<compile_context>
chip_gen: v5e
topology: v5e:2x2
jax: 0.10.0
libtpu: 0.0.40
codegen_flags: <defaults>
</compile_context>

<pallas_src>
import jax
import jax.numpy as jnp
from jax.experimental import pallas as pl
from jax.experimental.pallas import tpu as pltpu


# ----------------------------- Pallas kernels ------------------------------

def _conv_bn_pool_kernel(xp_ref, wb_ref, b_ref, sc_ref, sh_ref,
                         te_ref, to_ref, se_ref, so_ref, o_ref):
    """One fused layer for a single batch element (grid axis = batch).

    Shapes (per grid step):
      xp_ref: [1, H+2, (W+2)*Cin]    zero-padded NHWC rows, (w, ci) merged on lanes
      wb_ref: [3, (W+2)*Cin, W*Cout] banded 3x3 conv weight, one band per dy
      b/sc/sh: [1, W*Cout]           conv bias / BN scale / BN shift (tiled over w)
      te/to : [Ho, H]                even/odd row selection (H-pool + next-layer row pad)
      se/so : [W*Cout, Co]           even/odd col selection (W-pool + next-layer col pad)
      o_ref : [1, Ho, Co]
    """
    n_rows = te_ref.shape[1]                       # H
    acc = None
    for dy in range(3):                            # 3 banded matmuls == 3x3 'same' conv
        tap = xp_ref[0, pl.ds(dy, n_rows), :]      # [H, (W+2)*Cin]
        part = jnp.dot(tap, wb_ref[dy], preferred_element_type=jnp.float32)
        acc = part if acc is None else acc + part
    y = jnp.maximum(acc + b_ref[...], 0.0)         # conv bias + torch.relu
    y = y * sc_ref[...] + sh_ref[...]              # BatchNorm2d eval-mode affine
    # 2x2 max-pool: rows (H) then columns (W), via even/odd selection matmuls.
    hmax = jnp.maximum(
        jnp.dot(te_ref[...], y, preferred_element_type=jnp.float32),
        jnp.dot(to_ref[...], y, preferred_element_type=jnp.float32))
    out = jnp.maximum(
        jnp.dot(hmax, se_ref[...], preferred_element_type=jnp.float32),
        jnp.dot(hmax, so_ref[...], preferred_element_type=jnp.float32))
    o_ref[0] = out


def _mlp_kernel(x_ref, w1_ref, b1_ref, w2_ref, b2_ref, o_ref):
    """fc1 + ReLU + (dropout == identity in eval) + fc2, fused in one call."""
    h = jnp.dot(x_ref[...], w1_ref[...], preferred_element_type=jnp.float32)
    h = jnp.maximum(h + b1_ref[...], 0.0)
    # TODO(synk): nn.Dropout(0.5) is identity in eval mode; train-mode random
    # masking is not reproduced here.
    o_ref[...] = jnp.dot(h, w2_ref[...], preferred_element_type=jnp.float32) + b2_ref[...]


# ------------------------------ wrappers ------------------------------------

def conv_bn_pool(xp, layer):
    """xp: [N, H+2, (W+2)*Cin] -> [N, Ho, Co] (padded for the next layer,
    unpadded for the last layer)."""
    n, hp2, kin = xp.shape
    wb, te, to, se, so = (layer["wband"], layer["te"], layer["to"],
                          layer["se"], layer["so"])
    ho, co = te.shape[0], se.shape[1]
    wcout = se.shape[0]
    return pl.pallas_call(
        _conv_bn_pool_kernel,
        out_shape=jax.ShapeDtypeStruct((n, ho, co), jnp.float32),
        grid=(n,),
        in_specs=[
            pl.BlockSpec((1, hp2, kin), lambda i: (i, 0, 0)),   # per-sample input
            pl.BlockSpec(wb.shape, lambda i: (0, 0, 0)),        # banded conv weight
            pl.BlockSpec((1, wcout), lambda i: (0, 0)),         # bias (tiled over w)
            pl.BlockSpec((1, wcout), lambda i: (0, 0)),         # BN scale
            pl.BlockSpec((1, wcout), lambda i: (0, 0)),         # BN shift
            pl.BlockSpec(te.shape, lambda i: (0, 0)),           # pool row-select even
            pl.BlockSpec(to.shape, lambda i: (0, 0)),           # pool row-select odd
            pl.BlockSpec(se.shape, lambda i: (0, 0)),           # pool col-select even
            pl.BlockSpec(so.shape, lambda i: (0, 0)),           # pool col-select odd
        ],
        out_specs=pl.BlockSpec((1, ho, co), lambda i: (i, 0, 0)),
        compiler_params=pltpu.CompilerParams(
            dimension_semantics=("parallel",)),   # batch shards across TCs on v7x
    )(xp, wb, layer["bias"], layer["scale"], layer["shift"], te, to, se, so)


def mlp(x, fc):
    vspec = pl.BlockSpec(memory_space=pltpu.MemorySpace.VMEM)
    return pl.pallas_call(
        _mlp_kernel,
        out_shape=jax.ShapeDtypeStruct((x.shape[0], fc["w2"].shape[1]), jnp.float32),
        in_specs=[vspec] * 5,
        out_specs=vspec,
    )(x, fc["w1"], fc["b1"], fc["w2"], fc["b2"])


# --------------------------- parameter preparation --------------------------

def _banded_conv_weight(w_hwio, width):
    """[3,3,Cin,Cout] -> [3, (W+2)*Cin, W*Cout] banded GEMM weight (one band / dy)."""
    bands = []
    for dy in range(3):
        band = None
        for dx in range(3):
            sel = jnp.eye(width + 2, width, k=-dx, dtype=jnp.float32)  # row w+dx -> col w
            term = jnp.kron(sel, w_hwio[dy, dx])
            band = term if band is None else band + term
        bands.append(band)
    return jnp.stack(bands)


def _pool_row_select(height, pad_out):
    """Even/odd row-selection matrices for the 2x2 pool over H; when pad_out,
    they also emit the next layer's zero row padding."""
    hh = height // 2
    ho = hh + 2 if pad_out else hh
    rows = jnp.arange(ho)
    src = rows - 1 if pad_out else rows
    valid = (src >= 0) & (src < hh)
    src = jnp.clip(src, 0, hh - 1)
    cols = jnp.arange(height)
    te = ((cols[None, :] == 2 * src[:, None]) & valid[:, None]).astype(jnp.float32)
    to = ((cols[None, :] == 2 * src[:, None] + 1) & valid[:, None]).astype(jnp.float32)
    return te, to


def _pool_col_select(width, cout, pad_out):
    """Even/odd column-selection matrices for the 2x2 pool over W on a (w, c)
    merged lane axis; when pad_out, they also emit zero column padding."""
    wh = width // 2
    wo = wh + 2 if pad_out else wh
    j = jnp.arange(wo * cout)
    wdst, c = j // cout, j % cout
    src_w = wdst - 1 if pad_out else wdst
    valid = (src_w >= 0) & (src_w < wh)
    src_w = jnp.clip(src_w, 0, wh - 1)
    rows = jnp.arange(width * cout)
    se = ((rows[:, None] == (2 * src_w * cout + c)[None, :])
          & valid[None, :]).astype(jnp.float32)
    so = ((rows[:, None] == ((2 * src_w + 1) * cout + c)[None, :])
          & valid[None, :]).astype(jnp.float32)
    return se, so


def init_params(key):
    """Random parameters in a torch-like layout."""
    ks = jax.random.split(key, 16)
    p = {}
    chans = [(3, 16), (16, 32), (32, 64)]
    for li, (cin, cout) in enumerate(chans, start=1):
        k = iter(jax.random.split(ks[li], 6))
        p[f"w{li}"] = 0.1 * jax.random.normal(next(k), (3, 3, cin, cout), jnp.float32)
        p[f"b{li}"] = 0.1 * jax.random.normal(next(k), (cout,), jnp.float32)
        p[f"g{li}"] = 1.0 + 0.1 * jax.random.normal(next(k), (cout,), jnp.float32)
        p[f"beta{li}"] = 0.1 * jax.random.normal(next(k), (cout,), jnp.float32)
        p[f"mu{li}"] = 0.1 * jax.random.normal(next(k), (cout,), jnp.float32)
        p[f"var{li}"] = 0.5 + jax.random.uniform(next(k), (cout,), jnp.float32)
    p["fcw1"] = 0.05 * jax.random.normal(ks[10], (64 * 4 * 4, 512), jnp.float32)
    p["fcb1"] = 0.05 * jax.random.normal(ks[11], (512,), jnp.float32)
    p["fcw2"] = 0.05 * jax.random.normal(ks[12], (512, 10), jnp.float32)
    p["fcb2"] = 0.05 * jax.random.normal(ks[13], (10,), jnp.float32)
    return p


def prepare_params(p):
    """One-time preprocessing into the kernel-friendly layout."""
    spatial = [32, 16, 8]
    chans = [(3, 16), (16, 32), (32, 64)]
    out = {"layers": []}
    for li, ((cin, cout), width) in enumerate(zip(chans, spatial), start=1):
        last = li == 3
        scale = p[f"g{li}"] * jax.lax.rsqrt(p[f"var{li}"] + 1e-5)   # BN eval affine
        shift = p[f"beta{li}"] - p[f"mu{li}"] * scale
        te, to = _pool_row_select(width, pad_out=not last)
        se, so = _pool_col_select(width, cout, pad_out=not last)
        out["layers"].append({
            "wband": _banded_conv_weight(p[f"w{li}"], width),
            "bias": jnp.tile(p[f"b{li}"][None, :], (1, width)),
            "scale": jnp.tile(scale[None, :], (1, width)),
            "shift": jnp.tile(shift[None, :], (1, width)),
            "te": te, "to": to, "se": se, "so": so,
        })
    # Fold the NCHW flatten order into fc1: torch flattens (c, h, w); our
    # activation is flattened (h, w, c).  Permute fc1 rows once at prep time.
    c, hh, wh = 64, 4, 4
    perm = jnp.arange(c * hh * wh).reshape(c, hh, wh).transpose(1, 2, 0).reshape(-1)
    out["fc"] = {"w1": p["fcw1"][perm, :], "b1": p["fcb1"][None, :],
                 "w2": p["fcw2"], "b2": p["fcb2"][None, :]}
    return out


# ----------------------------- model forward --------------------------------

def cnn_forward(x_nchw, kp):
    n = x_nchw.shape[0]
    # NCHW -> NHWC, zero-pad H/W by 1 for the first 'same' conv, merge (w, c)
    # onto the lane axis.  (Subsequent layers get their padding from the
    # previous kernel's selection matrices — no wrapper pads between layers.)
    x = jnp.transpose(x_nchw, (0, 2, 3, 1)).astype(jnp.float32)
    xp = jnp.pad(x, ((0, 0), (1, 1), (1, 1), (0, 0)))
    xp = xp.reshape(n, x.shape[1] + 2, -1)
    for layer in kp["layers"]:
        xp = conv_bn_pool(xp, layer)        # fused conv+ReLU+BN+pool(+pad)
    x_flat = xp.reshape(n, -1)              # [N, 4*4*64], (h, w, c) order
    return mlp(x_flat, kp["fc"])


if __name__ == "__main__":
    key = jax.random.PRNGKey(0)
    kx, kparam = jax.random.split(key)
    # fc1 expects 64*4*4 features => spatial must be 32x32 (three 2x2 pools).
    x = jax.random.normal(kx, (2, 3, 32, 32), jnp.float32)        # NCHW like torch
    params = prepare_params(init_params(kparam))
    out = jax.jit(cnn_forward)(x, params)
    out = jax.block_until_ready(out)
    assert out.shape == (2, 10) and out.dtype == jnp.float32
    assert bool(jnp.all(jnp.isfinite(out)))
    print("KERNEL_OK")
</pallas_src>

<mosaic_0001>
module attributes {stable_mosaic.version = 11 : i64} {
  func.func @_conv_bn_pool_kernel(%arg0: i32, %arg1: memref<1x34x102xf32, #tpu.memory_space<vmem>>, %arg2: memref<3x102x512xf32, #tpu.memory_space<vmem>>, %arg3: memref<1x512xf32, #tpu.memory_space<vmem>>, %arg4: memref<1x512xf32, #tpu.memory_space<vmem>>, %arg5: memref<1x512xf32, #tpu.memory_space<vmem>>, %arg6: memref<18x32xf32, #tpu.memory_space<vmem>>, %arg7: memref<18x32xf32, #tpu.memory_space<vmem>>, %arg8: memref<512x288xf32, #tpu.memory_space<vmem>>, %arg9: memref<512x288xf32, #tpu.memory_space<vmem>>, %arg10: memref<1x18x288xf32, #tpu.memory_space<vmem>>) attributes {dimension_semantics = [#tpu.dimension_semantics<parallel>], iteration_bounds = array<i64: 2>, scalar_prefetch = 0 : i64, scratch_operands = 0 : i64, tpu.core_type = #tpu.core_type<tc>, window_params = [{transform_indices = @transform_0, window_bounds = array<i64: 1, 34, 102>}, {pipeline_mode = #tpu.pipeline_mode<synchronous>, transform_indices = @transform_1, window_bounds = array<i64: 3, 102, 512>}, {pipeline_mode = #tpu.pipeline_mode<synchronous>, transform_indices = @transform_2, window_bounds = array<i64: 1, 512>}, {pipeline_mode = #tpu.pipeline_mode<synchronous>, transform_indices = @transform_3, window_bounds = array<i64: 1, 512>}, {pipeline_mode = #tpu.pipeline_mode<synchronous>, transform_indices = @transform_4, window_bounds = array<i64: 1, 512>}, {pipeline_mode = #tpu.pipeline_mode<synchronous>, transform_indices = @transform_5, window_bounds = array<i64: 18, 32>}, {pipeline_mode = #tpu.pipeline_mode<synchronous>, transform_indices = @transform_6, window_bounds = array<i64: 18, 32>}, {pipeline_mode = #tpu.pipeline_mode<synchronous>, transform_indices = @transform_7, window_bounds = array<i64: 512, 288>}, {pipeline_mode = #tpu.pipeline_mode<synchronous>, transform_indices = @transform_8, window_bounds = array<i64: 512, 288>}, {transform_indices = @transform_9, window_bounds = array<i64: 1, 18, 288>}]} {
    %c0 = arith.constant 0 : index
    %c0_0 = arith.constant 0 : index
    %c0_1 = arith.constant 0 : index
    %0 = vector.load %arg1[%c0, %c0_0, %c0_1] : memref<1x34x102xf32, #tpu.memory_space<vmem>>, vector<1x32x102xf32>
    %1 = vector.shape_cast %0 : vector<1x32x102xf32> to vector<32x102xf32>
    %c0_2 = arith.constant 0 : index
    %c0_3 = arith.constant 0 : index
    %c0_4 = arith.constant 0 : index
    %2 = vector.load %arg2[%c0_2, %c0_3, %c0_4] : memref<3x102x512xf32, #tpu.memory_space<vmem>>, vector<1x102x512xf32>
    %3 = vector.shape_cast %2 : vector<1x102x512xf32> to vector<102x512xf32>
    %cst = arith.constant dense<0.000000e+00> : vector<32x512xf32>
    %4 = tpu.matmul %1, %3, %cst {dimension_numbers = #tpu.dot_dimension_numbers<[1], [0], [0], [1], [0, 0, 1, 1], [], []>} : vector<32x102xf32>, vector<102x512xf32>, vector<32x512xf32> -> vector<32x512xf32>
    %c0_5 = arith.constant 0 : index
    %c1 = arith.constant 1 : index
    %c0_6 = arith.constant 0 : index
    %5 = vector.load %arg1[%c0_5, %c1, %c0_6] : memref<1x34x102xf32, #tpu.memory_space<vmem>>, vector<1x32x102xf32>
    %6 = vector.shape_cast %5 : vector<1x32x102xf32> to vector<32x102xf32>
    %c1_7 = arith.constant 1 : index
    %c0_8 = arith.constant 0 : index
    %c0_9 = arith.constant 0 : index
    %7 = vector.load %arg2[%c1_7, %c0_8, %c0_9] : memref<3x102x512xf32, #tpu.memory_space<vmem>>, vector<1x102x512xf32>
    %8 = vector.shape_cast %7 : vector<1x102x512xf32> to vector<102x512xf32>
    %cst_10 = arith.constant dense<0.000000e+00> : vector<32x512xf32>
    %9 = tpu.matmul %6, %8, %cst_10 {dimension_numbers = #tpu.dot_dimension_numbers<[1], [0], [0], [1], [0, 0, 1, 1], [], []>} : vector<32x102xf32>, vector<102x512xf32>, vector<32x512xf32> -> vector<32x512xf32>
    %10 = arith.addf %4, %9 : vector<32x512xf32>
    %c0_11 = arith.constant 0 : index
    %c2 = arith.constant 2 : index
    %c0_12 = arith.constant 0 : index
    %11 = vector.load %arg1[%c0_11, %c2, %c0_12] : memref<1x34x102xf32, #tpu.memory_space<vmem>>, vector<1x32x102xf32>
    %12 = vector.shape_cast %11 : vector<1x32x102xf32> to vector<32x102xf32>
    %c2_13 = arith.constant 2 : index
    %c0_14 = arith.constant 0 : index
    %c0_15 = arith.constant 0 : index
    %13 = vector.load %arg2[%c2_13, %c0_14, %c0_15] : memref<3x102x512xf32, #tpu.memory_space<vmem>>, vector<1x102x512xf32>
    %14 = vector.shape_cast %13 : vector<1x102x512xf32> to vector<102x512xf32>
    %cst_16 = arith.constant dense<0.000000e+00> : vector<32x512xf32>
    %15 = tpu.matmul %12, %14, %cst_16 {dimension_numbers = #tpu.dot_dimension_numbers<[1], [0], [0], [1], [0, 0, 1, 1], [], []>} : vector<32x102xf32>, vector<102x512xf32>, vector<32x512xf32> -> vector<32x512xf32>
    %16 = arith.addf %10, %15 : vector<32x512xf32>
    %c0_17 = arith.constant 0 : index
    %c0_18 = arith.constant 0 : index
    %17 = vector.load %arg3[%c0_17, %c0_18] : memref<1x512xf32, #tpu.memory_space<vmem>>, vector<1x512xf32>
    %18 = vector.broadcast %17 : vector<1x512xf32> to vector<32x512xf32>
    %19 = arith.addf %16, %18 : vector<32x512xf32>
    %cst_19 = arith.constant 0.000000e+00 : f32
    %20 = vector.broadcast %cst_19 : f32 to vector<32x512xf32>
    %21 = arith.maximumf %19, %20 : vector<32x512xf32>
    %c0_20 = arith.constant 0 : index
    %c0_21 = arith.constant 0 : index
    %22 = vector.load %arg4[%c0_20, %c0_21] : memref<1x512xf32, #tpu.memory_space<vmem>>, vector<1x512xf32>
    %23 = vector.broadcast %22 : vector<1x512xf32> to vector<32x512xf32>
    %24 = arith.mulf %21, %23 : vector<32x512xf32>
    %c0_22 = arith.constant 0 : index
    %c0_23 = arith.constant 0 : index
    %25 = vector.load %arg5[%c0_22, %c0_23] : memref<1x512xf32, #tpu.memory_space<vmem>>, vector<1x512xf32>
    %26 = vector.broadcast %25 : vector<1x512xf32> to vector<32x512xf32>
    %27 = arith.addf %24, %26 : vector<32x512xf32>
    %c0_24 = arith.constant 0 : index
    %c0_25 = arith.constant 0 : index
    %28 = vector.load %arg6[%c0_24, %c0_25] : memref<18x32xf32, #tpu.memory_space<vmem>>, vector<18x32xf32>
    %cst_26 = arith.constant dense<0.000000e+00> : vector<18x512xf32>
    %29 = tpu.matmul %28, %27, %cst_26 {dimension_numbers = #tpu.dot_dimension_numbers<[1], [0], [0], [1], [0, 0, 1, 1], [], []>} : vector<18x32xf32>, vector<32x512xf32>, vector<18x512xf32> -> vector<18x512xf32>
    %c0_27 = arith.constant 0 : index
    %c0_28 = arith.constant 0 : index
    %30 = vector.load %arg7[%c0_27, %c0_28] : memref<18x32xf32, #tpu.memory_space<vmem>>, vector<18x32xf32>
    %cst_29 = arith.constant dense<0.000000e+00> : vector<18x512xf32>
    %31 = tpu.matmul %30, %27, %cst_29 {dimension_numbers = #tpu.dot_dimension_numbers<[1], [0], [0], [1], [0, 0, 1, 1], [], []>} : vector<18x32xf32>, vector<32x512xf32>, vector<18x512xf32> -> vector<18x512xf32>
    %32 = arith.maximumf %29, %31 : vector<18x512xf32>
    %c0_30 = arith.constant 0 : index
    %c0_31 = arith.constant 0 : index
    %33 = vector.load %arg8[%c0_30, %c0_31] : memref<512x288xf32, #tpu.memory_space<vmem>>, vector<512x288xf32>
    %cst_32 = arith.constant dense<0.000000e+00> : vector<18x288xf32>
    %34 = tpu.matmul %32, %33, %cst_32 {dimension_numbers = #tpu.dot_dimension_numbers<[1], [0], [0], [1], [0, 0, 1, 1], [], []>} : vector<18x512xf32>, vector<512x288xf32>, vector<18x288xf32> -> vector<18x288xf32>
    %c0_33 = arith.constant 0 : index
    %c0_34 = arith.constant 0 : index
    %35 = vector.load %arg9[%c0_33, %c0_34] : memref<512x288xf32, #tpu.memory_space<vmem>>, vector<512x288xf32>
    %cst_35 = arith.constant dense<0.000000e+00> : vector<18x288xf32>
    %36 = tpu.matmul %32, %35, %cst_35 {dimension_numbers = #tpu.dot_dimension_numbers<[1], [0], [0], [1], [0, 0, 1, 1], [], []>} : vector<18x512xf32>, vector<512x288xf32>, vector<18x288xf32> -> vector<18x288xf32>
    %37 = arith.maximumf %34, %36 : vector<18x288xf32>
    %c0_36 = arith.constant 0 : index
    %c0_37 = arith.constant 0 : index
    %c0_38 = arith.constant 0 : index
    %38 = vector.load %arg10[%c0_36, %c0_37, %c0_38] : memref<1x18x288xf32, #tpu.memory_space<vmem>>, vector<1x18x288xf32>
    %39 = vector.shape_cast %38 : vector<1x18x288xf32> to vector<18x288xf32>
    %40 = vector.shape_cast %37 : vector<18x288xf32> to vector<1x18x288xf32>
    tpu.vector_store %arg10[%c0_36, %c0_37, %c0_38], %40 {strides = array<i32>} : memref<1x18x288xf32, #tpu.memory_space<vmem>>, vector<1x18x288xf32>,
    return
  }
  func.func @transform_0(%arg0: i32) -> (i32, i32, i32) {
    %c0_i32 = arith.constant 0 : i32
    %c0_i32_0 = arith.constant 0 : i32
    %c0_i32_1 = arith.constant 0 : i32
    return %arg0, %c0_i32, %c0_i32_0 : i32, i32, i32
  }
  func.func @transform_1(%arg0: i32) -> (i32, i32, i32) {
    %c0_i32 = arith.constant 0 : i32
    %c0_i32_0 = arith.constant 0 : i32
    %c0_i32_1 = arith.constant 0 : i32
    %c0_i32_2 = arith.constant 0 : i32
    return %c0_i32, %c0_i32_0, %c0_i32_1 : i32, i32, i32
  }
  func.func @transform_2(%arg0: i32) -> (i32, i32) {
    %c0_i32 = arith.constant 0 : i32
    %c0_i32_0 = arith.constant 0 : i32
    %c0_i32_1 = arith.constant 0 : i32
    return %c0_i32, %c0_i32_0 : i32, i32
  }
  func.func @transform_3(%arg0: i32) -> (i32, i32) {
    %c0_i32 = arith.constant 0 : i32
    %c0_i32_0 = arith.constant 0 : i32
    %c0_i32_1 = arith.constant 0 : i32
    return %c0_i32, %c0_i32_0 : i32, i32
  }
  func.func @transform_4(%arg0: i32) -> (i32, i32) {
    %c0_i32 = arith.constant 0 : i32
    %c0_i32_0 = arith.constant 0 : i32
    %c0_i32_1 = arith.constant 0 : i32
    return %c0_i32, %c0_i32_0 : i32, i32
  }
  func.func @transform_5(%arg0: i32) -> (i32, i32) {
    %c0_i32 = arith.constant 0 : i32
    %c0_i32_0 = arith.constant 0 : i32
    %c0_i32_1 = arith.constant 0 : i32
    return %c0_i32, %c0_i32_0 : i32, i32
  }
  func.func @transform_6(%arg0: i32) -> (i32, i32) {
    %c0_i32 = arith.constant 0 : i32
    %c0_i32_0 = arith.constant 0 : i32
    %c0_i32_1 = arith.constant 0 : i32
    return %c0_i32, %c0_i32_0 : i32, i32
  }
  func.func @transform_7(%arg0: i32) -> (i32, i32) {
    %c0_i32 = arith.constant 0 : i32
    %c0_i32_0 = arith.constant 0 : i32
    %c0_i32_1 = arith.constant 0 : i32
    return %c0_i32, %c0_i32_0 : i32, i32
  }
  func.func @transform_8(%arg0: i32) -> (i32, i32) {
    %c0_i32 = arith.constant 0 : i32
    %c0_i32_0 = arith.constant 0 : i32
    %c0_i32_1 = arith.constant 0 : i32
    return %c0_i32, %c0_i32_0 : i32, i32
  }
  func.func @transform_9(%arg0: i32) -> (i32, i32, i32) {
    %c0_i32 = arith.constant 0 : i32
    %c0_i32_0 = arith.constant 0 : i32
    %c0_i32_1 = arith.constant 0 : i32
    return %arg0, %c0_i32, %c0_i32_0 : i32, i32, i32
  }
}

module attributes {stable_mosaic.version = 11 : i64} {
  func.func @_conv_bn_pool_kernel(%arg0: i32, %arg1: memref<1x18x288xf32, #tpu.memory_space<vmem>>, %arg2: memref<3x288x512xf32, #tpu.memory_space<vmem>>, %arg3: memref<1x512xf32, #tpu.memory_space<vmem>>, %arg4: memref<1x512xf32, #tpu.memory_space<vmem>>, %arg5: memref<1x512xf32, #tpu.memory_space<vmem>>, %arg6: memref<10x16xf32, #tpu.memory_space<vmem>>, %arg7: memref<10x16xf32, #tpu.memory_space<vmem>>, %arg8: memref<512x320xf32, #tpu.memory_space<vmem>>, %arg9: memref<512x320xf32, #tpu.memory_space<vmem>>, %arg10: memref<1x10x320xf32, #tpu.memory_space<vmem>>) attributes {dimension_semantics = [#tpu.dimension_semantics<parallel>], iteration_bounds = array<i64: 2>, scalar_prefetch = 0 : i64, scratch_operands = 0 : i64, tpu.core_type = #tpu.core_type<tc>, window_params = [{transform_indices = @transform_0, window_bounds = array<i64: 1, 18, 288>}, {pipeline_mode = #tpu.pipeline_mode<synchronous>, transform_indices = @transform_1, window_bounds = array<i64: 3, 288, 512>}, {pipeline_mode = #tpu.pipeline_mode<synchronous>, transform_indices = @transform_2, window_bounds = array<i64: 1, 512>}, {pipeline_mode = #tpu.pipeline_mode<synchronous>, transform_indices = @transform_3, window_bounds = array<i64: 1, 512>}, {pipeline_mode = #tpu.pipeline_mode<synchronous>, transform_indices = @transform_4, window_bounds = array<i64: 1, 512>}, {pipeline_mode = #tpu.pipeline_mode<synchronous>, transform_indices = @transform_5, window_bounds = array<i64: 10, 16>}, {pipeline_mode = #tpu.pipeline_mode<synchronous>, transform_indices = @transform_6, window_bounds = array<i64: 10, 16>}, {pipeline_mode = #tpu.pipeline_mode<synchronous>, transform_indices = @transform_7, window_bounds = array<i64: 512, 320>}, {pipeline_mode = #tpu.pipeline_mode<synchronous>, transform_indices = @transform_8, window_bounds = array<i64: 512, 320>}, {transform_indices = @transform_9, window_bounds = array<i64: 1, 10, 320>}]} {
    %c0 = arith.constant 0 : index
    %c0_0 = arith.constant 0 : index
    %c0_1 = arith.constant 0 : index
    %0 = vector.load %arg1[%c0, %c0_0, %c0_1] : memref<1x18x288xf32, #tpu.memory_space<vmem>>, vector<1x16x288xf32>
    %1 = vector.shape_cast %0 : vector<1x16x288xf32> to vector<16x288xf32>
    %c0_2 = arith.constant 0 : index
    %c0_3 = arith.constant 0 : index
    %c0_4 = arith.constant 0 : index
    %2 = vector.load %arg2[%c0_2, %c0_3, %c0_4] : memref<3x288x512xf32, #tpu.memory_space<vmem>>, vector<1x288x512xf32>
    %3 = vector.shape_cast %2 : vector<1x288x512xf32> to vector<288x512xf32>
    %cst = arith.constant dense<0.000000e+00> : vector<16x512xf32>
    %4 = tpu.matmul %1, %3, %cst {dimension_numbers = #tpu.dot_dimension_numbers<[1], [0], [0], [1], [0, 0, 1, 1], [], []>} : vector<16x288xf32>, vector<288x512xf32>, vector<16x512xf32> -> vector<16x512xf32>
    %c0_5 = arith.constant 0 : index
    %c1 = arith.constant 1 : index
    %c0_6 = arith.constant 0 : index
    %5 = vector.load %arg1[%c0_5, %c1, %c0_6] : memref<1x18x288xf32, #tpu.memory_space<vmem>>, vector<1x16x288xf32>
    %6 = vector.shape_cast %5 : vector<1x16x288xf32> to vector<16x288xf32>
    %c1_7 = arith.constant 1 : index
    %c0_8 = arith.constant 0 : index
    %c0_9 = arith.constant 0 : index
    %7 = vector.load %arg2[%c1_7, %c0_8, %c0_9] : memref<3x288x512xf32, #tpu.memory_space<vmem>>, vector<1x288x512xf32>
    %8 = vector.shape_cast %7 : vector<1x288x512xf32> to vector<288x512xf32>
    %cst_10 = arith.constant dense<0.000000e+00> : vector<16x512xf32>
    %9 = tpu.matmul %6, %8, %cst_10 {dimension_numbers = #tpu.dot_dimension_numbers<[1], [0], [0], [1], [0, 0, 1, 1], [], []>} : vector<16x288xf32>, vector<288x512xf32>, vector<16x512xf32> -> vector<16x512xf32>
    %10 = arith.addf %4, %9 : vector<16x512xf32>
    %c0_11 = arith.constant 0 : index
    %c2 = arith.constant 2 : index
    %c0_12 = arith.constant 0 : index
    %11 = vector.load %arg1[%c0_11, %c2, %c0_12] : memref<1x18x288xf32, #tpu.memory_space<vmem>>, vector<1x16x288xf32>
    %12 = vector.shape_cast %11 : vector<1x16x288xf32> to vector<16x288xf32>
    %c2_13 = arith.constant 2 : index
    %c0_14 = arith.constant 0 : index
    %c0_15 = arith.constant 0 : index
    %13 = vector.load %arg2[%c2_13, %c0_14, %c0_15] : memref<3x288x512xf32, #tpu.memory_space<vmem>>, vector<1x288x512xf32>
    %14 = vector.shape_cast %13 : vector<1x288x512xf32> to vector<288x512xf32>
    %cst_16 = arith.constant dense<0.000000e+00> : vector<16x512xf32>
    %15 = tpu.matmul %12, %14, %cst_16 {dimension_numbers = #tpu.dot_dimension_numbers<[1], [0], [0], [1], [0, 0, 1, 1], [], []>} : vector<16x288xf32>, vector<288x512xf32>, vector<16x512xf32> -> vector<16x512xf32>
    %16 = arith.addf %10, %15 : vector<16x512xf32>
    %c0_17 = arith.constant 0 : index
    %c0_18 = arith.constant 0 : index
    %17 = vector.load %arg3[%c0_17, %c0_18] : memref<1x512xf32, #tpu.memory_space<vmem>>, vector<1x512xf32>
    %18 = vector.broadcast %17 : vector<1x512xf32> to vector<16x512xf32>
    %19 = arith.addf %16, %18 : vector<16x512xf32>
    %cst_19 = arith.constant 0.000000e+00 : f32
    %20 = vector.broadcast %cst_19 : f32 to vector<16x512xf32>
    %21 = arith.maximumf %19, %20 : vector<16x512xf32>
    %c0_20 = arith.constant 0 : index
    %c0_21 = arith.constant 0 : index
    %22 = vector.load %arg4[%c0_20, %c0_21] : memref<1x512xf32, #tpu.memory_space<vmem>>, vector<1x512xf32>
    %23 = vector.broadcast %22 : vector<1x512xf32> to vector<16x512xf32>
    %24 = arith.mulf %21, %23 : vector<16x512xf32>
    %c0_22 = arith.constant 0 : index
    %c0_23 = arith.constant 0 : index
    %25 = vector.load %arg5[%c0_22, %c0_23] : memref<1x512xf32, #tpu.memory_space<vmem>>, vector<1x512xf32>
    %26 = vector.broadcast %25 : vector<1x512xf32> to vector<16x512xf32>
    %27 = arith.addf %24, %26 : vector<16x512xf32>
    %c0_24 = arith.constant 0 : index
    %c0_25 = arith.constant 0 : index
    %28 = vector.load %arg6[%c0_24, %c0_25] : memref<10x16xf32, #tpu.memory_space<vmem>>, vector<10x16xf32>
    %cst_26 = arith.constant dense<0.000000e+00> : vector<10x512xf32>
    %29 = tpu.matmul %28, %27, %cst_26 {dimension_numbers = #tpu.dot_dimension_numbers<[1], [0], [0], [1], [0, 0, 1, 1], [], []>} : vector<10x16xf32>, vector<16x512xf32>, vector<10x512xf32> -> vector<10x512xf32>
    %c0_27 = arith.constant 0 : index
    %c0_28 = arith.constant 0 : index
    %30 = vector.load %arg7[%c0_27, %c0_28] : memref<10x16xf32, #tpu.memory_space<vmem>>, vector<10x16xf32>
    %cst_29 = arith.constant dense<0.000000e+00> : vector<10x512xf32>
    %31 = tpu.matmul %30, %27, %cst_29 {dimension_numbers = #tpu.dot_dimension_numbers<[1], [0], [0], [1], [0, 0, 1, 1], [], []>} : vector<10x16xf32>, vector<16x512xf32>, vector<10x512xf32> -> vector<10x512xf32>
    %32 = arith.maximumf %29, %31 : vector<10x512xf32>
    %c0_30 = arith.constant 0 : index
    %c0_31 = arith.constant 0 : index
    %33 = vector.load %arg8[%c0_30, %c0_31] : memref<512x320xf32, #tpu.memory_space<vmem>>, vector<512x320xf32>
    %cst_32 = arith.constant dense<0.000000e+00> : vector<10x320xf32>
    %34 = tpu.matmul %32, %33, %cst_32 {dimension_numbers = #tpu.dot_dimension_numbers<[1], [0], [0], [1], [0, 0, 1, 1], [], []>} : vector<10x512xf32>, vector<512x320xf32>, vector<10x320xf32> -> vector<10x320xf32>
    %c0_33 = arith.constant 0 : index
    %c0_34 = arith.constant 0 : index
    %35 = vector.load %arg9[%c0_33, %c0_34] : memref<512x320xf32, #tpu.memory_space<vmem>>, vector<512x320xf32>
    %cst_35 = arith.constant dense<0.000000e+00> : vector<10x320xf32>
    %36 = tpu.matmul %32, %35, %cst_35 {dimension_numbers = #tpu.dot_dimension_numbers<[1], [0], [0], [1], [0, 0, 1, 1], [], []>} : vector<10x512xf32>, vector<512x320xf32>, vector<10x320xf32> -> vector<10x320xf32>
    %37 = arith.maximumf %34, %36 : vector<10x320xf32>
    %c0_36 = arith.constant 0 : index
    %c0_37 = arith.constant 0 : index
    %c0_38 = arith.constant 0 : index
    %38 = vector.load %arg10[%c0_36, %c0_37, %c0_38] : memref<1x10x320xf32, #tpu.memory_space<vmem>>, vector<1x10x320xf32>
    %39 = vector.shape_cast %38 : vector<1x10x320xf32> to vector<10x320xf32>
    %40 = vector.shape_cast %37 : vector<10x320xf32> to vector<1x10x320xf32>
    tpu.vector_store %arg10[%c0_36, %c0_37, %c0_38], %40 {strides = array<i32>} : memref<1x10x320xf32, #tpu.memory_space<vmem>>, vector<1x10x320xf32>,
    return
  }
  func.func @transform_0(%arg0: i32) -> (i32, i32, i32) {
    %c0_i32 = arith.constant 0 : i32
    %c0_i32_0 = arith.constant 0 : i32
    %c0_i32_1 = arith.constant 0 : i32
    return %arg0, %c0_i32, %c0_i32_0 : i32, i32, i32
  }
  func.func @transform_1(%arg0: i32) -> (i32, i32, i32) {
    %c0_i32 = arith.constant 0 : i32
    %c0_i32_0 = arith.constant 0 : i32
    %c0_i32_1 = arith.constant 0 : i32
    %c0_i32_2 = arith.constant 0 : i32
    return %c0_i32, %c0_i32_0, %c0_i32_1 : i32, i32, i32
  }
  func.func @transform_2(%arg0: i32) -> (i32, i32) {
    %c0_i32 = arith.constant 0 : i32
    %c0_i32_0 = arith.constant 0 : i32
    %c0_i32_1 = arith.constant 0 : i32
    return %c0_i32, %c0_i32_0 : i32, i32
  }
  func.func @transform_3(%arg0: i32) -> (i32, i32) {
    %c0_i32 = arith.constant 0 : i32
    %c0_i32_0 = arith.constant 0 : i32
    %c0_i32_1 = arith.constant 0 : i32
    return %c0_i32, %c0_i32_0 : i32, i32
  }
  func.func @transform_4(%arg0: i32) -> (i32, i32) {
    %c0_i32 = arith.constant 0 : i32
    %c0_i32_0 = arith.constant 0 : i32
    %c0_i32_1 = arith.constant 0 : i32
    return %c0_i32, %c0_i32_0 : i32, i32
  }
  func.func @transform_5(%arg0: i32) -> (i32, i32) {
    %c0_i32 = arith.constant 0 : i32
    %c0_i32_0 = arith.constant 0 : i32
    %c0_i32_1 = arith.constant 0 : i32
    return %c0_i32, %c0_i32_0 : i32, i32
  }
  func.func @transform_6(%arg0: i32) -> (i32, i32) {
    %c0_i32 = arith.constant 0 : i32
    %c0_i32_0 = arith.constant 0 : i32
    %c0_i32_1 = arith.constant 0 : i32
    return %c0_i32, %c0_i32_0 : i32, i32
  }
  func.func @transform_7(%arg0: i32) -> (i32, i32) {
    %c0_i32 = arith.constant 0 : i32
    %c0_i32_0 = arith.constant 0 : i32
    %c0_i32_1 = arith.constant 0 : i32
    return %c0_i32, %c0_i32_0 : i32, i32
  }
  func.func @transform_8(%arg0: i32) -> (i32, i32) {
    %c0_i32 = arith.constant 0 : i32
    %c0_i32_0 = arith.constant 0 : i32
    %c0_i32_1 = arith.constant 0 : i32
    return %c0_i32, %c0_i32_0 : i32, i32
  }
  func.func @transform_9(%arg0: i32) -> (i32, i32, i32) {
    %c0_i32 = arith.constant 0 : i32
    %c0_i32_0 = arith.constant 0 : i32
    %c0_i32_1 = arith.constant 0 : i32
    return %arg0, %c0_i32, %c0_i32_0 : i32, i32, i32
  }
}

module attributes {stable_mosaic.version = 11 : i64} {
  func.func @_conv_bn_pool_kernel(%arg0: i32, %arg1: memref<1x10x320xf32, #tpu.memory_space<vmem>>, %arg2: memref<3x320x512xf32, #tpu.memory_space<vmem>>, %arg3: memref<1x512xf32, #tpu.memory_space<vmem>>, %arg4: memref<1x512xf32, #tpu.memory_space<vmem>>, %arg5: memref<1x512xf32, #tpu.memory_space<vmem>>, %arg6: memref<4x8xf32, #tpu.memory_space<vmem>>, %arg7: memref<4x8xf32, #tpu.memory_space<vmem>>, %arg8: memref<512x256xf32, #tpu.memory_space<vmem>>, %arg9: memref<512x256xf32, #tpu.memory_space<vmem>>, %arg10: memref<1x4x256xf32, #tpu.memory_space<vmem>>) attributes {dimension_semantics = [#tpu.dimension_semantics<parallel>], iteration_bounds = array<i64: 2>, scalar_prefetch = 0 : i64, scratch_operands = 0 : i64, tpu.core_type = #tpu.core_type<tc>, window_params = [{transform_indices = @transform_0, window_bounds = array<i64: 1, 10, 320>}, {pipeline_mode = #tpu.pipeline_mode<synchronous>, transform_indices = @transform_1, window_bounds = array<i64: 3, 320, 512>}, {pipeline_mode = #tpu.pipeline_mode<synchronous>, transform_indices = @transform_2, window_bounds = array<i64: 1, 512>}, {pipeline_mode = #tpu.pipeline_mode<synchronous>, transform_indices = @transform_3, window_bounds = array<i64: 1, 512>}, {pipeline_mode = #tpu.pipeline_mode<synchronous>, transform_indices = @transform_4, window_bounds = array<i64: 1, 512>}, {pipeline_mode = #tpu.pipeline_mode<synchronous>, transform_indices = @transform_5, window_bounds = array<i64: 4, 8>}, {pipeline_mode = #tpu.pipeline_mode<synchronous>, transform_indices = @transform_6, window_bounds = array<i64: 4, 8>}, {pipeline_mode = #tpu.pipeline_mode<synchronous>, transform_indices = @transform_7, window_bounds = array<i64: 512, 256>}, {pipeline_mode = #tpu.pipeline_mode<synchronous>, transform_indices = @transform_8, window_bounds = array<i64: 512, 256>}, {transform_indices = @transform_9, window_bounds = array<i64: 1, 4, 256>}]} {
    %c0 = arith.constant 0 : index
    %c0_0 = arith.constant 0 : index
    %c0_1 = arith.constant 0 : index
    %0 = vector.load %arg1[%c0, %c0_0, %c0_1] : memref<1x10x320xf32, #tpu.memory_space<vmem>>, vector<1x8x320xf32>
    %1 = vector.shape_cast %0 : vector<1x8x320xf32> to vector<8x320xf32>
    %c0_2 = arith.constant 0 : index
    %c0_3 = arith.constant 0 : index
    %c0_4 = arith.constant 0 : index
    %2 = vector.load %arg2[%c0_2, %c0_3, %c0_4] : memref<3x320x512xf32, #tpu.memory_space<vmem>>, vector<1x320x512xf32>
    %3 = vector.shape_cast %2 : vector<1x320x512xf32> to vector<320x512xf32>
    %cst = arith.constant dense<0.000000e+00> : vector<8x512xf32>
    %4 = tpu.matmul %1, %3, %cst {dimension_numbers = #tpu.dot_dimension_numbers<[1], [0], [0], [1], [0, 0, 1, 1], [], []>} : vector<8x320xf32>, vector<320x512xf32>, vector<8x512xf32> -> vector<8x512xf32>
    %c0_5 = arith.constant 0 : index
    %c1 = arith.constant 1 : index
    %c0_6 = arith.constant 0 : index
    %5 = vector.load %arg1[%c0_5, %c1, %c0_6] : memref<1x10x320xf32, #tpu.memory_space<vmem>>, vector<1x8x320xf32>
    %6 = vector.shape_cast %5 : vector<1x8x320xf32> to vector<8x320xf32>
    %c1_7 = arith.constant 1 : index
    %c0_8 = arith.constant 0 : index
    %c0_9 = arith.constant 0 : index
    %7 = vector.load %arg2[%c1_7, %c0_8, %c0_9] : memref<3x320x512xf32, #tpu.memory_space<vmem>>, vector<1x320x512xf32>
    %8 = vector.shape_cast %7 : vector<1x320x512xf32> to vector<320x512xf32>
    %cst_10 = arith.constant dense<0.000000e+00> : vector<8x512xf32>
    %9 = tpu.matmul %6, %8, %cst_10 {dimension_numbers = #tpu.dot_dimension_numbers<[1], [0], [0], [1], [0, 0, 1, 1], [], []>} : vector<8x320xf32>, vector<320x512xf32>, vector<8x512xf32> -> vector<8x512xf32>
    %10 = arith.addf %4, %9 : vector<8x512xf32>
    %c0_11 = arith.constant 0 : index
    %c2 = arith.constant 2 : index
    %c0_12 = arith.constant 0 : index
    %11 = vector.load %arg1[%c0_11, %c2, %c0_12] : memref<1x10x320xf32, #tpu.memory_space<vmem>>, vector<1x8x320xf32>
    %12 = vector.shape_cast %11 : vector<1x8x320xf32> to vector<8x320xf32>
    %c2_13 = arith.constant 2 : index
    %c0_14 = arith.constant 0 : index
    %c0_15 = arith.constant 0 : index
    %13 = vector.load %arg2[%c2_13, %c0_14, %c0_15] : memref<3x320x512xf32, #tpu.memory_space<vmem>>, vector<1x320x512xf32>
    %14 = vector.shape_cast %13 : vector<1x320x512xf32> to vector<320x512xf32>
    %cst_16 = arith.constant dense<0.000000e+00> : vector<8x512xf32>
    %15 = tpu.matmul %12, %14, %cst_16 {dimension_numbers = #tpu.dot_dimension_numbers<[1], [0], [0], [1], [0, 0, 1, 1], [], []>} : vector<8x320xf32>, vector<320x512xf32>, vector<8x512xf32> -> vector<8x512xf32>
    %16 = arith.addf %10, %15 : vector<8x512xf32>
    %c0_17 = arith.constant 0 : index
    %c0_18 = arith.constant 0 : index
    %17 = vector.load %arg3[%c0_17, %c0_18] : memref<1x512xf32, #tpu.memory_space<vmem>>, vector<1x512xf32>
    %18 = vector.broadcast %17 : vector<1x512xf32> to vector<8x512xf32>
    %19 = arith.addf %16, %18 : vector<8x512xf32>
    %cst_19 = arith.constant 0.000000e+00 : f32
    %20 = vector.broadcast %cst_19 : f32 to vector<8x512xf32>
    %21 = arith.maximumf %19, %20 : vector<8x512xf32>
    %c0_20 = arith.constant 0 : index
    %c0_21 = arith.constant 0 : index
    %22 = vector.load %arg4[%c0_20, %c0_21] : memref<1x512xf32, #tpu.memory_space<vmem>>, vector<1x512xf32>
    %23 = vector.broadcast %22 : vector<1x512xf32> to vector<8x512xf32>
    %24 = arith.mulf %21, %23 : vector<8x512xf32>
    %c0_22 = arith.constant 0 : index
    %c0_23 = arith.constant 0 : index
    %25 = vector.load %arg5[%c0_22, %c0_23] : memref<1x512xf32, #tpu.memory_space<vmem>>, vector<1x512xf32>
    %26 = vector.broadcast %25 : vector<1x512xf32> to vector<8x512xf32>
    %27 = arith.addf %24, %26 : vector<8x512xf32>
    %c0_24 = arith.constant 0 : index
    %c0_25 = arith.constant 0 : index
    %28 = vector.load %arg6[%c0_24, %c0_25] : memref<4x8xf32, #tpu.memory_space<vmem>>, vector<4x8xf32>
    %cst_26 = arith.constant dense<0.000000e+00> : vector<4x512xf32>
    %29 = tpu.matmul %28, %27, %cst_26 {dimension_numbers = #tpu.dot_dimension_numbers<[1], [0], [0], [1], [0, 0, 1, 1], [], []>} : vector<4x8xf32>, vector<8x512xf32>, vector<4x512xf32> -> vector<4x512xf32>
    %c0_27 = arith.constant 0 : index
    %c0_28 = arith.constant 0 : index
    %30 = vector.load %arg7[%c0_27, %c0_28] : memref<4x8xf32, #tpu.memory_space<vmem>>, vector<4x8xf32>
    %cst_29 = arith.constant dense<0.000000e+00> : vector<4x512xf32>
    %31 = tpu.matmul %30, %27, %cst_29 {dimension_numbers = #tpu.dot_dimension_numbers<[1], [0], [0], [1], [0, 0, 1, 1], [], []>} : vector<4x8xf32>, vector<8x512xf32>, vector<4x512xf32> -> vector<4x512xf32>
    %32 = arith.maximumf %29, %31 : vector<4x512xf32>
    %c0_30 = arith.constant 0 : index
    %c0_31 = arith.constant 0 : index
    %33 = vector.load %arg8[%c0_30, %c0_31] : memref<512x256xf32, #tpu.memory_space<vmem>>, vector<512x256xf32>
    %cst_32 = arith.constant dense<0.000000e+00> : vector<4x256xf32>
    %34 = tpu.matmul %32, %33, %cst_32 {dimension_numbers = #tpu.dot_dimension_numbers<[1], [0], [0], [1], [0, 0, 1, 1], [], []>} : vector<4x512xf32>, vector<512x256xf32>, vector<4x256xf32> -> vector<4x256xf32>
    %c0_33 = arith.constant 0 : index
    %c0_34 = arith.constant 0 : index
    %35 = vector.load %arg9[%c0_33, %c0_34] : memref<512x256xf32, #tpu.memory_space<vmem>>, vector<512x256xf32>
    %cst_35 = arith.constant dense<0.000000e+00> : vector<4x256xf32>
    %36 = tpu.matmul %32, %35, %cst_35 {dimension_numbers = #tpu.dot_dimension_numbers<[1], [0], [0], [1], [0, 0, 1, 1], [], []>} : vector<4x512xf32>, vector<512x256xf32>, vector<4x256xf32> -> vector<4x256xf32>
    %37 = arith.maximumf %34, %36 : vector<4x256xf32>
    %c0_36 = arith.constant 0 : index
    %c0_37 = arith.constant 0 : index
    %c0_38 = arith.constant 0 : index
    %38 = vector.load %arg10[%c0_36, %c0_37, %c0_38] : memref<1x4x256xf32, #tpu.memory_space<vmem>>, vector<1x4x256xf32>
    %39 = vector.shape_cast %38 : vector<1x4x256xf32> to vector<4x256xf32>
    %40 = vector.shape_cast %37 : vector<4x256xf32> to vector<1x4x256xf32>
    tpu.vector_store %arg10[%c0_36, %c0_37, %c0_38], %40 {strides = array<i32>} : memref<1x4x256xf32, #tpu.memory_space<vmem>>, vector<1x4x256xf32>,
    return
  }
  func.func @transform_0(%arg0: i32) -> (i32, i32, i32) {
    %c0_i32 = arith.constant 0 : i32
    %c0_i32_0 = arith.constant 0 : i32
    %c0_i32_1 = arith.constant 0 : i32
    return %arg0, %c0_i32, %c0_i32_0 : i32, i32, i32
  }
  func.func @transform_1(%arg0: i32) -> (i32, i32, i32) {
    %c0_i32 = arith.constant 0 : i32
    %c0_i32_0 = arith.constant 0 : i32
    %c0_i32_1 = arith.constant 0 : i32
    %c0_i32_2 = arith.constant 0 : i32
    return %c0_i32, %c0_i32_0, %c0_i32_1 : i32, i32, i32
  }
  func.func @transform_2(%arg0: i32) -> (i32, i32) {
    %c0_i32 = arith.constant 0 : i32
    %c0_i32_0 = arith.constant 0 : i32
    %c0_i32_1 = arith.constant 0 : i32
    return %c0_i32, %c0_i32_0 : i32, i32
  }
  func.func @transform_3(%arg0: i32) -> (i32, i32) {
    %c0_i32 = arith.constant 0 : i32
    %c0_i32_0 = arith.constant 0 : i32
    %c0_i32_1 = arith.constant 0 : i32
    return %c0_i32, %c0_i32_0 : i32, i32
  }
  func.func @transform_4(%arg0: i32) -> (i32, i32) {
    %c0_i32 = arith.constant 0 : i32
    %c0_i32_0 = arith.constant 0 : i32
    %c0_i32_1 = arith.constant 0 : i32
    return %c0_i32, %c0_i32_0 : i32, i32
  }
  func.func @transform_5(%arg0: i32) -> (i32, i32) {
    %c0_i32 = arith.constant 0 : i32
    %c0_i32_0 = arith.constant 0 : i32
    %c0_i32_1 = arith.constant 0 : i32
    return %c0_i32, %c0_i32_0 : i32, i32
  }
  func.func @transform_6(%arg0: i32) -> (i32, i32) {
    %c0_i32 = arith.constant 0 : i32
    %c0_i32_0 = arith.constant 0 : i32
    %c0_i32_1 = arith.constant 0 : i32
    return %c0_i32, %c0_i32_0 : i32, i32
  }
  func.func @transform_7(%arg0: i32) -> (i32, i32) {
    %c0_i32 = arith.constant 0 : i32
    %c0_i32_0 = arith.constant 0 : i32
    %c0_i32_1 = arith.constant 0 : i32
    return %c0_i32, %c0_i32_0 : i32, i32
  }
  func.func @transform_8(%arg0: i32) -> (i32, i32) {
    %c0_i32 = arith.constant 0 : i32
    %c0_i32_0 = arith.constant 0 : i32
    %c0_i32_1 = arith.constant 0 : i32
    return %c0_i32, %c0_i32_0 : i32, i32
  }
  func.func @transform_9(%arg0: i32) -> (i32, i32, i32) {
    %c0_i32 = arith.constant 0 : i32
    %c0_i32_0 = arith.constant 0 : i32
    %c0_i32_1 = arith.constant 0 : i32
    return %arg0, %c0_i32, %c0_i32_0 : i32, i32, i32
  }
}

module attributes {stable_mosaic.version = 11 : i64} {
  func.func @_mlp_kernel(%arg0: memref<2x1024xf32, #tpu.memory_space<vmem>>, %arg1: memref<1024x512xf32, #tpu.memory_space<vmem>>, %arg2: memref<1x512xf32, #tpu.memory_space<vmem>>, %arg3: memref<512x10xf32, #tpu.memory_space<vmem>>, %arg4: memref<1x10xf32, #tpu.memory_space<vmem>>, %arg5: memref<2x10xf32, #tpu.memory_space<vmem>>) attributes {dimension_semantics = [], scalar_prefetch = 0 : i64, scratch_operands = 0 : i64, tpu.core_type = #tpu.core_type<tc>} {
    %c0 = arith.constant 0 : index
    %c0_0 = arith.constant 0 : index
    %0 = vector.load %arg0[%c0, %c0_0] : memref<2x1024xf32, #tpu.memory_space<vmem>>, vector<2x1024xf32>
    %c0_1 = arith.constant 0 : index
    %c0_2 = arith.constant 0 : index
    %1 = vector.load %arg1[%c0_1, %c0_2] : memref<1024x512xf32, #tpu.memory_space<vmem>>, vector<1024x512xf32>
    %cst = arith.constant dense<0.000000e+00> : vector<2x512xf32>
    %2 = tpu.matmul %0, %1, %cst {dimension_numbers = #tpu.dot_dimension_numbers<[1], [0], [0], [1], [0, 0, 1, 1], [], []>} : vector<2x1024xf32>, vector<1024x512xf32>, vector<2x512xf32> -> vector<2x512xf32>
    %c0_3 = arith.constant 0 : index
    %c0_4 = arith.constant 0 : index
    %3 = vector.load %arg2[%c0_3, %c0_4] : memref<1x512xf32, #tpu.memory_space<vmem>>, vector<1x512xf32>
    %4 = vector.broadcast %3 : vector<1x512xf32> to vector<2x512xf32>
    %5 = arith.addf %2, %4 : vector<2x512xf32>
    %cst_5 = arith.constant 0.000000e+00 : f32
    %6 = vector.broadcast %cst_5 : f32 to vector<2x512xf32>
    %7 = arith.maximumf %5, %6 : vector<2x512xf32>
    %c0_6 = arith.constant 0 : index
    %c0_7 = arith.constant 0 : index
    %8 = vector.load %arg3[%c0_6, %c0_7] : memref<512x10xf32, #tpu.memory_space<vmem>>, vector<512x10xf32>
    %cst_8 = arith.constant dense<0.000000e+00> : vector<2x10xf32>
    %9 = tpu.matmul %7, %8, %cst_8 {dimension_numbers = #tpu.dot_dimension_numbers<[1], [0], [0], [1], [0, 0, 1, 1], [], []>} : vector<2x512xf32>, vector<512x10xf32>, vector<2x10xf32> -> vector<2x10xf32>
    %c0_9 = arith.constant 0 : index
    %c0_10 = arith.constant 0 : index
    %10 = vector.load %arg4[%c0_9, %c0_10] : memref<1x10xf32, #tpu.memory_space<vmem>>, vector<1x10xf32>
    %11 = vector.broadcast %10 : vector<1x10xf32> to vector<2x10xf32>
    %12 = arith.addf %9, %11 : vector<2x10xf32>
    %c0_11 = arith.constant 0 : index
    %c0_12 = arith.constant 0 : index
    %13 = vector.load %arg5[%c0_11, %c0_12] : memref<2x10xf32, #tpu.memory_space<vmem>>, vector<2x10xf32>
    tpu.vector_store %arg5[%c0_11, %c0_12], %12 {strides = array<i32>} : memref<2x10xf32, #tpu.memory_space<vmem>>, vector<2x10xf32>,
    return
  }
}

</mosaic_0001>

<llo_original>
// kernel: cnn_forward.4
$region0: #{cnn_forward.4}
  #allocation0 [shape = 'u32[]', space=smem, size = 0x4, offset = 0x4, fixed_abs, tag = 'smem constant byte address 0x4 - core index']
  #allocation1 [shape = 'u32[72,128]{1,0:T(1,128)}', space=vmem, size = 0x9000, scoped, tag = 'internal scratch']
  %s0 = inlined_call_operand.vmem [shape: f32[2,34,102], index: 0, kind: input, shape index: {}]
  %s1 = inlined_call_operand.hbm [shape: f32[3,102,512], index: 1, kind: input, shape index: {}]
  %s2 = inlined_call_operand.vmem [shape: f32[1,512], index: 2, kind: input, shape index: {}]
  %s3 = inlined_call_operand.vmem [shape: f32[1,512], index: 3, kind: input, shape index: {}]
  %s4 = inlined_call_operand.vmem [shape: f32[1,512], index: 4, kind: input, shape index: {}]
  %s5 = inlined_call_operand.vmem [shape: f32[18,32], index: 5, kind: input, shape index: {}]
  %s6 = inlined_call_operand.vmem [shape: f32[18,32], index: 6, kind: input, shape index: {}]
  %s7 = inlined_call_operand.vmem [shape: f32[512,288], index: 7, kind: input, shape index: {}]
  %s8 = inlined_call_operand.vmem [shape: f32[512,288], index: 8, kind: input, shape index: {}]
  %s9 = inlined_call_operand.vmem [shape: f32[2,18,288], index: 9, kind: output, shape index: {}]
  %s10 = sld [smem:[#allocation0]]
  $region73: #{cnn_forward.4} parent=0
    _
  %s12 = ssub.s32 1, %s10
  %s13 = scalar_select 0, %s12, %s10
  $region1: #{cnn_forward.4} parent=0
    #allocation2 [shape = 'u8[638976]{0}', space=vmem, size = 0x9c000, scoped, tag = 'input window, operand 1, single buffered']
    #allocation3 [shape = 's32[2]{0}', space=sflag, size = 0x8, scoped, tag = 'scoped memory for cnn_forward.4']
    %14 = vsyncpa [#allocation3], 0
    loop: start=0, step=1, limit=4
    $region2: #{cnn_forward.4} parent=1 // loop_pre_header
      _
    $region3: #{cnn_forward.4} parent=1 // loop_header
      %s16 = sphi 0, %s20
      %p17 = scmp.ge.s32.totalorder %s16, 4
      %s26 = sphi 0, %s28
      %s29 = sphi 0, %s26
      %s30 = sphi 0, %s29
      %s46 = sphi 0, %s30
      %s50 = sphi 0, %s50
      %s52 = sphi 0, %s50
      %s53 = sphi 0, %s52
      %s67 = sphi 0, %s53
      %s71 = sphi 0, %s71
      %s73 = sphi 0, %s71
      %s74 = sphi 0, %s73
      %s88 = sphi 0, %s74
      %s92 = sphi 0, %s92
      %s94 = sphi 0, %s92
      %s95 = sphi 0, %s94
      %s109 = sphi 0, %s95
      %s113 = sphi 0, %s113
      %s115 = sphi 0, %s113
      %s116 = sphi 0, %s115
      %s130 = sphi 0, %s116
      %s134 = sphi 0, %s134
      %s136 = sphi 0, %s134
      %s137 = sphi 0, %s136
      %s151 = sphi 0, %s137
      %s155 = sphi 0, %s155
      %s157 = sphi 0, %s155
      %s158 = sphi 0, %s157
      %s172 = sphi 0, %s158
      %s176 = sphi 0, %s176
      %s178 = sphi 0, %s176
      %s179 = sphi 0, %s178
      %s193 = sphi 0, %s179
      %s197 = sphi 0, %s197
      %s199 = sphi 0, %s197
      %s200 = sphi 0, %s199
      %s214 = sphi 0, %s200
      %s220 = sphi 0, %s222
      %s223 = sphi 0, %s220
      %s224 = sphi 0, %s223
      %s240 = sphi 0, %s224
    $region4: #{cnn_forward.4} parent=1 // loop_header_branch
      %19 = sbr.rel (%p17) target = $region8
    $region5: #{cnn_forward.4} parent=1 // loop_body
      %s21 = ssub.s32 %s16, 1
      %s22 = ssub.s32 %s16, 2
      %s23 = sadd.s32 %s16, 1
      %s24 = ssub.s32 %s16, %s23
      %p25 = scmp.eq.s32.totalorder %s24, 0
      %s27 = sadd.s32 %s26, 1
      %s28 = scalar_select %p25, %s26, %s27
      %p31 = pneg %p25
      %p32 = scmp.eq.s32.totalorder %s16, 1
      %p33 = por %p31, %p32
      %p34 = scmp.ne.s32.totalorder %s26, %s29
      %p35 = scmp.eq.s32.totalorder %s16, 0
      %p36 = por %p34, %p35
      %p37 = scmp.ne.s32.totalorder %s26, %s29
      %p38 = scmp.eq.s32.totalorder %s21, 1
      %p39 = por %p37, %p38
      %p40 = scmp.ne.s32.totalorder %s29, %s30
      %p41 = scmp.eq.s32.totalorder %s21, 0
      %p42 = por %p40, %p41
      %p43 = scmp.ne.s32.totalorder %s29, %s30
      %p44 = scmp.eq.s32.totalorder %s22, 1
      %p45 = por %p43, %p44
      %p47 = scmp.ne.s32.totalorder %s30, %s46
      %p48 = scmp.eq.s32.totalorder %s22, 0
      %p49 = por %p47, %p48
      %s51 = sadd.s32 %s50, 1
      %p54 = scmp.eq.s32.totalorder %s16, 1
      %p55 = scmp.ne.s32.totalorder %s50, %s52
      %p56 = scmp.eq.s32.totalorder %s16, 0
      %p57 = por %p55, %p56
      %p58 = scmp.ne.s32.totalorder %s50, %s52
      %p59 = scmp.eq.s32.totalorder %s21, 1
      %p60 = por %p58, %p59
      %p61 = scmp.ne.s32.totalorder %s52, %s53
      %p62 = scmp.eq.s32.totalorder %s21, 0
      %p63 = por %p61, %p62
      %p64 = scmp.ne.s32.totalorder %s52, %s53
      %p65 = scmp.eq.s32.totalorder %s22, 1
      %p66 = por %p64, %p65
      %p68 = scmp.ne.s32.totalorder %s53, %s67
      %p69 = scmp.eq.s32.totalorder %s22, 0
      %p70 = por %p68, %p69
      %s72 = sadd.s32 %s71, 1
      %p75 = scmp.eq.s32.totalorder %s16, 1
      %p76 = scmp.ne.s32.totalorder %s71, %s73
      %p77 = scmp.eq.s32.totalorder %s16, 0
      %p78 = por %p76, %p77
      %p79 = scmp.ne.s32.totalorder %s71, %s73
      %p80 = scmp.eq.s32.totalorder %s21, 1
      %p81 = por %p79, %p80
      %p82 = scmp.ne.s32.totalorder %s73, %s74
      %p83 = scmp.eq.s32.totalorder %s21, 0
      %p84 = por %p82, %p83
      %p85 = scmp.ne.s32.totalorder %s73, %s74
      %p86 = scmp.eq.s32.totalorder %s22, 1
      %p87 = por %p85, %p86
      %p89 = scmp.ne.s32.totalorder %s74, %s88
      %p90 = scmp.eq.s32.totalorder %s22, 0
      %p91 = por %p89, %p90
      %s93 = sadd.s32 %s92, 1
      %p96 = scmp.eq.s32.totalorder %s16, 1
      %p97 = scmp.ne.s32.totalorder %s92, %s94
      %p98 = scmp.eq.s32.totalorder %s16, 0
      %p99 = por %p97, %p98
      %p100 = scmp.ne.s32.totalorder %s92, %s94
      %p101 = scmp.eq.s32.totalorder %s21, 1
      %p102 = por %p100, %p101
      %p103 = scmp.ne.s32.totalorder %s94, %s95
      %p104 = scmp.eq.s32.totalorder %s21, 0
      %p105 = por %p103, %p104
      %p106 = scmp.ne.s32.totalorder %s94, %s95
      %p107 = scmp.eq.s32.totalorder %s22, 1
      %p108 = por %p106, %p107
      %p110 = scmp.ne.s32.totalorder %s95, %s109
      %p111 = scmp.eq.s32.totalorder %s22, 0
      %p112 = por %p110, %p111
      %s114 = sadd.s32 %s113, 1
      %p117 = scmp.eq.s32.totalorder %s16, 1
      %p118 = scmp.ne.s32.totalorder %s113, %s115
      %p119 = scmp.eq.s32.totalorder %s16, 0
      %p120 = por %p118, %p119
      %p121 = scmp.ne.s32.totalorder %s113, %s115
      %p122 = scmp.eq.s32.totalorder %s21, 1
      %p123 = por %p121, %p122
      %p124 = scmp.ne.s32.totalorder %s115, %s116
      %p125 = scmp.eq.s32.totalorder %s21, 0
      %p126 = por %p124, %p125
      %p127 = scmp.ne.s32.totalorder %s115, %s116
      %p128 = scmp.eq.s32.totalorder %s22, 1
      %p129 = por %p127, %p128
      %p131 = scmp.ne.s32.totalorder %s116, %s130
      %p132 = scmp.eq.s32.totalorder %s22, 0
      %p133 = por %p131, %p132
      %s135 = sadd.s32 %s134, 1
      %p138 = scmp.eq.s32.totalorder %s16, 1
      %p139 = scmp.ne.s32.totalorder %s134, %s136
      %p140 = scmp.eq.s32.totalorder %s16, 0
      %p141 = por %p139, %p140
      %p142 = scmp.ne.s32.totalorder %s134, %s136
      %p143 = scmp.eq.s32.totalorder %s21, 1
      %p144 = por %p142, %p143
      %p145 = scmp.ne.s32.totalorder %s136, %s137
      %p146 = scmp.eq.s32.totalorder %s21, 0
      %p147 = por %p145, %p146
      %p148 = scmp.ne.s32.totalorder %s136, %s137
      %p149 = scmp.eq.s32.totalorder %s22, 1
      %p150 = por %p148, %p149
      %p152 = scmp.ne.s32.totalorder %s137, %s151
      %p153 = scmp.eq.s32.totalorder %s22, 0
      %p154 = por %p152, %p153
      %s156 = sadd.s32 %s155, 1
      %p159 = scmp.eq.s32.totalorder %s16, 1
      %p160 = scmp.ne.s32.totalorder %s155, %s157
      %p161 = scmp.eq.s32.totalorder %s16, 0
      %p162 = por %p160, %p161
      %p163 = scmp.ne.s32.totalorder %s155, %s157
      %p164 = scmp.eq.s32.totalorder %s21, 1
      %p165 = por %p163, %p164
      %p166 = scmp.ne.s32.totalorder %s157, %s158
      %p167 = scmp.eq.s32.totalorder %s21, 0
      %p168 = por %p166, %p167
      %p169 = scmp.ne.s32.totalorder %s157, %s158
      %p170 = scmp.eq.s32.totalorder %s22, 1
      %p171 = por %p169, %p170
      %p173 = scmp.ne.s32.totalorder %s158, %s172
      %p174 = scmp.eq.s32.totalorder %s22, 0
      %p175 = por %p173, %p174
      %s177 = sadd.s32 %s176, 1
      %p180 = scmp.eq.s32.totalorder %s16, 1
      %p181 = scmp.ne.s32.totalorder %s176, %s178
      %p182 = scmp.eq.s32.totalorder %s16, 0
      %p183 = por %p181, %p182
      %p184 = scmp.ne.s32.totalorder %s176, %s178
      %p185 = scmp.eq.s32.totalorder %s21, 1
      %p186 = por %p184, %p185
      %p187 = scmp.ne.s32.totalorder %s178, %s179
      %p188 = scmp.eq.s32.totalorder %s21, 0
      %p189 = por %p187, %p188
      %p190 = scmp.ne.s32.totalorder %s178, %s179
      %p191 = scmp.eq.s32.totalorder %s22, 1
      %p192 = por %p190, %p191
      %p194 = scmp.ne.s32.totalorder %s179, %s193
      %p195 = scmp.eq.s32.totalorder %s22, 0
      %p196 = por %p194, %p195
      %s198 = sadd.s32 %s197, 1
      %p201 = scmp.eq.s32.totalorder %s16, 1
      %p202 = scmp.ne.s32.totalorder %s197, %s199
      %p203 = scmp.eq.s32.totalorder %s16, 0
      %p204 = por %p202, %p203
      %p205 = scmp.ne.s32.totalorder %s197, %s199
      %p206 = scmp.eq.s32.totalorder %s21, 1
      %p207 = por %p205, %p206
      %p208 = scmp.ne.s32.totalorder %s199, %s200
      %p209 = scmp.eq.s32.totalorder %s21, 0
      %p210 = por %p208, %p209
      %p211 = scmp.ne.s32.totalorder %s199, %s200
      %p212 = scmp.eq.s32.totalorder %s22, 1
      %p213 = por %p211, %p212
      %p215 = scmp.ne.s32.totalorder %s200, %s214
      %p216 = scmp.eq.s32.totalorder %s22, 0
      %p217 = por %p215, %p216
      %s218 = ssub.s32 %s16, %s23
      %p219 = scmp.eq.s32.totalorder %s218, 0
      %s221 = sadd.s32 %s220, 1
      %s222 = scalar_select %p219, %s220, %s221
      %p225 = pneg %p219
      %p226 = scmp.eq.s32.totalorder %s16, 1
      %p227 = por %p225, %p226
      %p228 = scmp.ne.s32.totalorder %s220, %s223
      %p229 = scmp.eq.s32.totalorder %s16, 0
      %p230 = por %p228, %p229
      %p231 = scmp.ne.s32.totalorder %s220, %s223
      %p232 = scmp.eq.s32.totalorder %s21, 1
      %p233 = por %p231, %p232
      %p234 = scmp.ne.s32.totalorder %s223, %s224
      %p235 = scmp.eq.s32.totalorder %s21, 0
      %p236 = por %p234, %p235
      %p237 = scmp.ne.s32.totalorder %s223, %s224
      %p238 = scmp.eq.s32.totalorder %s22, 1
      %p239 = por %p237, %p238
      %p241 = scmp.ne.s32.totalorder %s224, %s240
      %p242 = scmp.eq.s32.totalorder %s22, 0
      %p243 = por %p241, %p242
      %p244 = scmp.le.s32.totalorder 1, %s16
      %p245 = scmp.lt.s32.totalorder %s16, 3
      %p246 = pnand %p244, %p245
      %p247 = pneg %p246
      // Predicated region
      $region9: #{cnn_forward.4} parent=5 // pred_check
        _
      $region10: #{cnn_forward.4} parent=5 // pred_check_branch
        %249 = sbr.rel (%p246) target = $region12
      $region11: #{cnn_forward.4} parent=5 // pred_region
        %s250 = ssub.s32 %s16, 1
        // Predicated region
        $region13: #{cnn_forward.4} parent=11 // pred_check
          %p251 = pneg %p63
        $region14: #{cnn_forward.4} parent=11 // pred_check_branch
          %253 = sbr.rel (%p251) target = $region16
        $region15: #{cnn_forward.4} parent=11 // pred_region
          %255 = vsyncadd [#allocation3], 0
          %s256 = sshll.u32 %s1, 4
          %s257 = int_to_ptr.hbm [resolvable:$true] %s256
          %s258 = sshll.u32 [#allocation2], 4
          %s259 = int_to_ptr.vmem [resolvable:$true] %s258
          %264 = dma.hbm_to_vmem [thread:$0]  %s257, 19968, %s259, [#allocation3], 512, 512, 32
        $region16: #{cnn_forward.4} parent=11 // pred_fallthru
          _
        // Predicated region
        $region17: #{cnn_forward.4} parent=11 // pred_check
          %p265 = pneg %p84
        $region18: #{cnn_forward.4} parent=11 // pred_check_branch
          %267 = sbr.rel (%p265) target = $region20
        $region19: #{cnn_forward.4} parent=11 // pred_region
          _
        $region20: #{cnn_forward.4} parent=11 // pred_fallthru
          _
        // Predicated region
        $region21: #{cnn_forward.4} parent=11 // pred_check
          %p268 = pneg %p105
        $region22: #{cnn_forward.4} parent=11 // pred_check_branch
          %270 = sbr.rel (%p268) target = $region24
        $region23: #{cnn_forward.4} parent=11 // pred_region
          _
        $region24: #{cnn_forward.4} parent=11 // pred_fallthru
          _
        // Predicated region
        $region25: #{cnn_forward.4} parent=11 // pred_check
          %p271 = pneg %p126
        $region26: #{cnn_forward.4} parent=11 // pred_check_branch
          %273 = sbr.rel (%p271) target = $region28
        $region27: #{cnn_forward.4} parent=11 // pred_region
          _
        $region28: #{cnn_forward.4} parent=11 // pred_fallthru
          _
        // Predicated region
        $region29: #{cnn_forward.4} parent=11 // pred_check
          %p274 = pneg %p147
        $region30: #{cnn_forward.4} parent=11 // pred_check_branch
          %276 = sbr.rel (%p274) target = $region32
        $region31: #{cnn_forward.4} parent=11 // pred_region
          _
        $region32: #{cnn_forward.4} parent=11 // pred_fallthru
          _
        // Predicated region
        $region33: #{cnn_forward.4} parent=11 // pred_check
          %p277 = pneg %p168
        $region34: #{cnn_forward.4} parent=11 // pred_check_branch
          %279 = sbr.rel (%p277) target = $region36
        $region35: #{cnn_forward.4} parent=11 // pred_region
          _
        $region36: #{cnn_forward.4} parent=11 // pred_fallthru
          _
        // Predicated region
        $region37: #{cnn_forward.4} parent=11 // pred_check
          %p280 = pneg %p189
        $region38: #{cnn_forward.4} parent=11 // pred_check_branch
          %282 = sbr.rel (%p280) target = $region40
        $region39: #{cnn_forward.4} parent=11 // pred_region
          _
        $region40: #{cnn_forward.4} parent=11 // pred_fallthru
          _
        // Predicated region
        $region41: #{cnn_forward.4} parent=11 // pred_check
          %p283 = pneg %p210
        $region42: #{cnn_forward.4} parent=11 // pred_check_branch
          %285 = sbr.rel (%p283) target = $region44
        $region43: #{cnn_forward.4} parent=11 // pred_region
          _
        $region44: #{cnn_forward.4} parent=11 // pred_fallthru
          _
      $region12: #{cnn_forward.4} parent=5 // pred_fallthru
        _
      %p286 = scmp.lt.s32.totalorder %s16, 2
      // Predicated region
      $region45: #{cnn_forward.4} parent=5 // pred_check
        %p287 = pneg %p286
      $region46: #{cnn_forward.4} parent=5 // pred_check_branch
        %289 = sbr.rel (%p287) target = $region48
      $region47: #{cnn_forward.4} parent=5 // pred_region
        // Predicated region
        $region49: #{cnn_forward.4} parent=47 // pred_check
          %p290 = pneg %p36
        $region50: #{cnn_forward.4} parent=47 // pred_check_branch
          %292 = sbr.rel (%p290) target = $region52
        $region51: #{cnn_forward.4} parent=47 // pred_region
          %p293 = scmp.lt.s32.totalorder %s16, 1
          %s294 = scalar_select %p293, %s16, 1
          %s295 = smul.addr %s294, 5
          %s296 = smul.addr %s295, 8
          %s297 = scalar_lea.vmem %s0, %s296
        $region52: #{cnn_forward.4} parent=47 // pred_fallthru
          _
      $region48: #{cnn_forward.4} parent=5 // pred_fallthru
        _
      %p298 = scmp.le.s32.totalorder 1, %s16
      %p299 = scmp.lt.s32.totalorder %s16, 3
      %p300 = pnand %p298, %p299
      %p301 = pneg %p300
      // Predicated region
      $region53: #{cnn_forward.4} parent=5 // pred_check
        _
      $region54: #{cnn_forward.4} parent=5 // pred_check_branch
        %303 = sbr.rel (%p300) target = $region56
      $region55: #{cnn_forward.4} parent=5 // pred_region
        %s304 = ssub.s32 %s16, 1
        // Predicated region
        $region57: #{cnn_forward.4} parent=55 // pred_check
          %p305 = pneg %p63
        $region58: #{cnn_forward.4} parent=55 // pred_check_branch
          %307 = sbr.rel (%p305) target = $region60
        $region59: #{cnn_forward.4} parent=55 // pred_region
          %309 = dma.done [#allocation3], 19968
        $region60: #{cnn_forward.4} parent=55 // pred_fallthru
          _
        %p310 = scmp.lt.s32.totalorder %s21, 1
        %s311 = scalar_select %p310, %s21, 1
        %s312 = smul.addr %s311, 5
        %s313 = smul.addr %s312, 8
        %s314 = scalar_lea.vmem %s0, %s313
        %p315 = pneg %p42
        %p316 = pneg %p39
        %p317 = pneg %p63
        %p318 = pneg %p60
        %p319 = pneg %p84
        %p320 = pneg %p81
        %p321 = pneg %p105
        %p322 = pneg %p102
        %p323 = pneg %p126
        %p324 = pneg %p123
        %p325 = pneg %p147
        %p326 = pneg %p144
        %p327 = pneg %p168
        %p328 = pneg %p165
        %p329 = pneg %p189
        %p330 = pneg %p186
        %p331 = pneg %p210
        %p332 = pneg %p207
        %p333 = pneg %p236
        %p334 = pneg %p233
        %p335 = scmp.lt.s32.totalorder %s21, 1
        %s336 = scalar_select %p335, %s21, 1
        %s337 = smul.addr %s336, 9
        %s338 = smul.addr %s337, 8
        %s339 = scalar_lea.vmem %s9, %s338
        %p340 = scmp.lt.s32.totalorder %s21, 1
        %s341 = scalar_select %p340, %s21, 1
        %s342 = smul.addr %s341, 5
        %s343 = smul.addr %s342, 8
        %s344 = scalar_lea.vmem %s0, %s343
        %p345 = scmp.lt.s32.totalorder %s21, 1
        %s346 = scalar_select %p345, %s21, 1
        %s347 = smul.addr %s346, 9
        %s348 = smul.addr %s347, 8
        %s349 = scalar_lea.vmem %s9, %s348
        %v350 = vld [vmem:[%s344] sm:$0xff]
        %v351 = vld [vmem:[%s344 + $0x8] sm:$0xff]
        %v352 = vld [vmem:[%s344 + $0x10] sm:$0xff]
        %v353 = vld [vmem:[%s344 + $0x18] sm:$0xff]
        %v354 = vld [vmem:[#allocation2] sm:$0xff]
        %v355 = vld [vmem:[#allocation2 + $0x8] sm:$0xff]
        %v356 = vld [vmem:[#allocation2 + $0x10] sm:$0xff]
        %v357 = vld [vmem:[#allocation2 + $0x18] sm:$0xff]
        %v358 = vld [vmem:[#allocation2 + $0x20] sm:$0xff]
        %v359 = vld [vmem:[#allocation2 + $0x28] sm:$0xff]
        %v360 = vld [vmem:[#allocation2 + $0x30] sm:$0xff]
        %v361 = vld [vmem:[#allocation2 + $0x38] sm:$0xff]
        %v362 = vld [vmem:[#allocation2 + $0x40] sm:$0xff]
        %v363 = vld [vmem:[#allocation2 + $0x48] sm:$0xff]
        %v364 = vld [vmem:[#allocation2 + $0x50] sm:$0xff]
        %v365 = vld [vmem:[#allocation2 + $0x58] sm:$0xff]
        %v366 = vld [vmem:[#allocation2 + $0x60] sm:$0xff]
        %v367 = vld [vmem:[#allocation2 + $0x68] sm:$0xff]
        %v368 = vld [vmem:[#allocation2 + $0x70] sm:$0xff]
        %v369 = vld [vmem:[#allocation2 + $0x78] sm:$0xff]
        %v370 = vld [vmem:[#allocation2 + $0x80] sm:$0xff]
        %v371 = vld [vmem:[#allocation2 + $0x88] sm:$0xff]
        %v372 = vld [vmem:[#allocation2 + $0x90] sm:$0xff]
        %v373 = vld [vmem:[#allocation2 + $0x98] sm:$0xff]
        %v374 = vld [vmem:[#allocation2 + $0xa0] sm:$0xff]
        %v375 = vld [vmem:[#allocation2 + $0xa8] sm:$0xff]
        %v376 = vld [vmem:[#allocation2 + $0xb0] sm:$0xff]
        %v377 = vld [vmem:[#allocation2 + $0xb8] sm:$0xff]
        %v378 = vld [vmem:[#allocation2 + $0xc0] sm:$0xff]
        %v379 = vld [vmem:[#allocation2 + $0xc8] sm:$0xff]
        %v380 = vld [vmem:[#allocation2 + $0xd0] sm:$0xff]
        %v381 = vld [vmem:[#allocation2 + $0xd8] sm:$0xff]
        %v382 = vld [vmem:[#allocation2 + $0xe0] sm:$0xff]
        %v383 = vld [vmem:[#allocation2 + $0xe8] sm:$0xff]
        %v384 = vld [vmem:[#allocation2 + $0xf0] sm:$0xff]
        %v385 = vld [vmem:[#allocation2 + $0xf8] sm:$0xff]
        %v386 = vld [vmem:[#allocation2 + $0x100] sm:$0xff]
        %v387 = vld [vmem:[#allocation2 + $0x108] sm:$0xff]
        %v388 = vld [vmem:[#allocation2 + $0x110] sm:$0xff]
        %v389 = vld [vmem:[#allocation2 + $0x118] sm:$0xff]
        %v390 = vld [vmem:[#allocation2 + $0x120] sm:$0xff]
        %v391 = vld [vmem:[#allocation2 + $0x128] sm:$0xff]
        %v392 = vld [vmem:[#allocation2 + $0x130] sm:$0xff]
        %v393 = vld [vmem:[#allocation2 + $0x138] sm:$0xff]
        %v394 = vld [vmem:[#allocation2 + $0x140] sm:$0xff]
        %v395 = vld [vmem:[#allocation2 + $0x148] sm:$0xff]
        %v396 = vld [vmem:[#allocation2 + $0x150] sm:$0xff]
        %v397 = vld [vmem:[#allocation2 + $0x158] sm:$0xff]
        %v398 = vld [vmem:[#allocation2 + $0x160] sm:$0xff]
        %v399 = vld [vmem:[#allocation2 + $0x168] sm:$0xff]
        %v400 = vld [vmem:[#allocation2 + $0x170] sm:$0xff]
        %v401 = vld [vmem:[#allocation2 + $0x178] sm:$0xff]
        %v402 = vld [vmem:[#allocation2 + $0x180] sm:$0x3f]
        %v403 = vld [vmem:[#allocation2 + $0x188] sm:$0x3f]
        %v404 = vld [vmem:[#allocation2 + $0x190] sm:$0x3f]
        %v405 = vld [vmem:[#allocation2 + $0x198] sm:$0x3f]
        %v406 = vld [vmem:[%s344 + $0x1] sm:$0xff]
        %v407 = vld [vmem:[%s344 + $0x9] sm:$0xff]
        %v408 = vld [vmem:[%s344 + $0x11] sm:$0xff]
        %v409 = vld [vmem:[%s344 + $0x19] sm:$0xff]
        %s410 = scalar_lea.vmem [#allocation2], 416
        %v411 = vld [vmem:[%s410] sm:$0xff]
        %v412 = vld [vmem:[%s410 + $0x8] sm:$0xff]
        %v413 = vld [vmem:[%s410 + $0x10] sm:$0xff]
        %v414 = vld [vmem:[%s410 + $0x18] sm:$0xff]
        %v415 = vld [vmem:[%s410 + $0x20] sm:$0xff]
        %v416 = vld [vmem:[%s410 + $0x28] sm:$0xff]
        %v417 = vld [vmem:[%s410 + $0x30] sm:$0xff]
        %v418 = vld [vmem:[%s410 + $0x38] sm:$0xff]
        %v419 = vld [vmem:[%s410 + $0x40] sm:$0xff]
        %v420 = vld [vmem:[%s410 + $0x48] sm:$0xff]
        %v421 = vld [vmem:[%s410 + $0x50] sm:$0xff]
        %v422 = vld [vmem:[%s410 + $0x58] sm:$0xff]
        %v423 = vld [vmem:[%s410 + $0x60] sm:$0xff]
        %v424 = vld [vmem:[%s410 + $0x68] sm:$0xff]
        %v425 = vld [vmem:[%s410 + $0x70] sm:$0xff]
        %v426 = vld [vmem:[%s410 + $0x78] sm:$0xff]
        %v427 = vld [vmem:[%s410 + $0x80] sm:$0xff]
        %v428 = vld [vmem:[%s410 + $0x88] sm:$0xff]
        %v429 = vld [vmem:[%s410 + $0x90] sm:$0xff]
        %v430 = vld [vmem:[%s410 + $0x98] sm:$0xff]
        %v431 = vld [vmem:[%s410 + $0xa0] sm:$0xff]
        %v432 = vld [vmem:[%s410 + $0xa8] sm:$0xff]
        %v433 = vld [vmem:[%s410 + $0xb0] sm:$0xff]
        %v434 = vld [vmem:[%s410 + $0xb8] sm:$0xff]
        %v435 = vld [vmem:[%s410 + $0xc0] sm:$0xff]
        %v436 = vld [vmem:[%s410 + $0xc8] sm:$0xff]
        %v437 = vld [vmem:[%s410 + $0xd0] sm:$0xff]
        %v438 = vld [vmem:[%s410 + $0xd8] sm:$0xff]
        %v439 = vld [vmem:[%s410 + $0xe0] sm:$0xff]
        %v440 = vld [vmem:[%s410 + $0xe8] sm:$0xff]
        %v441 = vld [vmem:[%s410 + $0xf0] sm:$0xff]
        %v442 = vld [vmem:[%s410 + $0xf8] sm:$0xff]
        %v443 = vld [vmem:[%s410 + $0x100] sm:$0xff]
        %v444 = vld [vmem:[%s410 + $0x108] sm:$0xff]
        %v445 = vld [vmem:[%s410 + $0x110] sm:$0xff]
        %v446 = vld [vmem:[%s410 + $0x118] sm:$0xff]
        %v447 = vld [vmem:[%s410 + $0x120] sm:$0xff]
        %v448 = vld [vmem:[%s410 + $0x128] sm:$0xff]
        %v449 = vld [vmem:[%s410 + $0x130] sm:$0xff]
        %v450 = vld [vmem:[%s410 + $0x138] sm:$0xff]
        %v451 = vld [vmem:[%s410 + $0x140] sm:$0xff]
        %v452 = vld [vmem:[%s410 + $0x148] sm:$0xff]
        %v453 = vld [vmem:[%s410 + $0x150] sm:$0xff]
        %v454 = vld [vmem:[%s410 + $0x158] sm:$0xff]
        %v455 = vld [vmem:[%s410 + $0x160] sm:$0xff]
        %v456 = vld [vmem:[%s410 + $0x168] sm:$0xff]
        %v457 = vld [vmem:[%s410 + $0x170] sm:$0xff]
        %v458 = vld [vmem:[%s410 + $0x178] sm:$0xff]
        %v459 = vld [vmem:[%s410 + $0x180] sm:$0x3f]
        %v460 = vld [vmem:[%s410 + $0x188] sm:$0x3f]
        %v461 = vld [vmem:[%s410 + $0x190] sm:$0x3f]
        %v462 = vld [vmem:[%s410 + $0x198] sm:$0x3f]
        %vm463 = vcmask 834560
        %v465 = vsel %vm463, %v406, 0
        %v468 = vsel %vm463, %v407, 0
        %v471 = vsel %vm463, %v408, 0
        %v474 = vsel %vm463, %v409, 0
        %vm476 = vcmask 1045504
        %v478 = vsel %vm476, %v459, 0
        %v481 = vsel %vm476, %v460, 0
        %v484 = vsel %vm476, %v461, 0
        %v487 = vsel %vm476, %v462, 0
        %489 = vmatpush.msra.mxu0 0.0
        %490 = vmatpush.msra.mxu0 0.0
        %491 = vmatpush.msra.mxu0 0.0
        %492 = vmatpush.msra.mxu0 %v478
        %493 = vmatpush.msra.mxu0 %v455
        %494 = vmatpush.msra.mxu0 %v451
        %495 = vmatpush.msra.mxu0 %v447
        %496 = vmatpush.msra.mxu0 %v443
        %497 = vmatpush.msra.mxu0 %v439
        %498 = vmatpush.msra.mxu0 %v435
        %499 = vmatpush.msra.mxu0 %v431
        %500 = vmatpush.msra.mxu0 %v427
        %501 = vmatpush.msra.mxu0 %v423
        %502 = vmatpush.msra.mxu0 %v419
        %503 = vmatpush.msra.mxu0 %v415
        %504 = vmatpush.msra.mxu0 %v411
        %505 = vmatmul.f32.gmra.mxu0 %v465
        %v506 = vpop.f32.mrf.mxu0
        %v507 = vadd.f32 0.0, %v506
        %508 = vmatmul.f32.gmra.mxu0 %v468
        %v509 = vpop.f32.mrf.mxu0
        %v510 = vadd.f32 0.0, %v509
        %511 = vmatmul.f32.gmra.mxu0 %v471
        %v512 = vpop.f32.mrf.mxu0
        %v513 = vadd.f32 0.0, %v512
        %514 = vmatmul.f32.gmra.mxu0 %v474
        %v515 = vpop.f32.mrf.mxu0
        %v516 = vadd.f32 0.0, %v515
        %517 = vdwg.mxu0
        %518 = vmatpush.msra.mxu0 0.0
        %519 = vmatpush.msra.mxu0 0.0
        %520 = vmatpush.msra.mxu0 0.0
        %521 = vmatpush.msra.mxu0 %v481
        %522 = vmatpush.msra.mxu0 %v456
        %523 = vmatpush.msra.mxu0 %v452
        %524 = vmatpush.msra.mxu0 %v448
        %525 = vmatpush.msra.mxu0 %v444
        %526 = vmatpush.msra.mxu0 %v440
        %527 = vmatpush.msra.mxu0 %v436
        %528 = vmatpush.msra.mxu0 %v432
        %529 = vmatpush.msra.mxu0 %v428
        %530 = vmatpush.msra.mxu0 %v424
        %531 = vmatpush.msra.mxu0 %v420
        %532 = vmatpush.msra.mxu0 %v416
        %533 = vmatpush.msra.mxu0 %v412
        %534 = vmatmul.f32.gmra.mxu0 %v465
        %v535 = vpop.f32.mrf.mxu0
        %v536 = vadd.f32 0.0, %v535
        %537 = vmatmul.f32.gmra.mxu0 %v468
        %v538 = vpop.f32.mrf.mxu0
        %v539 = vadd.f32 0.0, %v538
        %540 = vmatmul.f32.gmra.mxu0 %v471
        %v541 = vpop.f32.mrf.mxu0
        %v542 = vadd.f32 0.0, %v541
        %543 = vmatmul.f32.gmra.mxu0 %v474
        %v544 = vpop.f32.mrf.mxu0
        %v545 = vadd.f32 0.0, %v544
        %546 = vdwg.mxu0
        %547 = vmatpush.msra.mxu0 0.0
        %548 = vmatpush.msra.mxu0 0.0
        %549 = vmatpush.msra.mxu0 0.0
        %550 = vmatpush.msra.mxu0 %v484
        %551 = vmatpush.msra.mxu0 %v457
        %552 = vmatpush.msra.mxu0 %v453
        %553 = vmatpush.msra.mxu0 %v449
        %554 = vmatpush.msra.mxu0 %v445
        %555 = vmatpush.msra.mxu0 %v441
        %556 = vmatpush.msra.mxu0 %v437
        %557 = vmatpush.msra.mxu0 %v433
        %558 = vmatpush.msra.mxu0 %v429
        %559 = vmatpush.msra.mxu0 %v425
        %560 = vmatpush.msra.mxu0 %v421
        %561 = vmatpush.msra.mxu0 %v417
        %562 = vmatpush.msra.mxu0 %v413
        %563 = vmatmul.f32.gmra.mxu0 %v465
        %v564 = vpop.f32.mrf.mxu0
        %v565 = vadd.f32 0.0, %v564
        %566 = vmatmul.f32.gmra.mxu0 %v468
        %v567 = vpop.f32.mrf.mxu0
        %v568 = vadd.f32 0.0, %v567
        %569 = vmatmul.f32.gmra.mxu0 %v471
        %v570 = vpop.f32.mrf.mxu0
        %v571 = vadd.f32 0.0, %v570
        %572 = vmatmul.f32.gmra.mxu0 %v474
        %v573 = vpop.f32.mrf.mxu0
        %v574 = vadd.f32 0.0, %v573
        %575 = vdwg.mxu0
        %576 = vmatpush.msra.mxu0 0.0
        %577 = vmatpush.msra.mxu0 0.0
        %578 = vmatpush.msra.mxu0 0.0
        %579 = vmatpush.msra.mxu0 %v487
        %580 = vmatpush.msra.mxu0 %v458
        %581 = vmatpush.msra.mxu0 %v454
        %582 = vmatpush.msra.mxu0 %v450
        %583 = vmatpush.msra.mxu0 %v446
        %584 = vmatpush.msra.mxu0 %v442
        %585 = vmatpush.msra.mxu0 %v438
        %586 = vmatpush.msra.mxu0 %v434
        %587 = vmatpush.msra.mxu0 %v430
        %588 = vmatpush.msra.mxu0 %v426
        %589 = vmatpush.msra.mxu0 %v422
        %590 = vmatpush.msra.mxu0 %v418
        %591 = vmatpush.msra.mxu0 %v414
        %592 = vmatmul.f32.gmra.mxu0 %v465
        %v593 = vpop.f32.mrf.mxu0
        %v594 = vadd.f32 0.0, %v593
        %595 = vmatmul.f32.gmra.mxu0 %v468
        %v596 = vpop.f32.mrf.mxu0
        %v597 = vadd.f32 0.0, %v596
        %598 = vmatmul.f32.gmra.mxu0 %v471
        %v599 = vpop.f32.mrf.mxu0
        %v600 = vadd.f32 0.0, %v599
        %601 = vmatmul.f32.gmra.mxu0 %v474
        %v602 = vpop.f32.mrf.mxu0
        %v603 = vadd.f32 0.0, %v602
        %604 = vdwg.mxu0
        %v606 = vsel %vm463, %v350, 0
        %v609 = vsel %vm463, %v351, 0
        %v612 = vsel %vm463, %v352, 0
        %v615 = vsel %vm463, %v353, 0
        %v618 = vsel %vm476, %v402, 0
        %v621 = vsel %vm476, %v403, 0
        %v624 = vsel %vm476, %v404, 0
        %v627 = vsel %vm476, %v405, 0
        %629 = vmatpush.msra.mxu0 0.0
        %630 = vmatpush.msra.mxu0 0.0
        %631 = vmatpush.msra.mxu0 0.0
        %632 = vmatpush.msra.mxu0 %v618
        %633 = vmatpush.msra.mxu0 %v398
        %634 = vmatpush.msra.mxu0 %v394
        %635 = vmatpush.msra.mxu0 %v390
        %636 = vmatpush.msra.mxu0 %v386
        %637 = vmatpush.msra.mxu0 %v382
        %638 = vmatpush.msra.mxu0 %v378
        %639 = vmatpush.msra.mxu0 %v374
        %640 = vmatpush.msra.mxu0 %v370
        %641 = vmatpush.msra.mxu0 %v366
        %642 = vmatpush.msra.mxu0 %v362
        %643 = vmatpush.msra.mxu0 %v358
        %644 = vmatpush.msra.mxu0 %v354
        %645 = vmatmul.f32.gmra.mxu0 %v606
        %v646 = vpop.f32.mrf.mxu0
        %v647 = vadd.f32 %v507, %v646
        %648 = vmatmul.f32.gmra.mxu0 %v609
        %v649 = vpop.f32.mrf.mxu0
        %v650 = vadd.f32 %v510, %v649
        %651 = vmatmul.f32.gmra.mxu0 %v612
        %v652 = vpop.f32.mrf.mxu0
        %v653 = vadd.f32 %v513, %v652
        %654 = vmatmul.f32.gmra.mxu0 %v615
        %v655 = vpop.f32.mrf.mxu0
        %v656 = vadd.f32 %v516, %v655
        %657 = vdwg.mxu0
        %658 = vmatpush.msra.mxu0 0.0
        %659 = vmatpush.msra.mxu0 0.0
        %660 = vmatpush.msra.mxu0 0.0
        %661 = vmatpush.msra.mxu0 %v621
        %662 = vmatpush.msra.mxu0 %v399
        %663 = vmatpush.msra.mxu0 %v395
        %664 = vmatpush.msra.mxu0 %v391
        %665 = vmatpush.msra.mxu0 %v387
        %666 = vmatpush.msra.mxu0 %v383
        %667 = vmatpush.msra.mxu0 %v379
        %668 = vmatpush.msra.mxu0 %v375
        %669 = vmatpush.msra.mxu0 %v371
        %670 = vmatpush.msra.mxu0 %v367
        %671 = vmatpush.msra.mxu0 %v363
        %672 = vmatpush.msra.mxu0 %v359
        %673 = vmatpush.msra.mxu0 %v355
        %674 = vmatmul.f32.gmra.mxu0 %v606
        %v675 = vpop.f32.mrf.mxu0
        %v676 = vadd.f32 %v536, %v675
        %677 = vmatmul.f32.gmra.mxu0 %v609
        %v678 = vpop.f32.mrf.mxu0
        %v679 = vadd.f32 %v539, %v678
        %680 = vmatmul.f32.gmra.mxu0 %v612
        %v681 = vpop.f32.mrf.mxu0
        %v682 = vadd.f32 %v542, %v681
        %683 = vmatmul.f32.gmra.mxu0 %v615
        %v684 = vpop.f32.mrf.mxu0
        %v685 = vadd.f32 %v545, %v684
        %686 = vdwg.mxu0
        %687 = vmatpush.msra.mxu0 0.0
        %688 = vmatpush.msra.mxu0 0.0
        %689 = vmatpush.msra.mxu0 0.0
        %690 = vmatpush.msra.mxu0 %v624
        %691 = vmatpush.msra.mxu0 %v400
        %692 = vmatpush.msra.mxu0 %v396
        %693 = vmatpush.msra.mxu0 %v392
        %694 = vmatpush.msra.mxu0 %v388
        %695 = vmatpush.msra.mxu0 %v384
        %696 = vmatpush.msra.mxu0 %v380
        %697 = vmatpush.msra.mxu0 %v376
        %698 = vmatpush.msra.mxu0 %v372
        %699 = vmatpush.msra.mxu0 %v368
        %700 = vmatpush.msra.mxu0 %v364
        %701 = vmatpush.msra.mxu0 %v360
        %702 = vmatpush.msra.mxu0 %v356
        %703 = vmatmul.f32.gmra.mxu0 %v606
        %v704 = vpop.f32.mrf.mxu0
        %v705 = vadd.f32 %v565, %v704
        %706 = vmatmul.f32.gmra.mxu0 %v609
        %v707 = vpop.f32.mrf.mxu0
        %v708 = vadd.f32 %v568, %v707
        %709 = vmatmul.f32.gmra.mxu0 %v612
        %v710 = vpop.f32.mrf.mxu0
        %v711 = vadd.f32 %v571, %v710
        %712 = vmatmul.f32.gmra.mxu0 %v615
        %v713 = vpop.f32.mrf.mxu0
        %v714 = vadd.f32 %v574, %v713
        %715 = vdwg.mxu0
        %716 = vmatpush.msra.mxu0 0.0
        %717 = vmatpush.msra.mxu0 0.0
        %718 = vmatpush.msra.mxu0 0.0
        %719 = vmatpush.msra.mxu0 %v627
        %720 = vmatpush.msra.mxu0 %v401
        %721 = vmatpush.msra.mxu0 %v397
        %722 = vmatpush.msra.mxu0 %v393
        %723 = vmatpush.msra.mxu0 %v389
        %724 = vmatpush.msra.mxu0 %v385
        %725 = vmatpush.msra.mxu0 %v381
        %726 = vmatpush.msra.mxu0 %v377
        %727 = vmatpush.msra.mxu0 %v373
        %728 = vmatpush.msra.mxu0 %v369
        %729 = vmatpush.msra.mxu0 %v365
        %730 = vmatpush.msra.mxu0 %v361
        %731 = vmatpush.msra.mxu0 %v357
        %732 = vmatmul.f32.gmra.mxu0 %v606
        %v733 = vpop.f32.mrf.mxu0
        %v734 = vadd.f32 %v594, %v733
        %735 = vmatmul.f32.gmra.mxu0 %v609
        %v736 = vpop.f32.mrf.mxu0
        %v737 = vadd.f32 %v597, %v736
        %738 = vmatmul.f32.gmra.mxu0 %v612
        %v739 = vpop.f32.mrf.mxu0
        %v740 = vadd.f32 %v600, %v739
        %741 = vmatmul.f32.gmra.mxu0 %v615
        %v742 = vpop.f32.mrf.mxu0
        %v743 = vadd.f32 %v603, %v742
        %744 = vdwg.mxu0
        %v745 = vld [vmem:[%s344 + $0x2] sm:$0xff]
        %v746 = vld [vmem:[%s344 + $0xa] sm:$0xff]
        %v747 = vld [vmem:[%s344 + $0x12] sm:$0xff]
        %v748 = vld [vmem:[%s344 + $0x1a] sm:$0xff]
        %s749 = scalar_lea.vmem [#allocation2], 832
        %v750 = vld [vmem:[%s749] sm:$0xff]
        %v751 = vld [vmem:[%s749 + $0x8] sm:$0xff]
        %v752 = vld [vmem:[%s749 + $0x10] sm:$0xff]
        %v753 = vld [vmem:[%s749 + $0x18] sm:$0xff]
        %v754 = vld [vmem:[%s749 + $0x20] sm:$0xff]
        %v755 = vld [vmem:[%s749 + $0x28] sm:$0xff]
        %v756 = vld [vmem:[%s749 + $0x30] sm:$0xff]
        %v757 = vld [vmem:[%s749 + $0x38] sm:$0xff]
        %v758 = vld [vmem:[%s749 + $0x40] sm:$0xff]
        %v759 = vld [vmem:[%s749 + $0x48] sm:$0xff]
        %v760 = vld [vmem:[%s749 + $0x50] sm:$0xff]
        %v761 = vld [vmem:[%s749 + $0x58] sm:$0xff]
        %v762 = vld [vmem:[%s749 + $0x60] sm:$0xff]
        %v763 = vld [vmem:[%s749 + $0x68] sm:$0xff]
        %v764 = vld [vmem:[%s749 + $0x70] sm:$0xff]
        %v765 = vld [vmem:[%s749 + $0x78] sm:$0xff]
        %v766 = vld [vmem:[%s749 + $0x80] sm:$0xff]
        %v767 = vld [vmem:[%s749 + $0x88] sm:$0xff]
        %v768 = vld [vmem:[%s749 + $0x90] sm:$0xff]
        %v769 = vld [vmem:[%s749 + $0x98] sm:$0xff]
        %v770 = vld [vmem:[%s749 + $0xa0] sm:$0xff]
        %v771 = vld [vmem:[%s749 + $0xa8] sm:$0xff]
        %v772 = vld [vmem:[%s749 + $0xb0] sm:$0xff]
        %v773 = vld [vmem:[%s749 + $0xb8] sm:$0xff]
        %v774 = vld [vmem:[%s749 + $0xc0] sm:$0xff]
        %v775 = vld [vmem:[%s749 + $0xc8] sm:$0xff]
        %v776 = vld [vmem:[%s749 + $0xd0] sm:$0xff]
        %v777 = vld [vmem:[%s749 + $0xd8] sm:$0xff]
        %v778 = vld [vmem:[%s749 + $0xe0] sm:$0xff]
        %v779 = vld [vmem:[%s749 + $0xe8] sm:$0xff]
        %v780 = vld [vmem:[%s749 + $0xf0] sm:$0xff]
        %v781 = vld [vmem:[%s749 + $0xf8] sm:$0xff]
        %v782 = vld [vmem:[%s749 + $0x100] sm:$0xff]
        %v783 = vld [vmem:[%s749 + $0x108] sm:$0xff]
        %v784 = vld [vmem:[%s749 + $0x110] sm:$0xff]
        %v785 = vld [vmem:[%s749 + $0x118] sm:$0xff]
        %v786 = vld [vmem:[%s749 + $0x120] sm:$0xff]
        %v787 = vld [vmem:[%s749 + $0x128] sm:$0xff]
        %v788 = vld [vmem:[%s749 + $0x130] sm:$0xff]
        %v789 = vld [vmem:[%s749 + $0x138] sm:$0xff]
        %v790 = vld [vmem:[%s749 + $0x140] sm:$0xff]
        %v791 = vld [vmem:[%s749 + $0x148] sm:$0xff]
        %v792 = vld [vmem:[%s749 + $0x150] sm:$0xff]
        %v793 = vld [vmem:[%s749 + $0x158] sm:$0xff]
        %v794 = vld [vmem:[%s749 + $0x160] sm:$0xff]
        %v795 = vld [vmem:[%s749 + $0x168] sm:$0xff]
        %v796 = vld [vmem:[%s749 + $0x170] sm:$0xff]
        %v797 = vld [vmem:[%s749 + $0x178] sm:$0xff]
        %v798 = vld [vmem:[%s749 + $0x180] sm:$0x3f]
        %v799 = vld [vmem:[%s749 + $0x188] sm:$0x3f]
        %v800 = vld [vmem:[%s749 + $0x190] sm:$0x3f]
        %v801 = vld [vmem:[%s749 + $0x198] sm:$0x3f]
        %v803 = vsel %vm463, %v745, 0
        %v806 = vsel %vm463, %v746, 0
        %v809 = vsel %vm463, %v747, 0
        %v812 = vsel %vm463, %v748, 0
        %v815 = vsel %vm476, %v798, 0
        %v818 = vsel %vm476, %v799, 0
        %v821 = vsel %vm476, %v800, 0
        %v824 = vsel %vm476, %v801, 0
        %826 = vmatpush.msra.mxu0 0.0
        %827 = vmatpush.msra.mxu0 0.0
        %828 = vmatpush.msra.mxu0 0.0
        %829 = vmatpush.msra.mxu0 %v815
        %830 = vmatpush.msra.mxu0 %v794
        %831 = vmatpush.msra.mxu0 %v790
        %832 = vmatpush.msra.mxu0 %v786
        %833 = vmatpush.msra.mxu0 %v782
        %834 = vmatpush.msra.mxu0 %v778
        %835 = vmatpush.msra.mxu0 %v774
        %836 = vmatpush.msra.mxu0 %v770
        %837 = vmatpush.msra.mxu0 %v766
        %838 = vmatpush.msra.mxu0 %v762
        %839 = vmatpush.msra.mxu0 %v758
        %840 = vmatpush.msra.mxu0 %v754
        %841 = vmatpush.msra.mxu0 %v750
        %842 = vmatmul.f32.gmra.mxu0 %v803
        %v843 = vpop.f32.mrf.mxu0
        %v844 = vadd.f32 0.0, %v843
        %845 = vmatmul.f32.gmra.mxu0 %v806
        %v846 = vpop.f32.mrf.mxu0
        %v847 = vadd.f32 0.0, %v846
        %848 = vmatmul.f32.gmra.mxu0 %v809
        %v849 = vpop.f32.mrf.mxu0
        %v850 = vadd.f32 0.0, %v849
        %851 = vmatmul.f32.gmra.mxu0 %v812
        %v852 = vpop.f32.mrf.mxu0
        %v853 = vadd.f32 0.0, %v852
        %854 = vdwg.mxu0
        %855 = vmatpush.msra.mxu0 0.0
        %856 = vmatpush.msra.mxu0 0.0
        %857 = vmatpush.msra.mxu0 0.0
        %858 = vmatpush.msra.mxu0 %v818
        %859 = vmatpush.msra.mxu0 %v795
        %860 = vmatpush.msra.mxu0 %v791
        %861 = vmatpush.msra.mxu0 %v787
        %862 = vmatpush.msra.mxu0 %v783
        %863 = vmatpush.msra.mxu0 %v779
        %864 = vmatpush.msra.mxu0 %v775
        %865 = vmatpush.msra.mxu0 %v771
        %866 = vmatpush.msra.mxu0 %v767
        %867 = vmatpush.msra.mxu0 %v763
        %868 = vmatpush.msra.mxu0 %v759
        %869 = vmatpush.msra.mxu0 %v755
        %870 = vmatpush.msra.mxu0 %v751
        %871 = vmatmul.f32.gmra.mxu0 %v803
        %v872 = vpop.f32.mrf.mxu0
        %v873 = vadd.f32 0.0, %v872
        %874 = vmatmul.f32.gmra.mxu0 %v806
        %v875 = vpop.f32.mrf.mxu0
        %v876 = vadd.f32 0.0, %v875
        %877 = vmatmul.f32.gmra.mxu0 %v809
        %v878 = vpop.f32.mrf.mxu0
        %v879 = vadd.f32 0.0, %v878
        %880 = vmatmul.f32.gmra.mxu0 %v812
        %v881 = vpop.f32.mrf.mxu0
        %v882 = vadd.f32 0.0, %v881
        %883 = vdwg.mxu0
        %884 = vmatpush.msra.mxu0 0.0
        %885 = vmatpush.msra.mxu0 0.0
        %886 = vmatpush.msra.mxu0 0.0
        %887 = vmatpush.msra.mxu0 %v821
        %888 = vmatpush.msra.mxu0 %v796
        %889 = vmatpush.msra.mxu0 %v792
        %890 = vmatpush.msra.mxu0 %v788
        %891 = vmatpush.msra.mxu0 %v784
        %892 = vmatpush.msra.mxu0 %v780
        %893 = vmatpush.msra.mxu0 %v776
        %894 = vmatpush.msra.mxu0 %v772
        %895 = vmatpush.msra.mxu0 %v768
        %896 = vmatpush.msra.mxu0 %v764
        %897 = vmatpush.msra.mxu0 %v760
        %898 = vmatpush.msra.mxu0 %v756
        %899 = vmatpush.msra.mxu0 %v752
        %900 = vmatmul.f32.gmra.mxu0 %v803
        %v901 = vpop.f32.mrf.mxu0
        %v902 = vadd.f32 0.0, %v901
        %903 = vmatmul.f32.gmra.mxu0 %v806
        %v904 = vpop.f32.mrf.mxu0
        %v905 = vadd.f32 0.0, %v904
        %906 = vmatmul.f32.gmra.mxu0 %v809
        %v907 = vpop.f32.mrf.mxu0
        %v908 = vadd.f32 0.0, %v907
        %909 = vmatmul.f32.gmra.mxu0 %v812
        %v910 = vpop.f32.mrf.mxu0
        %v911 = vadd.f32 0.0, %v910
        %912 = vdwg.mxu0
        %913 = vmatpush.msra.mxu0 0.0
        %914 = vmatpush.msra.mxu0 0.0
        %915 = vmatpush.msra.mxu0 0.0
        %916 = vmatpush.msra.mxu0 %v824
        %917 = vmatpush.msra.mxu0 %v797
        %918 = vmatpush.msra.mxu0 %v793
        %919 = vmatpush.msra.mxu0 %v789
        %920 = vmatpush.msra.mxu0 %v785
        %921 = vmatpush.msra.mxu0 %v781
        %922 = vmatpush.msra.mxu0 %v777
        %923 = vmatpush.msra.mxu0 %v773
        %924 = vmatpush.msra.mxu0 %v769
        %925 = vmatpush.msra.mxu0 %v765
        %926 = vmatpush.msra.mxu0 %v761
        %927 = vmatpush.msra.mxu0 %v757
        %928 = vmatpush.msra.mxu0 %v753
        %929 = vmatmul.f32.gmra.mxu0 %v803
        %v930 = vpop.f32.mrf.mxu0
        %v931 = vadd.f32 0.0, %v930
        %932 = vmatmul.f32.gmra.mxu0 %v806
        %v933 = vpop.f32.mrf.mxu0
        %v934 = vadd.f32 0.0, %v933
        %935 = vmatmul.f32.gmra.mxu0 %v809
        %v936 = vpop.f32.mrf.mxu0
        %v937 = vadd.f32 0.0, %v936
        %938 = vmatmul.f32.gmra.mxu0 %v812
        %v939 = vpop.f32.mrf.mxu0
        %v940 = vadd.f32 0.0, %v939
        %941 = vdwg.mxu0
        %v942 = vadd.f32 %v647, %v844
        %v943 = vadd.f32 %v676, %v873
        %v944 = vadd.f32 %v705, %v902
        %v945 = vadd.f32 %v734, %v931
        %v946 = vadd.f32 %v650, %v847
        %v947 = vadd.f32 %v679, %v876
        %v948 = vadd.f32 %v708, %v905
        %v949 = vadd.f32 %v737, %v934
        %v950 = vadd.f32 %v653, %v850
        %v951 = vadd.f32 %v682, %v879
        %v952 = vadd.f32 %v711, %v908
        %v953 = vadd.f32 %v740, %v937
        %v954 = vadd.f32 %v656, %v853
        %v955 = vadd.f32 %v685, %v882
        %v956 = vadd.f32 %v714, %v911
        %v957 = vadd.f32 %v743, %v940
        %v958 = vld [vmem:[%s2] sm:$0xf]
        %v960 = vperm.slane %v958, 0
        %v961 = vperm.slane %v958, 1
        %v962 = vperm.slane %v958, 2
        %v963 = vperm.slane %v958, 3
        %v968 = vadd.f32 %v942, %v960
        %v969 = vadd.f32 %v943, %v961
        %v970 = vadd.f32 %v944, %v962
        %v971 = vadd.f32 %v945, %v963
        %v972 = vadd.f32 %v946, %v960
        %v973 = vadd.f32 %v947, %v961
        %v974 = vadd.f32 %v948, %v962
        %v975 = vadd.f32 %v949, %v963
        %v976 = vadd.f32 %v950, %v960
        %v977 = vadd.f32 %v951, %v961
        %v978 = vadd.f32 %v952, %v962
        %v979 = vadd.f32 %v953, %v963
        %v980 = vadd.f32 %v954, %v960
        %v981 = vadd.f32 %v955, %v961
        %v982 = vadd.f32 %v956, %v962
        %v983 = vadd.f32 %v957, %v963
        %v984 = vmax.f32 %v968, 0.0
        %v985 = vmax.f32 %v969, 0.0
        %v986 = vmax.f32 %v970, 0.0
        %v987 = vmax.f32 %v971, 0.0
        %v988 = vmax.f32 %v972, 0.0
        %v989 = vmax.f32 %v973, 0.0
        %v990 = vmax.f32 %v974, 0.0
        %v991 = vmax.f32 %v975, 0.0
        %v992 = vmax.f32 %v976, 0.0
        %v993 = vmax.f32 %v977, 0.0
        %v994 = vmax.f32 %v978, 0.0
        %v995 = vmax.f32 %v979, 0.0
        %v996 = vmax.f32 %v980, 0.0
        %v997 = vmax.f32 %v981, 0.0
        %v998 = vmax.f32 %v982, 0.0
        %v999 = vmax.f32 %v983, 0.0
        %v1000 = vld [vmem:[%s3] sm:$0xf]
        %v1002 = vperm.slane %v1000, 0
        %v1003 = vperm.slane %v1000, 1
        %v1004 = vperm.slane %v1000, 2
        %v1005 = vperm.slane %v1000, 3
        %v1010 = vmul.f32 %v984, %v1002
        %v1011 = vmul.f32 %v985, %v1003
        %v1012 = vmul.f32 %v986, %v1004
        %v1013 = vmul.f32 %v987, %v1005
        %v1014 = vmul.f32 %v988, %v1002
        %v1015 = vmul.f32 %v989, %v1003
        %v1016 = vmul.f32 %v990, %v1004
        %v1017 = vmul.f32 %v991, %v1005
        %v1018 = vmul.f32 %v992, %v1002
        %v1019 = vmul.f32 %v993, %v1003
        %v1020 = vmul.f32 %v994, %v1004
        %v1021 = vmul.f32 %v995, %v1005
        %v1022 = vmul.f32 %v996, %v1002
        %v1023 = vmul.f32 %v997, %v1003
        %v1024 = vmul.f32 %v998, %v1004
        %v1025 = vmul.f32 %v999, %v1005
        %v1026 = vld [vmem:[%s4] sm:$0xf]
        %v1028 = vperm.slane %v1026, 0
        %v1029 = vperm.slane %v1026, 1
        %v1030 = vperm.slane %v1026, 2
        %v1031 = vperm.slane %v1026, 3
        %v1036 = vadd.f32 %v1010, %v1028
        %v1037 = vadd.f32 %v1011, %v1029
        %v1038 = vadd.f32 %v1012, %v1030
        %v1039 = vadd.f32 %v1013, %v1031
        %v1040 = vadd.f32 %v1014, %v1028
        %v1041 = vadd.f32 %v1015, %v1029
        %v1042 = vadd.f32 %v1016, %v1030
        %v1043 = vadd.f32 %v1017, %v1031
        %v1044 = vadd.f32 %v1018, %v1028
        %v1045 = vadd.f32 %v1019, %v1029
        %v1046 = vadd.f32 %v1020, %v1030
        %v1047 = vadd.f32 %v1021, %v1031
        %v1048 = vadd.f32 %v1022, %v1028
        %v1049 = vadd.f32 %v1023, %v1029
        %v1050 = vadd.f32 %v1024, %v1030
        %v1051 = vadd.f32 %v1025, %v1031
        %v1052 = vld [vmem:[%s5] sm:$0xff]
        %v1053 = vld [vmem:[%s5 + $0x8] sm:$0xff]
        %v1054 = vld [vmem:[%s5 + $0x10] sm:$0x3]
        %vm1055 = vcmask 261120
        %v1057 = vsel %vm1055, %v1052, 0
        %v1060 = vsel %vm1055, %v1053, 0
        %v1063 = vsel %vm1055, %v1054, 0
        %1065 = vmatpush.msra.mxu0 0.0
        %1066 = vmatpush.msra.mxu0 0.0
        %1067 = vmatpush.msra.mxu0 0.0
        %1068 = vmatpush.msra.mxu0 0.0
        %1069 = vmatpush.msra.mxu0 0.0
        %1070 = vmatpush.msra.mxu0 0.0
        %1071 = vmatpush.msra.mxu0 0.0
        %1072 = vmatpush.msra.mxu0 0.0
        %1073 = vmatpush.msra.mxu0 0.0
        %1074 = vmatpush.msra.mxu0 0.0
        %1075 = vmatpush.msra.mxu0 0.0
        %1076 = vmatpush.msra.mxu0 0.0
        %1077 = vmatpush.msra.mxu0 %v1048
        %1078 = vmatpush.msra.mxu0 %v1044
        %1079 = vmatpush.msra.mxu0 %v1040
        %1080 = vmatpush.msra.mxu0 %v1036
        %1081 = vmatmul.f32.gmra.mxu0 %v1057
        %v1082 = vpop.f32.mrf.mxu0
        %v1083 = vadd.f32 0.0, %v1082
        %1084 = vmatmul.f32.gmra.mxu0 %v1060
        %v1085 = vpop.f32.mrf.mxu0
        %v1086 = vadd.f32 0.0, %v1085
        %1087 = vmatmul.f32.gmra.mxu0 %v1063
        %v1088 = vpop.f32.mrf.mxu0
        %v1089 = vadd.f32 0.0, %v1088
        %1090 = vdwg.mxu0
        %1091 = vmatpush.msra.mxu0 0.0
        %1092 = vmatpush.msra.mxu0 0.0
        %1093 = vmatpush.msra.mxu0 0.0
        %1094 = vmatpush.msra.mxu0 0.0
        %1095 = vmatpush.msra.mxu0 0.0
        %1096 = vmatpush.msra.mxu0 0.0
        %1097 = vmatpush.msra.mxu0 0.0
        %1098 = vmatpush.msra.mxu0 0.0
        %1099 = vmatpush.msra.mxu0 0.0
        %1100 = vmatpush.msra.mxu0 0.0
        %1101 = vmatpush.msra.mxu0 0.0
        %1102 = vmatpush.msra.mxu0 0.0
        %1103 = vmatpush.msra.mxu0 %v1049
        %1104 = vmatpush.msra.mxu0 %v1045
        %1105 = vmatpush.msra.mxu0 %v1041
        %1106 = vmatpush.msra.mxu0 %v1037
        %1107 = vmatmul.f32.gmra.mxu0 %v1057
        %v1108 = vpop.f32.mrf.mxu0
        %v1109 = vadd.f32 0.0, %v1108
        %1110 = vmatmul.f32.gmra.mxu0 %v1060
        %v1111 = vpop.f32.mrf.mxu0
        %v1112 = vadd.f32 0.0, %v1111
        %1113 = vmatmul.f32.gmra.mxu0 %v1063
        %v1114 = vpop.f32.mrf.mxu0
        %v1115 = vadd.f32 0.0, %v1114
        %1116 = vdwg.mxu0
        %1117 = vmatpush.msra.mxu0 0.0
        %1118 = vmatpush.msra.mxu0 0.0
        %1119 = vmatpush.msra.mxu0 0.0
        %1120 = vmatpush.msra.mxu0 0.0
        %1121 = vmatpush.msra.mxu0 0.0
        %1122 = vmatpush.msra.mxu0 0.0
        %1123 = vmatpush.msra.mxu0 0.0
        %1124 = vmatpush.msra.mxu0 0.0
        %1125 = vmatpush.msra.mxu0 0.0
        %1126 = vmatpush.msra.mxu0 0.0
        %1127 = vmatpush.msra.mxu0 0.0
        %1128 = vmatpush.msra.mxu0 0.0
        %1129 = vmatpush.msra.mxu0 %v1050
        %1130 = vmatpush.msra.mxu0 %v1046
        %1131 = vmatpush.msra.mxu0 %v1042
        %1132 = vmatpush.msra.mxu0 %v1038
        %1133 = vmatmul.f32.gmra.mxu0 %v1057
        %v1134 = vpop.f32.mrf.mxu0
        %v1135 = vadd.f32 0.0, %v1134
        %1136 = vmatmul.f32.gmra.mxu0 %v1060
        %v1137 = vpop.f32.mrf.mxu0
        %v1138 = vadd.f32 0.0, %v1137
        %1139 = vmatmul.f32.gmra.mxu0 %v1063
        %v1140 = vpop.f32.mrf.mxu0
        %v1141 = vadd.f32 0.0, %v1140
        %1142 = vdwg.mxu0
        %1143 = vmatpush.msra.mxu0 0.0
        %1144 = vmatpush.msra.mxu0 0.0
        %1145 = vmatpush.msra.mxu0 0.0
        %1146 = vmatpush.msra.mxu0 0.0
        %1147 = vmatpush.msra.mxu0 0.0
        %1148 = vmatpush.msra.mxu0 0.0
        %1149 = vmatpush.msra.mxu0 0.0
        %1150 = vmatpush.msra.mxu0 0.0
        %1151 = vmatpush.msra.mxu0 0.0
        %1152 = vmatpush.msra.mxu0 0.0
        %1153 = vmatpush.msra.mxu0 0.0
        %1154 = vmatpush.msra.mxu0 0.0
        %1155 = vmatpush.msra.mxu0 %v1051
        %1156 = vmatpush.msra.mxu0 %v1047
        %1157 = vmatpush.msra.mxu0 %v1043
        %1158 = vmatpush.msra.mxu0 %v1039
        %1159 = vmatmul.f32.gmra.mxu0 %v1057
        %v1160 = vpop.f32.mrf.mxu0
        %v1161 = vadd.f32 0.0, %v1160
        %1162 = vmatmul.f32.gmra.mxu0 %v1060
        %v1163 = vpop.f32.mrf.mxu0
        %v1164 = vadd.f32 0.0, %v1163
        %1165 = vmatmul.f32.gmra.mxu0 %v1063
        %v1166 = vpop.f32.mrf.mxu0
        %v1167 = vadd.f32 0.0, %v1166
        %1168 = vdwg.mxu0
        %v1169 = vld [vmem:[%s6] sm:$0xff]
        %v1170 = vld [vmem:[%s6 + $0x8] sm:$0xff]
        %v1171 = vld [vmem:[%s6 + $0x10] sm:$0x3]
        %v1173 = vsel %vm1055, %v1169, 0
        %v1176 = vsel %vm1055, %v1170, 0
        %v1179 = vsel %vm1055, %v1171, 0
        %1181 = vmatpush.msra.mxu0 0.0
        %1182 = vmatpush.msra.mxu0 0.0
        %1183 = vmatpush.msra.mxu0 0.0
        %1184 = vmatpush.msra.mxu0 0.0
        %1185 = vmatpush.msra.mxu0 0.0
        %1186 = vmatpush.msra.mxu0 0.0
        %1187 = vmatpush.msra.mxu0 0.0
        %1188 = vmatpush.msra.mxu0 0.0
        %1189 = vmatpush.msra.mxu0 0.0
        %1190 = vmatpush.msra.mxu0 0.0
        %1191 = vmatpush.msra.mxu0 0.0
        %1192 = vmatpush.msra.mxu0 0.0
        %1193 = vmatpush.msra.mxu0 %v1048
        %1194 = vmatpush.msra.mxu0 %v1044
        %1195 = vmatpush.msra.mxu0 %v1040
        %1196 = vmatpush.msra.mxu0 %v1036
        %1197 = vmatmul.f32.gmra.mxu0 %v1173
        %v1198 = vpop.f32.mrf.mxu0
        %v1199 = vadd.f32 0.0, %v1198
        %1200 = vmatmul.f32.gmra.mxu0 %v1176
        %v1201 = vpop.f32.mrf.mxu0
        %v1202 = vadd.f32 0.0, %v1201
        %1203 = vmatmul.f32.gmra.mxu0 %v1179
        %v1204 = vpop.f32.mrf.mxu0
        %v1205 = vadd.f32 0.0, %v1204
        %1206 = vdwg.mxu0
        %1207 = vmatpush.msra.mxu0 0.0
        %1208 = vmatpush.msra.mxu0 0.0
        %1209 = vmatpush.msra.mxu0 0.0
        %1210 = vmatpush.msra.mxu0 0.0
        %1211 = vmatpush.msra.mxu0 0.0
        %1212 = vmatpush.msra.mxu0 0.0
        %1213 = vmatpush.msra.mxu0 0.0
        %1214 = vmatpush.msra.mxu0 0.0
        %1215 = vmatpush.msra.mxu0 0.0
        %1216 = vmatpush.msra.mxu0 0.0
        %1217 = vmatpush.msra.mxu0 0.0
        %1218 = vmatpush.msra.mxu0 0.0
        %1219 = vmatpush.msra.mxu0 %v1049
        %1220 = vmatpush.msra.mxu0 %v1045
        %1221 = vmatpush.msra.mxu0 %v1041
        %1222 = vmatpush.msra.mxu0 %v1037
        %1223 = vmatmul.f32.gmra.mxu0 %v1173
        %v1224 = vpop.f32.mrf.mxu0
        %v1225 = vadd.f32 0.0, %v1224
        %1226 = vmatmul.f32.gmra.mxu0 %v1176
        %v1227 = vpop.f32.mrf.mxu0
        %v1228 = vadd.f32 0.0, %v1227
        %1229 = vmatmul.f32.gmra.mxu0 %v1179
        %v1230 = vpop.f32.mrf.mxu0
        %v1231 = vadd.f32 0.0, %v1230
        %1232 = vdwg.mxu0
        %1233 = vmatpush.msra.mxu0 0.0
        %1234 = vmatpush.msra.mxu0 0.0
        %1235 = vmatpush.msra.mxu0 0.0
        %1236 = vmatpush.msra.mxu0 0.0
        %1237 = vmatpush.msra.mxu0 0.0
        %1238 = vmatpush.msra.mxu0 0.0
        %1239 = vmatpush.msra.mxu0 0.0
        %1240 = vmatpush.msra.mxu0 0.0
        %1241 = vmatpush.msra.mxu0 0.0
        %1242 = vmatpush.msra.mxu0 0.0
        %1243 = vmatpush.msra.mxu0 0.0
        %1244 = vmatpush.msra.mxu0 0.0
        %1245 = vmatpush.msra.mxu0 %v1050
        %1246 = vmatpush.msra.mxu0 %v1046
        %1247 = vmatpush.msra.mxu0 %v1042
        %1248 = vmatpush.msra.mxu0 %v1038
        %1249 = vmatmul.f32.gmra.mxu0 %v1173
        %v1250 = vpop.f32.mrf.mxu0
        %v1251 = vadd.f32 0.0, %v1250
        %1252 = vmatmul.f32.gmra.mxu0 %v1176
        %v1253 = vpop.f32.mrf.mxu0
        %v1254 = vadd.f32 0.0, %v1253
        %1255 = vmatmul.f32.gmra.mxu0 %v1179
        %v1256 = vpop.f32.mrf.mxu0
        %v1257 = vadd.f32 0.0, %v1256
        %1258 = vdwg.mxu0
        %1259 = vmatpush.msra.mxu0 0.0
        %1260 = vmatpush.msra.mxu0 0.0
        %1261 = vmatpush.msra.mxu0 0.0
        %1262 = vmatpush.msra.mxu0 0.0
        %1263 = vmatpush.msra.mxu0 0.0
        %1264 = vmatpush.msra.mxu0 0.0
        %1265 = vmatpush.msra.mxu0 0.0
        %1266 = vmatpush.msra.mxu0 0.0
        %1267 = vmatpush.msra.mxu0 0.0
        %1268 = vmatpush.msra.mxu0 0.0
        %1269 = vmatpush.msra.mxu0 0.0
        %1270 = vmatpush.msra.mxu0 0.0
        %1271 = vmatpush.msra.mxu0 %v1051
        %1272 = vmatpush.msra.mxu0 %v1047
        %1273 = vmatpush.msra.mxu0 %v1043
        %1274 = vmatpush.msra.mxu0 %v1039
        %1275 = vmatmul.f32.gmra.mxu0 %v1173
        %v1276 = vpop.f32.mrf.mxu0
        %v1277 = vadd.f32 0.0, %v1276
        %1278 = vmatmul.f32.gmra.mxu0 %v1176
        %v1279 = vpop.f32.mrf.mxu0
        %v1280 = vadd.f32 0.0, %v1279
        %1281 = vmatmul.f32.gmra.mxu0 %v1179
        %v1282 = vpop.f32.mrf.mxu0
        %v1283 = vadd.f32 0.0, %v1282
        %1284 = vdwg.mxu0
        %v1285 = vmax.f32 %v1083, %v1199
        %v1286 = vmax.f32 %v1109, %v1225
        %v1287 = vmax.f32 %v1135, %v1251
        %v1288 = vmax.f32 %v1161, %v1277
        %v1289 = vmax.f32 %v1086, %v1202
        %v1290 = vmax.f32 %v1112, %v1228
        %v1291 = vmax.f32 %v1138, %v1254
        %v1292 = vmax.f32 %v1164, %v1280
        %v1293 = vmax.f32 %v1089, %v1205
        %v1294 = vmax.f32 %v1115, %v1231
        %v1295 = vmax.f32 %v1141, %v1257
        %v1296 = vmax.f32 %v1167, %v1283
        %v1297 = vld [vmem:[%s7] sm:$0xff]
        %v1298 = vld [vmem:[%s7 + $0x8] sm:$0xff]
        %v1299 = vld [vmem:[%s7 + $0x10] sm:$0xff]
        %v1300 = vld [vmem:[%s7 + $0x18] sm:$0xff]
        %v1301 = vld [vmem:[%s7 + $0x20] sm:$0xff]
        %v1302 = vld [vmem:[%s7 + $0x28] sm:$0xff]
        %v1303 = vld [vmem:[%s7 + $0x30] sm:$0xff]
        %v1304 = vld [vmem:[%s7 + $0x38] sm:$0xff]
        %v1305 = vld [vmem:[%s7 + $0x40] sm:$0xff]
        %v1306 = vld [vmem:[%s7 + $0x48] sm:$0xff]
        %v1307 = vld [vmem:[%s7 + $0x50] sm:$0xff]
        %v1308 = vld [vmem:[%s7 + $0x58] sm:$0xff]
        %v1309 = vld [vmem:[%s7 + $0x60] sm:$0xff]
        %v1310 = vld [vmem:[%s7 + $0x68] sm:$0xff]
        %v1311 = vld [vmem:[%s7 + $0x70] sm:$0xff]
        %v1312 = vld [vmem:[%s7 + $0x78] sm:$0xff]
        %v1313 = vld [vmem:[%s7 + $0x80] sm:$0xff]
        %v1314 = vld [vmem:[%s7 + $0x88] sm:$0xff]
        %v1315 = vld [vmem:[%s7 + $0x90] sm:$0xff]
        %v1316 = vld [vmem:[%s7 + $0x98] sm:$0xff]
        %v1317 = vld [vmem:[%s7 + $0xa0] sm:$0xff]
        %v1318 = vld [vmem:[%s7 + $0xa8] sm:$0xff]
        %v1319 = vld [vmem:[%s7 + $0xb0] sm:$0xff]
        %v1320 = vld [vmem:[%s7 + $0xb8] sm:$0xff]
        %v1321 = vld [vmem:[%s7 + $0xc0] sm:$0xff]
        %v1322 = vld [vmem:[%s7 + $0xc8] sm:$0xff]
        %v1323 = vld [vmem:[%s7 + $0xd0] sm:$0xff]
        %v1324 = vld [vmem:[%s7 + $0xd8] sm:$0xff]
        %v1325 = vld [vmem:[%s7 + $0xe0] sm:$0xff]
        %v1326 = vld [vmem:[%s7 + $0xe8] sm:$0xff]
        %v1327 = vld [vmem:[%s7 + $0xf0] sm:$0xff]
        %v1328 = vld [vmem:[%s7 + $0xf8] sm:$0xff]
        %v1329 = vld [vmem:[%s7 + $0x100] sm:$0xff]
        %v1330 = vld [vmem:[%s7 + $0x108] sm:$0xff]
        %v1331 = vld [vmem:[%s7 + $0x110] sm:$0xff]
        %v1332 = vld [vmem:[%s7 + $0x118] sm:$0xff]
        %v1333 = vld [vmem:[%s7 + $0x120] sm:$0xff]
        %v1334 = vld [vmem:[%s7 + $0x128] sm:$0xff]
        %v1335 = vld [vmem:[%s7 + $0x130] sm:$0xff]
        %v1336 = vld [vmem:[%s7 + $0x138] sm:$0xff]
        %v1337 = vld [vmem:[%s7 + $0x140] sm:$0xff]
        %v1338 = vld [vmem:[%s7 + $0x148] sm:$0xff]
        %v1339 = vld [vmem:[%s7 + $0x150] sm:$0xff]
        %v1340 = vld [vmem:[%s7 + $0x158] sm:$0xff]
        %v1341 = vld [vmem:[%s7 + $0x160] sm:$0xff]
        %v1342 = vld [vmem:[%s7 + $0x168] sm:$0xff]
        %v1343 = vld [vmem:[%s7 + $0x170] sm:$0xff]
        %v1344 = vld [vmem:[%s7 + $0x178] sm:$0xff]
        %v1345 = vld [vmem:[%s7 + $0x180] sm:$0xff]
        %v1346 = vld [vmem:[%s7 + $0x188] sm:$0xff]
        %v1347 = vld [vmem:[%s7 + $0x190] sm:$0xff]
        %v1348 = vld [vmem:[%s7 + $0x198] sm:$0xff]
        %v1349 = vld [vmem:[%s7 + $0x1a0] sm:$0xff]
        %v1350 = vld [vmem:[%s7 + $0x1a8] sm:$0xff]
        %v1351 = vld [vmem:[%s7 + $0x1b0] sm:$0xff]
        %v1352 = vld [vmem:[%s7 + $0x1b8] sm:$0xff]
        %v1353 = vld [vmem:[%s7 + $0x1c0] sm:$0xff]
        %v1354 = vld [vmem:[%s7 + $0x1c8] sm:$0xff]
        %v1355 = vld [vmem:[%s7 + $0x1d0] sm:$0xff]
        %v1356 = vld [vmem:[%s7 + $0x1d8] sm:$0xff]
        %v1357 = vld [vmem:[%s7 + $0x1e0] sm:$0xff]
        %v1358 = vld [vmem:[%s7 + $0x1e8] sm:$0xff]
        %v1359 = vld [vmem:[%s7 + $0x1f0] sm:$0xff]
        %v1360 = vld [vmem:[%s7 + $0x1f8] sm:$0xff]
        %v1361 = vld [vmem:[%s7 + $0x200] sm:$0xff]
        %v1362 = vld [vmem:[%s7 + $0x208] sm:$0xff]
        %v1363 = vld [vmem:[%s7 + $0x210] sm:$0xff]
        %v1364 = vld [vmem:[%s7 + $0x218] sm:$0xff]
        %v1365 = vld [vmem:[%s7 + $0x220] sm:$0xff]
        %v1366 = vld [vmem:[%s7 + $0x228] sm:$0xff]
        %v1367 = vld [vmem:[%s7 + $0x230] sm:$0xff]
        %v1368 = vld [vmem:[%s7 + $0x238] sm:$0xff]
        %v1369 = vld [vmem:[%s7 + $0x240] sm:$0xff]
        %v1370 = vld [vmem:[%s7 + $0x248] sm:$0xff]
        %v1371 = vld [vmem:[%s7 + $0x250] sm:$0xff]
        %v1372 = vld [vmem:[%s7 + $0x258] sm:$0xff]
        %v1373 = vld [vmem:[%s7 + $0x260] sm:$0xff]
        %v1374 = vld [vmem:[%s7 + $0x268] sm:$0xff]
        %v1375 = vld [vmem:[%s7 + $0x270] sm:$0xff]
        %v1376 = vld [vmem:[%s7 + $0x278] sm:$0xff]
        %v1377 = vld [vmem:[%s7 + $0x280] sm:$0xff]
        %v1378 = vld [vmem:[%s7 + $0x288] sm:$0xff]
        %v1379 = vld [vmem:[%s7 + $0x290] sm:$0xff]
        %v1380 = vld [vmem:[%s7 + $0x298] sm:$0xff]
        %v1381 = vld [vmem:[%s7 + $0x2a0] sm:$0xff]
        %v1382 = vld [vmem:[%s7 + $0x2a8] sm:$0xff]
        %v1383 = vld [vmem:[%s7 + $0x2b0] sm:$0xff]
        %v1384 = vld [vmem:[%s7 + $0x2b8] sm:$0xff]
        %v1385 = vld [vmem:[%s7 + $0x2c0] sm:$0xff]
        %v1386 = vld [vmem:[%s7 + $0x2c8] sm:$0xff]
        %v1387 = vld [vmem:[%s7 + $0x2d0] sm:$0xff]
        %v1388 = vld [vmem:[%s7 + $0x2d8] sm:$0xff]
        %v1389 = vld [vmem:[%s7 + $0x2e0] sm:$0xff]
        %v1390 = vld [vmem:[%s7 + $0x2e8] sm:$0xff]
        %v1391 = vld [vmem:[%s7 + $0x2f0] sm:$0xff]
        %v1392 = vld [vmem:[%s7 + $0x2f8] sm:$0xff]
        %v1393 = vld [vmem:[%s7 + $0x300] sm:$0xff]
        %v1394 = vld [vmem:[%s7 + $0x308] sm:$0xff]
        %v1395 = vld [vmem:[%s7 + $0x310] sm:$0xff]
        %v1396 = vld [vmem:[%s7 + $0x318] sm:$0xff]
        %v1397 = vld [vmem:[%s7 + $0x320] sm:$0xff]
        %v1398 = vld [vmem:[%s7 + $0x328] sm:$0xff]
        %v1399 = vld [vmem:[%s7 + $0x330] sm:$0xff]
        %v1400 = vld [vmem:[%s7 + $0x338] sm:$0xff]
        %v1401 = vld [vmem:[%s7 + $0x340] sm:$0xff]
        %v1402 = vld [vmem:[%s7 + $0x348] sm:$0xff]
        %v1403 = vld [vmem:[%s7 + $0x350] sm:$0xff]
        %v1404 = vld [vmem:[%s7 + $0x358] sm:$0xff]
        %v1405 = vld [vmem:[%s7 + $0x360] sm:$0xff]
        %v1406 = vld [vmem:[%s7 + $0x368] sm:$0xff]
        %v1407 = vld [vmem:[%s7 + $0x370] sm:$0xff]
        %v1408 = vld [vmem:[%s7 + $0x378] sm:$0xff]
        %v1409 = vld [vmem:[%s7 + $0x380] sm:$0xff]
        %v1410 = vld [vmem:[%s7 + $0x388] sm:$0xff]
        %v1411 = vld [vmem:[%s7 + $0x390] sm:$0xff]
        %v1412 = vld [vmem:[%s7 + $0x398] sm:$0xff]
        %v1413 = vld [vmem:[%s7 + $0x3a0] sm:$0xff]
        %v1414 = vld [vmem:[%s7 + $0x3a8] sm:$0xff]
        %v1415 = vld [vmem:[%s7 + $0x3b0] sm:$0xff]
        %v1416 = vld [vmem:[%s7 + $0x3b8] sm:$0xff]
        %v1417 = vld [vmem:[%s7 + $0x3c0] sm:$0xff]
        %v1418 = vld [vmem:[%s7 + $0x3c8] sm:$0xff]
        %v1419 = vld [vmem:[%s7 + $0x3d0] sm:$0xff]
        %v1420 = vld [vmem:[%s7 + $0x3d8] sm:$0xff]
        %v1421 = vld [vmem:[%s7 + $0x3e0] sm:$0xff]
        %v1422 = vld [vmem:[%s7 + $0x3e8] sm:$0xff]
        %v1423 = vld [vmem:[%s7 + $0x3f0] sm:$0xff]
        %v1424 = vld [vmem:[%s7 + $0x3f8] sm:$0xff]
        %v1425 = vld [vmem:[%s7 + $0x400] sm:$0xff]
        %v1426 = vld [vmem:[%s7 + $0x408] sm:$0xff]
        %v1427 = vld [vmem:[%s7 + $0x410] sm:$0xff]
        %v1428 = vld [vmem:[%s7 + $0x418] sm:$0xff]
        %v1429 = vld [vmem:[%s7 + $0x420] sm:$0xff]
        %v1430 = vld [vmem:[%s7 + $0x428] sm:$0xff]
        %v1431 = vld [vmem:[%s7 + $0x430] sm:$0xff]
        %v1432 = vld [vmem:[%s7 + $0x438] sm:$0xff]
        %v1433 = vld [vmem:[%s7 + $0x440] sm:$0xff]
        %v1434 = vld [vmem:[%s7 + $0x448] sm:$0xff]
        %v1435 = vld [vmem:[%s7 + $0x450] sm:$0xff]
        %v1436 = vld [vmem:[%s7 + $0x458] sm:$0xff]
        %v1437 = vld [vmem:[%s7 + $0x460] sm:$0xff]
        %v1438 = vld [vmem:[%s7 + $0x468] sm:$0xff]
        %v1439 = vld [vmem:[%s7 + $0x470] sm:$0xff]
        %v1440 = vld [vmem:[%s7 + $0x478] sm:$0xff]
        %v1441 = vld [vmem:[%s7 + $0x480] sm:$0xff]
        %v1442 = vld [vmem:[%s7 + $0x488] sm:$0xff]
        %v1443 = vld [vmem:[%s7 + $0x490] sm:$0xff]
        %v1444 = vld [vmem:[%s7 + $0x498] sm:$0xff]
        %v1445 = vld [vmem:[%s7 + $0x4a0] sm:$0xff]
        %v1446 = vld [vmem:[%s7 + $0x4a8] sm:$0xff]
        %v1447 = vld [vmem:[%s7 + $0x4b0] sm:$0xff]
        %v1448 = vld [vmem:[%s7 + $0x4b8] sm:$0xff]
        %v1449 = vld [vmem:[%s7 + $0x4c0] sm:$0xff]
        %v1450 = vld [vmem:[%s7 + $0x4c8] sm:$0xff]
        %v1451 = vld [vmem:[%s7 + $0x4d0] sm:$0xff]
        %v1452 = vld [vmem:[%s7 + $0x4d8] sm:$0xff]
        %v1453 = vld [vmem:[%s7 + $0x4e0] sm:$0xff]
        %v1454 = vld [vmem:[%s7 + $0x4e8] sm:$0xff]
        %v1455 = vld [vmem:[%s7 + $0x4f0] sm:$0xff]
        %v1456 = vld [vmem:[%s7 + $0x4f8] sm:$0xff]
        %v1457 = vld [vmem:[%s7 + $0x500] sm:$0xff]
        %v1458 = vld [vmem:[%s7 + $0x508] sm:$0xff]
        %v1459 = vld [vmem:[%s7 + $0x510] sm:$0xff]
        %v1460 = vld [vmem:[%s7 + $0x518] sm:$0xff]
        %v1461 = vld [vmem:[%s7 + $0x520] sm:$0xff]
        %v1462 = vld [vmem:[%s7 + $0x528] sm:$0xff]
        %v1463 = vld [vmem:[%s7 + $0x530] sm:$0xff]
        %v1464 = vld [vmem:[%s7 + $0x538] sm:$0xff]
        %v1465 = vld [vmem:[%s7 + $0x540] sm:$0xff]
        %v1466 = vld [vmem:[%s7 + $0x548] sm:$0xff]
        %v1467 = vld [vmem:[%s7 + $0x550] sm:$0xff]
        %v1468 = vld [vmem:[%s7 + $0x558] sm:$0xff]
        %v1469 = vld [vmem:[%s7 + $0x560] sm:$0xff]
        %v1470 = vld [vmem:[%s7 + $0x568] sm:$0xff]
        %v1471 = vld [vmem:[%s7 + $0x570] sm:$0xff]
        %v1472 = vld [vmem:[%s7 + $0x578] sm:$0xff]
        %v1473 = vld [vmem:[%s7 + $0x580] sm:$0xff]
        %v1474 = vld [vmem:[%s7 + $0x588] sm:$0xff]
        %v1475 = vld [vmem:[%s7 + $0x590] sm:$0xff]
        %v1476 = vld [vmem:[%s7 + $0x598] sm:$0xff]
        %v1477 = vld [vmem:[%s7 + $0x5a0] sm:$0xff]
        %v1478 = vld [vmem:[%s7 + $0x5a8] sm:$0xff]
        %v1479 = vld [vmem:[%s7 + $0x5b0] sm:$0xff]
        %v1480 = vld [vmem:[%s7 + $0x5b8] sm:$0xff]
        %v1481 = vld [vmem:[%s7 + $0x5c0] sm:$0xff]
        %v1482 = vld [vmem:[%s7 + $0x5c8] sm:$0xff]
        %v1483 = vld [vmem:[%s7 + $0x5d0] sm:$0xff]
        %v1484 = vld [vmem:[%s7 + $0x5d8] sm:$0xff]
        %v1485 = vld [vmem:[%s7 + $0x5e0] sm:$0xff]
        %v1486 = vld [vmem:[%s7 + $0x5e8] sm:$0xff]
        %v1487 = vld [vmem:[%s7 + $0x5f0] sm:$0xff]
        %v1488 = vld [vmem:[%s7 + $0x5f8] sm:$0xff]
        %1489 = vmatpush.msra.mxu0 %v1342
        %1490 = vmatpush.msra.mxu0 %v1339
        %1491 = vmatpush.msra.mxu0 %v1336
        %1492 = vmatpush.msra.mxu0 %v1333
        %1493 = vmatpush.msra.mxu0 %v1330
        %1494 = vmatpush.msra.mxu0 %v1327
        %1495 = vmatpush.msra.mxu0 %v1324
        %1496 = vmatpush.msra.mxu0 %v1321
        %1497 = vmatpush.msra.mxu0 %v1318
        %1498 = vmatpush.msra.mxu0 %v1315
        %1499 = vmatpush.msra.mxu0 %v1312
        %1500 = vmatpush.msra.mxu0 %v1309
        %1501 = vmatpush.msra.mxu0 %v1306
        %1502 = vmatpush.msra.mxu0 %v1303
        %1503 = vmatpush.msra.mxu0 %v1300
        %1504 = vmatpush.msra.mxu0 %v1297
        %1505 = vmatmul.f32.gmra.mxu0 %v1285
        %v1506 = vpop.f32.mrf.mxu0
        %v1507 = vadd.f32 0.0, %v1506
        %1508 = vmatmul.f32.gmra.mxu0 %v1289
        %v1509 = vpop.f32.mrf.mxu0
        %v1510 = vadd.f32 0.0, %v1509
        %1511 = vmatmul.f32.gmra.mxu0 %v1293
        %v1512 = vpop.f32.mrf.mxu0
        %v1513 = vadd.f32 0.0, %v1512
        %1514 = vdwg.mxu0
        %1515 = vmatpush.msra.mxu0 %v1390
        %1516 = vmatpush.msra.mxu0 %v1387
        %1517 = vmatpush.msra.mxu0 %v1384
        %1518 = vmatpush.msra.mxu0 %v1381
        %1519 = vmatpush.msra.mxu0 %v1378
        %1520 = vmatpush.msra.mxu0 %v1375
        %1521 = vmatpush.msra.mxu0 %v1372
        %1522 = vmatpush.msra.mxu0 %v1369
        %1523 = vmatpush.msra.mxu0 %v1366
        %1524 = vmatpush.msra.mxu0 %v1363
        %1525 = vmatpush.msra.mxu0 %v1360
        %1526 = vmatpush.msra.mxu0 %v1357
        %1527 = vmatpush.msra.mxu0 %v1354
        %1528 = vmatpush.msra.mxu0 %v1351
        %1529 = vmatpush.msra.mxu0 %v1348
        %1530 = vmatpush.msra.mxu0 %v1345
        %1531 = vmatmul.f32.gmra.mxu0 %v1286
        %v1532 = vpop.f32.mrf.mxu0
        %v1533 = vadd.f32 %v1507, %v1532
        %1534 = vmatmul.f32.gmra.mxu0 %v1290
        %v1535 = vpop.f32.mrf.mxu0
        %v1536 = vadd.f32 %v1510, %v1535
        %1537 = vmatmul.f32.gmra.mxu0 %v1294
        %v1538 = vpop.f32.mrf.mxu0
        %v1539 = vadd.f32 %v1513, %v1538
        %1540 = vdwg.mxu0
        %1541 = vmatpush.msra.mxu0 %v1438
        %1542 = vmatpush.msra.mxu0 %v1435
        %1543 = vmatpush.msra.mxu0 %v1432
        %1544 = vmatpush.msra.mxu0 %v1429
        %1545 = vmatpush.msra.mxu0 %v1426
        %1546 = vmatpush.msra.mxu0 %v1423
        %1547 = vmatpush.msra.mxu0 %v1420
        %1548 = vmatpush.msra.mxu0 %v1417
        %1549 = vmatpush.msra.mxu0 %v1414
        %1550 = vmatpush.msra.mxu0 %v1411
        %1551 = vmatpush.msra.mxu0 %v1408
        %1552 = vmatpush.msra.mxu0 %v1405
        %1553 = vmatpush.msra.mxu0 %v1402
        %1554 = vmatpush.msra.mxu0 %v1399
        %1555 = vmatpush.msra.mxu0 %v1396
        %1556 = vmatpush.msra.mxu0 %v1393
        %1557 = vmatmul.f32.gmra.mxu0 %v1287
        %v1558 = vpop.f32.mrf.mxu0
        %v1559 = vadd.f32 %v1533, %v1558
        %1560 = vmatmul.f32.gmra.mxu0 %v1291
        %v1561 = vpop.f32.mrf.mxu0
        %v1562 = vadd.f32 %v1536, %v1561
        %1563 = vmatmul.f32.gmra.mxu0 %v1295
        %v1564 = vpop.f32.mrf.mxu0
        %v1565 = vadd.f32 %v1539, %v1564
        %1566 = vdwg.mxu0
        %1567 = vmatpush.msra.mxu0 %v1486
        %1568 = vmatpush.msra.mxu0 %v1483
        %1569 = vmatpush.msra.mxu0 %v1480
        %1570 = vmatpush.msra.mxu0 %v1477
        %1571 = vmatpush.msra.mxu0 %v1474
        %1572 = vmatpush.msra.mxu0 %v1471
        %1573 = vmatpush.msra.mxu0 %v1468
        %1574 = vmatpush.msra.mxu0 %v1465
        %1575 = vmatpush.msra.mxu0 %v1462
        %1576 = vmatpush.msra.mxu0 %v1459
        %1577 = vmatpush.msra.mxu0 %v1456
        %1578 = vmatpush.msra.mxu0 %v1453
        %1579 = vmatpush.msra.mxu0 %v1450
        %1580 = vmatpush.msra.mxu0 %v1447
        %1581 = vmatpush.msra.mxu0 %v1444
        %1582 = vmatpush.msra.mxu0 %v1441
        %1583 = vmatmul.f32.gmra.mxu0 %v1288
        %v1584 = vpop.f32.mrf.mxu0
        %v1585 = vadd.f32 %v1559, %v1584
        %1586 = vmatmul.f32.gmra.mxu0 %v1292
        %v1587 = vpop.f32.mrf.mxu0
        %v1588 = vadd.f32 %v1562, %v1587
        %1589 = vmatmul.f32.gmra.mxu0 %v1296
        %v1590 = vpop.f32.mrf.mxu0
        %v1591 = vadd.f32 %v1565, %v1590
        %1592 = vdwg.mxu0
        %1593 = vmatpush.msra.mxu0 %v1343
        %1594 = vmatpush.msra.mxu0 %v1340
        %1595 = vmatpush.msra.mxu0 %v1337
        %1596 = vmatpush.msra.mxu0 %v1334
        %1597 = vmatpush.msra.mxu0 %v1331
        %1598 = vmatpush.msra.mxu0 %v1328
        %1599 = vmatpush.msra.mxu0 %v1325
        %1600 = vmatpush.msra.mxu0 %v1322
        %1601 = vmatpush.msra.mxu0 %v1319
        %1602 = vmatpush.msra.mxu0 %v1316
        %1603 = vmatpush.msra.mxu0 %v1313
        %1604 = vmatpush.msra.mxu0 %v1310
        %1605 = vmatpush.msra.mxu0 %v1307
        %1606 = vmatpush.msra.mxu0 %v1304
        %1607 = vmatpush.msra.mxu0 %v1301
        %1608 = vmatpush.msra.mxu0 %v1298
        %1609 = vmatmul.f32.gmra.mxu0 %v1285
        %v1610 = vpop.f32.mrf.mxu0
        %v1611 = vadd.f32 0.0, %v1610
        %1612 = vmatmul.f32.gmra.mxu0 %v1289
        %v1613 = vpop.f32.mrf.mxu0
        %v1614 = vadd.f32 0.0, %v1613
        %1615 = vmatmul.f32.gmra.mxu0 %v1293
        %v1616 = vpop.f32.mrf.mxu0
        %v1617 = vadd.f32 0.0, %v1616
        %1618 = vdwg.mxu0
        %1619 = vmatpush.msra.mxu0 %v1391
        %1620 = vmatpush.msra.mxu0 %v1388
        %1621 = vmatpush.msra.mxu0 %v1385
        %1622 = vmatpush.msra.mxu0 %v1382
        %1623 = vmatpush.msra.mxu0 %v1379
        %1624 = vmatpush.msra.mxu0 %v1376
        %1625 = vmatpush.msra.mxu0 %v1373
        %1626 = vmatpush.msra.mxu0 %v1370
        %1627 = vmatpush.msra.mxu0 %v1367
        %1628 = vmatpush.msra.mxu0 %v1364
        %1629 = vmatpush.msra.mxu0 %v1361
        %1630 = vmatpush.msra.mxu0 %v1358
        %1631 = vmatpush.msra.mxu0 %v1355
        %1632 = vmatpush.msra.mxu0 %v1352
        %1633 = vmatpush.msra.mxu0 %v1349
        %1634 = vmatpush.msra.mxu0 %v1346
        %1635 = vmatmul.f32.gmra.mxu0 %v1286
        %v1636 = vpop.f32.mrf.mxu0
        %v1637 = vadd.f32 %v1611, %v1636
        %1638 = vmatmul.f32.gmra.mxu0 %v1290
        %v1639 = vpop.f32.mrf.mxu0
        %v1640 = vadd.f32 %v1614, %v1639
        %1641 = vmatmul.f32.gmra.mxu0 %v1294
        %v1642 = vpop.f32.mrf.mxu0
        %v1643 = vadd.f32 %v1617, %v1642
        %1644 = vdwg.mxu0
        %1645 = vmatpush.msra.mxu0 %v1439
        %1646 = vmatpush.msra.mxu0 %v1436
        %1647 = vmatpush.msra.mxu0 %v1433
        %1648 = vmatpush.msra.mxu0 %v1430
        %1649 = vmatpush.msra.mxu0 %v1427
        %1650 = vmatpush.msra.mxu0 %v1424
        %1651 = vmatpush.msra.mxu0 %v1421
        %1652 = vmatpush.msra.mxu0 %v1418
        %1653 = vmatpush.msra.mxu0 %v1415
        %1654 = vmatpush.msra.mxu0 %v1412
        %1655 = vmatpush.msra.mxu0 %v1409
        %1656 = vmatpush.msra.mxu0 %v1406
        %1657 = vmatpush.msra.mxu0 %v1403
        %1658 = vmatpush.msra.mxu0 %v1400
        %1659 = vmatpush.msra.mxu0 %v1397
        %1660 = vmatpush.msra.mxu0 %v1394
        %1661 = vmatmul.f32.gmra.mxu0 %v1287
        %v1662 = vpop.f32.mrf.mxu0
        %v1663 = vadd.f32 %v1637, %v1662
        %1664 = vmatmul.f32.gmra.mxu0 %v1291
        %v1665 = vpop.f32.mrf.mxu0
        %v1666 = vadd.f32 %v1640, %v1665
        %1667 = vmatmul.f32.gmra.mxu0 %v1295
        %v1668 = vpop.f32.mrf.mxu0
        %v1669 = vadd.f32 %v1643, %v1668
        %1670 = vdwg.mxu0
        %1671 = vmatpush.msra.mxu0 %v1487
        %1672 = vmatpush.msra.mxu0 %v1484
        %1673 = vmatpush.msra.mxu0 %v1481
        %1674 = vmatpush.msra.mxu0 %v1478
        %1675 = vmatpush.msra.mxu0 %v1475
        %1676 = vmatpush.msra.mxu0 %v1472
        %1677 = vmatpush.msra.mxu0 %v1469
        %1678 = vmatpush.msra.mxu0 %v1466
        %1679 = vmatpush.msra.mxu0 %v1463
        %1680 = vmatpush.msra.mxu0 %v1460
        %1681 = vmatpush.msra.mxu0 %v1457
        %1682 = vmatpush.msra.mxu0 %v1454
        %1683 = vmatpush.msra.mxu0 %v1451
        %1684 = vmatpush.msra.mxu0 %v1448
        %1685 = vmatpush.msra.mxu0 %v1445
        %1686 = vmatpush.msra.mxu0 %v1442
        %1687 = vmatmul.f32.gmra.mxu0 %v1288
        %v1688 = vpop.f32.mrf.mxu0
        %v1689 = vadd.f32 %v1663, %v1688
        %1690 = vmatmul.f32.gmra.mxu0 %v1292
        %v1691 = vpop.f32.mrf.mxu0
        %v1692 = vadd.f32 %v1666, %v1691
        %1693 = vmatmul.f32.gmra.mxu0 %v1296
        %v1694 = vpop.f32.mrf.mxu0
        %v1695 = vadd.f32 %v1669, %v1694
        %1696 = vdwg.mxu0
        %1697 = vmatpush.msra.mxu0 %v1344
        %1698 = vmatpush.msra.mxu0 %v1341
        %1699 = vmatpush.msra.mxu0 %v1338
        %1700 = vmatpush.msra.mxu0 %v1335
        %1701 = vmatpush.msra.mxu0 %v1332
        %1702 = vmatpush.msra.mxu0 %v1329
        %1703 = vmatpush.msra.mxu0 %v1326
        %1704 = vmatpush.msra.mxu0 %v1323
        %1705 = vmatpush.msra.mxu0 %v1320
        %1706 = vmatpush.msra.mxu0 %v1317
        %1707 = vmatpush.msra.mxu0 %v1314
        %1708 = vmatpush.msra.mxu0 %v1311
        %1709 = vmatpush.msra.mxu0 %v1308
        %1710 = vmatpush.msra.mxu0 %v1305
        %1711 = vmatpush.msra.mxu0 %v1302
        %1712 = vmatpush.msra.mxu0 %v1299
        %1713 = vmatmul.f32.gmra.mxu0 %v1285
        %v1714 = vpop.f32.mrf.mxu0
        %v1715 = vadd.f32 0.0, %v1714
        %1716 = vmatmul.f32.gmra.mxu0 %v1289
        %v1717 = vpop.f32.mrf.mxu0
        %v1718 = vadd.f32 0.0, %v1717
        %1719 = vmatmul.f32.gmra.mxu0 %v1293
        %v1720 = vpop.f32.mrf.mxu0
        %v1721 = vadd.f32 0.0, %v1720
        %1722 = vdwg.mxu0
        %1723 = vmatpush.msra.mxu0 %v1392
        %1724 = vmatpush.msra.mxu0 %v1389
        %1725 = vmatpush.msra.mxu0 %v1386
        %1726 = vmatpush.msra.mxu0 %v1383
        %1727 = vmatpush.msra.mxu0 %v1380
        %1728 = vmatpush.msra.mxu0 %v1377
        %1729 = vmatpush.msra.mxu0 %v1374
        %1730 = vmatpush.msra.mxu0 %v1371
        %1731 = vmatpush.msra.mxu0 %v1368
        %1732 = vmatpush.msra.mxu0 %v1365
        %1733 = vmatpush.msra.mxu0 %v1362
        %1734 = vmatpush.msra.mxu0 %v1359
        %1735 = vmatpush.msra.mxu0 %v1356
        %1736 = vmatpush.msra.mxu0 %v1353
        %1737 = vmatpush.msra.mxu0 %v1350
        %1738 = vmatpush.msra.mxu0 %v1347
        %1739 = vmatmul.f32.gmra.mxu0 %v1286
        %v1740 = vpop.f32.mrf.mxu0
        %v1741 = vadd.f32 %v1715, %v1740
        %1742 = vmatmul.f32.gmra.mxu0 %v1290
        %v1743 = vpop.f32.mrf.mxu0
        %v1744 = vadd.f32 %v1718, %v1743
        %1745 = vmatmul.f32.gmra.mxu0 %v1294
        %v1746 = vpop.f32.mrf.mxu0
        %v1747 = vadd.f32 %v1721, %v1746
        %1748 = vdwg.mxu0
        %1749 = vmatpush.msra.mxu0 %v1440
        %1750 = vmatpush.msra.mxu0 %v1437
        %1751 = vmatpush.msra.mxu0 %v1434
        %1752 = vmatpush.msra.mxu0 %v1431
        %1753 = vmatpush.msra.mxu0 %v1428
        %1754 = vmatpush.msra.mxu0 %v1425
        %1755 = vmatpush.msra.mxu0 %v1422
        %1756 = vmatpush.msra.mxu0 %v1419
        %1757 = vmatpush.msra.mxu0 %v1416
        %1758 = vmatpush.msra.mxu0 %v1413
        %1759 = vmatpush.msra.mxu0 %v1410
        %1760 = vmatpush.msra.mxu0 %v1407
        %1761 = vmatpush.msra.mxu0 %v1404
        %1762 = vmatpush.msra.mxu0 %v1401
        %1763 = vmatpush.msra.mxu0 %v1398
        %1764 = vmatpush.msra.mxu0 %v1395
        %1765 = vmatmul.f32.gmra.mxu0 %v1287
        %v1766 = vpop.f32.mrf.mxu0
        %v1767 = vadd.f32 %v1741, %v1766
        %1768 = vmatmul.f32.gmra.mxu0 %v1291
        %v1769 = vpop.f32.mrf.mxu0
        %v1770 = vadd.f32 %v1744, %v1769
        %1771 = vmatmul.f32.gmra.mxu0 %v1295
        %v1772 = vpop.f32.mrf.mxu0
        %v1773 = vadd.f32 %v1747, %v1772
        %1774 = vdwg.mxu0
        %1775 = vmatpush.msra.mxu0 %v1488
        %1776 = vmatpush.msra.mxu0 %v1485
        %1777 = vmatpush.msra.mxu0 %v1482
        %1778 = vmatpush.msra.mxu0 %v1479
        %1779 = vmatpush.msra.mxu0 %v1476
        %1780 = vmatpush.msra.mxu0 %v1473
        %1781 = vmatpush.msra.mxu0 %v1470
        %1782 = vmatpush.msra.mxu0 %v1467
        %1783 = vmatpush.msra.mxu0 %v1464
        %1784 = vmatpush.msra.mxu0 %v1461
        %1785 = vmatpush.msra.mxu0 %v1458
        %1786 = vmatpush.msra.mxu0 %v1455
        %1787 = vmatpush.msra.mxu0 %v1452
        %1788 = vmatpush.msra.mxu0 %v1449
        %1789 = vmatpush.msra.mxu0 %v1446
        %1790 = vmatpush.msra.mxu0 %v1443
        %1791 = vmatmul.f32.gmra.mxu0 %v1288
        %v1792 = vpop.f32.mrf.mxu0
        %v1793 = vadd.f32 %v1767, %v1792
        %1794 = vmatmul.f32.gmra.mxu0 %v1292
        %v1795 = vpop.f32.mrf.mxu0
        %v1796 = vadd.f32 %v1770, %v1795
        %1797 = vmatmul.f32.gmra.mxu0 %v1296
        %v1798 = vpop.f32.mrf.mxu0
        %v1799 = vadd.f32 %v1773, %v1798
        %1800 = vdwg.mxu0
        %v1801 = vld [vmem:[%s8] sm:$0xff]
        %v1802 = vld [vmem:[%s8 + $0x8] sm:$0xff]
        %v1803 = vld [vmem:[%s8 + $0x10] sm:$0xff]
        %v1804 = vld [vmem:[%s8 + $0x18] sm:$0xff]
        %v1805 = vld [vmem:[%s8 + $0x20] sm:$0xff]
        %v1806 = vld [vmem:[%s8 + $0x28] sm:$0xff]
        %v1807 = vld [vmem:[%s8 + $0x30] sm:$0xff]
        %v1808 = vld [vmem:[%s8 + $0x38] sm:$0xff]
        %v1809 = vld [vmem:[%s8 + $0x40] sm:$0xff]
        %v1810 = vld [vmem:[%s8 + $0x48] sm:$0xff]
        %v1811 = vld [vmem:[%s8 + $0x50] sm:$0xff]
        %v1812 = vld [vmem:[%s8 + $0x58] sm:$0xff]
        %v1813 = vld [vmem:[%s8 + $0x60] sm:$0xff]
        %v1814 = vld [vmem:[%s8 + $0x68] sm:$0xff]
        %v1815 = vld [vmem:[%s8 + $0x70] sm:$0xff]
        %v1816 = vld [vmem:[%s8 + $0x78] sm:$0xff]
        %v1817 = vld [vmem:[%s8 + $0x80] sm:$0xff]
        %v1818 = vld [vmem:[%s8 + $0x88] sm:$0xff]
        %v1819 = vld [vmem:[%s8 + $0x90] sm:$0xff]
        %v1820 = vld [vmem:[%s8 + $0x98] sm:$0xff]
        %v1821 = vld [vmem:[%s8 + $0xa0] sm:$0xff]
        %v1822 = vld [vmem:[%s8 + $0xa8] sm:$0xff]
        %v1823 = vld [vmem:[%s8 + $0xb0] sm:$0xff]
        %v1824 = vld [vmem:[%s8 + $0xb8] sm:$0xff]
        %v1825 = vld [vmem:[%s8 + $0xc0] sm:$0xff]
        %v1826 = vld [vmem:[%s8 + $0xc8] sm:$0xff]
        %v1827 = vld [vmem:[%s8 + $0xd0] sm:$0xff]
        %v1828 = vld [vmem:[%s8 + $0xd8] sm:$0xff]
        %v1829 = vld [vmem:[%s8 + $0xe0] sm:$0xff]
        %v1830 = vld [vmem:[%s8 + $0xe8] sm:$0xff]
        %v1831 = vld [vmem:[%s8 + $0xf0] sm:$0xff]
        %v1832 = vld [vmem:[%s8 + $0xf8] sm:$0xff]
        %v1833 = vld [vmem:[%s8 + $0x100] sm:$0xff]
        %v1834 = vld [vmem:[%s8 + $0x108] sm:$0xff]
        %v1835 = vld [vmem:[%s8 + $0x110] sm:$0xff]
        %v1836 = vld [vmem:[%s8 + $0x118] sm:$0xff]
        %v1837 = vld [vmem:[%s8 + $0x120] sm:$0xff]
        %v1838 = vld [vmem:[%s8 + $0x128] sm:$0xff]
        %v1839 = vld [vmem:[%s8 + $0x130] sm:$0xff]
        %v1840 = vld [vmem:[%s8 + $0x138] sm:$0xff]
        %v1841 = vld [vmem:[%s8 + $0x140] sm:$0xff]
        %v1842 = vld [vmem:[%s8 + $0x148] sm:$0xff]
        %v1843 = vld [vmem:[%s8 + $0x150] sm:$0xff]
        %v1844 = vld [vmem:[%s8 + $0x158] sm:$0xff]
        %v1845 = vld [vmem:[%s8 + $0x160] sm:$0xff]
        %v1846 = vld [vmem:[%s8 + $0x168] sm:$0xff]
        %v1847 = vld [vmem:[%s8 + $0x170] sm:$0xff]
        %v1848 = vld [vmem:[%s8 + $0x178] sm:$0xff]
        %v1849 = vld [vmem:[%s8 + $0x180] sm:$0xff]
        %v1850 = vld [vmem:[%s8 + $0x188] sm:$0xff]
        %v1851 = vld [vmem:[%s8 + $0x190] sm:$0xff]
        %v1852 = vld [vmem:[%s8 + $0x198] sm:$0xff]
        %v1853 = vld [vmem:[%s8 + $0x1a0] sm:$0xff]
        %v1854 = vld [vmem:[%s8 + $0x1a8] sm:$0xff]
        %v1855 = vld [vmem:[%s8 + $0x1b0] sm:$0xff]
        %v1856 = vld [vmem:[%s8 + $0x1b8] sm:$0xff]
        %v1857 = vld [vmem:[%s8 + $0x1c0] sm:$0xff]
        %v1858 = vld [vmem:[%s8 + $0x1c8] sm:$0xff]
        %v1859 = vld [vmem:[%s8 + $0x1d0] sm:$0xff]
        %v1860 = vld [vmem:[%s8 + $0x1d8] sm:$0xff]
        %v1861 = vld [vmem:[%s8 + $0x1e0] sm:$0xff]
        %v1862 = vld [vmem:[%s8 + $0x1e8] sm:$0xff]
        %v1863 = vld [vmem:[%s8 + $0x1f0] sm:$0xff]
        %v1864 = vld [vmem:[%s8 + $0x1f8] sm:$0xff]
        %v1865 = vld [vmem:[%s8 + $0x200] sm:$0xff]
        %v1866 = vld [vmem:[%s8 + $0x208] sm:$0xff]
        %v1867 = vld [vmem:[%s8 + $0x210] sm:$0xff]
        %v1868 = vld [vmem:[%s8 + $0x218] sm:$0xff]
        %v1869 = vld [vmem:[%s8 + $0x220] sm:$0xff]
        %v1870 = vld [vmem:[%s8 + $0x228] sm:$0xff]
        %v1871 = vld [vmem:[%s8 + $0x230] sm:$0xff]
        %v1872 = vld [vmem:[%s8 + $0x238] sm:$0xff]
        %v1873 = vld [vmem:[%s8 + $0x240] sm:$0xff]
        %v1874 = vld [vmem:[%s8 + $0x248] sm:$0xff]
        %v1875 = vld [vmem:[%s8 + $0x250] sm:$0xff]
        %v1876 = vld [vmem:[%s8 + $0x258] sm:$0xff]
        %v1877 = vld [vmem:[%s8 + $0x260] sm:$0xff]
        %v1878 = vld [vmem:[%s8 + $0x268] sm:$0xff]
        %v1879 = vld [vmem:[%s8 + $0x270] sm:$0xff]
        %v1880 = vld [vmem:[%s8 + $0x278] sm:$0xff]
        %v1881 = vld [vmem:[%s8 + $0x280] sm:$0xff]
        %v1882 = vld [vmem:[%s8 + $0x288] sm:$0xff]
        %v1883 = vld [vmem:[%s8 + $0x290] sm:$0xff]
        %v1884 = vld [vmem:[%s8 + $0x298] sm:$0xff]
        %v1885 = vld [vmem:[%s8 + $0x2a0] sm:$0xff]
        %v1886 = vld [vmem:[%s8 + $0x2a8] sm:$0xff]
        %v1887 = vld [vmem:[%s8 + $0x2b0] sm:$0xff]
        %v1888 = vld [vmem:[%s8 + $0x2b8] sm:$0xff]
        %v1889 = vld [vmem:[%s8 + $0x2c0] sm:$0xff]
        %v1890 = vld [vmem:[%s8 + $0x2c8] sm:$0xff]
        %v1891 = vld [vmem:[%s8 + $0x2d0] sm:$0xff]
        %v1892 = vld [vmem:[%s8 + $0x2d8] sm:$0xff]
        %v1893 = vld [vmem:[%s8 + $0x2e0] sm:$0xff]
        %v1894 = vld [vmem:[%s8 + $0x2e8] sm:$0xff]
        %v1895 = vld [vmem:[%s8 + $0x2f0] sm:$0xff]
        %v1896 = vld [vmem:[%s8 + $0x2f8] sm:$0xff]
        %v1897 = vld [vmem:[%s8 + $0x300] sm:$0xff]
        %v1898 = vld [vmem:[%s8 + $0x308] sm:$0xff]
        %v1899 = vld [vmem:[%s8 + $0x310] sm:$0xff]
        %v1900 = vld [vmem:[%s8 + $0x318] sm:$0xff]
        %v1901 = vld [vmem:[%s8 + $0x320] sm:$0xff]
        %v1902 = vld [vmem:[%s8 + $0x328] sm:$0xff]
        %v1903 = vld [vmem:[%s8 + $0x330] sm:$0xff]
        %v1904 = vld [vmem:[%s8 + $0x338] sm:$0xff]
        %v1905 = vld [vmem:[%s8 + $0x340] sm:$0xff]
        %v1906 = vld [vmem:[%s8 + $0x348] sm:$0xff]
        %v1907 = vld [vmem:[%s8 + $0x350] sm:$0xff]
        %v1908 = vld [vmem:[%s8 + $0x358] sm:$0xff]
        %v1909 = vld [vmem:[%s8 + $0x360] sm:$0xff]
        %v1910 = vld [vmem:[%s8 + $0x368] sm:$0xff]
        %v1911 = vld [vmem:[%s8 + $0x370] sm:$0xff]
        %v1912 = vld [vmem:[%s8 + $0x378] sm:$0xff]
        %v1913 = vld [vmem:[%s8 + $0x380] sm:$0xff]
        %v1914 = vld [vmem:[%s8 + $0x388] sm:$0xff]
        %v1915 = vld [vmem:[%s8 + $0x390] sm:$0xff]
        %v1916 = vld [vmem:[%s8 + $0x398] sm:$0xff]
        %v1917 = vld [vmem:[%s8 + $0x3a0] sm:$0xff]
        %v1918 = vld [vmem:[%s8 + $0x3a8] sm:$0xff]
        %v1919 = vld [vmem:[%s8 + $0x3b0] sm:$0xff]
        %v1920 = vld [vmem:[%s8 + $0x3b8] sm:$0xff]
        %v1921 = vld [vmem:[%s8 + $0x3c0] sm:$0xff]
        %v1922 = vld [vmem:[%s8 + $0x3c8] sm:$0xff]
        %v1923 = vld [vmem:[%s8 + $0x3d0] sm:$0xff]
        %v1924 = vld [vmem:[%s8 + $0x3d8] sm:$0xff]
        %v1925 = vld [vmem:[%s8 + $0x3e0] sm:$0xff]
        %v1926 = vld [vmem:[%s8 + $0x3e8] sm:$0xff]
        %v1927 = vld [vmem:[%s8 + $0x3f0] sm:$0xff]
        %v1928 = vld [vmem:[%s8 + $0x3f8] sm:$0xff]
        %v1929 = vld [vmem:[%s8 + $0x400] sm:$0xff]
        %v1930 = vld [vmem:[%s8 + $0x408] sm:$0xff]
        %v1931 = vld [vmem:[%s8 + $0x410] sm:$0xff]
        %v1932 = vld [vmem:[%s8 + $0x418] sm:$0xff]
        %v1933 = vld [vmem:[%s8 + $0x420] sm:$0xff]
        %v1934 = vld [vmem:[%s8 + $0x428] sm:$0xff]
        %v1935 = vld [vmem:[%s8 + $0x430] sm:$0xff]
        %v1936 = vld [vmem:[%s8 + $0x438] sm:$0xff]
        %v1937 = vld [vmem:[%s8 + $0x440] sm:$0xff]
        %v1938 = vld [vmem:[%s8 + $0x448] sm:$0xff]
        %v1939 = vld [vmem:[%s8 + $0x450] sm:$0xff]
        %v1940 = vld [vmem:[%s8 + $0x458] sm:$0xff]
        %v1941 = vld [vmem:[%s8 + $0x460] sm:$0xff]
        %v1942 = vld [vmem:[%s8 + $0x468] sm:$0xff]
        %v1943 = vld [vmem:[%s8 + $0x470] sm:$0xff]
        %v1944 = vld [vmem:[%s8 + $0x478] sm:$0xff]
        %v1945 = vld [vmem:[%s8 + $0x480] sm:$0xff]
        %v1946 = vld [vmem:[%s8 + $0x488] sm:$0xff]
        %v1947 = vld [vmem:[%s8 + $0x490] sm:$0xff]
        %v1948 = vld [vmem:[%s8 + $0x498] sm:$0xff]
        %v1949 = vld [vmem:[%s8 + $0x4a0] sm:$0xff]
        %v1950 = vld [vmem:[%s8 + $0x4a8] sm:$0xff]
        %v1951 = vld [vmem:[%s8 + $0x4b0] sm:$0xff]
        %v1952 = vld [vmem:[%s8 + $0x4b8] sm:$0xff]
        %v1953 = vld [vmem:[%s8 + $0x4c0] sm:$0xff]
        %v1954 = vld [vmem:[%s8 + $0x4c8] sm:$0xff]
        %v1955 = vld [vmem:[%s8 + $0x4d0] sm:$0xff]
        %v1956 = vld [vmem:[%s8 + $0x4d8] sm:$0xff]
        %v1957 = vld [vmem:[%s8 + $0x4e0] sm:$0xff]
        %v1958 = vld [vmem:[%s8 + $0x4e8] sm:$0xff]
        %v1959 = vld [vmem:[%s8 + $0x4f0] sm:$0xff]
        %v1960 = vld [vmem:[%s8 + $0x4f8] sm:$0xff]
        %v1961 = vld [vmem:[%s8 + $0x500] sm:$0xff]
        %v1962 = vld [vmem:[%s8 + $0x508] sm:$0xff]
        %v1963 = vld [vmem:[%s8 + $0x510] sm:$0xff]
        %v1964 = vld [vmem:[%s8 + $0x518] sm:$0xff]
        %v1965 = vld [vmem:[%s8 + $0x520] sm:$0xff]
        %v1966 = vld [vmem:[%s8 + $0x528] sm:$0xff]
        %v1967 = vld [vmem:[%s8 + $0x530] sm:$0xff]
        %v1968 = vld [vmem:[%s8 + $0x538] sm:$0xff]
        %v1969 = vld [vmem:[%s8 + $0x540] sm:$0xff]
        %v1970 = vld [vmem:[%s8 + $0x548] sm:$0xff]
        %v1971 = vld [vmem:[%s8 + $0x550] sm:$0xff]
        %v1972 = vld [vmem:[%s8 + $0x558] sm:$0xff]
        %v1973 = vld [vmem:[%s8 + $0x560] sm:$0xff]
        %v1974 = vld [vmem:[%s8 + $0x568] sm:$0xff]
        %v1975 = vld [vmem:[%s8 + $0x570] sm:$0xff]
        %v1976 = vld [vmem:[%s8 + $0x578] sm:$0xff]
        %v1977 = vld [vmem:[%s8 + $0x580] sm:$0xff]
        %v1978 = vld [vmem:[%s8 + $0x588] sm:$0xff]
        %v1979 = vld [vmem:[%s8 + $0x590] sm:$0xff]
        %v1980 = vld [vmem:[%s8 + $0x598] sm:$0xff]
        %v1981 = vld [vmem:[%s8 + $0x5a0] sm:$0xff]
        %v1982 = vld [vmem:[%s8 + $0x5a8] sm:$0xff]
        %v1983 = vld [vmem:[%s8 + $0x5b0] sm:$0xff]
        %v1984 = vld [vmem:[%s8 + $0x5b8] sm:$0xff]
        %v1985 = vld [vmem:[%s8 + $0x5c0] sm:$0xff]
        %v1986 = vld [vmem:[%s8 + $0x5c8] sm:$0xff]
        %v1987 = vld [vmem:[%s8 + $0x5d0] sm:$0xff]
        %v1988 = vld [vmem:[%s8 + $0x5d8] sm:$0xff]
        %v1989 = vld [vmem:[%s8 + $0x5e0] sm:$0xff]
        %v1990 = vld [vmem:[%s8 + $0x5e8] sm:$0xff]
        %v1991 = vld [vmem:[%s8 + $0x5f0] sm:$0xff]
        %v1992 = vld [vmem:[%s8 + $0x5f8] sm:$0xff]
        %1993 = vmatpush.msra.mxu0 %v1846
        %1994 = vmatpush.msra.mxu0 %v1843
        %1995 = vmatpush.msra.mxu0 %v1840
        %1996 = vmatpush.msra.mxu0 %v1837
        %1997 = vmatpush.msra.mxu0 %v1834
        %1998 = vmatpush.msra.mxu0 %v1831
        %1999 = vmatpush.msra.mxu0 %v1828
        %2000 = vmatpush.msra.mxu0 %v1825
        %2001 = vmatpush.msra.mxu0 %v1822
        %2002 = vmatpush.msra.mxu0 %v1819
        %2003 = vmatpush.msra.mxu0 %v1816
        %2004 = vmatpush.msra.mxu0 %v1813
        %2005 = vmatpush.msra.mxu0 %v1810
        %2006 = vmatpush.msra.mxu0 %v1807
        %2007 = vmatpush.msra.mxu0 %v1804
        %2008 = vmatpush.msra.mxu0 %v1801
        %2009 = vmatmul.f32.gmra.mxu0 %v1285
        %v2010 = vpop.f32.mrf.mxu0
        %v2011 = vadd.f32 0.0, %v2010
        %2012 = vmatmul.f32.gmra.mxu0 %v1289
        %v2013 = vpop.f32.mrf.mxu0
        %v2014 = vadd.f32 0.0, %v2013
        %2015 = vmatmul.f32.gmra.mxu0 %v1293
        %v2016 = vpop.f32.mrf.mxu0
        %v2017 = vadd.f32 0.0, %v2016
        %2018 = vdwg.mxu0
        %2019 = vmatpush.msra.mxu0 %v1894
        %2020 = vmatpush.msra.mxu0 %v1891
        %2021 = vmatpush.msra.mxu0 %v1888
        %2022 = vmatpush.msra.mxu0 %v1885
        %2023 = vmatpush.msra.mxu0 %v1882
        %2024 = vmatpush.msra.mxu0 %v1879
        %2025 = vmatpush.msra.mxu0 %v1876
        %2026 = vmatpush.msra.mxu0 %v1873
        %2027 = vmatpush.msra.mxu0 %v1870
        %2028 = vmatpush.msra.mxu0 %v1867
        %2029 = vmatpush.msra.mxu0 %v1864
        %2030 = vmatpush.msra.mxu0 %v1861
        %2031 = vmatpush.msra.mxu0 %v1858
        %2032 = vmatpush.msra.mxu0 %v1855
        %2033 = vmatpush.msra.mxu0 %v1852
        %2034 = vmatpush.msra.mxu0 %v1849
        %2035 = vmatmul.f32.gmra.mxu0 %v1286
        %v2036 = vpop.f32.mrf.mxu0
        %v2037 = vadd.f32 %v2011, %v2036
        %2038 = vmatmul.f32.gmra.mxu0 %v1290
        %v2039 = vpop.f32.mrf.mxu0
        %v2040 = vadd.f32 %v2014, %v2039
        %2041 = vmatmul.f32.gmra.mxu0 %v1294
        %v2042 = vpop.f32.mrf.mxu0
        %v2043 = vadd.f32 %v2017, %v2042
        %2044 = vdwg.mxu0
        %2045 = vmatpush.msra.mxu0 %v1942
        %2046 = vmatpush.msra.mxu0 %v1939
        %2047 = vmatpush.msra.mxu0 %v1936
        %2048 = vmatpush.msra.mxu0 %v1933
        %2049 = vmatpush.msra.mxu0 %v1930
        %2050 = vmatpush.msra.mxu0 %v1927
        %2051 = vmatpush.msra.mxu0 %v1924
        %2052 = vmatpush.msra.mxu0 %v1921
        %2053 = vmatpush.msra.mxu0 %v1918
        %2054 = vmatpush.msra.mxu0 %v1915
        %2055 = vmatpush.msra.mxu0 %v1912
        %2056 = vmatpush.msra.mxu0 %v1909
        %2057 = vmatpush.msra.mxu0 %v1906
        %2058 = vmatpush.msra.mxu0 %v1903
        %2059 = vmatpush.msra.mxu0 %v1900
        %2060 = vmatpush.msra.mxu0 %v1897
        %2061 = vmatmul.f32.gmra.mxu0 %v1287
        %v2062 = vpop.f32.mrf.mxu0
        %v2063 = vadd.f32 %v2037, %v2062
        %2064 = vmatmul.f32.gmra.mxu0 %v1291
        %v2065 = vpop.f32.mrf.mxu0
        %v2066 = vadd.f32 %v2040, %v2065
        %2067 = vmatmul.f32.gmra.mxu0 %v1295
        %v2068 = vpop.f32.mrf.mxu0
        %v2069 = vadd.f32 %v2043, %v2068
        %2070 = vdwg.mxu0
        %2071 = vmatpush.msra.mxu0 %v1990
        %2072 = vmatpush.msra.mxu0 %v1987
        %2073 = vmatpush.msra.mxu0 %v1984
        %2074 = vmatpush.msra.mxu0 %v1981
        %2075 = vmatpush.msra.mxu0 %v1978
        %2076 = vmatpush.msra.mxu0 %v1975
        %2077 = vmatpush.msra.mxu0 %v1972
        %2078 = vmatpush.msra.mxu0 %v1969
        %2079 = vmatpush.msra.mxu0 %v1966
        %2080 = vmatpush.msra.mxu0 %v1963
        %2081 = vmatpush.msra.mxu0 %v1960
        %2082 = vmatpush.msra.mxu0 %v1957
        %2083 = vmatpush.msra.mxu0 %v1954
        %2084 = vmatpush.msra.mxu0 %v1951
        %2085 = vmatpush.msra.mxu0 %v1948
        %2086 = vmatpush.msra.mxu0 %v1945
        %2087 = vmatmul.f32.gmra.mxu0 %v1288
        %v2088 = vpop.f32.mrf.mxu0
        %v2089 = vadd.f32 %v2063, %v2088
        %2090 = vmatmul.f32.gmra.mxu0 %v1292
        %v2091 = vpop.f32.mrf.mxu0
        %v2092 = vadd.f32 %v2066, %v2091
        %2093 = vmatmul.f32.gmra.mxu0 %v1296
        %v2094 = vpop.f32.mrf.mxu0
        %v2095 = vadd.f32 %v2069, %v2094
        %2096 = vdwg.mxu0
        %2097 = vmatpush.msra.mxu0 %v1847
        %2098 = vmatpush.msra.mxu0 %v1844
        %2099 = vmatpush.msra.mxu0 %v1841
        %2100 = vmatpush.msra.mxu0 %v1838
        %2101 = vmatpush.msra.mxu0 %v1835
        %2102 = vmatpush.msra.mxu0 %v1832
        %2103 = vmatpush.msra.mxu0 %v1829
        %2104 = vmatpush.msra.mxu0 %v1826
        %2105 = vmatpush.msra.mxu0 %v1823
        %2106 = vmatpush.msra.mxu0 %v1820
        %2107 = vmatpush.msra.mxu0 %v1817
        %2108 = vmatpush.msra.mxu0 %v1814
        %2109 = vmatpush.msra.mxu0 %v1811
        %2110 = vmatpush.msra.mxu0 %v1808
        %2111 = vmatpush.msra.mxu0 %v1805
        %2112 = vmatpush.msra.mxu0 %v1802
        %2113 = vmatmul.f32.gmra.mxu0 %v1285
        %v2114 = vpop.f32.mrf.mxu0
        %v2115 = vadd.f32 0.0, %v2114
        %2116 = vmatmul.f32.gmra.mxu0 %v1289
        %v2117 = vpop.f32.mrf.mxu0
        %v2118 = vadd.f32 0.0, %v2117
        %2119 = vmatmul.f32.gmra.mxu0 %v1293
        %v2120 = vpop.f32.mrf.mxu0
        %v2121 = vadd.f32 0.0, %v2120
        %2122 = vdwg.mxu0
        %2123 = vmatpush.msra.mxu0 %v1895
        %2124 = vmatpush.msra.mxu0 %v1892
        %2125 = vmatpush.msra.mxu0 %v1889
        %2126 = vmatpush.msra.mxu0 %v1886
        %2127 = vmatpush.msra.mxu0 %v1883
        %2128 = vmatpush.msra.mxu0 %v1880
        %2129 = vmatpush.msra.mxu0 %v1877
        %2130 = vmatpush.msra.mxu0 %v1874
        %2131 = vmatpush.msra.mxu0 %v1871
        %2132 = vmatpush.msra.mxu0 %v1868
        %2133 = vmatpush.msra.mxu0 %v1865
        %2134 = vmatpush.msra.mxu0 %v1862
        %2135 = vmatpush.msra.mxu0 %v1859
        %2136 = vmatpush.msra.mxu0 %v1856
        %2137 = vmatpush.msra.mxu0 %v1853
        %2138 = vmatpush.msra.mxu0 %v1850
        %2139 = vmatmul.f32.gmra.mxu0 %v1286
        %v2140 = vpop.f32.mrf.mxu0
        %v2141 = vadd.f32 %v2115, %v2140
        %2142 = vmatmul.f32.gmra.mxu0 %v1290
        %v2143 = vpop.f32.mrf.mxu0
        %v2144 = vadd.f32 %v2118, %v2143
        %2145 = vmatmul.f32.gmra.mxu0 %v1294
        %v2146 = vpop.f32.mrf.mxu0
        %v2147 = vadd.f32 %v2121, %v2146
        %2148 = vdwg.mxu0
        %2149 = vmatpush.msra.mxu0 %v1943
        %2150 = vmatpush.msra.mxu0 %v1940
        %2151 = vmatpush.msra.mxu0 %v1937
        %2152 = vmatpush.msra.mxu0 %v1934
        %2153 = vmatpush.msra.mxu0 %v1931
        %2154 = vmatpush.msra.mxu0 %v1928
        %2155 = vmatpush.msra.mxu0 %v1925
        %2156 = vmatpush.msra.mxu0 %v1922
        %2157 = vmatpush.msra.mxu0 %v1919
        %2158 = vmatpush.msra.mxu0 %v1916
        %2159 = vmatpush.msra.mxu0 %v1913
        %2160 = vmatpush.msra.mxu0 %v1910
        %2161 = vmatpush.msra.mxu0 %v1907
        %2162 = vmatpush.msra.mxu0 %v1904
        %2163 = vmatpush.msra.mxu0 %v1901
        %2164 = vmatpush.msra.mxu0 %v1898
        %2165 = vmatmul.f32.gmra.mxu0 %v1287
        %v2166 = vpop.f32.mrf.mxu0
        %v2167 = vadd.f32 %v2141, %v2166
        %2168 = vmatmul.f32.gmra.mxu0 %v1291
        %v2169 = vpop.f32.mrf.mxu0
        %v2170 = vadd.f32 %v2144, %v2169
        %2171 = vmatmul.f32.gmra.mxu0 %v1295
        %v2172 = vpop.f32.mrf.mxu0
        %v2173 = vadd.f32 %v2147, %v2172
        %2174 = vdwg.mxu0
        %2175 = vmatpush.msra.mxu0 %v1991
        %2176 = vmatpush.msra.mxu0 %v1988
        %2177 = vmatpush.msra.mxu0 %v1985
        %2178 = vmatpush.msra.mxu0 %v1982
        %2179 = vmatpush.msra.mxu0 %v1979
        %2180 = vmatpush.msra.mxu0 %v1976
        %2181 = vmatpush.msra.mxu0 %v1973
        %2182 = vmatpush.msra.mxu0 %v1970
        %2183 = vmatpush.msra.mxu0 %v1967
        %2184 = vmatpush.msra.mxu0 %v1964
        %2185 = vmatpush.msra.mxu0 %v1961
        %2186 = vmatpush.msra.mxu0 %v1958
        %2187 = vmatpush.msra.mxu0 %v1955
        %2188 = vmatpush.msra.mxu0 %v1952
        %2189 = vmatpush.msra.mxu0 %v1949
        %2190 = vmatpush.msra.mxu0 %v1946
        %2191 = vmatmul.f32.gmra.mxu0 %v1288
        %v2192 = vpop.f32.mrf.mxu0
        %v2193 = vadd.f32 %v2167, %v2192
        %2194 = vmatmul.f32.gmra.mxu0 %v1292
        %v2195 = vpop.f32.mrf.mxu0
        %v2196 = vadd.f32 %v2170, %v2195
        %2197 = vmatmul.f32.gmra.mxu0 %v1296
        %v2198 = vpop.f32.mrf.mxu0
        %v2199 = vadd.f32 %v2173, %v2198
        %2200 = vdwg.mxu0
        %2201 = vmatpush.msra.mxu0 %v1848
        %2202 = vmatpush.msra.mxu0 %v1845
        %2203 = vmatpush.msra.mxu0 %v1842
        %2204 = vmatpush.msra.mxu0 %v1839
        %2205 = vmatpush.msra.mxu0 %v1836
        %2206 = vmatpush.msra.mxu0 %v1833
        %2207 = vmatpush.msra.mxu0 %v1830
        %2208 = vmatpush.msra.mxu0 %v1827
        %2209 = vmatpush.msra.mxu0 %v1824
        %2210 = vmatpush.msra.mxu0 %v1821
        %2211 = vmatpush.msra.mxu0 %v1818
        %2212 = vmatpush.msra.mxu0 %v1815
        %2213 = vmatpush.msra.mxu0 %v1812
        %2214 = vmatpush.msra.mxu0 %v1809
        %2215 = vmatpush.msra.mxu0 %v1806
        %2216 = vmatpush.msra.mxu0 %v1803
        %2217 = vmatmul.f32.gmra.mxu0 %v1285
        %v2218 = vpop.f32.mrf.mxu0
        %v2219 = vadd.f32 0.0, %v2218
        %2220 = vmatmul.f32.gmra.mxu0 %v1289
        %v2221 = vpop.f32.mrf.mxu0
        %v2222 = vadd.f32 0.0, %v2221
        %2223 = vmatmul.f32.gmra.mxu0 %v1293
        %v2224 = vpop.f32.mrf.mxu0
        %v2225 = vadd.f32 0.0, %v2224
        %2226 = vdwg.mxu0
        %2227 = vmatpush.msra.mxu0 %v1896
        %2228 = vmatpush.msra.mxu0 %v1893
        %2229 = vmatpush.msra.mxu0 %v1890
        %2230 = vmatpush.msra.mxu0 %v1887
        %2231 = vmatpush.msra.mxu0 %v1884
        %2232 = vmatpush.msra.mxu0 %v1881
        %2233 = vmatpush.msra.mxu0 %v1878
        %2234 = vmatpush.msra.mxu0 %v1875
        %2235 = vmatpush.msra.mxu0 %v1872
        %2236 = vmatpush.msra.mxu0 %v1869
        %2237 = vmatpush.msra.mxu0 %v1866
        %2238 = vmatpush.msra.mxu0 %v1863
        %2239 = vmatpush.msra.mxu0 %v1860
        %2240 = vmatpush.msra.mxu0 %v1857
        %2241 = vmatpush.msra.mxu0 %v1854
        %2242 = vmatpush.msra.mxu0 %v1851
        %2243 = vmatmul.f32.gmra.mxu0 %v1286
        %v2244 = vpop.f32.mrf.mxu0
        %v2245 = vadd.f32 %v2219, %v2244
        %2246 = vmatmul.f32.gmra.mxu0 %v1290
        %v2247 = vpop.f32.mrf.mxu0
        %v2248 = vadd.f32 %v2222, %v2247
        %2249 = vmatmul.f32.gmra.mxu0 %v1294
        %v2250 = vpop.f32.mrf.mxu0
        %v2251 = vadd.f32 %v2225, %v2250
        %2252 = vdwg.mxu0
        %2253 = vmatpush.msra.mxu0 %v1944
        %2254 = vmatpush.msra.mxu0 %v1941
        %2255 = vmatpush.msra.mxu0 %v1938
        %2256 = vmatpush.msra.mxu0 %v1935
        %2257 = vmatpush.msra.mxu0 %v1932
        %2258 = vmatpush.msra.mxu0 %v1929
        %2259 = vmatpush.msra.mxu0 %v1926
        %2260 = vmatpush.msra.mxu0 %v1923
        %2261 = vmatpush.msra.mxu0 %v1920
        %2262 = vmatpush.msra.mxu0 %v1917
        %2263 = vmatpush.msra.mxu0 %v1914
        %2264 = vmatpush.msra.mxu0 %v1911
        %2265 = vmatpush.msra.mxu0 %v1908
        %2266 = vmatpush.msra.mxu0 %v1905
        %2267 = vmatpush.msra.mxu0 %v1902
        %2268 = vmatpush.msra.mxu0 %v1899
        %2269 = vmatmul.f32.gmra.mxu0 %v1287
        %v2270 = vpop.f32.mrf.mxu0
        %v2271 = vadd.f32 %v2245, %v2270
        %2272 = vmatmul.f32.gmra.mxu0 %v1291
        %v2273 = vpop.f32.mrf.mxu0
        %v2274 = vadd.f32 %v2248, %v2273
        %2275 = vmatmul.f32.gmra.mxu0 %v1295
        %v2276 = vpop.f32.mrf.mxu0
        %v2277 = vadd.f32 %v2251, %v2276
        %2278 = vdwg.mxu0
        %2279 = vmatpush.msra.mxu0 %v1992
        %2280 = vmatpush.msra.mxu0 %v1989
        %2281 = vmatpush.msra.mxu0 %v1986
        %2282 = vmatpush.msra.mxu0 %v1983
        %2283 = vmatpush.msra.mxu0 %v1980
        %2284 = vmatpush.msra.mxu0 %v1977
        %2285 = vmatpush.msra.mxu0 %v1974
        %2286 = vmatpush.msra.mxu0 %v1971
        %2287 = vmatpush.msra.mxu0 %v1968
        %2288 = vmatpush.msra.mxu0 %v1965
        %2289 = vmatpush.msra.mxu0 %v1962
        %2290 = vmatpush.msra.mxu0 %v1959
        %2291 = vmatpush.msra.mxu0 %v1956
        %2292 = vmatpush.msra.mxu0 %v1953
        %2293 = vmatpush.msra.mxu0 %v1950
        %2294 = vmatpush.msra.mxu0 %v1947
        %2295 = vmatmul.f32.gmra.mxu0 %v1288
        %v2296 = vpop.f32.mrf.mxu0
        %v2297 = vadd.f32 %v2271, %v2296
        %2298 = vmatmul.f32.gmra.mxu0 %v1292
        %v2299 = vpop.f32.mrf.mxu0
        %v2300 = vadd.f32 %v2274, %v2299
        %2301 = vmatmul.f32.gmra.mxu0 %v1296
        %v2302 = vpop.f32.mrf.mxu0
        %v2303 = vadd.f32 %v2277, %v2302
        %2304 = vdwg.mxu0
        %v2305 = vmax.f32 %v1585, %v2089
        %v2306 = vmax.f32 %v1689, %v2193
        %v2307 = vmax.f32 %v1793, %v2297
        %v2308 = vmax.f32 %v1588, %v2092
        %v2309 = vmax.f32 %v1692, %v2196
        %v2310 = vmax.f32 %v1796, %v2300
        %v2311 = vmax.f32 %v1591, %v2095
        %v2312 = vmax.f32 %v1695, %v2199
        %v2313 = vmax.f32 %v1799, %v2303
        %2314 = vst [vmem:[%s349] sm:$0xff] %v2305
        %2315 = vst [vmem:[%s349 + $0x8] sm:$0xff] %v2306
        %2316 = vst.msk [vmem:[%s349 + $0x10] sm:$0xff] %vm1055, %v2307
        %2317 = vst [vmem:[%s349 + $0x18] sm:$0xff] %v2308
        %2318 = vst [vmem:[%s349 + $0x20] sm:$0xff] %v2309
        %2319 = vst.msk [vmem:[%s349 + $0x28] sm:$0xff] %vm1055, %v2310
        %2320 = vst [vmem:[%s349 + $0x30] sm:$0x3] %v2311
        %2321 = vst [vmem:[%s349 + $0x38] sm:$0x3] %v2312
        %vm2322 = vcmask 254976
        %2323 = vst.msk [vmem:[%s349 + $0x40] sm:$0x3] %vm2322, %v2313
        %p2324 = scmp.lt.s32.totalorder %s21, 1
        %s2325 = scalar_select %p2324, %s21, 1
        %s2326 = smul.addr %s2325, 9
        %s2327 = smul.addr %s2326, 8
        %s2328 = scalar_lea.vmem %s9, %s2327
        // Predicated region
        $region61: #{cnn_forward.4} parent=55 // pred_check
          %p2329 = pneg %p233
        $region62: #{cnn_forward.4} parent=55 // pred_check_branch
          %2331 = sbr.rel (%p2329) target = $region64
        $region63: #{cnn_forward.4} parent=55 // pred_region
          _
        $region64: #{cnn_forward.4} parent=55 // pred_fallthru
          _
      $region56: #{cnn_forward.4} parent=5 // pred_fallthru
        _
      %p2332 = scmp.le.s32.totalorder 2, %s16
      // Predicated region
      $region65: #{cnn_forward.4} parent=5 // pred_check
        %p2333 = pneg %p2332
      $region66: #{cnn_forward.4} parent=5 // pred_check_branch
        %2335 = sbr.rel (%p2333) target = $region68
      $region67: #{cnn_forward.4} parent=5 // pred_region
        %s2336 = ssub.s32 %s16, 2
        // Predicated region
        $region69: #{cnn_forward.4} parent=67 // pred_check
          %p2337 = pneg %p239
        $region70: #{cnn_forward.4} parent=67 // pred_check_branch
          %2339 = sbr.rel (%p2337) target = $region72
        $region71: #{cnn_forward.4} parent=67 // pred_region
          %p2340 = scmp.lt.s32.totalorder %s22, 1
          %s2341 = scalar_select %p2340, %s22, 1
          %s2342 = smul.addr %s2341, 9
          %s2343 = smul.addr %s2342, 8
          %s2344 = scalar_lea.vmem %s9, %s2343
        $region72: #{cnn_forward.4} parent=67 // pred_fallthru
          _
      $region68: #{cnn_forward.4} parent=5 // pred_fallthru
        _
    $region6: #{cnn_forward.4} parent=1 // loop_footer
      %s20 = sadd.s32 1, %s16
    $region7: #{cnn_forward.4} parent=1 // loop_footer_branch
      %15 = sbr.rel target = $region3
    $region8: #{cnn_forward.4} parent=1 // loop_exit
      _
    %2345 = vsyncpa [#allocation3], 1
    %s2346 = scalar_lea.sflag [#allocation3], 1
    %2347 = vsyncpa %s2346, 1

// kernel: cnn_forward.7
$region0: #{cnn_forward.7}
  #allocation0 [shape = 'u32[]', space=smem, size = 0x4, offset = 0x4, fixed_abs, tag = 'smem constant byte address 0x4 - core index']
  #allocation1 [shape = 'u32[72,128]{1,0:T(1,128)}', space=vmem, size = 0x9000, scoped, tag = 'internal scratch']
  %s0 = inlined_call_operand.vmem [shape: f32[2,1024], index: 0, kind: input, shape index: {}]
  %s1 = inlined_call_operand.vmem [shape: f32[1024,512], index: 1, kind: input, shape index: {}]
  %s2 = inlined_call_operand.vmem [shape: f32[1,512], index: 2, kind: input, shape index: {}]
  %s3 = inlined_call_operand.vmem [shape: f32[512,10], index: 3, kind: input, shape index: {}]
  %s4 = inlined_call_operand.vmem [shape: f32[1,10], index: 4, kind: input, shape index: {}]
  %s5 = inlined_call_operand.hbm [shape: f32[2,10], index: 5, kind: output, shape index: {}]
  %s6 = sld [smem:[#allocation0]]
  $region30: #{cnn_forward.7} parent=0
    _
  %s8 = ssub.s32 1, %s6
  %s9 = scalar_select 0, %s8, %s6
  $region1: #{cnn_forward.7} parent=0
    #allocation2 [shape = 'u8[1024]{0}', space=vmem, size = 0x400, scoped, tag = 'output window, operand 0, single buffered']
    #allocation3 [shape = 's32[1]{0}', space=sflag, size = 0x4, scoped, tag = 'scoped memory for cnn_forward.7']
    %10 = vsyncpa [#allocation3], 0
    // Predicated region
    $region2: #{cnn_forward.7} parent=1 // pred_check
      _
    $region3: #{cnn_forward.7} parent=1 // pred_check_branch
      %12 = sbr.rel (0) target = $region5
    $region4: #{cnn_forward.7} parent=1 // pred_region
      _
    $region5: #{cnn_forward.7} parent=1 // pred_fallthru
      _
    // Predicated region
    $region6: #{cnn_forward.7} parent=1 // pred_check
      _
    $region7: #{cnn_forward.7} parent=1 // pred_check_branch
      %14 = sbr.rel (0) target = $region9
    $region8: #{cnn_forward.7} parent=1 // pred_region
      _
    $region9: #{cnn_forward.7} parent=1 // pred_fallthru
      _
    // Predicated region
    $region10: #{cnn_forward.7} parent=1 // pred_check
      _
    $region11: #{cnn_forward.7} parent=1 // pred_check_branch
      %16 = sbr.rel (0) target = $region13
    $region12: #{cnn_forward.7} parent=1 // pred_region
      _
    $region13: #{cnn_forward.7} parent=1 // pred_fallthru
      _
    // Predicated region
    $region14: #{cnn_forward.7} parent=1 // pred_check
      _
    $region15: #{cnn_forward.7} parent=1 // pred_check_branch
      %18 = sbr.rel (0) target = $region17
    $region16: #{cnn_forward.7} parent=1 // pred_region
      _
    $region17: #{cnn_forward.7} parent=1 // pred_fallthru
      _
    // Predicated region
    $region18: #{cnn_forward.7} parent=1 // pred_check
      _
    $region19: #{cnn_forward.7} parent=1 // pred_check_branch
      %20 = sbr.rel (0) target = $region21
    $region20: #{cnn_forward.7} parent=1 // pred_region
      _
    $region21: #{cnn_forward.7} parent=1 // pred_fallthru
      _
    %v21 = vld [vmem:[%s0] sm:$0xff]
    %v22 = vld [vmem:[%s0 + $0x8] sm:$0xff]
    %v23 = vld [vmem:[%s1] sm:$0xff]
    %v24 = vld [vmem:[%s1 + $0x8] sm:$0xff]
    %v25 = vld [vmem:[%s1 + $0x10] sm:$0xff]
    %v26 = vld [vmem:[%s1 + $0x18] sm:$0xff]
    %v27 = vld [vmem:[%s1 + $0x20] sm:$0xff]
    %v28 = vld [vmem:[%s1 + $0x28] sm:$0xff]
    %v29 = vld [vmem:[%s1 + $0x30] sm:$0xff]
    %v30 = vld [vmem:[%s1 + $0x38] sm:$0xff]
    %v31 = vld [vmem:[%s1 + $0x40] sm:$0xff]
    %v32 = vld [vmem:[%s1 + $0x48] sm:$0xff]
    %v33 = vld [vmem:[%s1 + $0x50] sm:$0xff]
    %v34 = vld [vmem:[%s1 + $0x58] sm:$0xff]
    %v35 = vld [vmem:[%s1 + $0x60] sm:$0xff]
    %v36 = vld [vmem:[%s1 + $0x68] sm:$0xff]
    %v37 = vld [vmem:[%s1 + $0x70] sm:$0xff]
    %v38 = vld [vmem:[%s1 + $0x78] sm:$0xff]
    %v39 = vld [vmem:[%s1 + $0x80] sm:$0xff]
    %v40 = vld [vmem:[%s1 + $0x88] sm:$0xff]
    %v41 = vld [vmem:[%s1 + $0x90] sm:$0xff]
    %v42 = vld [vmem:[%s1 + $0x98] sm:$0xff]
    %v43 = vld [vmem:[%s1 + $0xa0] sm:$0xff]
    %v44 = vld [vmem:[%s1 + $0xa8] sm:$0xff]
    %v45 = vld [vmem:[%s1 + $0xb0] sm:$0xff]
    %v46 = vld [vmem:[%s1 + $0xb8] sm:$0xff]
    %v47 = vld [vmem:[%s1 + $0xc0] sm:$0xff]
    %v48 = vld [vmem:[%s1 + $0xc8] sm:$0xff]
    %v49 = vld [vmem:[%s1 + $0xd0] sm:$0xff]
    %v50 = vld [vmem:[%s1 + $0xd8] sm:$0xff]
    %v51 = vld [vmem:[%s1 + $0xe0] sm:$0xff]
    %v52 = vld [vmem:[%s1 + $0xe8] sm:$0xff]
    %v53 = vld [vmem:[%s1 + $0xf0] sm:$0xff]
    %v54 = vld [vmem:[%s1 + $0xf8] sm:$0xff]
    %v55 = vld [vmem:[%s1 + $0x100] sm:$0xff]
    %v56 = vld [vmem:[%s1 + $0x108] sm:$0xff]
    %v57 = vld [vmem:[%s1 + $0x110] sm:$0xff]
    %v58 = vld [vmem:[%s1 + $0x118] sm:$0xff]
    %v59 = vld [vmem:[%s1 + $0x120] sm:$0xff]
    %v60 = vld [vmem:[%s1 + $0x128] sm:$0xff]
    %v61 = vld [vmem:[%s1 + $0x130] sm:$0xff]
    %v62 = vld [vmem:[%s1 + $0x138] sm:$0xff]
    %v63 = vld [vmem:[%s1 + $0x140] sm:$0xff]
    %v64 = vld [vmem:[%s1 + $0x148] sm:$0xff]
    %v65 = vld [vmem:[%s1 + $0x150] sm:$0xff]
    %v66 = vld [vmem:[%s1 + $0x158] sm:$0xff]
    %v67 = vld [vmem:[%s1 + $0x160] sm:$0xff]
    %v68 = vld [vmem:[%s1 + $0x168] sm:$0xff]
    %v69 = vld [vmem:[%s1 + $0x170] sm:$0xff]
    %v70 = vld [vmem:[%s1 + $0x178] sm:$0xff]
    %v71 = vld [vmem:[%s1 + $0x180] sm:$0xff]
    %v72 = vld [vmem:[%s1 + $0x188] sm:$0xff]
    %v73 = vld [vmem:[%s1 + $0x190] sm:$0xff]
    %v74 = vld [vmem:[%s1 + $0x198] sm:$0xff]
    %v75 = vld [vmem:[%s1 + $0x1a0] sm:$0xff]
    %v76 = vld [vmem:[%s1 + $0x1a8] sm:$0xff]
    %v77 = vld [vmem:[%s1 + $0x1b0] sm:$0xff]
    %v78 = vld [vmem:[%s1 + $0x1b8] sm:$0xff]
    %v79 = vld [vmem:[%s1 + $0x1c0] sm:$0xff]
    %v80 = vld [vmem:[%s1 + $0x1c8] sm:$0xff]
    %v81 = vld [vmem:[%s1 + $0x1d0] sm:$0xff]
    %v82 = vld [vmem:[%s1 + $0x1d8] sm:$0xff]
    %v83 = vld [vmem:[%s1 + $0x1e0] sm:$0xff]
    %v84 = vld [vmem:[%s1 + $0x1e8] sm:$0xff]
    %v85 = vld [vmem:[%s1 + $0x1f0] sm:$0xff]
    %v86 = vld [vmem:[%s1 + $0x1f8] sm:$0xff]
    %v87 = vld [vmem:[%s1 + $0x200] sm:$0xff]
    %v88 = vld [vmem:[%s1 + $0x208] sm:$0xff]
    %v89 = vld [vmem:[%s1 + $0x210] sm:$0xff]
    %v90 = vld [vmem:[%s1 + $0x218] sm:$0xff]
    %v91 = vld [vmem:[%s1 + $0x220] sm:$0xff]
    %v92 = vld [vmem:[%s1 + $0x228] sm:$0xff]
    %v93 = vld [vmem:[%s1 + $0x230] sm:$0xff]
    %v94 = vld [vmem:[%s1 + $0x238] sm:$0xff]
    %v95 = vld [vmem:[%s1 + $0x240] sm:$0xff]
    %v96 = vld [vmem:[%s1 + $0x248] sm:$0xff]
    %v97 = vld [vmem:[%s1 + $0x250] sm:$0xff]
    %v98 = vld [vmem:[%s1 + $0x258] sm:$0xff]
    %v99 = vld [vmem:[%s1 + $0x260] sm:$0xff]
    %v100 = vld [vmem:[%s1 + $0x268] sm:$0xff]
    %v101 = vld [vmem:[%s1 + $0x270] sm:$0xff]
    %v102 = vld [vmem:[%s1 + $0x278] sm:$0xff]
    %v103 = vld [vmem:[%s1 + $0x280] sm:$0xff]
    %v104 = vld [vmem:[%s1 + $0x288] sm:$0xff]
    %v105 = vld [vmem:[%s1 + $0x290] sm:$0xff]
    %v106 = vld [vmem:[%s1 + $0x298] sm:$0xff]
    %v107 = vld [vmem:[%s1 + $0x2a0] sm:$0xff]
    %v108 = vld [vmem:[%s1 + $0x2a8] sm:$0xff]
    %v109 = vld [vmem:[%s1 + $0x2b0] sm:$0xff]
    %v110 = vld [vmem:[%s1 + $0x2b8] sm:$0xff]
    %v111 = vld [vmem:[%s1 + $0x2c0] sm:$0xff]
    %v112 = vld [vmem:[%s1 + $0x2c8] sm:$0xff]
    %v113 = vld [vmem:[%s1 + $0x2d0] sm:$0xff]
    %v114 = vld [vmem:[%s1 + $0x2d8] sm:$0xff]
    %v115 = vld [vmem:[%s1 + $0x2e0] sm:$0xff]
    %v116 = vld [vmem:[%s1 + $0x2e8] sm:$0xff]
    %v117 = vld [vmem:[%s1 + $0x2f0] sm:$0xff]
    %v118 = vld [vmem:[%s1 + $0x2f8] sm:$0xff]
    %v119 = vld [vmem:[%s1 + $0x300] sm:$0xff]
    %v120 = vld [vmem:[%s1 + $0x308] sm:$0xff]
    %v121 = vld [vmem:[%s1 + $0x310] sm:$0xff]
    %v122 = vld [vmem:[%s1 + $0x318] sm:$0xff]
    %v123 = vld [vmem:[%s1 + $0x320] sm:$0xff]
    %v124 = vld [vmem:[%s1 + $0x328] sm:$0xff]
    %v125 = vld [vmem:[%s1 + $0x330] sm:$0xff]
    %v126 = vld [vmem:[%s1 + $0x338] sm:$0xff]
    %v127 = vld [vmem:[%s1 + $0x340] sm:$0xff]
    %v128 = vld [vmem:[%s1 + $0x348] sm:$0xff]
    %v129 = vld [vmem:[%s1 + $0x350] sm:$0xff]
    %v130 = vld [vmem:[%s1 + $0x358] sm:$0xff]
    %v131 = vld [vmem:[%s1 + $0x360] sm:$0xff]
    %v132 = vld [vmem:[%s1 + $0x368] sm:$0xff]
    %v133 = vld [vmem:[%s1 + $0x370] sm:$0xff]
    %v134 = vld [vmem:[%s1 + $0x378] sm:$0xff]
    %v135 = vld [vmem:[%s1 + $0x380] sm:$0xff]
    %v136 = vld [vmem:[%s1 + $0x388] sm:$0xff]
    %v137 = vld [vmem:[%s1 + $0x390] sm:$0xff]
    %v138 = vld [vmem:[%s1 + $0x398] sm:$0xff]
    %v139 = vld [vmem:[%s1 + $0x3a0] sm:$0xff]
    %v140 = vld [vmem:[%s1 + $0x3a8] sm:$0xff]
    %v141 = vld [vmem:[%s1 + $0x3b0] sm:$0xff]
    %v142 = vld [vmem:[%s1 + $0x3b8] sm:$0xff]
    %v143 = vld [vmem:[%s1 + $0x3c0] sm:$0xff]
    %v144 = vld [vmem:[%s1 + $0x3c8] sm:$0xff]
    %v145 = vld [vmem:[%s1 + $0x3d0] sm:$0xff]
    %v146 = vld [vmem:[%s1 + $0x3d8] sm:$0xff]
    %v147 = vld [vmem:[%s1 + $0x3e0] sm:$0xff]
    %v148 = vld [vmem:[%s1 + $0x3e8] sm:$0xff]
    %v149 = vld [vmem:[%s1 + $0x3f0] sm:$0xff]
    %v150 = vld [vmem:[%s1 + $0x3f8] sm:$0xff]
    %v151 = vld [vmem:[%s1 + $0x400] sm:$0xff]
    %v152 = vld [vmem:[%s1 + $0x408] sm:$0xff]
    %v153 = vld [vmem:[%s1 + $0x410] sm:$0xff]
    %v154 = vld [vmem:[%s1 + $0x418] sm:$0xff]
    %v155 = vld [vmem:[%s1 + $0x420] sm:$0xff]
    %v156 = vld [vmem:[%s1 + $0x428] sm:$0xff]
    %v157 = vld [vmem:[%s1 + $0x430] sm:$0xff]
    %v158 = vld [vmem:[%s1 + $0x438] sm:$0xff]
    %v159 = vld [vmem:[%s1 + $0x440] sm:$0xff]
    %v160 = vld [vmem:[%s1 + $0x448] sm:$0xff]
    %v161 = vld [vmem:[%s1 + $0x450] sm:$0xff]
    %v162 = vld [vmem:[%s1 + $0x458] sm:$0xff]
    %v163 = vld [vmem:[%s1 + $0x460] sm:$0xff]
    %v164 = vld [vmem:[%s1 + $0x468] sm:$0xff]
    %v165 = vld [vmem:[%s1 + $0x470] sm:$0xff]
    %v166 = vld [vmem:[%s1 + $0x478] sm:$0xff]
    %v167 = vld [vmem:[%s1 + $0x480] sm:$0xff]
    %v168 = vld [vmem:[%s1 + $0x488] sm:$0xff]
    %v169 = vld [vmem:[%s1 + $0x490] sm:$0xff]
    %v170 = vld [vmem:[%s1 + $0x498] sm:$0xff]
    %v171 = vld [vmem:[%s1 + $0x4a0] sm:$0xff]
    %v172 = vld [vmem:[%s1 + $0x4a8] sm:$0xff]
    %v173 = vld [vmem:[%s1 + $0x4b0] sm:$0xff]
    %v174 = vld [vmem:[%s1 + $0x4b8] sm:$0xff]
    %v175 = vld [vmem:[%s1 + $0x4c0] sm:$0xff]
    %v176 = vld [vmem:[%s1 + $0x4c8] sm:$0xff]
    %v177 = vld [vmem:[%s1 + $0x4d0] sm:$0xff]
    %v178 = vld [vmem:[%s1 + $0x4d8] sm:$0xff]
    %v179 = vld [vmem:[%s1 + $0x4e0] sm:$0xff]
    %v180 = vld [vmem:[%s1 + $0x4e8] sm:$0xff]
    %v181 = vld [vmem:[%s1 + $0x4f0] sm:$0xff]
    %v182 = vld [vmem:[%s1 + $0x4f8] sm:$0xff]
    %v183 = vld [vmem:[%s1 + $0x500] sm:$0xff]
    %v184 = vld [vmem:[%s1 + $0x508] sm:$0xff]
    %v185 = vld [vmem:[%s1 + $0x510] sm:$0xff]
    %v186 = vld [vmem:[%s1 + $0x518] sm:$0xff]
    %v187 = vld [vmem:[%s1 + $0x520] sm:$0xff]
    %v188 = vld [vmem:[%s1 + $0x528] sm:$0xff]
    %v189 = vld [vmem:[%s1 + $0x530] sm:$0xff]
    %v190 = vld [vmem:[%s1 + $0x538] sm:$0xff]
    %v191 = vld [vmem:[%s1 + $0x540] sm:$0xff]
    %v192 = vld [vmem:[%s1 + $0x548] sm:$0xff]
    %v193 = vld [vmem:[%s1 + $0x550] sm:$0xff]
    %v194 = vld [vmem:[%s1 + $0x558] sm:$0xff]
    %v195 = vld [vmem:[%s1 + $0x560] sm:$0xff]
    %v196 = vld [vmem:[%s1 + $0x568] sm:$0xff]
    %v197 = vld [vmem:[%s1 + $0x570] sm:$0xff]
    %v198 = vld [vmem:[%s1 + $0x578] sm:$0xff]
    %v199 = vld [vmem:[%s1 + $0x580] sm:$0xff]
    %v200 = vld [vmem:[%s1 + $0x588] sm:$0xff]
    %v201 = vld [vmem:[%s1 + $0x590] sm:$0xff]
    %v202 = vld [vmem:[%s1 + $0x598] sm:$0xff]
    %v203 = vld [vmem:[%s1 + $0x5a0] sm:$0xff]
    %v204 = vld [vmem:[%s1 + $0x5a8] sm:$0xff]
    %v205 = vld [vmem:[%s1 + $0x5b0] sm:$0xff]
    %v206 = vld [vmem:[%s1 + $0x5b8] sm:$0xff]
    %v207 = vld [vmem:[%s1 + $0x5c0] sm:$0xff]
    %v208 = vld [vmem:[%s1 + $0x5c8] sm:$0xff]
    %v209 = vld [vmem:[%s1 + $0x5d0] sm:$0xff]
    %v210 = vld [vmem:[%s1 + $0x5d8] sm:$0xff]
    %v211 = vld [vmem:[%s1 + $0x5e0] sm:$0xff]
    %v212 = vld [vmem:[%s1 + $0x5e8] sm:$0xff]
    %v213 = vld [vmem:[%s1 + $0x5f0] sm:$0xff]
    %v214 = vld [vmem:[%s1 + $0x5f8] sm:$0xff]
    %v215 = vld [vmem:[%s1 + $0x600] sm:$0xff]
    %v216 = vld [vmem:[%s1 + $0x608] sm:$0xff]
    %v217 = vld [vmem:[%s1 + $0x610] sm:$0xff]
    %v218 = vld [vmem:[%s1 + $0x618] sm:$0xff]
    %v219 = vld [vmem:[%s1 + $0x620] sm:$0xff]
    %v220 = vld [vmem:[%s1 + $0x628] sm:$0xff]
    %v221 = vld [vmem:[%s1 + $0x630] sm:$0xff]
    %v222 = vld [vmem:[%s1 + $0x638] sm:$0xff]
    %v223 = vld [vmem:[%s1 + $0x640] sm:$0xff]
    %v224 = vld [vmem:[%s1 + $0x648] sm:$0xff]
    %v225 = vld [vmem:[%s1 + $0x650] sm:$0xff]
    %v226 = vld [vmem:[%s1 + $0x658] sm:$0xff]
    %v227 = vld [vmem:[%s1 + $0x660] sm:$0xff]
    %v228 = vld [vmem:[%s1 + $0x668] sm:$0xff]
    %v229 = vld [vmem:[%s1 + $0x670] sm:$0xff]
    %v230 = vld [vmem:[%s1 + $0x678] sm:$0xff]
    %v231 = vld [vmem:[%s1 + $0x680] sm:$0xff]
    %v232 = vld [vmem:[%s1 + $0x688] sm:$0xff]
    %v233 = vld [vmem:[%s1 + $0x690] sm:$0xff]
    %v234 = vld [vmem:[%s1 + $0x698] sm:$0xff]
    %v235 = vld [vmem:[%s1 + $0x6a0] sm:$0xff]
    %v236 = vld [vmem:[%s1 + $0x6a8] sm:$0xff]
    %v237 = vld [vmem:[%s1 + $0x6b0] sm:$0xff]
    %v238 = vld [vmem:[%s1 + $0x6b8] sm:$0xff]
    %v239 = vld [vmem:[%s1 + $0x6c0] sm:$0xff]
    %v240 = vld [vmem:[%s1 + $0x6c8] sm:$0xff]
    %v241 = vld [vmem:[%s1 + $0x6d0] sm:$0xff]
    %v242 = vld [vmem:[%s1 + $0x6d8] sm:$0xff]
    %v243 = vld [vmem:[%s1 + $0x6e0] sm:$0xff]
    %v244 = vld [vmem:[%s1 + $0x6e8] sm:$0xff]
    %v245 = vld [vmem:[%s1 + $0x6f0] sm:$0xff]
    %v246 = vld [vmem:[%s1 + $0x6f8] sm:$0xff]
    %v247 = vld [vmem:[%s1 + $0x700] sm:$0xff]
    %v248 = vld [vmem:[%s1 + $0x708] sm:$0xff]
    %v249 = vld [vmem:[%s1 + $0x710] sm:$0xff]
    %v250 = vld [vmem:[%s1 + $0x718] sm:$0xff]
    %v251 = vld [vmem:[%s1 + $0x720] sm:$0xff]
    %v252 = vld [vmem:[%s1 + $0x728] sm:$0xff]
    %v253 = vld [vmem:[%s1 + $0x730] sm:$0xff]
    %v254 = vld [vmem:[%s1 + $0x738] sm:$0xff]
    %v255 = vld [vmem:[%s1 + $0x740] sm:$0xff]
    %v256 = vld [vmem:[%s1 + $0x748] sm:$0xff]
    %v257 = vld [vmem:[%s1 + $0x750] sm:$0xff]
    %v258 = vld [vmem:[%s1 + $0x758] sm:$0xff]
    %v259 = vld [vmem:[%s1 + $0x760] sm:$0xff]
    %v260 = vld [vmem:[%s1 + $0x768] sm:$0xff]
    %v261 = vld [vmem:[%s1 + $0x770] sm:$0xff]
    %v262 = vld [vmem:[%s1 + $0x778] sm:$0xff]
    %v263 = vld [vmem:[%s1 + $0x780] sm:$0xff]
    %v264 = vld [vmem:[%s1 + $0x788] sm:$0xff]
    %v265 = vld [vmem:[%s1 + $0x790] sm:$0xff]
    %v266 = vld [vmem:[%s1 + $0x798] sm:$0xff]
    %v267 = vld [vmem:[%s1 + $0x7a0] sm:$0xff]
    %v268 = vld [vmem:[%s1 + $0x7a8] sm:$0xff]
    %v269 = vld [vmem:[%s1 + $0x7b0] sm:$0xff]
    %v270 = vld [vmem:[%s1 + $0x7b8] sm:$0xff]
    %v271 = vld [vmem:[%s1 + $0x7c0] sm:$0xff]
    %v272 = vld [vmem:[%s1 + $0x7c8] sm:$0xff]
    %v273 = vld [vmem:[%s1 + $0x7d0] sm:$0xff]
    %v274 = vld [vmem:[%s1 + $0x7d8] sm:$0xff]
    %v275 = vld [vmem:[%s1 + $0x7e0] sm:$0xff]
    %v276 = vld [vmem:[%s1 + $0x7e8] sm:$0xff]
    %v277 = vld [vmem:[%s1 + $0x7f0] sm:$0xff]
    %v278 = vld [vmem:[%s1 + $0x7f8] sm:$0xff]
    %v279 = vld [vmem:[%s1 + $0x800] sm:$0xff]
    %v280 = vld [vmem:[%s1 + $0x808] sm:$0xff]
    %v281 = vld [vmem:[%s1 + $0x810] sm:$0xff]
    %v282 = vld [vmem:[%s1 + $0x818] sm:$0xff]
    %v283 = vld [vmem:[%s1 + $0x820] sm:$0xff]
    %v284 = vld [vmem:[%s1 + $0x828] sm:$0xff]
    %v285 = vld [vmem:[%s1 + $0x830] sm:$0xff]
    %v286 = vld [vmem:[%s1 + $0x838] sm:$0xff]
    %v287 = vld [vmem:[%s1 + $0x840] sm:$0xff]
    %v288 = vld [vmem:[%s1 + $0x848] sm:$0xff]
    %v289 = vld [vmem:[%s1 + $0x850] sm:$0xff]
    %v290 = vld [vmem:[%s1 + $0x858] sm:$0xff]
    %v291 = vld [vmem:[%s1 + $0x860] sm:$0xff]
    %v292 = vld [vmem:[%s1 + $0x868] sm:$0xff]
    %v293 = vld [vmem:[%s1 + $0x870] sm:$0xff]
    %v294 = vld [vmem:[%s1 + $0x878] sm:$0xff]
    %v295 = vld [vmem:[%s1 + $0x880] sm:$0xff]
    %v296 = vld [vmem:[%s1 + $0x888] sm:$0xff]
    %v297 = vld [vmem:[%s1 + $0x890] sm:$0xff]
    %v298 = vld [vmem:[%s1 + $0x898] sm:$0xff]
    %v299 = vld [vmem:[%s1 + $0x8a0] sm:$0xff]
    %v300 = vld [vmem:[%s1 + $0x8a8] sm:$0xff]
    %v301 = vld [vmem:[%s1 + $0x8b0] sm:$0xff]
    %v302 = vld [vmem:[%s1 + $0x8b8] sm:$0xff]
    %v303 = vld [vmem:[%s1 + $0x8c0] sm:$0xff]
    %v304 = vld [vmem:[%s1 + $0x8c8] sm:$0xff]
    %v305 = vld [vmem:[%s1 + $0x8d0] sm:$0xff]
    %v306 = vld [vmem:[%s1 + $0x8d8] sm:$0xff]
    %v307 = vld [vmem:[%s1 + $0x8e0] sm:$0xff]
    %v308 = vld [vmem:[%s1 + $0x8e8] sm:$0xff]
    %v309 = vld [vmem:[%s1 + $0x8f0] sm:$0xff]
    %v310 = vld [vmem:[%s1 + $0x8f8] sm:$0xff]
    %v311 = vld [vmem:[%s1 + $0x900] sm:$0xff]
    %v312 = vld [vmem:[%s1 + $0x908] sm:$0xff]
    %v313 = vld [vmem:[%s1 + $0x910] sm:$0xff]
    %v314 = vld [vmem:[%s1 + $0x918] sm:$0xff]
    %v315 = vld [vmem:[%s1 + $0x920] sm:$0xff]
    %v316 = vld [vmem:[%s1 + $0x928] sm:$0xff]
    %v317 = vld [vmem:[%s1 + $0x930] sm:$0xff]
    %v318 = vld [vmem:[%s1 + $0x938] sm:$0xff]
    %v319 = vld [vmem:[%s1 + $0x940] sm:$0xff]
    %v320 = vld [vmem:[%s1 + $0x948] sm:$0xff]
    %v321 = vld [vmem:[%s1 + $0x950] sm:$0xff]
    %v322 = vld [vmem:[%s1 + $0x958] sm:$0xff]
    %v323 = vld [vmem:[%s1 + $0x960] sm:$0xff]
    %v324 = vld [vmem:[%s1 + $0x968] sm:$0xff]
    %v325 = vld [vmem:[%s1 + $0x970] sm:$0xff]
    %v326 = vld [vmem:[%s1 + $0x978] sm:$0xff]
    %v327 = vld [vmem:[%s1 + $0x980] sm:$0xff]
    %v328 = vld [vmem:[%s1 + $0x988] sm:$0xff]
    %v329 = vld [vmem:[%s1 + $0x990] sm:$0xff]
    %v330 = vld [vmem:[%s1 + $0x998] sm:$0xff]
    %v331 = vld [vmem:[%s1 + $0x9a0] sm:$0xff]
    %v332 = vld [vmem:[%s1 + $0x9a8] sm:$0xff]
    %v333 = vld [vmem:[%s1 + $0x9b0] sm:$0xff]
    %v334 = vld [vmem:[%s1 + $0x9b8] sm:$0xff]
    %v335 = vld [vmem:[%s1 + $0x9c0] sm:$0xff]
    %v336 = vld [vmem:[%s1 + $0x9c8] sm:$0xff]
    %v337 = vld [vmem:[%s1 + $0x9d0] sm:$0xff]
    %v338 = vld [vmem:[%s1 + $0x9d8] sm:$0xff]
    %v339 = vld [vmem:[%s1 + $0x9e0] sm:$0xff]
    %v340 = vld [vmem:[%s1 + $0x9e8] sm:$0xff]
    %v341 = vld [vmem:[%s1 + $0x9f0] sm:$0xff]
    %v342 = vld [vmem:[%s1 + $0x9f8] sm:$0xff]
    %v343 = vld [vmem:[%s1 + $0xa00] sm:$0xff]
    %v344 = vld [vmem:[%s1 + $0xa08] sm:$0xff]
    %v345 = vld [vmem:[%s1 + $0xa10] sm:$0xff]
    %v346 = vld [vmem:[%s1 + $0xa18] sm:$0xff]
    %v347 = vld [vmem:[%s1 + $0xa20] sm:$0xff]
    %v348 = vld [vmem:[%s1 + $0xa28] sm:$0xff]
    %v349 = vld [vmem:[%s1 + $0xa30] sm:$0xff]
    %v350 = vld [vmem:[%s1 + $0xa38] sm:$0xff]
    %v351 = vld [vmem:[%s1 + $0xa40] sm:$0xff]
    %v352 = vld [vmem:[%s1 + $0xa48] sm:$0xff]
    %v353 = vld [vmem:[%s1 + $0xa50] sm:$0xff]
    %v354 = vld [vmem:[%s1 + $0xa58] sm:$0xff]
    %v355 = vld [vmem:[%s1 + $0xa60] sm:$0xff]
    %v356 = vld [vmem:[%s1 + $0xa68] sm:$0xff]
    %v357 = vld [vmem:[%s1 + $0xa70] sm:$0xff]
    %v358 = vld [vmem:[%s1 + $0xa78] sm:$0xff]
    %v359 = vld [vmem:[%s1 + $0xa80] sm:$0xff]
    %v360 = vld [vmem:[%s1 + $0xa88] sm:$0xff]
    %v361 = vld [vmem:[%s1 + $0xa90] sm:$0xff]
    %v362 = vld [vmem:[%s1 + $0xa98] sm:$0xff]
    %v363 = vld [vmem:[%s1 + $0xaa0] sm:$0xff]
    %v364 = vld [vmem:[%s1 + $0xaa8] sm:$0xff]
    %v365 = vld [vmem:[%s1 + $0xab0] sm:$0xff]
    %v366 = vld [vmem:[%s1 + $0xab8] sm:$0xff]
    %v367 = vld [vmem:[%s1 + $0xac0] sm:$0xff]
    %v368 = vld [vmem:[%s1 + $0xac8] sm:$0xff]
    %v369 = vld [vmem:[%s1 + $0xad0] sm:$0xff]
    %v370 = vld [vmem:[%s1 + $0xad8] sm:$0xff]
    %v371 = vld [vmem:[%s1 + $0xae0] sm:$0xff]
    %v372 = vld [vmem:[%s1 + $0xae8] sm:$0xff]
    %v373 = vld [vmem:[%s1 + $0xaf0] sm:$0xff]
    %v374 = vld [vmem:[%s1 + $0xaf8] sm:$0xff]
    %v375 = vld [vmem:[%s1 + $0xb00] sm:$0xff]
    %v376 = vld [vmem:[%s1 + $0xb08] sm:$0xff]
    %v377 = vld [vmem:[%s1 + $0xb10] sm:$0xff]
    %v378 = vld [vmem:[%s1 + $0xb18] sm:$0xff]
    %v379 = vld [vmem:[%s1 + $0xb20] sm:$0xff]
    %v380 = vld [vmem:[%s1 + $0xb28] sm:$0xff]
    %v381 = vld [vmem:[%s1 + $0xb30] sm:$0xff]
    %v382 = vld [vmem:[%s1 + $0xb38] sm:$0xff]
    %v383 = vld [vmem:[%s1 + $0xb40] sm:$0xff]
    %v384 = vld [vmem:[%s1 + $0xb48] sm:$0xff]
    %v385 = vld [vmem:[%s1 + $0xb50] sm:$0xff]
    %v386 = vld [vmem:[%s1 + $0xb58] sm:$0xff]
    %v387 = vld [vmem:[%s1 + $0xb60] sm:$0xff]
    %v388 = vld [vmem:[%s1 + $0xb68] sm:$0xff]
    %v389 = vld [vmem:[%s1 + $0xb70] sm:$0xff]
    %v390 = vld [vmem:[%s1 + $0xb78] sm:$0xff]
    %v391 = vld [vmem:[%s1 + $0xb80] sm:$0xff]
    %v392 = vld [vmem:[%s1 + $0xb88] sm:$0xff]
    %v393 = vld [vmem:[%s1 + $0xb90] sm:$0xff]
    %v394 = vld [vmem:[%s1 + $0xb98] sm:$0xff]
    %v395 = vld [vmem:[%s1 + $0xba0] sm:$0xff]
    %v396 = vld [vmem:[%s1 + $0xba8] sm:$0xff]
    %v397 = vld [vmem:[%s1 + $0xbb0] sm:$0xff]
    %v398 = vld [vmem:[%s1 + $0xbb8] sm:$0xff]
    %v399 = vld [vmem:[%s1 + $0xbc0] sm:$0xff]
    %v400 = vld [vmem:[%s1 + $0xbc8] sm:$0xff]
    %v401 = vld [vmem:[%s1 + $0xbd0] sm:$0xff]
    %v402 = vld [vmem:[%s1 + $0xbd8] sm:$0xff]
    %v403 = vld [vmem:[%s1 + $0xbe0] sm:$0xff]
    %v404 = vld [vmem:[%s1 + $0xbe8] sm:$0xff]
    %v405 = vld [vmem:[%s1 + $0xbf0] sm:$0xff]
    %v406 = vld [vmem:[%s1 + $0xbf8] sm:$0xff]
    %v407 = vld [vmem:[%s1 + $0xc00] sm:$0xff]
    %v408 = vld [vmem:[%s1 + $0xc08] sm:$0xff]
    %v409 = vld [vmem:[%s1 + $0xc10] sm:$0xff]
    %v410 = vld [vmem:[%s1 + $0xc18] sm:$0xff]
    %v411 = vld [vmem:[%s1 + $0xc20] sm:$0xff]
    %v412 = vld [vmem:[%s1 + $0xc28] sm:$0xff]
    %v413 = vld [vmem:[%s1 + $0xc30] sm:$0xff]
    %v414 = vld [vmem:[%s1 + $0xc38] sm:$0xff]
    %v415 = vld [vmem:[%s1 + $0xc40] sm:$0xff]
    %v416 = vld [vmem:[%s1 + $0xc48] sm:$0xff]
    %v417 = vld [vmem:[%s1 + $0xc50] sm:$0xff]
    %v418 = vld [vmem:[%s1 + $0xc58] sm:$0xff]
    %v419 = vld [vmem:[%s1 + $0xc60] sm:$0xff]
    %v420 = vld [vmem:[%s1 + $0xc68] sm:$0xff]
    %v421 = vld [vmem:[%s1 + $0xc70] sm:$0xff]
    %v422 = vld [vmem:[%s1 + $0xc78] sm:$0xff]
    %v423 = vld [vmem:[%s1 + $0xc80] sm:$0xff]
    %v424 = vld [vmem:[%s1 + $0xc88] sm:$0xff]
    %v425 = vld [vmem:[%s1 + $0xc90] sm:$0xff]
    %v426 = vld [vmem:[%s1 + $0xc98] sm:$0xff]
    %v427 = vld [vmem:[%s1 + $0xca0] sm:$0xff]
    %v428 = vld [vmem:[%s1 + $0xca8] sm:$0xff]
    %v429 = vld [vmem:[%s1 + $0xcb0] sm:$0xff]
    %v430 = vld [vmem:[%s1 + $0xcb8] sm:$0xff]
    %v431 = vld [vmem:[%s1 + $0xcc0] sm:$0xff]
    %v432 = vld [vmem:[%s1 + $0xcc8] sm:$0xff]
    %v433 = vld [vmem:[%s1 + $0xcd0] sm:$0xff]
    %v434 = vld [vmem:[%s1 + $0xcd8] sm:$0xff]
    %v435 = vld [vmem:[%s1 + $0xce0] sm:$0xff]
    %v436 = vld [vmem:[%s1 + $0xce8] sm:$0xff]
    %v437 = vld [vmem:[%s1 + $0xcf0] sm:$0xff]
    %v438 = vld [vmem:[%s1 + $0xcf8] sm:$0xff]
    %v439 = vld [vmem:[%s1 + $0xd00] sm:$0xff]
    %v440 = vld [vmem:[%s1 + $0xd08] sm:$0xff]
    %v441 = vld [vmem:[%s1 + $0xd10] sm:$0xff]
    %v442 = vld [vmem:[%s1 + $0xd18] sm:$0xff]
    %v443 = vld [vmem:[%s1 + $0xd20] sm:$0xff]
    %v444 = vld [vmem:[%s1 + $0xd28] sm:$0xff]
    %v445 = vld [vmem:[%s1 + $0xd30] sm:$0xff]
    %v446 = vld [vmem:[%s1 + $0xd38] sm:$0xff]
    %v447 = vld [vmem:[%s1 + $0xd40] sm:$0xff]
    %v448 = vld [vmem:[%s1 + $0xd48] sm:$0xff]
    %v449 = vld [vmem:[%s1 + $0xd50] sm:$0xff]
    %v450 = vld [vmem:[%s1 + $0xd58] sm:$0xff]
    %v451 = vld [vmem:[%s1 + $0xd60] sm:$0xff]
    %v452 = vld [vmem:[%s1 + $0xd68] sm:$0xff]
    %v453 = vld [vmem:[%s1 + $0xd70] sm:$0xff]
    %v454 = vld [vmem:[%s1 + $0xd78] sm:$0xff]
    %v455 = vld [vmem:[%s1 + $0xd80] sm:$0xff]
    %v456 = vld [vmem:[%s1 + $0xd88] sm:$0xff]
    %v457 = vld [vmem:[%s1 + $0xd90] sm:$0xff]
    %v458 = vld [vmem:[%s1 + $0xd98] sm:$0xff]
    %v459 = vld [vmem:[%s1 + $0xda0] sm:$0xff]
    %v460 = vld [vmem:[%s1 + $0xda8] sm:$0xff]
    %v461 = vld [vmem:[%s1 + $0xdb0] sm:$0xff]
    %v462 = vld [vmem:[%s1 + $0xdb8] sm:$0xff]
    %v463 = vld [vmem:[%s1 + $0xdc0] sm:$0xff]
    %v464 = vld [vmem:[%s1 + $0xdc8] sm:$0xff]
    %v465 = vld [vmem:[%s1 + $0xdd0] sm:$0xff]
    %v466 = vld [vmem:[%s1 + $0xdd8] sm:$0xff]
    %v467 = vld [vmem:[%s1 + $0xde0] sm:$0xff]
    %v468 = vld [vmem:[%s1 + $0xde8] sm:$0xff]
    %v469 = vld [vmem:[%s1 + $0xdf0] sm:$0xff]
    %v470 = vld [vmem:[%s1 + $0xdf8] sm:$0xff]
    %v471 = vld [vmem:[%s1 + $0xe00] sm:$0xff]
    %v472 = vld [vmem:[%s1 + $0xe08] sm:$0xff]
    %v473 = vld [vmem:[%s1 + $0xe10] sm:$0xff]
    %v474 = vld [vmem:[%s1 + $0xe18] sm:$0xff]
    %v475 = vld [vmem:[%s1 + $0xe20] sm:$0xff]
    %v476 = vld [vmem:[%s1 + $0xe28] sm:$0xff]
    %v477 = vld [vmem:[%s1 + $0xe30] sm:$0xff]
    %v478 = vld [vmem:[%s1 + $0xe38] sm:$0xff]
    %v479 = vld [vmem:[%s1 + $0xe40] sm:$0xff]
    %v480 = vld [vmem:[%s1 + $0xe48] sm:$0xff]
    %v481 = vld [vmem:[%s1 + $0xe50] sm:$0xff]
    %v482 = vld [vmem:[%s1 + $0xe58] sm:$0xff]
    %v483 = vld [vmem:[%s1 + $0xe60] sm:$0xff]
    %v484 = vld [vmem:[%s1 + $0xe68] sm:$0xff]
    %v485 = vld [vmem:[%s1 + $0xe70] sm:$0xff]
    %v486 = vld [vmem:[%s1 + $0xe78] sm:$0xff]
    %v487 = vld [vmem:[%s1 + $0xe80] sm:$0xff]
    %v488 = vld [vmem:[%s1 + $0xe88] sm:$0xff]
    %v489 = vld [vmem:[%s1 + $0xe90] sm:$0xff]
    %v490 = vld [vmem:[%s1 + $0xe98] sm:$0xff]
    %v491 = vld [vmem:[%s1 + $0xea0] sm:$0xff]
    %v492 = vld [vmem:[%s1 + $0xea8] sm:$0xff]
    %v493 = vld [vmem:[%s1 + $0xeb0] sm:$0xff]
    %v494 = vld [vmem:[%s1 + $0xeb8] sm:$0xff]
    %v495 = vld [vmem:[%s1 + $0xec0] sm:$0xff]
    %v496 = vld [vmem:[%s1 + $0xec8] sm:$0xff]
    %v497 = vld [vmem:[%s1 + $0xed0] sm:$0xff]
    %v498 = vld [vmem:[%s1 + $0xed8] sm:$0xff]
    %v499 = vld [vmem:[%s1 + $0xee0] sm:$0xff]
    %v500 = vld [vmem:[%s1 + $0xee8] sm:$0xff]
    %v501 = vld [vmem:[%s1 + $0xef0] sm:$0xff]
    %v502 = vld [vmem:[%s1 + $0xef8] sm:$0xff]
    %v503 = vld [vmem:[%s1 + $0xf00] sm:$0xff]
    %v504 = vld [vmem:[%s1 + $0xf08] sm:$0xff]
    %v505 = vld [vmem:[%s1 + $0xf10] sm:$0xff]
    %v506 = vld [vmem:[%s1 + $0xf18] sm:$0xff]
    %v507 = vld [vmem:[%s1 + $0xf20] sm:$0xff]
    %v508 = vld [vmem:[%s1 + $0xf28] sm:$0xff]
    %v509 = vld [vmem:[%s1 + $0xf30] sm:$0xff]
    %v510 = vld [vmem:[%s1 + $0xf38] sm:$0xff]
    %v511 = vld [vmem:[%s1 + $0xf40] sm:$0xff]
    %v512 = vld [vmem:[%s1 + $0xf48] sm:$0xff]
    %v513 = vld [vmem:[%s1 + $0xf50] sm:$0xff]
    %v514 = vld [vmem:[%s1 + $0xf58] sm:$0xff]
    %v515 = vld [vmem:[%s1 + $0xf60] sm:$0xff]
    %v516 = vld [vmem:[%s1 + $0xf68] sm:$0xff]
    %v517 = vld [vmem:[%s1 + $0xf70] sm:$0xff]
    %v518 = vld [vmem:[%s1 + $0xf78] sm:$0xff]
    %v519 = vld [vmem:[%s1 + $0xf80] sm:$0xff]
    %v520 = vld [vmem:[%s1 + $0xf88] sm:$0xff]
    %v521 = vld [vmem:[%s1 + $0xf90] sm:$0xff]
    %v522 = vld [vmem:[%s1 + $0xf98] sm:$0xff]
    %v523 = vld [vmem:[%s1 + $0xfa0] sm:$0xff]
    %v524 = vld [vmem:[%s1 + $0xfa8] sm:$0xff]
    %v525 = vld [vmem:[%s1 + $0xfb0] sm:$0xff]
    %v526 = vld [vmem:[%s1 + $0xfb8] sm:$0xff]
    %v527 = vld [vmem:[%s1 + $0xfc0] sm:$0xff]
    %v528 = vld [vmem:[%s1 + $0xfc8] sm:$0xff]
    %v529 = vld [vmem:[%s1 + $0xfd0] sm:$0xff]
    %v530 = vld [vmem:[%s1 + $0xfd8] sm:$0xff]
    %v531 = vld [vmem:[%s1 + $0xfe0] sm:$0xff]
    %v532 = vld [vmem:[%s1 + $0xfe8] sm:$0xff]
    %v533 = vld [vmem:[%s1 + $0xff0] sm:$0xff]
    %v534 = vld [vmem:[%s1 + $0xff8] sm:$0xff]
    %v535 = vld [vmem:[%s2] sm:$0xf]
    %v537 = vperm.slane %v535, 0
    %v538 = vperm.slane %v535, 1
    %v539 = vperm.slane %v535, 2
    %v540 = vperm.slane %v535, 3
    %547 = vst [vmem:[#allocation1] ss:$4 sm:$0xff] %v21
    %s548 = scalar_lea.vmem [#allocation1], 32
    %549 = vst [vmem:[%s548] ss:$4 sm:$0xff] %v22
    %v550 = vld.sshfl [vmem:[#allocation1] sm:$0xff pattern:$0x73625140]
    %v551 = vld.sshfl [vmem:[#allocation1 + $0x8] sm:$0xff pattern:$0x73625140]
    %v552 = vld.sshfl [vmem:[#allocation1 + $0x10] sm:$0xff pattern:$0x73625140]
    %v553 = vld.sshfl [vmem:[#allocation1 + $0x18] sm:$0xff pattern:$0x73625140]
    %v554 = vld.sshfl [vmem:[#allocation1 + $0x20] sm:$0xff pattern:$0x73625140]
    %v555 = vld.sshfl [vmem:[#allocation1 + $0x28] sm:$0xff pattern:$0x73625140]
    %v556 = vld.sshfl [vmem:[#allocation1 + $0x30] sm:$0xff pattern:$0x73625140]
    %v557 = vld.sshfl [vmem:[#allocation1 + $0x38] sm:$0xff pattern:$0x73625140]
    %566 = vmatpush.msra.mxu0 %v83
    %567 = vmatpush.msra.mxu0 %v79
    %568 = vmatpush.msra.mxu0 %v75
    %569 = vmatpush.msra.mxu0 %v71
    %570 = vmatpush.msra.mxu0 %v67
    %571 = vmatpush.msra.mxu0 %v63
    %572 = vmatpush.msra.mxu0 %v59
    %573 = vmatpush.msra.mxu0 %v55
    %574 = vmatpush.msra.mxu0 %v51
    %575 = vmatpush.msra.mxu0 %v47
    %576 = vmatpush.msra.mxu0 %v43
    %577 = vmatpush.msra.mxu0 %v39
    %578 = vmatpush.msra.mxu0 %v35
    %579 = vmatpush.msra.mxu0 %v31
    %580 = vmatpush.msra.mxu0 %v27
    %581 = vmatpush.msra.mxu0 %v23
    %582 = vmatmul.f32.gmra.mxu0 %v550
    %v583 = vpop.f32.mrf.mxu0
    %v584 = vadd.f32 %v537, %v583
    %585 = vdwg.mxu0
    %586 = vmatpush.msra.mxu0 %v147
    %587 = vmatpush.msra.mxu0 %v143
    %588 = vmatpush.msra.mxu0 %v139
    %589 = vmatpush.msra.mxu0 %v135
    %590 = vmatpush.msra.mxu0 %v131
    %591 = vmatpush.msra.mxu0 %v127
    %592 = vmatpush.msra.mxu0 %v123
    %593 = vmatpush.msra.mxu0 %v119
    %594 = vmatpush.msra.mxu0 %v115
    %595 = vmatpush.msra.mxu0 %v111
    %596 = vmatpush.msra.mxu0 %v107
    %597 = vmatpush.msra.mxu0 %v103
    %598 = vmatpush.msra.mxu0 %v99
    %599 = vmatpush.msra.mxu0 %v95
    %600 = vmatpush.msra.mxu0 %v91
    %601 = vmatpush.msra.mxu0 %v87
    %602 = vmatmul.f32.gmra.mxu0 %v551
    %v603 = vpop.f32.mrf.mxu0
    %v604 = vadd.f32 %v584, %v603
    %605 = vdwg.mxu0
    %606 = vmatpush.msra.mxu0 %v211
    %607 = vmatpush.msra.mxu0 %v207
    %608 = vmatpush.msra.mxu0 %v203
    %609 = vmatpush.msra.mxu0 %v199
    %610 = vmatpush.msra.mxu0 %v195
    %611 = vmatpush.msra.mxu0 %v191
    %612 = vmatpush.msra.mxu0 %v187
    %613 = vmatpush.msra.mxu0 %v183
    %614 = vmatpush.msra.mxu0 %v179
    %615 = vmatpush.msra.mxu0 %v175
    %616 = vmatpush.msra.mxu0 %v171
    %617 = vmatpush.msra.mxu0 %v167
    %618 = vmatpush.msra.mxu0 %v163
    %619 = vmatpush.msra.mxu0 %v159
    %620 = vmatpush.msra.mxu0 %v155
    %621 = vmatpush.msra.mxu0 %v151
    %622 = vmatmul.f32.gmra.mxu0 %v552
    %v623 = vpop.f32.mrf.mxu0
    %v624 = vadd.f32 %v604, %v623
    %625 = vdwg.mxu0
    %626 = vmatpush.msra.mxu0 %v275
    %627 = vmatpush.msra.mxu0 %v271
    %628 = vmatpush.msra.mxu0 %v267
    %629 = vmatpush.msra.mxu0 %v263
    %630 = vmatpush.msra.mxu0 %v259
    %631 = vmatpush.msra.mxu0 %v255
    %632 = vmatpush.msra.mxu0 %v251
    %633 = vmatpush.msra.mxu0 %v247
    %634 = vmatpush.msra.mxu0 %v243
    %635 = vmatpush.msra.mxu0 %v239
    %636 = vmatpush.msra.mxu0 %v235
    %637 = vmatpush.msra.mxu0 %v231
    %638 = vmatpush.msra.mxu0 %v227
    %639 = vmatpush.msra.mxu0 %v223
    %640 = vmatpush.msra.mxu0 %v219
    %641 = vmatpush.msra.mxu0 %v215
    %642 = vmatmul.f32.gmra.mxu0 %v553
    %v643 = vpop.f32.mrf.mxu0
    %v644 = vadd.f32 %v624, %v643
    %645 = vdwg.mxu0
    %646 = vmatpush.msra.mxu0 %v339
    %647 = vmatpush.msra.mxu0 %v335
    %648 = vmatpush.msra.mxu0 %v331
    %649 = vmatpush.msra.mxu0 %v327
    %650 = vmatpush.msra.mxu0 %v323
    %651 = vmatpush.msra.mxu0 %v319
    %652 = vmatpush.msra.mxu0 %v315
    %653 = vmatpush.msra.mxu0 %v311
    %654 = vmatpush.msra.mxu0 %v307
    %655 = vmatpush.msra.mxu0 %v303
    %656 = vmatpush.msra.mxu0 %v299
    %657 = vmatpush.msra.mxu0 %v295
    %658 = vmatpush.msra.mxu0 %v291
    %659 = vmatpush.msra.mxu0 %v287
    %660 = vmatpush.msra.mxu0 %v283
    %661 = vmatpush.msra.mxu0 %v279
    %662 = vmatmul.f32.gmra.mxu0 %v554
    %v663 = vpop.f32.mrf.mxu0
    %v664 = vadd.f32 %v644, %v663
    %665 = vdwg.mxu0
    %666 = vmatpush.msra.mxu0 %v403
    %667 = vmatpush.msra.mxu0 %v399
    %668 = vmatpush.msra.mxu0 %v395
    %669 = vmatpush.msra.mxu0 %v391
    %670 = vmatpush.msra.mxu0 %v387
    %671 = vmatpush.msra.mxu0 %v383
    %672 = vmatpush.msra.mxu0 %v379
    %673 = vmatpush.msra.mxu0 %v375
    %674 = vmatpush.msra.mxu0 %v371
    %675 = vmatpush.msra.mxu0 %v367
    %676 = vmatpush.msra.mxu0 %v363
    %677 = vmatpush.msra.mxu0 %v359
    %678 = vmatpush.msra.mxu0 %v355
    %679 = vmatpush.msra.mxu0 %v351
    %680 = vmatpush.msra.mxu0 %v347
    %681 = vmatpush.msra.mxu0 %v343
    %682 = vmatmul.f32.gmra.mxu0 %v555
    %v683 = vpop.f32.mrf.mxu0
    %v684 = vadd.f32 %v664, %v683
    %685 = vdwg.mxu0
    %686 = vmatpush.msra.mxu0 %v467
    %687 = vmatpush.msra.mxu0 %v463
    %688 = vmatpush.msra.mxu0 %v459
    %689 = vmatpush.msra.mxu0 %v455
    %690 = vmatpush.msra.mxu0 %v451
    %691 = vmatpush.msra.mxu0 %v447
    %692 = vmatpush.msra.mxu0 %v443
    %693 = vmatpush.msra.mxu0 %v439
    %694 = vmatpush.msra.mxu0 %v435
    %695 = vmatpush.msra.mxu0 %v431
    %696 = vmatpush.msra.mxu0 %v427
    %697 = vmatpush.msra.mxu0 %v423
    %698 = vmatpush.msra.mxu0 %v419
    %699 = vmatpush.msra.mxu0 %v415
    %700 = vmatpush.msra.mxu0 %v411
    %701 = vmatpush.msra.mxu0 %v407
    %702 = vmatmul.f32.gmra.mxu0 %v556
    %v703 = vpop.f32.mrf.mxu0
    %v704 = vadd.f32 %v684, %v703
    %705 = vdwg.mxu0
    %706 = vmatpush.msra.mxu0 %v531
    %707 = vmatpush.msra.mxu0 %v527
    %708 = vmatpush.msra.mxu0 %v523
    %709 = vmatpush.msra.mxu0 %v519
    %710 = vmatpush.msra.mxu0 %v515
    %711 = vmatpush.msra.mxu0 %v511
    %712 = vmatpush.msra.mxu0 %v507
    %713 = vmatpush.msra.mxu0 %v503
    %714 = vmatpush.msra.mxu0 %v499
    %715 = vmatpush.msra.mxu0 %v495
    %716 = vmatpush.msra.mxu0 %v491
    %717 = vmatpush.msra.mxu0 %v487
    %718 = vmatpush.msra.mxu0 %v483
    %719 = vmatpush.msra.mxu0 %v479
    %720 = vmatpush.msra.mxu0 %v475
    %721 = vmatpush.msra.mxu0 %v471
    %722 = vmatmul.f32.gmra.mxu0 %v557
    %v723 = vpop.f32.mrf.mxu0
    %v724 = vadd.f32 %v704, %v723
    %725 = vdwg.mxu0
    %726 = vmatpush.msra.mxu0 %v84
    %727 = vmatpush.msra.mxu0 %v80
    %728 = vmatpush.msra.mxu0 %v76
    %729 = vmatpush.msra.mxu0 %v72
    %730 = vmatpush.msra.mxu0 %v68
    %731 = vmatpush.msra.mxu0 %v64
    %732 = vmatpush.msra.mxu0 %v60
    %733 = vmatpush.msra.mxu0 %v56
    %734 = vmatpush.msra.mxu0 %v52
    %735 = vmatpush.msra.mxu0 %v48
    %736 = vmatpush.msra.mxu0 %v44
    %737 = vmatpush.msra.mxu0 %v40
    %738 = vmatpush.msra.mxu0 %v36
    %739 = vmatpush.msra.mxu0 %v32
    %740 = vmatpush.msra.mxu0 %v28
    %741 = vmatpush.msra.mxu0 %v24
    %742 = vmatmul.f32.gmra.mxu0 %v550
    %v743 = vpop.f32.mrf.mxu0
    %v744 = vadd.f32 %v538, %v743
    %745 = vdwg.mxu0
    %746 = vmatpush.msra.mxu0 %v148
    %747 = vmatpush.msra.mxu0 %v144
    %748 = vmatpush.msra.mxu0 %v140
    %749 = vmatpush.msra.mxu0 %v136
    %750 = vmatpush.msra.mxu0 %v132
    %751 = vmatpush.msra.mxu0 %v128
    %752 = vmatpush.msra.mxu0 %v124
    %753 = vmatpush.msra.mxu0 %v120
    %754 = vmatpush.msra.mxu0 %v116
    %755 = vmatpush.msra.mxu0 %v112
    %756 = vmatpush.msra.mxu0 %v108
    %757 = vmatpush.msra.mxu0 %v104
    %758 = vmatpush.msra.mxu0 %v100
    %759 = vmatpush.msra.mxu0 %v96
    %760 = vmatpush.msra.mxu0 %v92
    %761 = vmatpush.msra.mxu0 %v88
    %762 = vmatmul.f32.gmra.mxu0 %v551
    %v763 = vpop.f32.mrf.mxu0
    %v764 = vadd.f32 %v744, %v763
    %765 = vdwg.mxu0
    %766 = vmatpush.msra.mxu0 %v212
    %767 = vmatpush.msra.mxu0 %v208
    %768 = vmatpush.msra.mxu0 %v204
    %769 = vmatpush.msra.mxu0 %v200
    %770 = vmatpush.msra.mxu0 %v196
    %771 = vmatpush.msra.mxu0 %v192
    %772 = vmatpush.msra.mxu0 %v188
    %773 = vmatpush.msra.mxu0 %v184
    %774 = vmatpush.msra.mxu0 %v180
    %775 = vmatpush.msra.mxu0 %v176
    %776 = vmatpush.msra.mxu0 %v172
    %777 = vmatpush.msra.mxu0 %v168
    %778 = vmatpush.msra.mxu0 %v164
    %779 = vmatpush.msra.mxu0 %v160
    %780 = vmatpush.msra.mxu0 %v156
    %781 = vmatpush.msra.mxu0 %v152
    %782 = vmatmul.f32.gmra.mxu0 %v552
    %v783 = vpop.f32.mrf.mxu0
    %v784 = vadd.f32 %v764, %v783
    %785 = vdwg.mxu0
    %786 = vmatpush.msra.mxu0 %v276
    %787 = vmatpush.msra.mxu0 %v272
    %788 = vmatpush.msra.mxu0 %v268
    %789 = vmatpush.msra.mxu0 %v264
    %790 = vmatpush.msra.mxu0 %v260
    %791 = vmatpush.msra.mxu0 %v256
    %792 = vmatpush.msra.mxu0 %v252
    %793 = vmatpush.msra.mxu0 %v248
    %794 = vmatpush.msra.mxu0 %v244
    %795 = vmatpush.msra.mxu0 %v240
    %796 = vmatpush.msra.mxu0 %v236
    %797 = vmatpush.msra.mxu0 %v232
    %798 = vmatpush.msra.mxu0 %v228
    %799 = vmatpush.msra.mxu0 %v224
    %800 = vmatpush.msra.mxu0 %v220
    %801 = vmatpush.msra.mxu0 %v216
    %802 = vmatmul.f32.gmra.mxu0 %v553
    %v803 = vpop.f32.mrf.mxu0
    %v804 = vadd.f32 %v784, %v803
    %805 = vdwg.mxu0
    %806 = vmatpush.msra.mxu0 %v340
    %807 = vmatpush.msra.mxu0 %v336
    %808 = vmatpush.msra.mxu0 %v332
    %809 = vmatpush.msra.mxu0 %v328
    %810 = vmatpush.msra.mxu0 %v324
    %811 = vmatpush.msra.mxu0 %v320
    %812 = vmatpush.msra.mxu0 %v316
    %813 = vmatpush.msra.mxu0 %v312
    %814 = vmatpush.msra.mxu0 %v308
    %815 = vmatpush.msra.mxu0 %v304
    %816 = vmatpush.msra.mxu0 %v300
    %817 = vmatpush.msra.mxu0 %v296
    %818 = vmatpush.msra.mxu0 %v292
    %819 = vmatpush.msra.mxu0 %v288
    %820 = vmatpush.msra.mxu0 %v284
    %821 = vmatpush.msra.mxu0 %v280
    %822 = vmatmul.f32.gmra.mxu0 %v554
    %v823 = vpop.f32.mrf.mxu0
    %v824 = vadd.f32 %v804, %v823
    %825 = vdwg.mxu0
    %826 = vmatpush.msra.mxu0 %v404
    %827 = vmatpush.msra.mxu0 %v400
    %828 = vmatpush.msra.mxu0 %v396
    %829 = vmatpush.msra.mxu0 %v392
    %830 = vmatpush.msra.mxu0 %v388
    %831 = vmatpush.msra.mxu0 %v384
    %832 = vmatpush.msra.mxu0 %v380
    %833 = vmatpush.msra.mxu0 %v376
    %834 = vmatpush.msra.mxu0 %v372
    %835 = vmatpush.msra.mxu0 %v368
    %836 = vmatpush.msra.mxu0 %v364
    %837 = vmatpush.msra.mxu0 %v360
    %838 = vmatpush.msra.mxu0 %v356
    %839 = vmatpush.msra.mxu0 %v352
    %840 = vmatpush.msra.mxu0 %v348
    %841 = vmatpush.msra.mxu0 %v344
    %842 = vmatmul.f32.gmra.mxu0 %v555
    %v843 = vpop.f32.mrf.mxu0
    %v844 = vadd.f32 %v824, %v843
    %845 = vdwg.mxu0
    %846 = vmatpush.msra.mxu0 %v468
    %847 = vmatpush.msra.mxu0 %v464
    %848 = vmatpush.msra.mxu0 %v460
    %849 = vmatpush.msra.mxu0 %v456
    %850 = vmatpush.msra.mxu0 %v452
    %851 = vmatpush.msra.mxu0 %v448
    %852 = vmatpush.msra.mxu0 %v444
    %853 = vmatpush.msra.mxu0 %v440
    %854 = vmatpush.msra.mxu0 %v436
    %855 = vmatpush.msra.mxu0 %v432
    %856 = vmatpush.msra.mxu0 %v428
    %857 = vmatpush.msra.mxu0 %v424
    %858 = vmatpush.msra.mxu0 %v420
    %859 = vmatpush.msra.mxu0 %v416
    %860 = vmatpush.msra.mxu0 %v412
    %861 = vmatpush.msra.mxu0 %v408
    %862 = vmatmul.f32.gmra.mxu0 %v556
    %v863 = vpop.f32.mrf.mxu0
    %v864 = vadd.f32 %v844, %v863
    %865 = vdwg.mxu0
    %866 = vmatpush.msra.mxu0 %v532
    %867 = vmatpush.msra.mxu0 %v528
    %868 = vmatpush.msra.mxu0 %v524
    %869 = vmatpush.msra.mxu0 %v520
    %870 = vmatpush.msra.mxu0 %v516
    %871 = vmatpush.msra.mxu0 %v512
    %872 = vmatpush.msra.mxu0 %v508
    %873 = vmatpush.msra.mxu0 %v504
    %874 = vmatpush.msra.mxu0 %v500
    %875 = vmatpush.msra.mxu0 %v496
    %876 = vmatpush.msra.mxu0 %v492
    %877 = vmatpush.msra.mxu0 %v488
    %878 = vmatpush.msra.mxu0 %v484
    %879 = vmatpush.msra.mxu0 %v480
    %880 = vmatpush.msra.mxu0 %v476
    %881 = vmatpush.msra.mxu0 %v472
    %882 = vmatmul.f32.gmra.mxu0 %v557
    %v883 = vpop.f32.mrf.mxu0
    %v884 = vadd.f32 %v864, %v883
    %885 = vdwg.mxu0
    %886 = vmatpush.msra.mxu0 %v85
    %887 = vmatpush.msra.mxu0 %v81
    %888 = vmatpush.msra.mxu0 %v77
    %889 = vmatpush.msra.mxu0 %v73
    %890 = vmatpush.msra.mxu0 %v69
    %891 = vmatpush.msra.mxu0 %v65
    %892 = vmatpush.msra.mxu0 %v61
    %893 = vmatpush.msra.mxu0 %v57
    %894 = vmatpush.msra.mxu0 %v53
    %895 = vmatpush.msra.mxu0 %v49
    %896 = vmatpush.msra.mxu0 %v45
    %897 = vmatpush.msra.mxu0 %v41
    %898 = vmatpush.msra.mxu0 %v37
    %899 = vmatpush.msra.mxu0 %v33
    %900 = vmatpush.msra.mxu0 %v29
    %901 = vmatpush.msra.mxu0 %v25
    %902 = vmatmul.f32.gmra.mxu0 %v550
    %v903 = vpop.f32.mrf.mxu0
    %v904 = vadd.f32 %v539, %v903
    %905 = vdwg.mxu0
    %906 = vmatpush.msra.mxu0 %v149
    %907 = vmatpush.msra.mxu0 %v145
    %908 = vmatpush.msra.mxu0 %v141
    %909 = vmatpush.msra.mxu0 %v137
    %910 = vmatpush.msra.mxu0 %v133
    %911 = vmatpush.msra.mxu0 %v129
    %912 = vmatpush.msra.mxu0 %v125
    %913 = vmatpush.msra.mxu0 %v121
    %914 = vmatpush.msra.mxu0 %v117
    %915 = vmatpush.msra.mxu0 %v113
    %916 = vmatpush.msra.mxu0 %v109
    %917 = vmatpush.msra.mxu0 %v105
    %918 = vmatpush.msra.mxu0 %v101
    %919 = vmatpush.msra.mxu0 %v97
    %920 = vmatpush.msra.mxu0 %v93
    %921 = vmatpush.msra.mxu0 %v89
    %922 = vmatmul.f32.gmra.mxu0 %v551
    %v923 = vpop.f32.mrf.mxu0
    %v924 = vadd.f32 %v904, %v923
    %925 = vdwg.mxu0
    %926 = vmatpush.msra.mxu0 %v213
    %927 = vmatpush.msra.mxu0 %v209
    %928 = vmatpush.msra.mxu0 %v205
    %929 = vmatpush.msra.mxu0 %v201
    %930 = vmatpush.msra.mxu0 %v197
    %931 = vmatpush.msra.mxu0 %v193
    %932 = vmatpush.msra.mxu0 %v189
    %933 = vmatpush.msra.mxu0 %v185
    %934 = vmatpush.msra.mxu0 %v181
    %935 = vmatpush.msra.mxu0 %v177
    %936 = vmatpush.msra.mxu0 %v173
    %937 = vmatpush.msra.mxu0 %v169
    %938 = vmatpush.msra.mxu0 %v165
    %939 = vmatpush.msra.mxu0 %v161
    %940 = vmatpush.msra.mxu0 %v157
    %941 = vmatpush.msra.mxu0 %v153
    %942 = vmatmul.f32.gmra.mxu0 %v552
    %v943 = vpop.f32.mrf.mxu0
    %v944 = vadd.f32 %v924, %v943
    %945 = vdwg.mxu0
    %946 = vmatpush.msra.mxu0 %v277
    %947 = vmatpush.msra.mxu0 %v273
    %948 = vmatpush.msra.mxu0 %v269
    %949 = vmatpush.msra.mxu0 %v265
    %950 = vmatpush.msra.mxu0 %v261
    %951 = vmatpush.msra.mxu0 %v257
    %952 = vmatpush.msra.mxu0 %v253
    %953 = vmatpush.msra.mxu0 %v249
    %954 = vmatpush.msra.mxu0 %v245
    %955 = vmatpush.msra.mxu0 %v241
    %956 = vmatpush.msra.mxu0 %v237
    %957 = vmatpush.msra.mxu0 %v233
    %958 = vmatpush.msra.mxu0 %v229
    %959 = vmatpush.msra.mxu0 %v225
    %960 = vmatpush.msra.mxu0 %v221
    %961 = vmatpush.msra.mxu0 %v217
    %962 = vmatmul.f32.gmra.mxu0 %v553
    %v963 = vpop.f32.mrf.mxu0
    %v964 = vadd.f32 %v944, %v963
    %965 = vdwg.mxu0
    %966 = vmatpush.msra.mxu0 %v341
    %967 = vmatpush.msra.mxu0 %v337
    %968 = vmatpush.msra.mxu0 %v333
    %969 = vmatpush.msra.mxu0 %v329
    %970 = vmatpush.msra.mxu0 %v325
    %971 = vmatpush.msra.mxu0 %v321
    %972 = vmatpush.msra.mxu0 %v317
    %973 = vmatpush.msra.mxu0 %v313
    %974 = vmatpush.msra.mxu0 %v309
    %975 = vmatpush.msra.mxu0 %v305
    %976 = vmatpush.msra.mxu0 %v301
    %977 = vmatpush.msra.mxu0 %v297
    %978 = vmatpush.msra.mxu0 %v293
    %979 = vmatpush.msra.mxu0 %v289
    %980 = vmatpush.msra.mxu0 %v285
    %981 = vmatpush.msra.mxu0 %v281
    %982 = vmatmul.f32.gmra.mxu0 %v554
    %v983 = vpop.f32.mrf.mxu0
    %v984 = vadd.f32 %v964, %v983
    %985 = vdwg.mxu0
    %986 = vmatpush.msra.mxu0 %v405
    %987 = vmatpush.msra.mxu0 %v401
    %988 = vmatpush.msra.mxu0 %v397
    %989 = vmatpush.msra.mxu0 %v393
    %990 = vmatpush.msra.mxu0 %v389
    %991 = vmatpush.msra.mxu0 %v385
    %992 = vmatpush.msra.mxu0 %v381
    %993 = vmatpush.msra.mxu0 %v377
    %994 = vmatpush.msra.mxu0 %v373
    %995 = vmatpush.msra.mxu0 %v369
    %996 = vmatpush.msra.mxu0 %v365
    %997 = vmatpush.msra.mxu0 %v361
    %998 = vmatpush.msra.mxu0 %v357
    %999 = vmatpush.msra.mxu0 %v353
    %1000 = vmatpush.msra.mxu0 %v349
    %1001 = vmatpush.msra.mxu0 %v345
    %1002 = vmatmul.f32.gmra.mxu0 %v555
    %v1003 = vpop.f32.mrf.mxu0
    %v1004 = vadd.f32 %v984, %v1003
    %1005 = vdwg.mxu0
    %1006 = vmatpush.msra.mxu0 %v469
    %1007 = vmatpush.msra.mxu0 %v465
    %1008 = vmatpush.msra.mxu0 %v461
    %1009 = vmatpush.msra.mxu0 %v457
    %1010 = vmatpush.msra.mxu0 %v453
    %1011 = vmatpush.msra.mxu0 %v449
    %1012 = vmatpush.msra.mxu0 %v445
    %1013 = vmatpush.msra.mxu0 %v441
    %1014 = vmatpush.msra.mxu0 %v437
    %1015 = vmatpush.msra.mxu0 %v433
    %1016 = vmatpush.msra.mxu0 %v429
    %1017 = vmatpush.msra.mxu0 %v425
    %1018 = vmatpush.msra.mxu0 %v421
    %1019 = vmatpush.msra.mxu0 %v417
    %1020 = vmatpush.msra.mxu0 %v413
    %1021 = vmatpush.msra.mxu0 %v409
    %1022 = vmatmul.f32.gmra.mxu0 %v556
    %v1023 = vpop.f32.mrf.mxu0
    %v1024 = vadd.f32 %v1004, %v1023
    %1025 = vdwg.mxu0
    %1026 = vmatpush.msra.mxu0 %v533
    %1027 = vmatpush.msra.mxu0 %v529
    %1028 = vmatpush.msra.mxu0 %v525
    %1029 = vmatpush.msra.mxu0 %v521
    %1030 = vmatpush.msra.mxu0 %v517
    %1031 = vmatpush.msra.mxu0 %v513
    %1032 = vmatpush.msra.mxu0 %v509
    %1033 = vmatpush.msra.mxu0 %v505
    %1034 = vmatpush.msra.mxu0 %v501
    %1035 = vmatpush.msra.mxu0 %v497
    %1036 = vmatpush.msra.mxu0 %v493
    %1037 = vmatpush.msra.mxu0 %v489
    %1038 = vmatpush.msra.mxu0 %v485
    %1039 = vmatpush.msra.mxu0 %v481
    %1040 = vmatpush.msra.mxu0 %v477
    %1041 = vmatpush.msra.mxu0 %v473
    %1042 = vmatmul.f32.gmra.mxu0 %v557
    %v1043 = vpop.f32.mrf.mxu0
    %v1044 = vadd.f32 %v1024, %v1043
    %1045 = vdwg.mxu0
    %1046 = vmatpush.msra.mxu0 %v86
    %1047 = vmatpush.msra.mxu0 %v82
    %1048 = vmatpush.msra.mxu0 %v78
    %1049 = vmatpush.msra.mxu0 %v74
    %1050 = vmatpush.msra.mxu0 %v70
    %1051 = vmatpush.msra.mxu0 %v66
    %1052 = vmatpush.msra.mxu0 %v62
    %1053 = vmatpush.msra.mxu0 %v58
    %1054 = vmatpush.msra.mxu0 %v54
    %1055 = vmatpush.msra.mxu0 %v50
    %1056 = vmatpush.msra.mxu0 %v46
    %1057 = vmatpush.msra.mxu0 %v42
    %1058 = vmatpush.msra.mxu0 %v38
    %1059 = vmatpush.msra.mxu0 %v34
    %1060 = vmatpush.msra.mxu0 %v30
    %1061 = vmatpush.msra.mxu0 %v26
    %1062 = vmatmul.f32.gmra.mxu0 %v550
    %v1063 = vpop.f32.mrf.mxu0
    %v1064 = vadd.f32 %v540, %v1063
    %1065 = vdwg.mxu0
    %1066 = vmatpush.msra.mxu0 %v150
    %1067 = vmatpush.msra.mxu0 %v146
    %1068 = vmatpush.msra.mxu0 %v142
    %1069 = vmatpush.msra.mxu0 %v138
    %1070 = vmatpush.msra.mxu0 %v134
    %1071 = vmatpush.msra.mxu0 %v130
    %1072 = vmatpush.msra.mxu0 %v126
    %1073 = vmatpush.msra.mxu0 %v122
    %1074 = vmatpush.msra.mxu0 %v118
    %1075 = vmatpush.msra.mxu0 %v114
    %1076 = vmatpush.msra.mxu0 %v110
    %1077 = vmatpush.msra.mxu0 %v106
    %1078 = vmatpush.msra.mxu0 %v102
    %1079 = vmatpush.msra.mxu0 %v98
    %1080 = vmatpush.msra.mxu0 %v94
    %1081 = vmatpush.msra.mxu0 %v90
    %1082 = vmatmul.f32.gmra.mxu0 %v551
    %v1083 = vpop.f32.mrf.mxu0
    %v1084 = vadd.f32 %v1064, %v1083
    %1085 = vdwg.mxu0
    %1086 = vmatpush.msra.mxu0 %v214
    %1087 = vmatpush.msra.mxu0 %v210
    %1088 = vmatpush.msra.mxu0 %v206
    %1089 = vmatpush.msra.mxu0 %v202
    %1090 = vmatpush.msra.mxu0 %v198
    %1091 = vmatpush.msra.mxu0 %v194
    %1092 = vmatpush.msra.mxu0 %v190
    %1093 = vmatpush.msra.mxu0 %v186
    %1094 = vmatpush.msra.mxu0 %v182
    %1095 = vmatpush.msra.mxu0 %v178
    %1096 = vmatpush.msra.mxu0 %v174
    %1097 = vmatpush.msra.mxu0 %v170
    %1098 = vmatpush.msra.mxu0 %v166
    %1099 = vmatpush.msra.mxu0 %v162
    %1100 = vmatpush.msra.mxu0 %v158
    %1101 = vmatpush.msra.mxu0 %v154
    %1102 = vmatmul.f32.gmra.mxu0 %v552
    %v1103 = vpop.f32.mrf.mxu0
    %v1104 = vadd.f32 %v1084, %v1103
    %1105 = vdwg.mxu0
    %1106 = vmatpush.msra.mxu0 %v278
    %1107 = vmatpush.msra.mxu0 %v274
    %1108 = vmatpush.msra.mxu0 %v270
    %1109 = vmatpush.msra.mxu0 %v266
    %1110 = vmatpush.msra.mxu0 %v262
    %1111 = vmatpush.msra.mxu0 %v258
    %1112 = vmatpush.msra.mxu0 %v254
    %1113 = vmatpush.msra.mxu0 %v250
    %1114 = vmatpush.msra.mxu0 %v246
    %1115 = vmatpush.msra.mxu0 %v242
    %1116 = vmatpush.msra.mxu0 %v238
    %1117 = vmatpush.msra.mxu0 %v234
    %1118 = vmatpush.msra.mxu0 %v230
    %1119 = vmatpush.msra.mxu0 %v226
    %1120 = vmatpush.msra.mxu0 %v222
    %1121 = vmatpush.msra.mxu0 %v218
    %1122 = vmatmul.f32.gmra.mxu0 %v553
    %v1123 = vpop.f32.mrf.mxu0
    %v1124 = vadd.f32 %v1104, %v1123
    %1125 = vdwg.mxu0
    %1126 = vmatpush.msra.mxu0 %v342
    %1127 = vmatpush.msra.mxu0 %v338
    %1128 = vmatpush.msra.mxu0 %v334
    %1129 = vmatpush.msra.mxu0 %v330
    %1130 = vmatpush.msra.mxu0 %v326
    %1131 = vmatpush.msra.mxu0 %v322
    %1132 = vmatpush.msra.mxu0 %v318
    %1133 = vmatpush.msra.mxu0 %v314
    %1134 = vmatpush.msra.mxu0 %v310
    %1135 = vmatpush.msra.mxu0 %v306
    %1136 = vmatpush.msra.mxu0 %v302
    %1137 = vmatpush.msra.mxu0 %v298
    %1138 = vmatpush.msra.mxu0 %v294
    %1139 = vmatpush.msra.mxu0 %v290
    %1140 = vmatpush.msra.mxu0 %v286
    %1141 = vmatpush.msra.mxu0 %v282
    %1142 = vmatmul.f32.gmra.mxu0 %v554
    %v1143 = vpop.f32.mrf.mxu0
    %v1144 = vadd.f32 %v1124, %v1143
    %1145 = vdwg.mxu0
    %1146 = vmatpush.msra.mxu0 %v406
    %1147 = vmatpush.msra.mxu0 %v402
    %1148 = vmatpush.msra.mxu0 %v398
    %1149 = vmatpush.msra.mxu0 %v394
    %1150 = vmatpush.msra.mxu0 %v390
    %1151 = vmatpush.msra.mxu0 %v386
    %1152 = vmatpush.msra.mxu0 %v382
    %1153 = vmatpush.msra.mxu0 %v378
    %1154 = vmatpush.msra.mxu0 %v374
    %1155 = vmatpush.msra.mxu0 %v370
    %1156 = vmatpush.msra.mxu0 %v366
    %1157 = vmatpush.msra.mxu0 %v362
    %1158 = vmatpush.msra.mxu0 %v358
    %1159 = vmatpush.msra.mxu0 %v354
    %1160 = vmatpush.msra.mxu0 %v350
    %1161 = vmatpush.msra.mxu0 %v346
    %1162 = vmatmul.f32.gmra.mxu0 %v555
    %v1163 = vpop.f32.mrf.mxu0
    %v1164 = vadd.f32 %v1144, %v1163
    %1165 = vdwg.mxu0
    %1166 = vmatpush.msra.mxu0 %v470
    %1167 = vmatpush.msra.mxu0 %v466
    %1168 = vmatpush.msra.mxu0 %v462
    %1169 = vmatpush.msra.mxu0 %v458
    %1170 = vmatpush.msra.mxu0 %v454
    %1171 = vmatpush.msra.mxu0 %v450
    %1172 = vmatpush.msra.mxu0 %v446
    %1173 = vmatpush.msra.mxu0 %v442
    %1174 = vmatpush.msra.mxu0 %v438
    %1175 = vmatpush.msra.mxu0 %v434
    %1176 = vmatpush.msra.mxu0 %v430
    %1177 = vmatpush.msra.mxu0 %v426
    %1178 = vmatpush.msra.mxu0 %v422
    %1179 = vmatpush.msra.mxu0 %v418
    %1180 = vmatpush.msra.mxu0 %v414
    %1181 = vmatpush.msra.mxu0 %v410
    %1182 = vmatmul.f32.gmra.mxu0 %v556
    %v1183 = vpop.f32.mrf.mxu0
    %v1184 = vadd.f32 %v1164, %v1183
    %1185 = vdwg.mxu0
    %1186 = vmatpush.msra.mxu0 %v534
    %1187 = vmatpush.msra.mxu0 %v530
    %1188 = vmatpush.msra.mxu0 %v526
    %1189 = vmatpush.msra.mxu0 %v522
    %1190 = vmatpush.msra.mxu0 %v518
    %1191 = vmatpush.msra.mxu0 %v514
    %1192 = vmatpush.msra.mxu0 %v510
    %1193 = vmatpush.msra.mxu0 %v506
    %1194 = vmatpush.msra.mxu0 %v502
    %1195 = vmatpush.msra.mxu0 %v498
    %1196 = vmatpush.msra.mxu0 %v494
    %1197 = vmatpush.msra.mxu0 %v490
    %1198 = vmatpush.msra.mxu0 %v486
    %1199 = vmatpush.msra.mxu0 %v482
    %1200 = vmatpush.msra.mxu0 %v478
    %1201 = vmatpush.msra.mxu0 %v474
    %1202 = vmatmul.f32.gmra.mxu0 %v557
    %v1203 = vpop.f32.mrf.mxu0
    %v1204 = vadd.f32 %v1184, %v1203
    %1205 = vdwg.mxu0
    %v1206 = vmax.f32 %v724, 0.0
    %v1207 = vmax.f32 %v884, 0.0
    %v1208 = vmax.f32 %v1044, 0.0
    %v1209 = vmax.f32 %v1204, 0.0
    %v1210 = vld [vmem:[%s3] sm:$0xff]
    %v1211 = vld [vmem:[%s3 + $0x8] sm:$0xff]
    %v1212 = vld [vmem:[%s3 + $0x10] sm:$0xff]
    %v1213 = vld [vmem:[%s3 + $0x18] sm:$0xff]
    %v1214 = vld [vmem:[%s3 + $0x20] sm:$0xff]
    %v1215 = vld [vmem:[%s3 + $0x28] sm:$0xff]
    %v1216 = vld [vmem:[%s3 + $0x30] sm:$0xff]
    %v1217 = vld [vmem:[%s3 + $0x38] sm:$0xff]
    %v1218 = vld [vmem:[%s3 + $0x40] sm:$0xff]
    %v1219 = vld [vmem:[%s3 + $0x48] sm:$0xff]
    %v1220 = vld [vmem:[%s3 + $0x50] sm:$0xff]
    %v1221 = vld [vmem:[%s3 + $0x58] sm:$0xff]
    %v1222 = vld [vmem:[%s3 + $0x60] sm:$0xff]
    %v1223 = vld [vmem:[%s3 + $0x68] sm:$0xff]
    %v1224 = vld [vmem:[%s3 + $0x70] sm:$0xff]
    %v1225 = vld [vmem:[%s3 + $0x78] sm:$0xff]
    %v1226 = vld [vmem:[%s3 + $0x80] sm:$0xff]
    %v1227 = vld [vmem:[%s3 + $0x88] sm:$0xff]
    %v1228 = vld [vmem:[%s3 + $0x90] sm:$0xff]
    %v1229 = vld [vmem:[%s3 + $0x98] sm:$0xff]
    %v1230 = vld [vmem:[%s3 + $0xa0] sm:$0xff]
    %v1231 = vld [vmem:[%s3 + $0xa8] sm:$0xff]
    %v1232 = vld [vmem:[%s3 + $0xb0] sm:$0xff]
    %v1233 = vld [vmem:[%s3 + $0xb8] sm:$0xff]
    %v1234 = vld [vmem:[%s3 + $0xc0] sm:$0xff]
    %v1235 = vld [vmem:[%s3 + $0xc8] sm:$0xff]
    %v1236 = vld [vmem:[%s3 + $0xd0] sm:$0xff]
    %v1237 = vld [vmem:[%s3 + $0xd8] sm:$0xff]
    %v1238 = vld [vmem:[%s3 + $0xe0] sm:$0xff]
    %v1239 = vld [vmem:[%s3 + $0xe8] sm:$0xff]
    %v1240 = vld [vmem:[%s3 + $0xf0] sm:$0xff]
    %v1241 = vld [vmem:[%s3 + $0xf8] sm:$0xff]
    %v1242 = vld [vmem:[%s3 + $0x100] sm:$0xff]
    %v1243 = vld [vmem:[%s3 + $0x108] sm:$0xff]
    %v1244 = vld [vmem:[%s3 + $0x110] sm:$0xff]
    %v1245 = vld [vmem:[%s3 + $0x118] sm:$0xff]
    %v1246 = vld [vmem:[%s3 + $0x120] sm:$0xff]
    %v1247 = vld [vmem:[%s3 + $0x128] sm:$0xff]
    %v1248 = vld [vmem:[%s3 + $0x130] sm:$0xff]
    %v1249 = vld [vmem:[%s3 + $0x138] sm:$0xff]
    %v1250 = vld [vmem:[%s3 + $0x140] sm:$0xff]
    %v1251 = vld [vmem:[%s3 + $0x148] sm:$0xff]
    %v1252 = vld [vmem:[%s3 + $0x150] sm:$0xff]
    %v1253 = vld [vmem:[%s3 + $0x158] sm:$0xff]
    %v1254 = vld [vmem:[%s3 + $0x160] sm:$0xff]
    %v1255 = vld [vmem:[%s3 + $0x168] sm:$0xff]
    %v1256 = vld [vmem:[%s3 + $0x170] sm:$0xff]
    %v1257 = vld [vmem:[%s3 + $0x178] sm:$0xff]
    %v1258 = vld [vmem:[%s3 + $0x180] sm:$0xff]
    %v1259 = vld [vmem:[%s3 + $0x188] sm:$0xff]
    %v1260 = vld [vmem:[%s3 + $0x190] sm:$0xff]
    %v1261 = vld [vmem:[%s3 + $0x198] sm:$0xff]
    %v1262 = vld [vmem:[%s3 + $0x1a0] sm:$0xff]
    %v1263 = vld [vmem:[%s3 + $0x1a8] sm:$0xff]
    %v1264 = vld [vmem:[%s3 + $0x1b0] sm:$0xff]
    %v1265 = vld [vmem:[%s3 + $0x1b8] sm:$0xff]
    %v1266 = vld [vmem:[%s3 + $0x1c0] sm:$0xff]
    %v1267 = vld [vmem:[%s3 + $0x1c8] sm:$0xff]
    %v1268 = vld [vmem:[%s3 + $0x1d0] sm:$0xff]
    %v1269 = vld [vmem:[%s3 + $0x1d8] sm:$0xff]
    %v1270 = vld [vmem:[%s3 + $0x1e0] sm:$0xff]
    %v1271 = vld [vmem:[%s3 + $0x1e8] sm:$0xff]
    %v1272 = vld [vmem:[%s3 + $0x1f0] sm:$0xff]
    %v1273 = vld [vmem:[%s3 + $0x1f8] sm:$0xff]
    %v1274 = vld [vmem:[%s4] sm:$0x1]
    %v1276 = vperm.slane %v1274, 0
    %1278 = vmatpush.msra.mxu0 %v1225
    %1279 = vmatpush.msra.mxu0 %v1224
    %1280 = vmatpush.msra.mxu0 %v1223
    %1281 = vmatpush.msra.mxu0 %v1222
    %1282 = vmatpush.msra.mxu0 %v1221
    %1283 = vmatpush.msra.mxu0 %v1220
    %1284 = vmatpush.msra.mxu0 %v1219
    %1285 = vmatpush.msra.mxu0 %v1218
    %1286 = vmatpush.msra.mxu0 %v1217
    %1287 = vmatpush.msra.mxu0 %v1216
    %1288 = vmatpush.msra.mxu0 %v1215
    %1289 = vmatpush.msra.mxu0 %v1214
    %1290 = vmatpush.msra.mxu0 %v1213
    %1291 = vmatpush.msra.mxu0 %v1212
    %1292 = vmatpush.msra.mxu0 %v1211
    %1293 = vmatpush.msra.mxu0 %v1210
    %1294 = vmatmul.f32.gmra.mxu0 %v1206
    %v1295 = vpop.f32.mrf.mxu0
    %v1296 = vadd.f32 %v1276, %v1295
    %1297 = vdwg.mxu0
    %1298 = vmatpush.msra.mxu0 %v1241
    %1299 = vmatpush.msra.mxu0 %v1240
    %1300 = vmatpush.msra.mxu0 %v1239
    %1301 = vmatpush.msra.mxu0 %v1238
    %1302 = vmatpush.msra.mxu0 %v1237
    %1303 = vmatpush.msra.mxu0 %v1236
    %1304 = vmatpush.msra.mxu0 %v1235
    %1305 = vmatpush.msra.mxu0 %v1234
    %1306 = vmatpush.msra.mxu0 %v1233
    %1307 = vmatpush.msra.mxu0 %v1232
    %1308 = vmatpush.msra.mxu0 %v1231
    %1309 = vmatpush.msra.mxu0 %v1230
    %1310 = vmatpush.msra.mxu0 %v1229
    %1311 = vmatpush.msra.mxu0 %v1228
    %1312 = vmatpush.msra.mxu0 %v1227
    %1313 = vmatpush.msra.mxu0 %v1226
    %1314 = vmatmul.f32.gmra.mxu0 %v1207
    %v1315 = vpop.f32.mrf.mxu0
    %v1316 = vadd.f32 %v1296, %v1315
    %1317 = vdwg.mxu0
    %1318 = vmatpush.msra.mxu0 %v1257
    %1319 = vmatpush.msra.mxu0 %v1256
    %1320 = vmatpush.msra.mxu0 %v1255
    %1321 = vmatpush.msra.mxu0 %v1254
    %1322 = vmatpush.msra.mxu0 %v1253
    %1323 = vmatpush.msra.mxu0 %v1252
    %1324 = vmatpush.msra.mxu0 %v1251
    %1325 = vmatpush.msra.mxu0 %v1250
    %1326 = vmatpush.msra.mxu0 %v1249
    %1327 = vmatpush.msra.mxu0 %v1248
    %1328 = vmatpush.msra.mxu0 %v1247
    %1329 = vmatpush.msra.mxu0 %v1246
    %1330 = vmatpush.msra.mxu0 %v1245
    %1331 = vmatpush.msra.mxu0 %v1244
    %1332 = vmatpush.msra.mxu0 %v1243
    %1333 = vmatpush.msra.mxu0 %v1242
    %1334 = vmatmul.f32.gmra.mxu0 %v1208
    %v1335 = vpop.f32.mrf.mxu0
    %v1336 = vadd.f32 %v1316, %v1335
    %1337 = vdwg.mxu0
    %1338 = vmatpush.msra.mxu0 %v1273
    %1339 = vmatpush.msra.mxu0 %v1272
    %1340 = vmatpush.msra.mxu0 %v1271
    %1341 = vmatpush.msra.mxu0 %v1270
    %1342 = vmatpush.msra.mxu0 %v1269
    %1343 = vmatpush.msra.mxu0 %v1268
    %1344 = vmatpush.msra.mxu0 %v1267
    %1345 = vmatpush.msra.mxu0 %v1266
    %1346 = vmatpush.msra.mxu0 %v1265
    %1347 = vmatpush.msra.mxu0 %v1264
    %1348 = vmatpush.msra.mxu0 %v1263
    %1349 = vmatpush.msra.mxu0 %v1262
    %1350 = vmatpush.msra.mxu0 %v1261
    %1351 = vmatpush.msra.mxu0 %v1260
    %1352 = vmatpush.msra.mxu0 %v1259
    %1353 = vmatpush.msra.mxu0 %v1258
    %1354 = vmatmul.f32.gmra.mxu0 %v1209
    %v1355 = vpop.f32.mrf.mxu0
    %v1356 = vadd.f32 %v1336, %v1355
    %1357 = vdwg.mxu0
    %vm1358 = vcmask 74752
    %1359 = vst.msk [vmem:[#allocation2] sm:$0x3] %vm1358, %v1356
    // Predicated region
    $region22: #{cnn_forward.7} parent=1 // pred_check
      _
    $region23: #{cnn_forward.7} parent=1 // pred_check_branch
      %1361 = sbr.rel (0) target = $region25
    $region24: #{cnn_forward.7} parent=1 // pred_region
      %1363 = vsyncadd [#allocation3], 0
      %s1365 = sshll.u32 [#allocation2], 4
      %s1366 = int_to_ptr.vmem [resolvable:$true] %s1365
      %s1367 = sshll.u32 %s5, 4
      %s1368 = int_to_ptr.hbm [resolvable:$true] %s1367
      %1370 = dma.vmem_to_hbm [thread:$0]  %s1366, 32, %s1368, [#allocation3]
    $region25: #{cnn_forward.7} parent=1 // pred_fallthru
      _
    // Predicated region
    $region26: #{cnn_forward.7} parent=1 // pred_check
      _
    $region27: #{cnn_forward.7} parent=1 // pred_check_branch
      %1372 = sbr.rel (0) target = $region29
    $region28: #{cnn_forward.7} parent=1 // pred_region
      %1374 = dma.done [#allocation3], 32
    $region29: #{cnn_forward.7} parent=1 // pred_fallthru
      _
    %1375 = vsyncpa [#allocation3], 1

// kernel: cnn_forward.5
$region0: #{cnn_forward.5}
  #allocation0 [shape = 'u32[]', space=smem, size = 0x4, offset = 0x4, fixed_abs, tag = 'smem constant byte address 0x4 - core index']
  #allocation1 [shape = 'u32[72,128]{1,0:T(1,128)}', space=vmem, size = 0x9000, scoped, tag = 'internal scratch']
  %s0 = inlined_call_operand.vmem [shape: f32[2,18,288], index: 0, kind: input, shape index: {}]
  %s1 = inlined_call_operand.hbm [shape: f32[3,288,512], index: 1, kind: input, shape index: {}]
  %s2 = inlined_call_operand.vmem [shape: f32[1,512], index: 2, kind: input, shape index: {}]
  %s3 = inlined_call_operand.vmem [shape: f32[1,512], index: 3, kind: input, shape index: {}]
  %s4 = inlined_call_operand.vmem [shape: f32[1,512], index: 4, kind: input, shape index: {}]
  %s5 = inlined_call_operand.vmem [shape: f32[10,16], index: 5, kind: input, shape index: {}]
  %s6 = inlined_call_operand.vmem [shape: f32[10,16], index: 6, kind: input, shape index: {}]
  %s7 = inlined_call_operand.vmem [shape: f32[512,320], index: 7, kind: input, shape index: {}]
  %s8 = inlined_call_operand.vmem [shape: f32[512,320], index: 8, kind: input, shape index: {}]
  %s9 = inlined_call_operand.vmem [shape: f32[2,10,320], index: 9, kind: output, shape index: {}]
  %s10 = sld [smem:[#allocation0]]
  $region73: #{cnn_forward.5} parent=0
    _
  %s12 = ssub.s32 1, %s10
  %s13 = scalar_select 0, %s12, %s10
  $region1: #{cnn_forward.5} parent=0
    #allocation2 [shape = 'u8[1769472]{0}', space=vmem, size = 0x1b0000, scoped, tag = 'input window, operand 1, single buffered']
    #allocation3 [shape = 's32[2]{0}', space=sflag, size = 0x8, scoped, tag = 'scoped memory for cnn_forward.5']
    %14 = vsyncpa [#allocation3], 0
    loop: start=0, step=1, limit=4
    $region2: #{cnn_forward.5} parent=1 // loop_pre_header
      _
    $region3: #{cnn_forward.5} parent=1 // loop_header
      %s16 = sphi 0, %s20
      %p17 = scmp.ge.s32.totalorder %s16, 4
      %s26 = sphi 0, %s28
      %s29 = sphi 0, %s26
      %s30 = sphi 0, %s29
      %s46 = sphi 0, %s30
      %s50 = sphi 0, %s50
      %s52 = sphi 0, %s50
      %s53 = sphi 0, %s52
      %s67 = sphi 0, %s53
      %s71 = sphi 0, %s71
      %s73 = sphi 0, %s71
      %s74 = sphi 0, %s73
      %s88 = sphi 0, %s74
      %s92 = sphi 0, %s92
      %s94 = sphi 0, %s92
      %s95 = sphi 0, %s94
      %s109 = sphi 0, %s95
      %s113 = sphi 0, %s113
      %s115 = sphi 0, %s113
      %s116 = sphi 0, %s115
      %s130 = sphi 0, %s116
      %s134 = sphi 0, %s134
      %s136 = sphi 0, %s134
      %s137 = sphi 0, %s136
      %s151 = sphi 0, %s137
      %s155 = sphi 0, %s155
      %s157 = sphi 0, %s155
      %s158 = sphi 0, %s157
      %s172 = sphi 0, %s158
      %s176 = sphi 0, %s176
      %s178 = sphi 0, %s176
      %s179 = sphi 0, %s178
      %s193 = sphi 0, %s179
      %s197 = sphi 0, %s197
      %s199 = sphi 0, %s197
      %s200 = sphi 0, %s199
      %s214 = sphi 0, %s200
      %s220 = sphi 0, %s222
      %s223 = sphi 0, %s220
      %s224 = sphi 0, %s223
      %s240 = sphi 0, %s224
    $region4: #{cnn_forward.5} parent=1 // loop_header_branch
      %19 = sbr.rel (%p17) target = $region8
    $region5: #{cnn_forward.5} parent=1 // loop_body
      %s21 = ssub.s32 %s16, 1
      %s22 = ssub.s32 %s16, 2
      %s23 = sadd.s32 %s16, 1
      %s24 = ssub.s32 %s16, %s23
      %p25 = scmp.eq.s32.totalorder %s24, 0
      %s27 = sadd.s32 %s26, 1
      %s28 = scalar_select %p25, %s26, %s27
      %p31 = pneg %p25
      %p32 = scmp.eq.s32.totalorder %s16, 1
      %p33 = por %p31, %p32
      %p34 = scmp.ne.s32.totalorder %s26, %s29
      %p35 = scmp.eq.s32.totalorder %s16, 0
      %p36 = por %p34, %p35
      %p37 = scmp.ne.s32.totalorder %s26, %s29
      %p38 = scmp.eq.s32.totalorder %s21, 1
      %p39 = por %p37, %p38
      %p40 = scmp.ne.s32.totalorder %s29, %s30
      %p41 = scmp.eq.s32.totalorder %s21, 0
      %p42 = por %p40, %p41
      %p43 = scmp.ne.s32.totalorder %s29, %s30
      %p44 = scmp.eq.s32.totalorder %s22, 1
      %p45 = por %p43, %p44
      %p47 = scmp.ne.s32.totalorder %s30, %s46
      %p48 = scmp.eq.s32.totalorder %s22, 0
      %p49 = por %p47, %p48
      %s51 = sadd.s32 %s50, 1
      %p54 = scmp.eq.s32.totalorder %s16, 1
      %p55 = scmp.ne.s32.totalorder %s50, %s52
      %p56 = scmp.eq.s32.totalorder %s16, 0
      %p57 = por %p55, %p56
      %p58 = scmp.ne.s32.totalorder %s50, %s52
      %p59 = scmp.eq.s32.totalorder %s21, 1
      %p60 = por %p58, %p59
      %p61 = scmp.ne.s32.totalorder %s52, %s53
      %p62 = scmp.eq.s32.totalorder %s21, 0
      %p63 = por %p61, %p62
      %p64 = scmp.ne.s32.totalorder %s52, %s53
      %p65 = scmp.eq.s32.totalorder %s22, 1
      %p66 = por %p64, %p65
      %p68 = scmp.ne.s32.totalorder %s53, %s67
      %p69 = scmp.eq.s32.totalorder %s22, 0
      %p70 = por %p68, %p69
      %s72 = sadd.s32 %s71, 1
      %p75 = scmp.eq.s32.totalorder %s16, 1
      %p76 = scmp.ne.s32.totalorder %s71, %s73
      %p77 = scmp.eq.s32.totalorder %s16, 0
      %p78 = por %p76, %p77
      %p79 = scmp.ne.s32.totalorder %s71, %s73
      %p80 = scmp.eq.s32.totalorder %s21, 1
      %p81 = por %p79, %p80
      %p82 = scmp.ne.s32.totalorder %s73, %s74
      %p83 = scmp.eq.s32.totalorder %s21, 0
      %p84 = por %p82, %p83
      %p85 = scmp.ne.s32.totalorder %s73, %s74
      %p86 = scmp.eq.s32.totalorder %s22, 1
      %p87 = por %p85, %p86
      %p89 = scmp.ne.s32.totalorder %s74, %s88
      %p90 = scmp.eq.s32.totalorder %s22, 0
      %p91 = por %p89, %p90
      %s93 = sadd.s32 %s92, 1
      %p96 = scmp.eq.s32.totalorder %s16, 1
      %p97 = scmp.ne.s32.totalorder %s92, %s94
      %p98 = scmp.eq.s32.totalorder %s16, 0
      %p99 = por %p97, %p98
      %p100 = scmp.ne.s32.totalorder %s92, %s94
      %p101 = scmp.eq.s32.totalorder %s21, 1
      %p102 = por %p100, %p101
      %p103 = scmp.ne.s32.totalorder %s94, %s95
      %p104 = scmp.eq.s32.totalorder %s21, 0
      %p105 = por %p103, %p104
      %p106 = scmp.ne.s32.totalorder %s94, %s95
      %p107 = scmp.eq.s32.totalorder %s22, 1
      %p108 = por %p106, %p107
      %p110 = scmp.ne.s32.totalorder %s95, %s109
      %p111 = scmp.eq.s32.totalorder %s22, 0
      %p112 = por %p110, %p111
      %s114 = sadd.s32 %s113, 1
      %p117 = scmp.eq.s32.totalorder %s16, 1
      %p118 = scmp.ne.s32.totalorder %s113, %s115
      %p119 = scmp.eq.s32.totalorder %s16, 0
      %p120 = por %p118, %p119
      %p121 = scmp.ne.s32.totalorder %s113, %s115
      %p122 = scmp.eq.s32.totalorder %s21, 1
      %p123 = por %p121, %p122
      %p124 = scmp.ne.s32.totalorder %s115, %s116
      %p125 = scmp.eq.s32.totalorder %s21, 0
      %p126 = por %p124, %p125
      %p127 = scmp.ne.s32.totalorder %s115, %s116
      %p128 = scmp.eq.s32.totalorder %s22, 1
      %p129 = por %p127, %p128
      %p131 = scmp.ne.s32.totalorder %s116, %s130
      %p132 = scmp.eq.s32.totalorder %s22, 0
      %p133 = por %p131, %p132
      %s135 = sadd.s32 %s134, 1
      %p138 = scmp.eq.s32.totalorder %s16, 1
      %p139 = scmp.ne.s32.totalorder %s134, %s136
      %p140 = scmp.eq.s32.totalorder %s16, 0
      %p141 = por %p139, %p140
      %p142 = scmp.ne.s32.totalorder %s134, %s136
      %p143 = scmp.eq.s32.totalorder %s21, 1
      %p144 = por %p142, %p143
      %p145 = scmp.ne.s32.totalorder %s136, %s137
      %p146 = scmp.eq.s32.totalorder %s21, 0
      %p147 = por %p145, %p146
      %p148 = scmp.ne.s32.totalorder %s136, %s137
      %p149 = scmp.eq.s32.totalorder %s22, 1
      %p150 = por %p148, %p149
      %p152 = scmp.ne.s32.totalorder %s137, %s151
      %p153 = scmp.eq.s32.totalorder %s22, 0
      %p154 = por %p152, %p153
      %s156 = sadd.s32 %s155, 1
      %p159 = scmp.eq.s32.totalorder %s16, 1
      %p160 = scmp.ne.s32.totalorder %s155, %s157
      %p161 = scmp.eq.s32.totalorder %s16, 0
      %p162 = por %p160, %p161
      %p163 = scmp.ne.s32.totalorder %s155, %s157
      %p164 = scmp.eq.s32.totalorder %s21, 1
      %p165 = por %p163, %p164
      %p166 = scmp.ne.s32.totalorder %s157, %s158
      %p167 = scmp.eq.s32.totalorder %s21, 0
      %p168 = por %p166, %p167
      %p169 = scmp.ne.s32.totalorder %s157, %s158
      %p170 = scmp.eq.s32.totalorder %s22, 1
      %p171 = por %p169, %p170
      %p173 = scmp.ne.s32.totalorder %s158, %s172
      %p174 = scmp.eq.s32.totalorder %s22, 0
      %p175 = por %p173, %p174
      %s177 = sadd.s32 %s176, 1
      %p180 = scmp.eq.s32.totalorder %s16, 1
      %p181 = scmp.ne.s32.totalorder %s176, %s178
      %p182 = scmp.eq.s32.totalorder %s16, 0
      %p183 = por %p181, %p182
      %p184 = scmp.ne.s32.totalorder %s176, %s178
      %p185 = scmp.eq.s32.totalorder %s21, 1
      %p186 = por %p184, %p185
      %p187 = scmp.ne.s32.totalorder %s178, %s179
      %p188 = scmp.eq.s32.totalorder %s21, 0
      %p189 = por %p187, %p188
      %p190 = scmp.ne.s32.totalorder %s178, %s179
      %p191 = scmp.eq.s32.totalorder %s22, 1
      %p192 = por %p190, %p191
      %p194 = scmp.ne.s32.totalorder %s179, %s193
      %p195 = scmp.eq.s32.totalorder %s22, 0
      %p196 = por %p194, %p195
      %s198 = sadd.s32 %s197, 1
      %p201 = scmp.eq.s32.totalorder %s16, 1
      %p202 = scmp.ne.s32.totalorder %s197, %s199
      %p203 = scmp.eq.s32.totalorder %s16, 0
      %p204 = por %p202, %p203
      %p205 = scmp.ne.s32.totalorder %s197, %s199
      %p206 = scmp.eq.s32.totalorder %s21, 1
      %p207 = por %p205, %p206
      %p208 = scmp.ne.s32.totalorder %s199, %s200
      %p209 = scmp.eq.s32.totalorder %s21, 0
      %p210 = por %p208, %p209
      %p211 = scmp.ne.s32.totalorder %s199, %s200
      %p212 = scmp.eq.s32.totalorder %s22, 1
      %p213 = por %p211, %p212
      %p215 = scmp.ne.s32.totalorder %s200, %s214
      %p216 = scmp.eq.s32.totalorder %s22, 0
      %p217 = por %p215, %p216
      %s218 = ssub.s32 %s16, %s23
      %p219 = scmp.eq.s32.totalorder %s218, 0
      %s221 = sadd.s32 %s220, 1
      %s222 = scalar_select %p219, %s220, %s221
      %p225 = pneg %p219
      %p226 = scmp.eq.s32.totalorder %s16, 1
      %p227 = por %p225, %p226
      %p228 = scmp.ne.s32.totalorder %s220, %s223
      %p229 = scmp.eq.s32.totalorder %s16, 0
      %p230 = por %p228, %p229
      %p231 = scmp.ne.s32.totalorder %s220, %s223
      %p232 = scmp.eq.s32.totalorder %s21, 1
      %p233 = por %p231, %p232
      %p234 = scmp.ne.s32.totalorder %s223, %s224
      %p235 = scmp.eq.s32.totalorder %s21, 0
      %p236 = por %p234, %p235
      %p237 = scmp.ne.s32.totalorder %s223, %s224
      %p238 = scmp.eq.s32.totalorder %s22, 1
      %p239 = por %p237, %p238
      %p241 = scmp.ne.s32.totalorder %s224, %s240
      %p242 = scmp.eq.s32.totalorder %s22, 0
      %p243 = por %p241, %p242
      %p244 = scmp.le.s32.totalorder 1, %s16
      %p245 = scmp.lt.s32.totalorder %s16, 3
      %p246 = pnand %p244, %p245
      %p247 = pneg %p246
      // Predicated region
      $region9: #{cnn_forward.5} parent=5 // pred_check
        _
      $region10: #{cnn_forward.5} parent=5 // pred_check_branch
        %249 = sbr.rel (%p246) target = $region12
      $region11: #{cnn_forward.5} parent=5 // pred_region
        %s250 = ssub.s32 %s16, 1
        // Predicated region
        $region13: #{cnn_forward.5} parent=11 // pred_check
          %p251 = pneg %p63
        $region14: #{cnn_forward.5} parent=11 // pred_check_branch
          %253 = sbr.rel (%p251) target = $region16
        $region15: #{cnn_forward.5} parent=11 // pred_region
          %255 = vsyncadd [#allocation3], 0
          %s256 = sshll.u32 %s1, 4
          %s257 = int_to_ptr.hbm [resolvable:$true] %s256
          %s258 = sshll.u32 [#allocation2], 4
          %s259 = int_to_ptr.vmem [resolvable:$true] %s258
          %264 = dma.hbm_to_vmem [thread:$0]  %s257, 55296, %s259, [#allocation3], 512, 512, 32
        $region16: #{cnn_forward.5} parent=11 // pred_fallthru
          _
        // Predicated region
        $region17: #{cnn_forward.5} parent=11 // pred_check
          %p265 = pneg %p84
        $region18: #{cnn_forward.5} parent=11 // pred_check_branch
          %267 = sbr.rel (%p265) target = $region20
        $region19: #{cnn_forward.5} parent=11 // pred_region
          _
        $region20: #{cnn_forward.5} parent=11 // pred_fallthru
          _
        // Predicated region
        $region21: #{cnn_forward.5} parent=11 // pred_check
          %p268 = pneg %p105
        $region22: #{cnn_forward.5} parent=11 // pred_check_branch
          %270 = sbr.rel (%p268) target = $region24
        $region23: #{cnn_forward.5} parent=11 // pred_region
          _
        $region24: #{cnn_forward.5} parent=11 // pred_fallthru
          _
        // Predicated region
        $region25: #{cnn_forward.5} parent=11 // pred_check
          %p271 = pneg %p126
        $region26: #{cnn_forward.5} parent=11 // pred_check_branch
          %273 = sbr.rel (%p271) target = $region28
        $region27: #{cnn_forward.5} parent=11 // pred_region
          _
        $region28: #{cnn_forward.5} parent=11 // pred_fallthru
          _
        // Predicated region
        $region29: #{cnn_forward.5} parent=11 // pred_check
          %p274 = pneg %p147
        $region30: #{cnn_forward.5} parent=11 // pred_check_branch
          %276 = sbr.rel (%p274) target = $region32
        $region31: #{cnn_forward.5} parent=11 // pred_region
          _
        $region32: #{cnn_forward.5} parent=11 // pred_fallthru
          _
        // Predicated region
        $region33: #{cnn_forward.5} parent=11 // pred_check
          %p277 = pneg %p168
        $region34: #{cnn_forward.5} parent=11 // pred_check_branch
          %279 = sbr.rel (%p277) target = $region36
        $region35: #{cnn_forward.5} parent=11 // pred_region
          _
        $region36: #{cnn_forward.5} parent=11 // pred_fallthru
          _
        // Predicated region
        $region37: #{cnn_forward.5} parent=11 // pred_check
          %p280 = pneg %p189
        $region38: #{cnn_forward.5} parent=11 // pred_check_branch
          %282 = sbr.rel (%p280) target = $region40
        $region39: #{cnn_forward.5} parent=11 // pred_region
          _
        $region40: #{cnn_forward.5} parent=11 // pred_fallthru
          _
        // Predicated region
        $region41: #{cnn_forward.5} parent=11 // pred_check
          %p283 = pneg %p210
        $region42: #{cnn_forward.5} parent=11 // pred_check_branch
          %285 = sbr.rel (%p283) target = $region44
        $region43: #{cnn_forward.5} parent=11 // pred_region
          _
        $region44: #{cnn_forward.5} parent=11 // pred_fallthru
          _
      $region12: #{cnn_forward.5} parent=5 // pred_fallthru
        _
      %p286 = scmp.lt.s32.totalorder %s16, 2
      // Predicated region
      $region45: #{cnn_forward.5} parent=5 // pred_check
        %p287 = pneg %p286
      $region46: #{cnn_forward.5} parent=5 // pred_check_branch
        %289 = sbr.rel (%p287) target = $region48
      $region47: #{cnn_forward.5} parent=5 // pred_region
        // Predicated region
        $region49: #{cnn_forward.5} parent=47 // pred_check
          %p290 = pneg %p36
        $region50: #{cnn_forward.5} parent=47 // pred_check_branch
          %292 = sbr.rel (%p290) target = $region52
        $region51: #{cnn_forward.5} parent=47 // pred_region
          %p293 = scmp.lt.s32.totalorder %s16, 1
          %s294 = scalar_select %p293, %s16, 1
          %s295 = smul.addr %s294, 9
          %s296 = smul.addr %s295, 8
          %s297 = scalar_lea.vmem %s0, %s296
        $region52: #{cnn_forward.5} parent=47 // pred_fallthru
          _
      $region48: #{cnn_forward.5} parent=5 // pred_fallthru
        _
      %p298 = scmp.le.s32.totalorder 1, %s16
      %p299 = scmp.lt.s32.totalorder %s16, 3
      %p300 = pnand %p298, %p299
      %p301 = pneg %p300
      // Predicated region
      $region53: #{cnn_forward.5} parent=5 // pred_check
        _
      $region54: #{cnn_forward.5} parent=5 // pred_check_branch
        %303 = sbr.rel (%p300) target = $region56
      $region55: #{cnn_forward.5} parent=5 // pred_region
        %s304 = ssub.s32 %s16, 1
        // Predicated region
        $region57: #{cnn_forward.5} parent=55 // pred_check
          %p305 = pneg %p63
        $region58: #{cnn_forward.5} parent=55 // pred_check_branch
          %307 = sbr.rel (%p305) target = $region60
        $region59: #{cnn_forward.5} parent=55 // pred_region
          %309 = dma.done [#allocation3], 55296
        $region60: #{cnn_forward.5} parent=55 // pred_fallthru
          _
        %p310 = scmp.lt.s32.totalorder %s21, 1
        %s311 = scalar_select %p310, %s21, 1
        %s312 = smul.addr %s311, 9
        %s313 = smul.addr %s312, 8
        %s314 = scalar_lea.vmem %s0, %s313
        %p315 = pneg %p42
        %p316 = pneg %p39
        %p317 = pneg %p63
        %p318 = pneg %p60
        %p319 = pneg %p84
        %p320 = pneg %p81
        %p321 = pneg %p105
        %p322 = pneg %p102
        %p323 = pneg %p126
        %p324 = pneg %p123
        %p325 = pneg %p147
        %p326 = pneg %p144
        %p327 = pneg %p168
        %p328 = pneg %p165
        %p329 = pneg %p189
        %p330 = pneg %p186
        %p331 = pneg %p210
        %p332 = pneg %p207
        %p333 = pneg %p236
        %p334 = pneg %p233
        %p335 = scmp.lt.s32.totalorder %s21, 1
        %s336 = scalar_select %p335, %s21, 1
        %s337 = smul.addr %s336, 6
        %s338 = smul.addr %s337, 8
        %s339 = scalar_lea.vmem %s9, %s338
        %p340 = scmp.lt.s32.totalorder %s21, 1
        %s341 = scalar_select %p340, %s21, 1
        %s342 = smul.addr %s341, 9
        %s343 = smul.addr %s342, 8
        %s344 = scalar_lea.vmem %s0, %s343
        %p345 = scmp.lt.s32.totalorder %s21, 1
        %s346 = scalar_select %p345, %s21, 1
        %s347 = smul.addr %s346, 6
        %s348 = smul.addr %s347, 8
        %s349 = scalar_lea.vmem %s9, %s348
        %v350 = vld [vmem:[%s344] sm:$0xff]
        %v351 = vld [vmem:[%s344 + $0x8] sm:$0xff]
        %v352 = vld [vmem:[%s344 + $0x10] sm:$0xff]
        %v353 = vld [vmem:[%s344 + $0x18] sm:$0xff]
        %v354 = vld [vmem:[%s344 + $0x20] sm:$0xff]
        %v355 = vld [vmem:[%s344 + $0x28] sm:$0xff]
        %v356 = vld [vmem:[#allocation2] sm:$0xff]
        %v357 = vld [vmem:[#allocation2 + $0x8] sm:$0xff]
        %v358 = vld [vmem:[#allocation2 + $0x10] sm:$0xff]
        %v359 = vld [vmem:[#allocation2 + $0x18] sm:$0xff]
        %v360 = vld [vmem:[#allocation2 + $0x20] sm:$0xff]
        %v361 = vld [vmem:[#allocation2 + $0x28] sm:$0xff]
        %v362 = vld [vmem:[#allocation2 + $0x30] sm:$0xff]
        %v363 = vld [vmem:[#allocation2 + $0x38] sm:$0xff]
        %v364 = vld [vmem:[#allocation2 + $0x40] sm:$0xff]
        %v365 = vld [vmem:[#allocation2 + $0x48] sm:$0xff]
        %v366 = vld [vmem:[#allocation2 + $0x50] sm:$0xff]
        %v367 = vld [vmem:[#allocation2 + $0x58] sm:$0xff]
        %v368 = vld [vmem:[#allocation2 + $0x60] sm:$0xff]
        %v369 = vld [vmem:[#allocation2 + $0x68] sm:$0xff]
        %v370 = vld [vmem:[#allocation2 + $0x70] sm:$0xff]
        %v371 = vld [vmem:[#allocation2 + $0x78] sm:$0xff]
        %v372 = vld [vmem:[#allocation2 + $0x80] sm:$0xff]
        %v373 = vld [vmem:[#allocation2 + $0x88] sm:$0xff]
        %v374 = vld [vmem:[#allocation2 + $0x90] sm:$0xff]
        %v375 = vld [vmem:[#allocation2 + $0x98] sm:$0xff]
        %v376 = vld [vmem:[#allocation2 + $0xa0] sm:$0xff]
        %v377 = vld [vmem:[#allocation2 + $0xa8] sm:$0xff]
        %v378 = vld [vmem:[#allocation2 + $0xb0] sm:$0xff]
        %v379 = vld [vmem:[#allocation2 + $0xb8] sm:$0xff]
        %v380 = vld [vmem:[#allocation2 + $0xc0] sm:$0xff]
        %v381 = vld [vmem:[#allocation2 + $0xc8] sm:$0xff]
        %v382 = vld [vmem:[#allocation2 + $0xd0] sm:$0xff]
        %v383 = vld [vmem:[#allocation2 + $0xd8] sm:$0xff]
        %v384 = vld [vmem:[#allocation2 + $0xe0] sm:$0xff]
        %v385 = vld [vmem:[#allocation2 + $0xe8] sm:$0xff]
        %v386 = vld [vmem:[#allocation2 + $0xf0] sm:$0xff]
        %v387 = vld [vmem:[#allocation2 + $0xf8] sm:$0xff]
        %v388 = vld [vmem:[#allocation2 + $0x100] sm:$0xff]
        %v389 = vld [vmem:[#allocation2 + $0x108] sm:$0xff]
        %v390 = vld [vmem:[#allocation2 + $0x110] sm:$0xff]
        %v391 = vld [vmem:[#allocation2 + $0x118] sm:$0xff]
        %v392 = vld [vmem:[#allocation2 + $0x120] sm:$0xff]
        %v393 = vld [vmem:[#allocation2 + $0x128] sm:$0xff]
        %v394 = vld [vmem:[#allocation2 + $0x130] sm:$0xff]
        %v395 = vld [vmem:[#allocation2 + $0x138] sm:$0xff]
        %v396 = vld [vmem:[#allocation2 + $0x140] sm:$0xff]
        %v397 = vld [vmem:[#allocation2 + $0x148] sm:$0xff]
        %v398 = vld [vmem:[#allocation2 + $0x150] sm:$0xff]
        %v399 = vld [vmem:[#allocation2 + $0x158] sm:$0xff]
        %v400 = vld [vmem:[#allocation2 + $0x160] sm:$0xff]
        %v401 = vld [vmem:[#allocation2 + $0x168] sm:$0xff]
        %v402 = vld [vmem:[#allocation2 + $0x170] sm:$0xff]
        %v403 = vld [vmem:[#allocation2 + $0x178] sm:$0xff]
        %v404 = vld [vmem:[#allocation2 + $0x180] sm:$0xff]
        %v405 = vld [vmem:[#allocation2 + $0x188] sm:$0xff]
        %v406 = vld [vmem:[#allocation2 + $0x190] sm:$0xff]
        %v407 = vld [vmem:[#allocation2 + $0x198] sm:$0xff]
        %v408 = vld [vmem:[#allocation2 + $0x1a0] sm:$0xff]
        %v409 = vld [vmem:[#allocation2 + $0x1a8] sm:$0xff]
        %v410 = vld [vmem:[#allocation2 + $0x1b0] sm:$0xff]
        %v411 = vld [vmem:[#allocation2 + $0x1b8] sm:$0xff]
        %v412 = vld [vmem:[#allocation2 + $0x1c0] sm:$0xff]
        %v413 = vld [vmem:[#allocation2 + $0x1c8] sm:$0xff]
        %v414 = vld [vmem:[#allocation2 + $0x1d0] sm:$0xff]
        %v415 = vld [vmem:[#allocation2 + $0x1d8] sm:$0xff]
        %v416 = vld [vmem:[#allocation2 + $0x1e0] sm:$0xff]
        %v417 = vld [vmem:[#allocation2 + $0x1e8] sm:$0xff]
        %v418 = vld [vmem:[#allocation2 + $0x1f0] sm:$0xff]
        %v419 = vld [vmem:[#allocation2 + $0x1f8] sm:$0xff]
        %v420 = vld [vmem:[#allocation2 + $0x200] sm:$0xff]
        %v421 = vld [vmem:[#allocation2 + $0x208] sm:$0xff]
        %v422 = vld [vmem:[#allocation2 + $0x210] sm:$0xff]
        %v423 = vld [vmem:[#allocation2 + $0x218] sm:$0xff]
        %v424 = vld [vmem:[#allocation2 + $0x220] sm:$0xff]
        %v425 = vld [vmem:[#allocation2 + $0x228] sm:$0xff]
        %v426 = vld [vmem:[#allocation2 + $0x230] sm:$0xff]
        %v427 = vld [vmem:[#allocation2 + $0x238] sm:$0xff]
        %v428 = vld [vmem:[#allocation2 + $0x240] sm:$0xff]
        %v429 = vld [vmem:[#allocation2 + $0x248] sm:$0xff]
        %v430 = vld [vmem:[#allocation2 + $0x250] sm:$0xff]
        %v431 = vld [vmem:[#allocation2 + $0x258] sm:$0xff]
        %v432 = vld [vmem:[#allocation2 + $0x260] sm:$0xff]
        %v433 = vld [vmem:[#allocation2 + $0x268] sm:$0xff]
        %v434 = vld [vmem:[#allocation2 + $0x270] sm:$0xff]
        %v435 = vld [vmem:[#allocation2 + $0x278] sm:$0xff]
        %v436 = vld [vmem:[#allocation2 + $0x280] sm:$0xff]
        %v437 = vld [vmem:[#allocation2 + $0x288] sm:$0xff]
        %v438 = vld [vmem:[#allocation2 + $0x290] sm:$0xff]
        %v439 = vld [vmem:[#allocation2 + $0x298] sm:$0xff]
        %v440 = vld [vmem:[#allocation2 + $0x2a0] sm:$0xff]
        %v441 = vld [vmem:[#allocation2 + $0x2a8] sm:$0xff]
        %v442 = vld [vmem:[#allocation2 + $0x2b0] sm:$0xff]
        %v443 = vld [vmem:[#allocation2 + $0x2b8] sm:$0xff]
        %v444 = vld [vmem:[#allocation2 + $0x2c0] sm:$0xff]
        %v445 = vld [vmem:[#allocation2 + $0x2c8] sm:$0xff]
        %v446 = vld [vmem:[#allocation2 + $0x2d0] sm:$0xff]
        %v447 = vld [vmem:[#allocation2 + $0x2d8] sm:$0xff]
        %v448 = vld [vmem:[#allocation2 + $0x2e0] sm:$0xff]
        %v449 = vld [vmem:[#allocation2 + $0x2e8] sm:$0xff]
        %v450 = vld [vmem:[#allocation2 + $0x2f0] sm:$0xff]
        %v451 = vld [vmem:[#allocation2 + $0x2f8] sm:$0xff]
        %v452 = vld [vmem:[#allocation2 + $0x300] sm:$0xff]
        %v453 = vld [vmem:[#allocation2 + $0x308] sm:$0xff]
        %v454 = vld [vmem:[#allocation2 + $0x310] sm:$0xff]
        %v455 = vld [vmem:[#allocation2 + $0x318] sm:$0xff]
        %v456 = vld [vmem:[#allocation2 + $0x320] sm:$0xff]
        %v457 = vld [vmem:[#allocation2 + $0x328] sm:$0xff]
        %v458 = vld [vmem:[#allocation2 + $0x330] sm:$0xff]
        %v459 = vld [vmem:[#allocation2 + $0x338] sm:$0xff]
        %v460 = vld [vmem:[#allocation2 + $0x340] sm:$0xff]
        %v461 = vld [vmem:[#allocation2 + $0x348] sm:$0xff]
        %v462 = vld [vmem:[#allocation2 + $0x350] sm:$0xff]
        %v463 = vld [vmem:[#allocation2 + $0x358] sm:$0xff]
        %v464 = vld [vmem:[#allocation2 + $0x360] sm:$0xff]
        %v465 = vld [vmem:[#allocation2 + $0x368] sm:$0xff]
        %v466 = vld [vmem:[#allocation2 + $0x370] sm:$0xff]
        %v467 = vld [vmem:[#allocation2 + $0x378] sm:$0xff]
        %v468 = vld [vmem:[#allocation2 + $0x380] sm:$0xff]
        %v469 = vld [vmem:[#allocation2 + $0x388] sm:$0xff]
        %v470 = vld [vmem:[#allocation2 + $0x390] sm:$0xff]
        %v471 = vld [vmem:[#allocation2 + $0x398] sm:$0xff]
        %v472 = vld [vmem:[#allocation2 + $0x3a0] sm:$0xff]
        %v473 = vld [vmem:[#allocation2 + $0x3a8] sm:$0xff]
        %v474 = vld [vmem:[#allocation2 + $0x3b0] sm:$0xff]
        %v475 = vld [vmem:[#allocation2 + $0x3b8] sm:$0xff]
        %v476 = vld [vmem:[#allocation2 + $0x3c0] sm:$0xff]
        %v477 = vld [vmem:[#allocation2 + $0x3c8] sm:$0xff]
        %v478 = vld [vmem:[#allocation2 + $0x3d0] sm:$0xff]
        %v479 = vld [vmem:[#allocation2 + $0x3d8] sm:$0xff]
        %v480 = vld [vmem:[#allocation2 + $0x3e0] sm:$0xff]
        %v481 = vld [vmem:[#allocation2 + $0x3e8] sm:$0xff]
        %v482 = vld [vmem:[#allocation2 + $0x3f0] sm:$0xff]
        %v483 = vld [vmem:[#allocation2 + $0x3f8] sm:$0xff]
        %v484 = vld [vmem:[#allocation2 + $0x400] sm:$0xff]
        %v485 = vld [vmem:[#allocation2 + $0x408] sm:$0xff]
        %v486 = vld [vmem:[#allocation2 + $0x410] sm:$0xff]
        %v487 = vld [vmem:[#allocation2 + $0x418] sm:$0xff]
        %v488 = vld [vmem:[#allocation2 + $0x420] sm:$0xff]
        %v489 = vld [vmem:[#allocation2 + $0x428] sm:$0xff]
        %v490 = vld [vmem:[#allocation2 + $0x430] sm:$0xff]
        %v491 = vld [vmem:[#allocation2 + $0x438] sm:$0xff]
        %v492 = vld [vmem:[#allocation2 + $0x440] sm:$0xff]
        %v493 = vld [vmem:[#allocation2 + $0x448] sm:$0xff]
        %v494 = vld [vmem:[#allocation2 + $0x450] sm:$0xff]
        %v495 = vld [vmem:[#allocation2 + $0x458] sm:$0xff]
        %v496 = vld [vmem:[#allocation2 + $0x460] sm:$0xff]
        %v497 = vld [vmem:[#allocation2 + $0x468] sm:$0xff]
        %v498 = vld [vmem:[#allocation2 + $0x470] sm:$0xff]
        %v499 = vld [vmem:[#allocation2 + $0x478] sm:$0xff]
        %v500 = vld [vmem:[%s344] sm:$0xfe]
        %v501 = vld [vmem:[%s344 + $0x8] sm:$0xfe]
        %v502 = vld [vmem:[%s344 + $0x10] sm:$0xfe]
        %v503 = vld [vmem:[%s344 + $0x30] sm:$0x1]
        %v504 = vld [vmem:[%s344 + $0x38] sm:$0x1]
        %v505 = vld [vmem:[%s344 + $0x40] sm:$0x1]
        %s506 = scalar_lea.vmem [#allocation2], 1152
        %v507 = vld [vmem:[%s506] sm:$0xff]
        %v508 = vld [vmem:[%s506 + $0x8] sm:$0xff]
        %v509 = vld [vmem:[%s506 + $0x10] sm:$0xff]
        %v510 = vld [vmem:[%s506 + $0x18] sm:$0xff]
        %v511 = vld [vmem:[%s506 + $0x20] sm:$0xff]
        %v512 = vld [vmem:[%s506 + $0x28] sm:$0xff]
        %v513 = vld [vmem:[%s506 + $0x30] sm:$0xff]
        %v514 = vld [vmem:[%s506 + $0x38] sm:$0xff]
        %v515 = vld [vmem:[%s506 + $0x40] sm:$0xff]
        %v516 = vld [vmem:[%s506 + $0x48] sm:$0xff]
        %v517 = vld [vmem:[%s506 + $0x50] sm:$0xff]
        %v518 = vld [vmem:[%s506 + $0x58] sm:$0xff]
        %v519 = vld [vmem:[%s506 + $0x60] sm:$0xff]
        %v520 = vld [vmem:[%s506 + $0x68] sm:$0xff]
        %v521 = vld [vmem:[%s506 + $0x70] sm:$0xff]
        %v522 = vld [vmem:[%s506 + $0x78] sm:$0xff]
        %v523 = vld [vmem:[%s506 + $0x80] sm:$0xff]
        %v524 = vld [vmem:[%s506 + $0x88] sm:$0xff]
        %v525 = vld [vmem:[%s506 + $0x90] sm:$0xff]
        %v526 = vld [vmem:[%s506 + $0x98] sm:$0xff]
        %v527 = vld [vmem:[%s506 + $0xa0] sm:$0xff]
        %v528 = vld [vmem:[%s506 + $0xa8] sm:$0xff]
        %v529 = vld [vmem:[%s506 + $0xb0] sm:$0xff]
        %v530 = vld [vmem:[%s506 + $0xb8] sm:$0xff]
        %v531 = vld [vmem:[%s506 + $0xc0] sm:$0xff]
        %v532 = vld [vmem:[%s506 + $0xc8] sm:$0xff]
        %v533 = vld [vmem:[%s506 + $0xd0] sm:$0xff]
        %v534 = vld [vmem:[%s506 + $0xd8] sm:$0xff]
        %v535 = vld [vmem:[%s506 + $0xe0] sm:$0xff]
        %v536 = vld [vmem:[%s506 + $0xe8] sm:$0xff]
        %v537 = vld [vmem:[%s506 + $0xf0] sm:$0xff]
        %v538 = vld [vmem:[%s506 + $0xf8] sm:$0xff]
        %v539 = vld [vmem:[%s506 + $0x100] sm:$0xff]
        %v540 = vld [vmem:[%s506 + $0x108] sm:$0xff]
        %v541 = vld [vmem:[%s506 + $0x110] sm:$0xff]
        %v542 = vld [vmem:[%s506 + $0x118] sm:$0xff]
        %v543 = vld [vmem:[%s506 + $0x120] sm:$0xff]
        %v544 = vld [vmem:[%s506 + $0x128] sm:$0xff]
        %v545 = vld [vmem:[%s506 + $0x130] sm:$0xff]
        %v546 = vld [vmem:[%s506 + $0x138] sm:$0xff]
        %v547 = vld [vmem:[%s506 + $0x140] sm:$0xff]
        %v548 = vld [vmem:[%s506 + $0x148] sm:$0xff]
        %v549 = vld [vmem:[%s506 + $0x150] sm:$0xff]
        %v550 = vld [vmem:[%s506 + $0x158] sm:$0xff]
        %v551 = vld [vmem:[%s506 + $0x160] sm:$0xff]
        %v552 = vld [vmem:[%s506 + $0x168] sm:$0xff]
        %v553 = vld [vmem:[%s506 + $0x170] sm:$0xff]
        %v554 = vld [vmem:[%s506 + $0x178] sm:$0xff]
        %v555 = vld [vmem:[%s506 + $0x180] sm:$0xff]
        %v556 = vld [vmem:[%s506 + $0x188] sm:$0xff]
        %v557 = vld [vmem:[%s506 + $0x190] sm:$0xff]
        %v558 = vld [vmem:[%s506 + $0x198] sm:$0xff]
        %v559 = vld [vmem:[%s506 + $0x1a0] sm:$0xff]
        %v560 = vld [vmem:[%s506 + $0x1a8] sm:$0xff]
        %v561 = vld [vmem:[%s506 + $0x1b0] sm:$0xff]
        %v562 = vld [vmem:[%s506 + $0x1b8] sm:$0xff]
        %v563 = vld [vmem:[%s506 + $0x1c0] sm:$0xff]
        %v564 = vld [vmem:[%s506 + $0x1c8] sm:$0xff]
        %v565 = vld [vmem:[%s506 + $0x1d0] sm:$0xff]
        %v566 = vld [vmem:[%s506 + $0x1d8] sm:$0xff]
        %v567 = vld [vmem:[%s506 + $0x1e0] sm:$0xff]
        %v568 = vld [vmem:[%s506 + $0x1e8] sm:$0xff]
        %v569 = vld [vmem:[%s506 + $0x1f0] sm:$0xff]
        %v570 = vld [vmem:[%s506 + $0x1f8] sm:$0xff]
        %v571 = vld [vmem:[%s506 + $0x200] sm:$0xff]
        %v572 = vld [vmem:[%s506 + $0x208] sm:$0xff]
        %v573 = vld [vmem:[%s506 + $0x210] sm:$0xff]
        %v574 = vld [vmem:[%s506 + $0x218] sm:$0xff]
        %v575 = vld [vmem:[%s506 + $0x220] sm:$0xff]
        %v576 = vld [vmem:[%s506 + $0x228] sm:$0xff]
        %v577 = vld [vmem:[%s506 + $0x230] sm:$0xff]
        %v578 = vld [vmem:[%s506 + $0x238] sm:$0xff]
        %v579 = vld [vmem:[%s506 + $0x240] sm:$0xff]
        %v580 = vld [vmem:[%s506 + $0x248] sm:$0xff]
        %v581 = vld [vmem:[%s506 + $0x250] sm:$0xff]
        %v582 = vld [vmem:[%s506 + $0x258] sm:$0xff]
        %v583 = vld [vmem:[%s506 + $0x260] sm:$0xff]
        %v584 = vld [vmem:[%s506 + $0x268] sm:$0xff]
        %v585 = vld [vmem:[%s506 + $0x270] sm:$0xff]
        %v586 = vld [vmem:[%s506 + $0x278] sm:$0xff]
        %v587 = vld [vmem:[%s506 + $0x280] sm:$0xff]
        %v588 = vld [vmem:[%s506 + $0x288] sm:$0xff]
        %v589 = vld [vmem:[%s506 + $0x290] sm:$0xff]
        %v590 = vld [vmem:[%s506 + $0x298] sm:$0xff]
        %v591 = vld [vmem:[%s506 + $0x2a0] sm:$0xff]
        %v592 = vld [vmem:[%s506 + $0x2a8] sm:$0xff]
        %v593 = vld [vmem:[%s506 + $0x2b0] sm:$0xff]
        %v594 = vld [vmem:[%s506 + $0x2b8] sm:$0xff]
        %v595 = vld [vmem:[%s506 + $0x2c0] sm:$0xff]
        %v596 = vld [vmem:[%s506 + $0x2c8] sm:$0xff]
        %v597 = vld [vmem:[%s506 + $0x2d0] sm:$0xff]
        %v598 = vld [vmem:[%s506 + $0x2d8] sm:$0xff]
        %v599 = vld [vmem:[%s506 + $0x2e0] sm:$0xff]
        %v600 = vld [vmem:[%s506 + $0x2e8] sm:$0xff]
        %v601 = vld [vmem:[%s506 + $0x2f0] sm:$0xff]
        %v602 = vld [vmem:[%s506 + $0x2f8] sm:$0xff]
        %v603 = vld [vmem:[%s506 + $0x300] sm:$0xff]
        %v604 = vld [vmem:[%s506 + $0x308] sm:$0xff]
        %v605 = vld [vmem:[%s506 + $0x310] sm:$0xff]
        %v606 = vld [vmem:[%s506 + $0x318] sm:$0xff]
        %v607 = vld [vmem:[%s506 + $0x320] sm:$0xff]
        %v608 = vld [vmem:[%s506 + $0x328] sm:$0xff]
        %v609 = vld [vmem:[%s506 + $0x330] sm:$0xff]
        %v610 = vld [vmem:[%s506 + $0x338] sm:$0xff]
        %v611 = vld [vmem:[%s506 + $0x340] sm:$0xff]
        %v612 = vld [vmem:[%s506 + $0x348] sm:$0xff]
        %v613 = vld [vmem:[%s506 + $0x350] sm:$0xff]
        %v614 = vld [vmem:[%s506 + $0x358] sm:$0xff]
        %v615 = vld [vmem:[%s506 + $0x360] sm:$0xff]
        %v616 = vld [vmem:[%s506 + $0x368] sm:$0xff]
        %v617 = vld [vmem:[%s506 + $0x370] sm:$0xff]
        %v618 = vld [vmem:[%s506 + $0x378] sm:$0xff]
        %v619 = vld [vmem:[%s506 + $0x380] sm:$0xff]
        %v620 = vld [vmem:[%s506 + $0x388] sm:$0xff]
        %v621 = vld [vmem:[%s506 + $0x390] sm:$0xff]
        %v622 = vld [vmem:[%s506 + $0x398] sm:$0xff]
        %v623 = vld [vmem:[%s506 + $0x3a0] sm:$0xff]
        %v624 = vld [vmem:[%s506 + $0x3a8] sm:$0xff]
        %v625 = vld [vmem:[%s506 + $0x3b0] sm:$0xff]
        %v626 = vld [vmem:[%s506 + $0x3b8] sm:$0xff]
        %v627 = vld [vmem:[%s506 + $0x3c0] sm:$0xff]
        %v628 = vld [vmem:[%s506 + $0x3c8] sm:$0xff]
        %v629 = vld [vmem:[%s506 + $0x3d0] sm:$0xff]
        %v630 = vld [vmem:[%s506 + $0x3d8] sm:$0xff]
        %v631 = vld [vmem:[%s506 + $0x3e0] sm:$0xff]
        %v632 = vld [vmem:[%s506 + $0x3e8] sm:$0xff]
        %v633 = vld [vmem:[%s506 + $0x3f0] sm:$0xff]
        %v634 = vld [vmem:[%s506 + $0x3f8] sm:$0xff]
        %v635 = vld [vmem:[%s506 + $0x400] sm:$0xff]
        %v636 = vld [vmem:[%s506 + $0x408] sm:$0xff]
        %v637 = vld [vmem:[%s506 + $0x410] sm:$0xff]
        %v638 = vld [vmem:[%s506 + $0x418] sm:$0xff]
        %v639 = vld [vmem:[%s506 + $0x420] sm:$0xff]
        %v640 = vld [vmem:[%s506 + $0x428] sm:$0xff]
        %v641 = vld [vmem:[%s506 + $0x430] sm:$0xff]
        %v642 = vld [vmem:[%s506 + $0x438] sm:$0xff]
        %v643 = vld [vmem:[%s506 + $0x440] sm:$0xff]
        %v644 = vld [vmem:[%s506 + $0x448] sm:$0xff]
        %v645 = vld [vmem:[%s506 + $0x450] sm:$0xff]
        %v646 = vld [vmem:[%s506 + $0x458] sm:$0xff]
        %v647 = vld [vmem:[%s506 + $0x460] sm:$0xff]
        %v648 = vld [vmem:[%s506 + $0x468] sm:$0xff]
        %v649 = vld [vmem:[%s506 + $0x470] sm:$0xff]
        %v650 = vld [vmem:[%s506 + $0x478] sm:$0xff]
        %vm660 = vcmask 1046528
        %v661 = vrot.slane %v500, 1
        %v662 = vrot.slane %v353, 1
        %v663 = vsel %vm660, %v661, %v662
        %v664 = vrot.slane %v501, 1
        %v665 = vrot.slane %v354, 1
        %v666 = vsel %vm660, %v664, %v665
        %v667 = vrot.slane %v502, 1
        %v668 = vrot.slane %v355, 1
        %v669 = vsel %vm660, %v667, %v668
        %v670 = vrot.slane %v503, 1
        %v671 = vsel %vm660, %v662, %v670
        %v672 = vrot.slane %v504, 1
        %v673 = vsel %vm660, %v665, %v672
        %v674 = vrot.slane %v505, 1
        %v675 = vsel %vm660, %v668, %v674
        %vm680 = vcmask 261120
        %v681 = vsel %vm680, %v669, 0
        %v683 = vsel %vm680, %v675, 0
        %685 = vmatpush.msra.mxu0 %v567
        %686 = vmatpush.msra.mxu0 %v563
        %687 = vmatpush.msra.mxu0 %v559
        %688 = vmatpush.msra.mxu0 %v555
        %689 = vmatpush.msra.mxu0 %v551
        %690 = vmatpush.msra.mxu0 %v547
        %691 = vmatpush.msra.mxu0 %v543
        %692 = vmatpush.msra.mxu0 %v539
        %693 = vmatpush.msra.mxu0 %v535
        %694 = vmatpush.msra.mxu0 %v531
        %695 = vmatpush.msra.mxu0 %v527
        %696 = vmatpush.msra.mxu0 %v523
        %697 = vmatpush.msra.mxu0 %v519
        %698 = vmatpush.msra.mxu0 %v515
        %699 = vmatpush.msra.mxu0 %v511
        %700 = vmatpush.msra.mxu0 %v507
        %701 = vmatmul.f32.gmra.mxu0 %v663
        %v702 = vpop.f32.mrf.mxu0
        %v703 = vadd.f32 0.0, %v702
        %704 = vmatmul.f32.gmra.mxu0 %v671
        %v705 = vpop.f32.mrf.mxu0
        %v706 = vadd.f32 0.0, %v705
        %707 = vdwg.mxu0
        %708 = vmatpush.msra.mxu0 %v631
        %709 = vmatpush.msra.mxu0 %v627
        %710 = vmatpush.msra.mxu0 %v623
        %711 = vmatpush.msra.mxu0 %v619
        %712 = vmatpush.msra.mxu0 %v615
        %713 = vmatpush.msra.mxu0 %v611
        %714 = vmatpush.msra.mxu0 %v607
        %715 = vmatpush.msra.mxu0 %v603
        %716 = vmatpush.msra.mxu0 %v599
        %717 = vmatpush.msra.mxu0 %v595
        %718 = vmatpush.msra.mxu0 %v591
        %719 = vmatpush.msra.mxu0 %v587
        %720 = vmatpush.msra.mxu0 %v583
        %721 = vmatpush.msra.mxu0 %v579
        %722 = vmatpush.msra.mxu0 %v575
        %723 = vmatpush.msra.mxu0 %v571
        %724 = vmatmul.f32.gmra.mxu0 %v666
        %v725 = vpop.f32.mrf.mxu0
        %v726 = vadd.f32 %v703, %v725
        %727 = vmatmul.f32.gmra.mxu0 %v673
        %v728 = vpop.f32.mrf.mxu0
        %v729 = vadd.f32 %v706, %v728
        %730 = vdwg.mxu0
        %731 = vmatpush.msra.mxu0 0.0
        %732 = vmatpush.msra.mxu0 0.0
        %733 = vmatpush.msra.mxu0 0.0
        %734 = vmatpush.msra.mxu0 0.0
        %735 = vmatpush.msra.mxu0 0.0
        %736 = vmatpush.msra.mxu0 0.0
        %737 = vmatpush.msra.mxu0 0.0
        %738 = vmatpush.msra.mxu0 0.0
        %739 = vmatpush.msra.mxu0 0.0
        %740 = vmatpush.msra.mxu0 0.0
        %741 = vmatpush.msra.mxu0 0.0
        %742 = vmatpush.msra.mxu0 0.0
        %743 = vmatpush.msra.mxu0 %v647
        %744 = vmatpush.msra.mxu0 %v643
        %745 = vmatpush.msra.mxu0 %v639
        %746 = vmatpush.msra.mxu0 %v635
        %747 = vmatmul.f32.gmra.mxu0 %v681
        %v748 = vpop.f32.mrf.mxu0
        %v749 = vadd.f32 %v726, %v748
        %750 = vmatmul.f32.gmra.mxu0 %v683
        %v751 = vpop.f32.mrf.mxu0
        %v752 = vadd.f32 %v729, %v751
        %753 = vdwg.mxu0
        %754 = vmatpush.msra.mxu0 %v568
        %755 = vmatpush.msra.mxu0 %v564
        %756 = vmatpush.msra.mxu0 %v560
        %757 = vmatpush.msra.mxu0 %v556
        %758 = vmatpush.msra.mxu0 %v552
        %759 = vmatpush.msra.mxu0 %v548
        %760 = vmatpush.msra.mxu0 %v544
        %761 = vmatpush.msra.mxu0 %v540
        %762 = vmatpush.msra.mxu0 %v536
        %763 = vmatpush.msra.mxu0 %v532
        %764 = vmatpush.msra.mxu0 %v528
        %765 = vmatpush.msra.mxu0 %v524
        %766 = vmatpush.msra.mxu0 %v520
        %767 = vmatpush.msra.mxu0 %v516
        %768 = vmatpush.msra.mxu0 %v512
        %769 = vmatpush.msra.mxu0 %v508
        %770 = vmatmul.f32.gmra.mxu0 %v663
        %v771 = vpop.f32.mrf.mxu0
        %v772 = vadd.f32 0.0, %v771
        %773 = vmatmul.f32.gmra.mxu0 %v671
        %v774 = vpop.f32.mrf.mxu0
        %v775 = vadd.f32 0.0, %v774
        %776 = vdwg.mxu0
        %777 = vmatpush.msra.mxu0 %v632
        %778 = vmatpush.msra.mxu0 %v628
        %779 = vmatpush.msra.mxu0 %v624
        %780 = vmatpush.msra.mxu0 %v620
        %781 = vmatpush.msra.mxu0 %v616
        %782 = vmatpush.msra.mxu0 %v612
        %783 = vmatpush.msra.mxu0 %v608
        %784 = vmatpush.msra.mxu0 %v604
        %785 = vmatpush.msra.mxu0 %v600
        %786 = vmatpush.msra.mxu0 %v596
        %787 = vmatpush.msra.mxu0 %v592
        %788 = vmatpush.msra.mxu0 %v588
        %789 = vmatpush.msra.mxu0 %v584
        %790 = vmatpush.msra.mxu0 %v580
        %791 = vmatpush.msra.mxu0 %v576
        %792 = vmatpush.msra.mxu0 %v572
        %793 = vmatmul.f32.gmra.mxu0 %v666
        %v794 = vpop.f32.mrf.mxu0
        %v795 = vadd.f32 %v772, %v794
        %796 = vmatmul.f32.gmra.mxu0 %v673
        %v797 = vpop.f32.mrf.mxu0
        %v798 = vadd.f32 %v775, %v797
        %799 = vdwg.mxu0
        %800 = vmatpush.msra.mxu0 0.0
        %801 = vmatpush.msra.mxu0 0.0
        %802 = vmatpush.msra.mxu0 0.0
        %803 = vmatpush.msra.mxu0 0.0
        %804 = vmatpush.msra.mxu0 0.0
        %805 = vmatpush.msra.mxu0 0.0
        %806 = vmatpush.msra.mxu0 0.0
        %807 = vmatpush.msra.mxu0 0.0
        %808 = vmatpush.msra.mxu0 0.0
        %809 = vmatpush.msra.mxu0 0.0
        %810 = vmatpush.msra.mxu0 0.0
        %811 = vmatpush.msra.mxu0 0.0
        %812 = vmatpush.msra.mxu0 %v648
        %813 = vmatpush.msra.mxu0 %v644
        %814 = vmatpush.msra.mxu0 %v640
        %815 = vmatpush.msra.mxu0 %v636
        %816 = vmatmul.f32.gmra.mxu0 %v681
        %v817 = vpop.f32.mrf.mxu0
        %v818 = vadd.f32 %v795, %v817
        %819 = vmatmul.f32.gmra.mxu0 %v683
        %v820 = vpop.f32.mrf.mxu0
        %v821 = vadd.f32 %v798, %v820
        %822 = vdwg.mxu0
        %823 = vmatpush.msra.mxu0 %v569
        %824 = vmatpush.msra.mxu0 %v565
        %825 = vmatpush.msra.mxu0 %v561
        %826 = vmatpush.msra.mxu0 %v557
        %827 = vmatpush.msra.mxu0 %v553
        %828 = vmatpush.msra.mxu0 %v549
        %829 = vmatpush.msra.mxu0 %v545
        %830 = vmatpush.msra.mxu0 %v541
        %831 = vmatpush.msra.mxu0 %v537
        %832 = vmatpush.msra.mxu0 %v533
        %833 = vmatpush.msra.mxu0 %v529
        %834 = vmatpush.msra.mxu0 %v525
        %835 = vmatpush.msra.mxu0 %v521
        %836 = vmatpush.msra.mxu0 %v517
        %837 = vmatpush.msra.mxu0 %v513
        %838 = vmatpush.msra.mxu0 %v509
        %839 = vmatmul.f32.gmra.mxu0 %v663
        %v840 = vpop.f32.mrf.mxu0
        %v841 = vadd.f32 0.0, %v840
        %842 = vmatmul.f32.gmra.mxu0 %v671
        %v843 = vpop.f32.mrf.mxu0
        %v844 = vadd.f32 0.0, %v843
        %845 = vdwg.mxu0
        %846 = vmatpush.msra.mxu0 %v633
        %847 = vmatpush.msra.mxu0 %v629
        %848 = vmatpush.msra.mxu0 %v625
        %849 = vmatpush.msra.mxu0 %v621
        %850 = vmatpush.msra.mxu0 %v617
        %851 = vmatpush.msra.mxu0 %v613
        %852 = vmatpush.msra.mxu0 %v609
        %853 = vmatpush.msra.mxu0 %v605
        %854 = vmatpush.msra.mxu0 %v601
        %855 = vmatpush.msra.mxu0 %v597
        %856 = vmatpush.msra.mxu0 %v593
        %857 = vmatpush.msra.mxu0 %v589
        %858 = vmatpush.msra.mxu0 %v585
        %859 = vmatpush.msra.mxu0 %v581
        %860 = vmatpush.msra.mxu0 %v577
        %861 = vmatpush.msra.mxu0 %v573
        %862 = vmatmul.f32.gmra.mxu0 %v666
        %v863 = vpop.f32.mrf.mxu0
        %v864 = vadd.f32 %v841, %v863
        %865 = vmatmul.f32.gmra.mxu0 %v673
        %v866 = vpop.f32.mrf.mxu0
        %v867 = vadd.f32 %v844, %v866
        %868 = vdwg.mxu0
        %869 = vmatpush.msra.mxu0 0.0
        %870 = vmatpush.msra.mxu0 0.0
        %871 = vmatpush.msra.mxu0 0.0
        %872 = vmatpush.msra.mxu0 0.0
        %873 = vmatpush.msra.mxu0 0.0
        %874 = vmatpush.msra.mxu0 0.0
        %875 = vmatpush.msra.mxu0 0.0
        %876 = vmatpush.msra.mxu0 0.0
        %877 = vmatpush.msra.mxu0 0.0
        %878 = vmatpush.msra.mxu0 0.0
        %879 = vmatpush.msra.mxu0 0.0
        %880 = vmatpush.msra.mxu0 0.0
        %881 = vmatpush.msra.mxu0 %v649
        %882 = vmatpush.msra.mxu0 %v645
        %883 = vmatpush.msra.mxu0 %v641
        %884 = vmatpush.msra.mxu0 %v637
        %885 = vmatmul.f32.gmra.mxu0 %v681
        %v886 = vpop.f32.mrf.mxu0
        %v887 = vadd.f32 %v864, %v886
        %888 = vmatmul.f32.gmra.mxu0 %v683
        %v889 = vpop.f32.mrf.mxu0
        %v890 = vadd.f32 %v867, %v889
        %891 = vdwg.mxu0
        %892 = vmatpush.msra.mxu0 %v570
        %893 = vmatpush.msra.mxu0 %v566
        %894 = vmatpush.msra.mxu0 %v562
        %895 = vmatpush.msra.mxu0 %v558
        %896 = vmatpush.msra.mxu0 %v554
        %897 = vmatpush.msra.mxu0 %v550
        %898 = vmatpush.msra.mxu0 %v546
        %899 = vmatpush.msra.mxu0 %v542
        %900 = vmatpush.msra.mxu0 %v538
        %901 = vmatpush.msra.mxu0 %v534
        %902 = vmatpush.msra.mxu0 %v530
        %903 = vmatpush.msra.mxu0 %v526
        %904 = vmatpush.msra.mxu0 %v522
        %905 = vmatpush.msra.mxu0 %v518
        %906 = vmatpush.msra.mxu0 %v514
        %907 = vmatpush.msra.mxu0 %v510
        %908 = vmatmul.f32.gmra.mxu0 %v663
        %v909 = vpop.f32.mrf.mxu0
        %v910 = vadd.f32 0.0, %v909
        %911 = vmatmul.f32.gmra.mxu0 %v671
        %v912 = vpop.f32.mrf.mxu0
        %v913 = vadd.f32 0.0, %v912
        %914 = vdwg.mxu0
        %915 = vmatpush.msra.mxu0 %v634
        %916 = vmatpush.msra.mxu0 %v630
        %917 = vmatpush.msra.mxu0 %v626
        %918 = vmatpush.msra.mxu0 %v622
        %919 = vmatpush.msra.mxu0 %v618
        %920 = vmatpush.msra.mxu0 %v614
        %921 = vmatpush.msra.mxu0 %v610
        %922 = vmatpush.msra.mxu0 %v606
        %923 = vmatpush.msra.mxu0 %v602
        %924 = vmatpush.msra.mxu0 %v598
        %925 = vmatpush.msra.mxu0 %v594
        %926 = vmatpush.msra.mxu0 %v590
        %927 = vmatpush.msra.mxu0 %v586
        %928 = vmatpush.msra.mxu0 %v582
        %929 = vmatpush.msra.mxu0 %v578
        %930 = vmatpush.msra.mxu0 %v574
        %931 = vmatmul.f32.gmra.mxu0 %v666
        %v932 = vpop.f32.mrf.mxu0
        %v933 = vadd.f32 %v910, %v932
        %934 = vmatmul.f32.gmra.mxu0 %v673
        %v935 = vpop.f32.mrf.mxu0
        %v936 = vadd.f32 %v913, %v935
        %937 = vdwg.mxu0
        %938 = vmatpush.msra.mxu0 0.0
        %939 = vmatpush.msra.mxu0 0.0
        %940 = vmatpush.msra.mxu0 0.0
        %941 = vmatpush.msra.mxu0 0.0
        %942 = vmatpush.msra.mxu0 0.0
        %943 = vmatpush.msra.mxu0 0.0
        %944 = vmatpush.msra.mxu0 0.0
        %945 = vmatpush.msra.mxu0 0.0
        %946 = vmatpush.msra.mxu0 0.0
        %947 = vmatpush.msra.mxu0 0.0
        %948 = vmatpush.msra.mxu0 0.0
        %949 = vmatpush.msra.mxu0 0.0
        %950 = vmatpush.msra.mxu0 %v650
        %951 = vmatpush.msra.mxu0 %v646
        %952 = vmatpush.msra.mxu0 %v642
        %953 = vmatpush.msra.mxu0 %v638
        %954 = vmatmul.f32.gmra.mxu0 %v681
        %v955 = vpop.f32.mrf.mxu0
        %v956 = vadd.f32 %v933, %v955
        %957 = vmatmul.f32.gmra.mxu0 %v683
        %v958 = vpop.f32.mrf.mxu0
        %v959 = vadd.f32 %v936, %v958
        %960 = vdwg.mxu0
        %v962 = vsel %vm680, %v352, 0
        %v964 = vsel %vm680, %v355, 0
        %966 = vmatpush.msra.mxu0 %v416
        %967 = vmatpush.msra.mxu0 %v412
        %968 = vmatpush.msra.mxu0 %v408
        %969 = vmatpush.msra.mxu0 %v404
        %970 = vmatpush.msra.mxu0 %v400
        %971 = vmatpush.msra.mxu0 %v396
        %972 = vmatpush.msra.mxu0 %v392
        %973 = vmatpush.msra.mxu0 %v388
        %974 = vmatpush.msra.mxu0 %v384
        %975 = vmatpush.msra.mxu0 %v380
        %976 = vmatpush.msra.mxu0 %v376
        %977 = vmatpush.msra.mxu0 %v372
        %978 = vmatpush.msra.mxu0 %v368
        %979 = vmatpush.msra.mxu0 %v364
        %980 = vmatpush.msra.mxu0 %v360
        %981 = vmatpush.msra.mxu0 %v356
        %982 = vmatmul.f32.gmra.mxu0 %v350
        %v983 = vpop.f32.mrf.mxu0
        %v984 = vadd.f32 %v749, %v983
        %985 = vmatmul.f32.gmra.mxu0 %v353
        %v986 = vpop.f32.mrf.mxu0
        %v987 = vadd.f32 %v752, %v986
        %988 = vdwg.mxu0
        %989 = vmatpush.msra.mxu0 %v480
        %990 = vmatpush.msra.mxu0 %v476
        %991 = vmatpush.msra.mxu0 %v472
        %992 = vmatpush.msra.mxu0 %v468
        %993 = vmatpush.msra.mxu0 %v464
        %994 = vmatpush.msra.mxu0 %v460
        %995 = vmatpush.msra.mxu0 %v456
        %996 = vmatpush.msra.mxu0 %v452
        %997 = vmatpush.msra.mxu0 %v448
        %998 = vmatpush.msra.mxu0 %v444
        %999 = vmatpush.msra.mxu0 %v440
        %1000 = vmatpush.msra.mxu0 %v436
        %1001 = vmatpush.msra.mxu0 %v432
        %1002 = vmatpush.msra.mxu0 %v428
        %1003 = vmatpush.msra.mxu0 %v424
        %1004 = vmatpush.msra.mxu0 %v420
        %1005 = vmatmul.f32.gmra.mxu0 %v351
        %v1006 = vpop.f32.mrf.mxu0
        %v1007 = vadd.f32 %v984, %v1006
        %1008 = vmatmul.f32.gmra.mxu0 %v354
        %v1009 = vpop.f32.mrf.mxu0
        %v1010 = vadd.f32 %v987, %v1009
        %1011 = vdwg.mxu0
        %1012 = vmatpush.msra.mxu0 0.0
        %1013 = vmatpush.msra.mxu0 0.0
        %1014 = vmatpush.msra.mxu0 0.0
        %1015 = vmatpush.msra.mxu0 0.0
        %1016 = vmatpush.msra.mxu0 0.0
        %1017 = vmatpush.msra.mxu0 0.0
        %1018 = vmatpush.msra.mxu0 0.0
        %1019 = vmatpush.msra.mxu0 0.0
        %1020 = vmatpush.msra.mxu0 0.0
        %1021 = vmatpush.msra.mxu0 0.0
        %1022 = vmatpush.msra.mxu0 0.0
        %1023 = vmatpush.msra.mxu0 0.0
        %1024 = vmatpush.msra.mxu0 %v496
        %1025 = vmatpush.msra.mxu0 %v492
        %1026 = vmatpush.msra.mxu0 %v488
        %1027 = vmatpush.msra.mxu0 %v484
        %1028 = vmatmul.f32.gmra.mxu0 %v962
        %v1029 = vpop.f32.mrf.mxu0
        %v1030 = vadd.f32 %v1007, %v1029
        %1031 = vmatmul.f32.gmra.mxu0 %v964
        %v1032 = vpop.f32.mrf.mxu0
        %v1033 = vadd.f32 %v1010, %v1032
        %1034 = vdwg.mxu0
        %1035 = vmatpush.msra.mxu0 %v417
        %1036 = vmatpush.msra.mxu0 %v413
        %1037 = vmatpush.msra.mxu0 %v409
        %1038 = vmatpush.msra.mxu0 %v405
        %1039 = vmatpush.msra.mxu0 %v401
        %1040 = vmatpush.msra.mxu0 %v397
        %1041 = vmatpush.msra.mxu0 %v393
        %1042 = vmatpush.msra.mxu0 %v389
        %1043 = vmatpush.msra.mxu0 %v385
        %1044 = vmatpush.msra.mxu0 %v381
        %1045 = vmatpush.msra.mxu0 %v377
        %1046 = vmatpush.msra.mxu0 %v373
        %1047 = vmatpush.msra.mxu0 %v369
        %1048 = vmatpush.msra.mxu0 %v365
        %1049 = vmatpush.msra.mxu0 %v361
        %1050 = vmatpush.msra.mxu0 %v357
        %1051 = vmatmul.f32.gmra.mxu0 %v350
        %v1052 = vpop.f32.mrf.mxu0
        %v1053 = vadd.f32 %v818, %v1052
        %1054 = vmatmul.f32.gmra.mxu0 %v353
        %v1055 = vpop.f32.mrf.mxu0
        %v1056 = vadd.f32 %v821, %v1055
        %1057 = vdwg.mxu0
        %1058 = vmatpush.msra.mxu0 %v481
        %1059 = vmatpush.msra.mxu0 %v477
        %1060 = vmatpush.msra.mxu0 %v473
        %1061 = vmatpush.msra.mxu0 %v469
        %1062 = vmatpush.msra.mxu0 %v465
        %1063 = vmatpush.msra.mxu0 %v461
        %1064 = vmatpush.msra.mxu0 %v457
        %1065 = vmatpush.msra.mxu0 %v453
        %1066 = vmatpush.msra.mxu0 %v449
        %1067 = vmatpush.msra.mxu0 %v445
        %1068 = vmatpush.msra.mxu0 %v441
        %1069 = vmatpush.msra.mxu0 %v437
        %1070 = vmatpush.msra.mxu0 %v433
        %1071 = vmatpush.msra.mxu0 %v429
        %1072 = vmatpush.msra.mxu0 %v425
        %1073 = vmatpush.msra.mxu0 %v421
        %1074 = vmatmul.f32.gmra.mxu0 %v351
        %v1075 = vpop.f32.mrf.mxu0
        %v1076 = vadd.f32 %v1053, %v1075
        %1077 = vmatmul.f32.gmra.mxu0 %v354
        %v1078 = vpop.f32.mrf.mxu0
        %v1079 = vadd.f32 %v1056, %v1078
        %1080 = vdwg.mxu0
        %1081 = vmatpush.msra.mxu0 0.0
        %1082 = vmatpush.msra.mxu0 0.0
        %1083 = vmatpush.msra.mxu0 0.0
        %1084 = vmatpush.msra.mxu0 0.0
        %1085 = vmatpush.msra.mxu0 0.0
        %1086 = vmatpush.msra.mxu0 0.0
        %1087 = vmatpush.msra.mxu0 0.0
        %1088 = vmatpush.msra.mxu0 0.0
        %1089 = vmatpush.msra.mxu0 0.0
        %1090 = vmatpush.msra.mxu0 0.0
        %1091 = vmatpush.msra.mxu0 0.0
        %1092 = vmatpush.msra.mxu0 0.0
        %1093 = vmatpush.msra.mxu0 %v497
        %1094 = vmatpush.msra.mxu0 %v493
        %1095 = vmatpush.msra.mxu0 %v489
        %1096 = vmatpush.msra.mxu0 %v485
        %1097 = vmatmul.f32.gmra.mxu0 %v962
        %v1098 = vpop.f32.mrf.mxu0
        %v1099 = vadd.f32 %v1076, %v1098
        %1100 = vmatmul.f32.gmra.mxu0 %v964
        %v1101 = vpop.f32.mrf.mxu0
        %v1102 = vadd.f32 %v1079, %v1101
        %1103 = vdwg.mxu0
        %1104 = vmatpush.msra.mxu0 %v418
        %1105 = vmatpush.msra.mxu0 %v414
        %1106 = vmatpush.msra.mxu0 %v410
        %1107 = vmatpush.msra.mxu0 %v406
        %1108 = vmatpush.msra.mxu0 %v402
        %1109 = vmatpush.msra.mxu0 %v398
        %1110 = vmatpush.msra.mxu0 %v394
        %1111 = vmatpush.msra.mxu0 %v390
        %1112 = vmatpush.msra.mxu0 %v386
        %1113 = vmatpush.msra.mxu0 %v382
        %1114 = vmatpush.msra.mxu0 %v378
        %1115 = vmatpush.msra.mxu0 %v374
        %1116 = vmatpush.msra.mxu0 %v370
        %1117 = vmatpush.msra.mxu0 %v366
        %1118 = vmatpush.msra.mxu0 %v362
        %1119 = vmatpush.msra.mxu0 %v358
        %1120 = vmatmul.f32.gmra.mxu0 %v350
        %v1121 = vpop.f32.mrf.mxu0
        %v1122 = vadd.f32 %v887, %v1121
        %1123 = vmatmul.f32.gmra.mxu0 %v353
        %v1124 = vpop.f32.mrf.mxu0
        %v1125 = vadd.f32 %v890, %v1124
        %1126 = vdwg.mxu0
        %1127 = vmatpush.msra.mxu0 %v482
        %1128 = vmatpush.msra.mxu0 %v478
        %1129 = vmatpush.msra.mxu0 %v474
        %1130 = vmatpush.msra.mxu0 %v470
        %1131 = vmatpush.msra.mxu0 %v466
        %1132 = vmatpush.msra.mxu0 %v462
        %1133 = vmatpush.msra.mxu0 %v458
        %1134 = vmatpush.msra.mxu0 %v454
        %1135 = vmatpush.msra.mxu0 %v450
        %1136 = vmatpush.msra.mxu0 %v446
        %1137 = vmatpush.msra.mxu0 %v442
        %1138 = vmatpush.msra.mxu0 %v438
        %1139 = vmatpush.msra.mxu0 %v434
        %1140 = vmatpush.msra.mxu0 %v430
        %1141 = vmatpush.msra.mxu0 %v426
        %1142 = vmatpush.msra.mxu0 %v422
        %1143 = vmatmul.f32.gmra.mxu0 %v351
        %v1144 = vpop.f32.mrf.mxu0
        %v1145 = vadd.f32 %v1122, %v1144
        %1146 = vmatmul.f32.gmra.mxu0 %v354
        %v1147 = vpop.f32.mrf.mxu0
        %v1148 = vadd.f32 %v1125, %v1147
        %1149 = vdwg.mxu0
        %1150 = vmatpush.msra.mxu0 0.0
        %1151 = vmatpush.msra.mxu0 0.0
        %1152 = vmatpush.msra.mxu0 0.0
        %1153 = vmatpush.msra.mxu0 0.0
        %1154 = vmatpush.msra.mxu0 0.0
        %1155 = vmatpush.msra.mxu0 0.0
        %1156 = vmatpush.msra.mxu0 0.0
        %1157 = vmatpush.msra.mxu0 0.0
        %1158 = vmatpush.msra.mxu0 0.0
        %1159 = vmatpush.msra.mxu0 0.0
        %1160 = vmatpush.msra.mxu0 0.0
        %1161 = vmatpush.msra.mxu0 0.0
        %1162 = vmatpush.msra.mxu0 %v498
        %1163 = vmatpush.msra.mxu0 %v494
        %1164 = vmatpush.msra.mxu0 %v490
        %1165 = vmatpush.msra.mxu0 %v486
        %1166 = vmatmul.f32.gmra.mxu0 %v962
        %v1167 = vpop.f32.mrf.mxu0
        %v1168 = vadd.f32 %v1145, %v1167
        %1169 = vmatmul.f32.gmra.mxu0 %v964
        %v1170 = vpop.f32.mrf.mxu0
        %v1171 = vadd.f32 %v1148, %v1170
        %1172 = vdwg.mxu0
        %1173 = vmatpush.msra.mxu0 %v419
        %1174 = vmatpush.msra.mxu0 %v415
        %1175 = vmatpush.msra.mxu0 %v411
        %1176 = vmatpush.msra.mxu0 %v407
        %1177 = vmatpush.msra.mxu0 %v403
        %1178 = vmatpush.msra.mxu0 %v399
        %1179 = vmatpush.msra.mxu0 %v395
        %1180 = vmatpush.msra.mxu0 %v391
        %1181 = vmatpush.msra.mxu0 %v387
        %1182 = vmatpush.msra.mxu0 %v383
        %1183 = vmatpush.msra.mxu0 %v379
        %1184 = vmatpush.msra.mxu0 %v375
        %1185 = vmatpush.msra.mxu0 %v371
        %1186 = vmatpush.msra.mxu0 %v367
        %1187 = vmatpush.msra.mxu0 %v363
        %1188 = vmatpush.msra.mxu0 %v359
        %1189 = vmatmul.f32.gmra.mxu0 %v350
        %v1190 = vpop.f32.mrf.mxu0
        %v1191 = vadd.f32 %v956, %v1190
        %1192 = vmatmul.f32.gmra.mxu0 %v353
        %v1193 = vpop.f32.mrf.mxu0
        %v1194 = vadd.f32 %v959, %v1193
        %1195 = vdwg.mxu0
        %1196 = vmatpush.msra.mxu0 %v483
        %1197 = vmatpush.msra.mxu0 %v479
        %1198 = vmatpush.msra.mxu0 %v475
        %1199 = vmatpush.msra.mxu0 %v471
        %1200 = vmatpush.msra.mxu0 %v467
        %1201 = vmatpush.msra.mxu0 %v463
        %1202 = vmatpush.msra.mxu0 %v459
        %1203 = vmatpush.msra.mxu0 %v455
        %1204 = vmatpush.msra.mxu0 %v451
        %1205 = vmatpush.msra.mxu0 %v447
        %1206 = vmatpush.msra.mxu0 %v443
        %1207 = vmatpush.msra.mxu0 %v439
        %1208 = vmatpush.msra.mxu0 %v435
        %1209 = vmatpush.msra.mxu0 %v431
        %1210 = vmatpush.msra.mxu0 %v427
        %1211 = vmatpush.msra.mxu0 %v423
        %1212 = vmatmul.f32.gmra.mxu0 %v351
        %v1213 = vpop.f32.mrf.mxu0
        %v1214 = vadd.f32 %v1191, %v1213
        %1215 = vmatmul.f32.gmra.mxu0 %v354
        %v1216 = vpop.f32.mrf.mxu0
        %v1217 = vadd.f32 %v1194, %v1216
        %1218 = vdwg.mxu0
        %1219 = vmatpush.msra.mxu0 0.0
        %1220 = vmatpush.msra.mxu0 0.0
        %1221 = vmatpush.msra.mxu0 0.0
        %1222 = vmatpush.msra.mxu0 0.0
        %1223 = vmatpush.msra.mxu0 0.0
        %1224 = vmatpush.msra.mxu0 0.0
        %1225 = vmatpush.msra.mxu0 0.0
        %1226 = vmatpush.msra.mxu0 0.0
        %1227 = vmatpush.msra.mxu0 0.0
        %1228 = vmatpush.msra.mxu0 0.0
        %1229 = vmatpush.msra.mxu0 0.0
        %1230 = vmatpush.msra.mxu0 0.0
        %1231 = vmatpush.msra.mxu0 %v499
        %1232 = vmatpush.msra.mxu0 %v495
        %1233 = vmatpush.msra.mxu0 %v491
        %1234 = vmatpush.msra.mxu0 %v487
        %1235 = vmatmul.f32.gmra.mxu0 %v962
        %v1236 = vpop.f32.mrf.mxu0
        %v1237 = vadd.f32 %v1214, %v1236
        %1238 = vmatmul.f32.gmra.mxu0 %v964
        %v1239 = vpop.f32.mrf.mxu0
        %v1240 = vadd.f32 %v1217, %v1239
        %1241 = vdwg.mxu0
        %v1242 = vld [vmem:[%s344] sm:$0xfc]
        %v1243 = vld [vmem:[%s344 + $0x8] sm:$0xfc]
        %v1244 = vld [vmem:[%s344 + $0x10] sm:$0xfc]
        %v1245 = vld [vmem:[%s344 + $0x30] sm:$0x3]
        %v1246 = vld [vmem:[%s344 + $0x38] sm:$0x3]
        %v1247 = vld [vmem:[%s344 + $0x40] sm:$0x3]
        %s1248 = scalar_lea.vmem [#allocation2], 2304
        %v1249 = vld [vmem:[%s1248] sm:$0xff]
        %v1250 = vld [vmem:[%s1248 + $0x8] sm:$0xff]
        %v1251 = vld [vmem:[%s1248 + $0x10] sm:$0xff]
        %v1252 = vld [vmem:[%s1248 + $0x18] sm:$0xff]
        %v1253 = vld [vmem:[%s1248 + $0x20] sm:$0xff]
        %v1254 = vld [vmem:[%s1248 + $0x28] sm:$0xff]
        %v1255 = vld [vmem:[%s1248 + $0x30] sm:$0xff]
        %v1256 = vld [vmem:[%s1248 + $0x38] sm:$0xff]
        %v1257 = vld [vmem:[%s1248 + $0x40] sm:$0xff]
        %v1258 = vld [vmem:[%s1248 + $0x48] sm:$0xff]
        %v1259 = vld [vmem:[%s1248 + $0x50] sm:$0xff]
        %v1260 = vld [vmem:[%s1248 + $0x58] sm:$0xff]
        %v1261 = vld [vmem:[%s1248 + $0x60] sm:$0xff]
        %v1262 = vld [vmem:[%s1248 + $0x68] sm:$0xff]
        %v1263 = vld [vmem:[%s1248 + $0x70] sm:$0xff]
        %v1264 = vld [vmem:[%s1248 + $0x78] sm:$0xff]
        %v1265 = vld [vmem:[%s1248 + $0x80] sm:$0xff]
        %v1266 = vld [vmem:[%s1248 + $0x88] sm:$0xff]
        %v1267 = vld [vmem:[%s1248 + $0x90] sm:$0xff]
        %v1268 = vld [vmem:[%s1248 + $0x98] sm:$0xff]
        %v1269 = vld [vmem:[%s1248 + $0xa0] sm:$0xff]
        %v1270 = vld [vmem:[%s1248 + $0xa8] sm:$0xff]
        %v1271 = vld [vmem:[%s1248 + $0xb0] sm:$0xff]
        %v1272 = vld [vmem:[%s1248 + $0xb8] sm:$0xff]
        %v1273 = vld [vmem:[%s1248 + $0xc0] sm:$0xff]
        %v1274 = vld [vmem:[%s1248 + $0xc8] sm:$0xff]
        %v1275 = vld [vmem:[%s1248 + $0xd0] sm:$0xff]
        %v1276 = vld [vmem:[%s1248 + $0xd8] sm:$0xff]
        %v1277 = vld [vmem:[%s1248 + $0xe0] sm:$0xff]
        %v1278 = vld [vmem:[%s1248 + $0xe8] sm:$0xff]
        %v1279 = vld [vmem:[%s1248 + $0xf0] sm:$0xff]
        %v1280 = vld [vmem:[%s1248 + $0xf8] sm:$0xff]
        %v1281 = vld [vmem:[%s1248 + $0x100] sm:$0xff]
        %v1282 = vld [vmem:[%s1248 + $0x108] sm:$0xff]
        %v1283 = vld [vmem:[%s1248 + $0x110] sm:$0xff]
        %v1284 = vld [vmem:[%s1248 + $0x118] sm:$0xff]
        %v1285 = vld [vmem:[%s1248 + $0x120] sm:$0xff]
        %v1286 = vld [vmem:[%s1248 + $0x128] sm:$0xff]
        %v1287 = vld [vmem:[%s1248 + $0x130] sm:$0xff]
        %v1288 = vld [vmem:[%s1248 + $0x138] sm:$0xff]
        %v1289 = vld [vmem:[%s1248 + $0x140] sm:$0xff]
        %v1290 = vld [vmem:[%s1248 + $0x148] sm:$0xff]
        %v1291 = vld [vmem:[%s1248 + $0x150] sm:$0xff]
        %v1292 = vld [vmem:[%s1248 + $0x158] sm:$0xff]
        %v1293 = vld [vmem:[%s1248 + $0x160] sm:$0xff]
        %v1294 = vld [vmem:[%s1248 + $0x168] sm:$0xff]
        %v1295 = vld [vmem:[%s1248 + $0x170] sm:$0xff]
        %v1296 = vld [vmem:[%s1248 + $0x178] sm:$0xff]
        %v1297 = vld [vmem:[%s1248 + $0x180] sm:$0xff]
        %v1298 = vld [vmem:[%s1248 + $0x188] sm:$0xff]
        %v1299 = vld [vmem:[%s1248 + $0x190] sm:$0xff]
        %v1300 = vld [vmem:[%s1248 + $0x198] sm:$0xff]
        %v1301 = vld [vmem:[%s1248 + $0x1a0] sm:$0xff]
        %v1302 = vld [vmem:[%s1248 + $0x1a8] sm:$0xff]
        %v1303 = vld [vmem:[%s1248 + $0x1b0] sm:$0xff]
        %v1304 = vld [vmem:[%s1248 + $0x1b8] sm:$0xff]
        %v1305 = vld [vmem:[%s1248 + $0x1c0] sm:$0xff]
        %v1306 = vld [vmem:[%s1248 + $0x1c8] sm:$0xff]
        %v1307 = vld [vmem:[%s1248 + $0x1d0] sm:$0xff]
        %v1308 = vld [vmem:[%s1248 + $0x1d8] sm:$0xff]
        %v1309 = vld [vmem:[%s1248 + $0x1e0] sm:$0xff]
        %v1310 = vld [vmem:[%s1248 + $0x1e8] sm:$0xff]
        %v1311 = vld [vmem:[%s1248 + $0x1f0] sm:$0xff]
        %v1312 = vld [vmem:[%s1248 + $0x1f8] sm:$0xff]
        %v1313 = vld [vmem:[%s1248 + $0x200] sm:$0xff]
        %v1314 = vld [vmem:[%s1248 + $0x208] sm:$0xff]
        %v1315 = vld [vmem:[%s1248 + $0x210] sm:$0xff]
        %v1316 = vld [vmem:[%s1248 + $0x218] sm:$0xff]
        %v1317 = vld [vmem:[%s1248 + $0x220] sm:$0xff]
        %v1318 = vld [vmem:[%s1248 + $0x228] sm:$0xff]
        %v1319 = vld [vmem:[%s1248 + $0x230] sm:$0xff]
        %v1320 = vld [vmem:[%s1248 + $0x238] sm:$0xff]
        %v1321 = vld [vmem:[%s1248 + $0x240] sm:$0xff]
        %v1322 = vld [vmem:[%s1248 + $0x248] sm:$0xff]
        %v1323 = vld [vmem:[%s1248 + $0x250] sm:$0xff]
        %v1324 = vld [vmem:[%s1248 + $0x258] sm:$0xff]
        %v1325 = vld [vmem:[%s1248 + $0x260] sm:$0xff]
        %v1326 = vld [vmem:[%s1248 + $0x268] sm:$0xff]
        %v1327 = vld [vmem:[%s1248 + $0x270] sm:$0xff]
        %v1328 = vld [vmem:[%s1248 + $0x278] sm:$0xff]
        %v1329 = vld [vmem:[%s1248 + $0x280] sm:$0xff]
        %v1330 = vld [vmem:[%s1248 + $0x288] sm:$0xff]
        %v1331 = vld [vmem:[%s1248 + $0x290] sm:$0xff]
        %v1332 = vld [vmem:[%s1248 + $0x298] sm:$0xff]
        %v1333 = vld [vmem:[%s1248 + $0x2a0] sm:$0xff]
        %v1334 = vld [vmem:[%s1248 + $0x2a8] sm:$0xff]
        %v1335 = vld [vmem:[%s1248 + $0x2b0] sm:$0xff]
        %v1336 = vld [vmem:[%s1248 + $0x2b8] sm:$0xff]
        %v1337 = vld [vmem:[%s1248 + $0x2c0] sm:$0xff]
        %v1338 = vld [vmem:[%s1248 + $0x2c8] sm:$0xff]
        %v1339 = vld [vmem:[%s1248 + $0x2d0] sm:$0xff]
        %v1340 = vld [vmem:[%s1248 + $0x2d8] sm:$0xff]
        %v1341 = vld [vmem:[%s1248 + $0x2e0] sm:$0xff]
        %v1342 = vld [vmem:[%s1248 + $0x2e8] sm:$0xff]
        %v1343 = vld [vmem:[%s1248 + $0x2f0] sm:$0xff]
        %v1344 = vld [vmem:[%s1248 + $0x2f8] sm:$0xff]
        %v1345 = vld [vmem:[%s1248 + $0x300] sm:$0xff]
        %v1346 = vld [vmem:[%s1248 + $0x308] sm:$0xff]
        %v1347 = vld [vmem:[%s1248 + $0x310] sm:$0xff]
        %v1348 = vld [vmem:[%s1248 + $0x318] sm:$0xff]
        %v1349 = vld [vmem:[%s1248 + $0x320] sm:$0xff]
        %v1350 = vld [vmem:[%s1248 + $0x328] sm:$0xff]
        %v1351 = vld [vmem:[%s1248 + $0x330] sm:$0xff]
        %v1352 = vld [vmem:[%s1248 + $0x338] sm:$0xff]
        %v1353 = vld [vmem:[%s1248 + $0x340] sm:$0xff]
        %v1354 = vld [vmem:[%s1248 + $0x348] sm:$0xff]
        %v1355 = vld [vmem:[%s1248 + $0x350] sm:$0xff]
        %v1356 = vld [vmem:[%s1248 + $0x358] sm:$0xff]
        %v1357 = vld [vmem:[%s1248 + $0x360] sm:$0xff]
        %v1358 = vld [vmem:[%s1248 + $0x368] sm:$0xff]
        %v1359 = vld [vmem:[%s1248 + $0x370] sm:$0xff]
        %v1360 = vld [vmem:[%s1248 + $0x378] sm:$0xff]
        %v1361 = vld [vmem:[%s1248 + $0x380] sm:$0xff]
        %v1362 = vld [vmem:[%s1248 + $0x388] sm:$0xff]
        %v1363 = vld [vmem:[%s1248 + $0x390] sm:$0xff]
        %v1364 = vld [vmem:[%s1248 + $0x398] sm:$0xff]
        %v1365 = vld [vmem:[%s1248 + $0x3a0] sm:$0xff]
        %v1366 = vld [vmem:[%s1248 + $0x3a8] sm:$0xff]
        %v1367 = vld [vmem:[%s1248 + $0x3b0] sm:$0xff]
        %v1368 = vld [vmem:[%s1248 + $0x3b8] sm:$0xff]
        %v1369 = vld [vmem:[%s1248 + $0x3c0] sm:$0xff]
        %v1370 = vld [vmem:[%s1248 + $0x3c8] sm:$0xff]
        %v1371 = vld [vmem:[%s1248 + $0x3d0] sm:$0xff]
        %v1372 = vld [vmem:[%s1248 + $0x3d8] sm:$0xff]
        %v1373 = vld [vmem:[%s1248 + $0x3e0] sm:$0xff]
        %v1374 = vld [vmem:[%s1248 + $0x3e8] sm:$0xff]
        %v1375 = vld [vmem:[%s1248 + $0x3f0] sm:$0xff]
        %v1376 = vld [vmem:[%s1248 + $0x3f8] sm:$0xff]
        %v1377 = vld [vmem:[%s1248 + $0x400] sm:$0xff]
        %v1378 = vld [vmem:[%s1248 + $0x408] sm:$0xff]
        %v1379 = vld [vmem:[%s1248 + $0x410] sm:$0xff]
        %v1380 = vld [vmem:[%s1248 + $0x418] sm:$0xff]
        %v1381 = vld [vmem:[%s1248 + $0x420] sm:$0xff]
        %v1382 = vld [vmem:[%s1248 + $0x428] sm:$0xff]
        %v1383 = vld [vmem:[%s1248 + $0x430] sm:$0xff]
        %v1384 = vld [vmem:[%s1248 + $0x438] sm:$0xff]
        %v1385 = vld [vmem:[%s1248 + $0x440] sm:$0xff]
        %v1386 = vld [vmem:[%s1248 + $0x448] sm:$0xff]
        %v1387 = vld [vmem:[%s1248 + $0x450] sm:$0xff]
        %v1388 = vld [vmem:[%s1248 + $0x458] sm:$0xff]
        %v1389 = vld [vmem:[%s1248 + $0x460] sm:$0xff]
        %v1390 = vld [vmem:[%s1248 + $0x468] sm:$0xff]
        %v1391 = vld [vmem:[%s1248 + $0x470] sm:$0xff]
        %v1392 = vld [vmem:[%s1248 + $0x478] sm:$0xff]
        %vm1399 = vcmask 1045504
        %v1400 = vrot.slane %v1242, 2
        %v1401 = vrot.slane %v353, 2
        %v1402 = vsel %vm1399, %v1400, %v1401
        %v1403 = vrot.slane %v1243, 2
        %v1404 = vrot.slane %v354, 2
        %v1405 = vsel %vm1399, %v1403, %v1404
        %v1406 = vrot.slane %v1244, 2
        %v1407 = vrot.slane %v355, 2
        %v1408 = vsel %vm1399, %v1406, %v1407
        %v1409 = vrot.slane %v1245, 2
        %v1410 = vsel %vm1399, %v1401, %v1409
        %v1411 = vrot.slane %v1246, 2
        %v1412 = vsel %vm1399, %v1404, %v1411
        %v1413 = vrot.slane %v1247, 2
        %v1414 = vsel %vm1399, %v1407, %v1413
        %v1419 = vsel %vm680, %v1408, 0
        %v1421 = vsel %vm680, %v1414, 0
        %1423 = vmatpush.msra.mxu0 %v1309
        %1424 = vmatpush.msra.mxu0 %v1305
        %1425 = vmatpush.msra.mxu0 %v1301
        %1426 = vmatpush.msra.mxu0 %v1297
        %1427 = vmatpush.msra.mxu0 %v1293
        %1428 = vmatpush.msra.mxu0 %v1289
        %1429 = vmatpush.msra.mxu0 %v1285
        %1430 = vmatpush.msra.mxu0 %v1281
        %1431 = vmatpush.msra.mxu0 %v1277
        %1432 = vmatpush.msra.mxu0 %v1273
        %1433 = vmatpush.msra.mxu0 %v1269
        %1434 = vmatpush.msra.mxu0 %v1265
        %1435 = vmatpush.msra.mxu0 %v1261
        %1436 = vmatpush.msra.mxu0 %v1257
        %1437 = vmatpush.msra.mxu0 %v1253
        %1438 = vmatpush.msra.mxu0 %v1249
        %1439 = vmatmul.f32.gmra.mxu0 %v1402
        %v1440 = vpop.f32.mrf.mxu0
        %v1441 = vadd.f32 0.0, %v1440
        %1442 = vmatmul.f32.gmra.mxu0 %v1410
        %v1443 = vpop.f32.mrf.mxu0
        %v1444 = vadd.f32 0.0, %v1443
        %1445 = vdwg.mxu0
        %1446 = vmatpush.msra.mxu0 %v1373
        %1447 = vmatpush.msra.mxu0 %v1369
        %1448 = vmatpush.msra.mxu0 %v1365
        %1449 = vmatpush.msra.mxu0 %v1361
        %1450 = vmatpush.msra.mxu0 %v1357
        %1451 = vmatpush.msra.mxu0 %v1353
        %1452 = vmatpush.msra.mxu0 %v1349
        %1453 = vmatpush.msra.mxu0 %v1345
        %1454 = vmatpush.msra.mxu0 %v1341
        %1455 = vmatpush.msra.mxu0 %v1337
        %1456 = vmatpush.msra.mxu0 %v1333
        %1457 = vmatpush.msra.mxu0 %v1329
        %1458 = vmatpush.msra.mxu0 %v1325
        %1459 = vmatpush.msra.mxu0 %v1321
        %1460 = vmatpush.msra.mxu0 %v1317
        %1461 = vmatpush.msra.mxu0 %v1313
        %1462 = vmatmul.f32.gmra.mxu0 %v1405
        %v1463 = vpop.f32.mrf.mxu0
        %v1464 = vadd.f32 %v1441, %v1463
        %1465 = vmatmul.f32.gmra.mxu0 %v1412
        %v1466 = vpop.f32.mrf.mxu0
        %v1467 = vadd.f32 %v1444, %v1466
        %1468 = vdwg.mxu0
        %1469 = vmatpush.msra.mxu0 0.0
        %1470 = vmatpush.msra.mxu0 0.0
        %1471 = vmatpush.msra.mxu0 0.0
        %1472 = vmatpush.msra.mxu0 0.0
        %1473 = vmatpush.msra.mxu0 0.0
        %1474 = vmatpush.msra.mxu0 0.0
        %1475 = vmatpush.msra.mxu0 0.0
        %1476 = vmatpush.msra.mxu0 0.0
        %1477 = vmatpush.msra.mxu0 0.0
        %1478 = vmatpush.msra.mxu0 0.0
        %1479 = vmatpush.msra.mxu0 0.0
        %1480 = vmatpush.msra.mxu0 0.0
        %1481 = vmatpush.msra.mxu0 %v1389
        %1482 = vmatpush.msra.mxu0 %v1385
        %1483 = vmatpush.msra.mxu0 %v1381
        %1484 = vmatpush.msra.mxu0 %v1377
        %1485 = vmatmul.f32.gmra.mxu0 %v1419
        %v1486 = vpop.f32.mrf.mxu0
        %v1487 = vadd.f32 %v1464, %v1486
        %1488 = vmatmul.f32.gmra.mxu0 %v1421
        %v1489 = vpop.f32.mrf.mxu0
        %v1490 = vadd.f32 %v1467, %v1489
        %1491 = vdwg.mxu0
        %1492 = vmatpush.msra.mxu0 %v1310
        %1493 = vmatpush.msra.mxu0 %v1306
        %1494 = vmatpush.msra.mxu0 %v1302
        %1495 = vmatpush.msra.mxu0 %v1298
        %1496 = vmatpush.msra.mxu0 %v1294
        %1497 = vmatpush.msra.mxu0 %v1290
        %1498 = vmatpush.msra.mxu0 %v1286
        %1499 = vmatpush.msra.mxu0 %v1282
        %1500 = vmatpush.msra.mxu0 %v1278
        %1501 = vmatpush.msra.mxu0 %v1274
        %1502 = vmatpush.msra.mxu0 %v1270
        %1503 = vmatpush.msra.mxu0 %v1266
        %1504 = vmatpush.msra.mxu0 %v1262
        %1505 = vmatpush.msra.mxu0 %v1258
        %1506 = vmatpush.msra.mxu0 %v1254
        %1507 = vmatpush.msra.mxu0 %v1250
        %1508 = vmatmul.f32.gmra.mxu0 %v1402
        %v1509 = vpop.f32.mrf.mxu0
        %v1510 = vadd.f32 0.0, %v1509
        %1511 = vmatmul.f32.gmra.mxu0 %v1410
        %v1512 = vpop.f32.mrf.mxu0
        %v1513 = vadd.f32 0.0, %v1512
        %1514 = vdwg.mxu0
        %1515 = vmatpush.msra.mxu0 %v1374
        %1516 = vmatpush.msra.mxu0 %v1370
        %1517 = vmatpush.msra.mxu0 %v1366
        %1518 = vmatpush.msra.mxu0 %v1362
        %1519 = vmatpush.msra.mxu0 %v1358
        %1520 = vmatpush.msra.mxu0 %v1354
        %1521 = vmatpush.msra.mxu0 %v1350
        %1522 = vmatpush.msra.mxu0 %v1346
        %1523 = vmatpush.msra.mxu0 %v1342
        %1524 = vmatpush.msra.mxu0 %v1338
        %1525 = vmatpush.msra.mxu0 %v1334
        %1526 = vmatpush.msra.mxu0 %v1330
        %1527 = vmatpush.msra.mxu0 %v1326
        %1528 = vmatpush.msra.mxu0 %v1322
        %1529 = vmatpush.msra.mxu0 %v1318
        %1530 = vmatpush.msra.mxu0 %v1314
        %1531 = vmatmul.f32.gmra.mxu0 %v1405
        %v1532 = vpop.f32.mrf.mxu0
        %v1533 = vadd.f32 %v1510, %v1532
        %1534 = vmatmul.f32.gmra.mxu0 %v1412
        %v1535 = vpop.f32.mrf.mxu0
        %v1536 = vadd.f32 %v1513, %v1535
        %1537 = vdwg.mxu0
        %1538 = vmatpush.msra.mxu0 0.0
        %1539 = vmatpush.msra.mxu0 0.0
        %1540 = vmatpush.msra.mxu0 0.0
        %1541 = vmatpush.msra.mxu0 0.0
        %1542 = vmatpush.msra.mxu0 0.0
        %1543 = vmatpush.msra.mxu0 0.0
        %1544 = vmatpush.msra.mxu0 0.0
        %1545 = vmatpush.msra.mxu0 0.0
        %1546 = vmatpush.msra.mxu0 0.0
        %1547 = vmatpush.msra.mxu0 0.0
        %1548 = vmatpush.msra.mxu0 0.0
        %1549 = vmatpush.msra.mxu0 0.0
        %1550 = vmatpush.msra.mxu0 %v1390
        %1551 = vmatpush.msra.mxu0 %v1386
        %1552 = vmatpush.msra.mxu0 %v1382
        %1553 = vmatpush.msra.mxu0 %v1378
        %1554 = vmatmul.f32.gmra.mxu0 %v1419
        %v1555 = vpop.f32.mrf.mxu0
        %v1556 = vadd.f32 %v1533, %v1555
        %1557 = vmatmul.f32.gmra.mxu0 %v1421
        %v1558 = vpop.f32.mrf.mxu0
        %v1559 = vadd.f32 %v1536, %v1558
        %1560 = vdwg.mxu0
        %1561 = vmatpush.msra.mxu0 %v1311
        %1562 = vmatpush.msra.mxu0 %v1307
        %1563 = vmatpush.msra.mxu0 %v1303
        %1564 = vmatpush.msra.mxu0 %v1299
        %1565 = vmatpush.msra.mxu0 %v1295
        %1566 = vmatpush.msra.mxu0 %v1291
        %1567 = vmatpush.msra.mxu0 %v1287
        %1568 = vmatpush.msra.mxu0 %v1283
        %1569 = vmatpush.msra.mxu0 %v1279
        %1570 = vmatpush.msra.mxu0 %v1275
        %1571 = vmatpush.msra.mxu0 %v1271
        %1572 = vmatpush.msra.mxu0 %v1267
        %1573 = vmatpush.msra.mxu0 %v1263
        %1574 = vmatpush.msra.mxu0 %v1259
        %1575 = vmatpush.msra.mxu0 %v1255
        %1576 = vmatpush.msra.mxu0 %v1251
        %1577 = vmatmul.f32.gmra.mxu0 %v1402
        %v1578 = vpop.f32.mrf.mxu0
        %v1579 = vadd.f32 0.0, %v1578
        %1580 = vmatmul.f32.gmra.mxu0 %v1410
        %v1581 = vpop.f32.mrf.mxu0
        %v1582 = vadd.f32 0.0, %v1581
        %1583 = vdwg.mxu0
        %1584 = vmatpush.msra.mxu0 %v1375
        %1585 = vmatpush.msra.mxu0 %v1371
        %1586 = vmatpush.msra.mxu0 %v1367
        %1587 = vmatpush.msra.mxu0 %v1363
        %1588 = vmatpush.msra.mxu0 %v1359
        %1589 = vmatpush.msra.mxu0 %v1355
        %1590 = vmatpush.msra.mxu0 %v1351
        %1591 = vmatpush.msra.mxu0 %v1347
        %1592 = vmatpush.msra.mxu0 %v1343
        %1593 = vmatpush.msra.mxu0 %v1339
        %1594 = vmatpush.msra.mxu0 %v1335
        %1595 = vmatpush.msra.mxu0 %v1331
        %1596 = vmatpush.msra.mxu0 %v1327
        %1597 = vmatpush.msra.mxu0 %v1323
        %1598 = vmatpush.msra.mxu0 %v1319
        %1599 = vmatpush.msra.mxu0 %v1315
        %1600 = vmatmul.f32.gmra.mxu0 %v1405
        %v1601 = vpop.f32.mrf.mxu0
        %v1602 = vadd.f32 %v1579, %v1601
        %1603 = vmatmul.f32.gmra.mxu0 %v1412
        %v1604 = vpop.f32.mrf.mxu0
        %v1605 = vadd.f32 %v1582, %v1604
        %1606 = vdwg.mxu0
        %1607 = vmatpush.msra.mxu0 0.0
        %1608 = vmatpush.msra.mxu0 0.0
        %1609 = vmatpush.msra.mxu0 0.0
        %1610 = vmatpush.msra.mxu0 0.0
        %1611 = vmatpush.msra.mxu0 0.0
        %1612 = vmatpush.msra.mxu0 0.0
        %1613 = vmatpush.msra.mxu0 0.0
        %1614 = vmatpush.msra.mxu0 0.0
        %1615 = vmatpush.msra.mxu0 0.0
        %1616 = vmatpush.msra.mxu0 0.0
        %1617 = vmatpush.msra.mxu0 0.0
        %1618 = vmatpush.msra.mxu0 0.0
        %1619 = vmatpush.msra.mxu0 %v1391
        %1620 = vmatpush.msra.mxu0 %v1387
        %1621 = vmatpush.msra.mxu0 %v1383
        %1622 = vmatpush.msra.mxu0 %v1379
        %1623 = vmatmul.f32.gmra.mxu0 %v1419
        %v1624 = vpop.f32.mrf.mxu0
        %v1625 = vadd.f32 %v1602, %v1624
        %1626 = vmatmul.f32.gmra.mxu0 %v1421
        %v1627 = vpop.f32.mrf.mxu0
        %v1628 = vadd.f32 %v1605, %v1627
        %1629 = vdwg.mxu0
        %1630 = vmatpush.msra.mxu0 %v1312
        %1631 = vmatpush.msra.mxu0 %v1308
        %1632 = vmatpush.msra.mxu0 %v1304
        %1633 = vmatpush.msra.mxu0 %v1300
        %1634 = vmatpush.msra.mxu0 %v1296
        %1635 = vmatpush.msra.mxu0 %v1292
        %1636 = vmatpush.msra.mxu0 %v1288
        %1637 = vmatpush.msra.mxu0 %v1284
        %1638 = vmatpush.msra.mxu0 %v1280
        %1639 = vmatpush.msra.mxu0 %v1276
        %1640 = vmatpush.msra.mxu0 %v1272
        %1641 = vmatpush.msra.mxu0 %v1268
        %1642 = vmatpush.msra.mxu0 %v1264
        %1643 = vmatpush.msra.mxu0 %v1260
        %1644 = vmatpush.msra.mxu0 %v1256
        %1645 = vmatpush.msra.mxu0 %v1252
        %1646 = vmatmul.f32.gmra.mxu0 %v1402
        %v1647 = vpop.f32.mrf.mxu0
        %v1648 = vadd.f32 0.0, %v1647
        %1649 = vmatmul.f32.gmra.mxu0 %v1410
        %v1650 = vpop.f32.mrf.mxu0
        %v1651 = vadd.f32 0.0, %v1650
        %1652 = vdwg.mxu0
        %1653 = vmatpush.msra.mxu0 %v1376
        %1654 = vmatpush.msra.mxu0 %v1372
        %1655 = vmatpush.msra.mxu0 %v1368
        %1656 = vmatpush.msra.mxu0 %v1364
        %1657 = vmatpush.msra.mxu0 %v1360
        %1658 = vmatpush.msra.mxu0 %v1356
        %1659 = vmatpush.msra.mxu0 %v1352
        %1660 = vmatpush.msra.mxu0 %v1348
        %1661 = vmatpush.msra.mxu0 %v1344
        %1662 = vmatpush.msra.mxu0 %v1340
        %1663 = vmatpush.msra.mxu0 %v1336
        %1664 = vmatpush.msra.mxu0 %v1332
        %1665 = vmatpush.msra.mxu0 %v1328
        %1666 = vmatpush.msra.mxu0 %v1324
        %1667 = vmatpush.msra.mxu0 %v1320
        %1668 = vmatpush.msra.mxu0 %v1316
        %1669 = vmatmul.f32.gmra.mxu0 %v1405
        %v1670 = vpop.f32.mrf.mxu0
        %v1671 = vadd.f32 %v1648, %v1670
        %1672 = vmatmul.f32.gmra.mxu0 %v1412
        %v1673 = vpop.f32.mrf.mxu0
        %v1674 = vadd.f32 %v1651, %v1673
        %1675 = vdwg.mxu0
        %1676 = vmatpush.msra.mxu0 0.0
        %1677 = vmatpush.msra.mxu0 0.0
        %1678 = vmatpush.msra.mxu0 0.0
        %1679 = vmatpush.msra.mxu0 0.0
        %1680 = vmatpush.msra.mxu0 0.0
        %1681 = vmatpush.msra.mxu0 0.0
        %1682 = vmatpush.msra.mxu0 0.0
        %1683 = vmatpush.msra.mxu0 0.0
        %1684 = vmatpush.msra.mxu0 0.0
        %1685 = vmatpush.msra.mxu0 0.0
        %1686 = vmatpush.msra.mxu0 0.0
        %1687 = vmatpush.msra.mxu0 0.0
        %1688 = vmatpush.msra.mxu0 %v1392
        %1689 = vmatpush.msra.mxu0 %v1388
        %1690 = vmatpush.msra.mxu0 %v1384
        %1691 = vmatpush.msra.mxu0 %v1380
        %1692 = vmatmul.f32.gmra.mxu0 %v1419
        %v1693 = vpop.f32.mrf.mxu0
        %v1694 = vadd.f32 %v1671, %v1693
        %1695 = vmatmul.f32.gmra.mxu0 %v1421
        %v1696 = vpop.f32.mrf.mxu0
        %v1697 = vadd.f32 %v1674, %v1696
        %1698 = vdwg.mxu0
        %v1699 = vadd.f32 %v1030, %v1487
        %v1700 = vadd.f32 %v1099, %v1556
        %v1701 = vadd.f32 %v1168, %v1625
        %v1702 = vadd.f32 %v1237, %v1694
        %v1703 = vadd.f32 %v1033, %v1490
        %v1704 = vadd.f32 %v1102, %v1559
        %v1705 = vadd.f32 %v1171, %v1628
        %v1706 = vadd.f32 %v1240, %v1697
        %v1707 = vld [vmem:[%s2] sm:$0xf]
        %v1709 = vperm.slane %v1707, 0
        %v1710 = vperm.slane %v1707, 1
        %v1711 = vperm.slane %v1707, 2
        %v1712 = vperm.slane %v1707, 3
        %v1717 = vadd.f32 %v1699, %v1709
        %v1718 = vadd.f32 %v1700, %v1710
        %v1719 = vadd.f32 %v1701, %v1711
        %v1720 = vadd.f32 %v1702, %v1712
        %v1721 = vadd.f32 %v1703, %v1709
        %v1722 = vadd.f32 %v1704, %v1710
        %v1723 = vadd.f32 %v1705, %v1711
        %v1724 = vadd.f32 %v1706, %v1712
        %v1725 = vmax.f32 %v1717, 0.0
        %v1726 = vmax.f32 %v1718, 0.0
        %v1727 = vmax.f32 %v1719, 0.0
        %v1728 = vmax.f32 %v1720, 0.0
        %v1729 = vmax.f32 %v1721, 0.0
        %v1730 = vmax.f32 %v1722, 0.0
        %v1731 = vmax.f32 %v1723, 0.0
        %v1732 = vmax.f32 %v1724, 0.0
        %v1733 = vld [vmem:[%s3] sm:$0xf]
        %v1735 = vperm.slane %v1733, 0
        %v1736 = vperm.slane %v1733, 1
        %v1737 = vperm.slane %v1733, 2
        %v1738 = vperm.slane %v1733, 3
        %v1743 = vmul.f32 %v1725, %v1735
        %v1744 = vmul.f32 %v1726, %v1736
        %v1745 = vmul.f32 %v1727, %v1737
        %v1746 = vmul.f32 %v1728, %v1738
        %v1747 = vmul.f32 %v1729, %v1735
        %v1748 = vmul.f32 %v1730, %v1736
        %v1749 = vmul.f32 %v1731, %v1737
        %v1750 = vmul.f32 %v1732, %v1738
        %v1751 = vld [vmem:[%s4] sm:$0xf]
        %v1753 = vperm.slane %v1751, 0
        %v1754 = vperm.slane %v1751, 1
        %v1755 = vperm.slane %v1751, 2
        %v1756 = vperm.slane %v1751, 3
        %v1761 = vadd.f32 %v1743, %v1753
        %v1762 = vadd.f32 %v1744, %v1754
        %v1763 = vadd.f32 %v1745, %v1755
        %v1764 = vadd.f32 %v1746, %v1756
        %v1765 = vadd.f32 %v1747, %v1753
        %v1766 = vadd.f32 %v1748, %v1754
        %v1767 = vadd.f32 %v1749, %v1755
        %v1768 = vadd.f32 %v1750, %v1756
        %v1769 = vld [vmem:[%s5] sm:$0xff]
        %v1770 = vld [vmem:[%s5 + $0x8] sm:$0x3]
        %vm1771 = vcmask 130048
        %v1773 = vsel %vm1771, %v1769, 0
        %v1776 = vsel %vm1771, %v1770, 0
        %1778 = vmatpush.msra.mxu0 0.0
        %1779 = vmatpush.msra.mxu0 0.0
        %1780 = vmatpush.msra.mxu0 0.0
        %1781 = vmatpush.msra.mxu0 0.0
        %1782 = vmatpush.msra.mxu0 0.0
        %1783 = vmatpush.msra.mxu0 0.0
        %1784 = vmatpush.msra.mxu0 0.0
        %1785 = vmatpush.msra.mxu0 0.0
        %1786 = vmatpush.msra.mxu0 0.0
        %1787 = vmatpush.msra.mxu0 0.0
        %1788 = vmatpush.msra.mxu0 0.0
        %1789 = vmatpush.msra.mxu0 0.0
        %1790 = vmatpush.msra.mxu0 0.0
        %1791 = vmatpush.msra.mxu0 0.0
        %1792 = vmatpush.msra.mxu0 %v1765
        %1793 = vmatpush.msra.mxu0 %v1761
        %1794 = vmatmul.f32.gmra.mxu0 %v1773
        %v1795 = vpop.f32.mrf.mxu0
        %v1796 = vadd.f32 0.0, %v1795
        %1797 = vmatmul.f32.gmra.mxu0 %v1776
        %v1798 = vpop.f32.mrf.mxu0
        %v1799 = vadd.f32 0.0, %v1798
        %1800 = vdwg.mxu0
        %1801 = vmatpush.msra.mxu0 0.0
        %1802 = vmatpush.msra.mxu0 0.0
        %1803 = vmatpush.msra.mxu0 0.0
        %1804 = vmatpush.msra.mxu0 0.0
        %1805 = vmatpush.msra.mxu0 0.0
        %1806 = vmatpush.msra.mxu0 0.0
        %1807 = vmatpush.msra.mxu0 0.0
        %1808 = vmatpush.msra.mxu0 0.0
        %1809 = vmatpush.msra.mxu0 0.0
        %1810 = vmatpush.msra.mxu0 0.0
        %1811 = vmatpush.msra.mxu0 0.0
        %1812 = vmatpush.msra.mxu0 0.0
        %1813 = vmatpush.msra.mxu0 0.0
        %1814 = vmatpush.msra.mxu0 0.0
        %1815 = vmatpush.msra.mxu0 %v1766
        %1816 = vmatpush.msra.mxu0 %v1762
        %1817 = vmatmul.f32.gmra.mxu0 %v1773
        %v1818 = vpop.f32.mrf.mxu0
        %v1819 = vadd.f32 0.0, %v1818
        %1820 = vmatmul.f32.gmra.mxu0 %v1776
        %v1821 = vpop.f32.mrf.mxu0
        %v1822 = vadd.f32 0.0, %v1821
        %1823 = vdwg.mxu0
        %1824 = vmatpush.msra.mxu0 0.0
        %1825 = vmatpush.msra.mxu0 0.0
        %1826 = vmatpush.msra.mxu0 0.0
        %1827 = vmatpush.msra.mxu0 0.0
        %1828 = vmatpush.msra.mxu0 0.0
        %1829 = vmatpush.msra.mxu0 0.0
        %1830 = vmatpush.msra.mxu0 0.0
        %1831 = vmatpush.msra.mxu0 0.0
        %1832 = vmatpush.msra.mxu0 0.0
        %1833 = vmatpush.msra.mxu0 0.0
        %1834 = vmatpush.msra.mxu0 0.0
        %1835 = vmatpush.msra.mxu0 0.0
        %1836 = vmatpush.msra.mxu0 0.0
        %1837 = vmatpush.msra.mxu0 0.0
        %1838 = vmatpush.msra.mxu0 %v1767
        %1839 = vmatpush.msra.mxu0 %v1763
        %1840 = vmatmul.f32.gmra.mxu0 %v1773
        %v1841 = vpop.f32.mrf.mxu0
        %v1842 = vadd.f32 0.0, %v1841
        %1843 = vmatmul.f32.gmra.mxu0 %v1776
        %v1844 = vpop.f32.mrf.mxu0
        %v1845 = vadd.f32 0.0, %v1844
        %1846 = vdwg.mxu0
        %1847 = vmatpush.msra.mxu0 0.0
        %1848 = vmatpush.msra.mxu0 0.0
        %1849 = vmatpush.msra.mxu0 0.0
        %1850 = vmatpush.msra.mxu0 0.0
        %1851 = vmatpush.msra.mxu0 0.0
        %1852 = vmatpush.msra.mxu0 0.0
        %1853 = vmatpush.msra.mxu0 0.0
        %1854 = vmatpush.msra.mxu0 0.0
        %1855 = vmatpush.msra.mxu0 0.0
        %1856 = vmatpush.msra.mxu0 0.0
        %1857 = vmatpush.msra.mxu0 0.0
        %1858 = vmatpush.msra.mxu0 0.0
        %1859 = vmatpush.msra.mxu0 0.0
        %1860 = vmatpush.msra.mxu0 0.0
        %1861 = vmatpush.msra.mxu0 %v1768
        %1862 = vmatpush.msra.mxu0 %v1764
        %1863 = vmatmul.f32.gmra.mxu0 %v1773
        %v1864 = vpop.f32.mrf.mxu0
        %v1865 = vadd.f32 0.0, %v1864
        %1866 = vmatmul.f32.gmra.mxu0 %v1776
        %v1867 = vpop.f32.mrf.mxu0
        %v1868 = vadd.f32 0.0, %v1867
        %1869 = vdwg.mxu0
        %v1870 = vld [vmem:[%s6] sm:$0xff]
        %v1871 = vld [vmem:[%s6 + $0x8] sm:$0x3]
        %v1873 = vsel %vm1771, %v1870, 0
        %v1876 = vsel %vm1771, %v1871, 0
        %1878 = vmatpush.msra.mxu0 0.0
        %1879 = vmatpush.msra.mxu0 0.0
        %1880 = vmatpush.msra.mxu0 0.0
        %1881 = vmatpush.msra.mxu0 0.0
        %1882 = vmatpush.msra.mxu0 0.0
        %1883 = vmatpush.msra.mxu0 0.0
        %1884 = vmatpush.msra.mxu0 0.0
        %1885 = vmatpush.msra.mxu0 0.0
        %1886 = vmatpush.msra.mxu0 0.0
        %1887 = vmatpush.msra.mxu0 0.0
        %1888 = vmatpush.msra.mxu0 0.0
        %1889 = vmatpush.msra.mxu0 0.0
        %1890 = vmatpush.msra.mxu0 0.0
        %1891 = vmatpush.msra.mxu0 0.0
        %1892 = vmatpush.msra.mxu0 %v1765
        %1893 = vmatpush.msra.mxu0 %v1761
        %1894 = vmatmul.f32.gmra.mxu0 %v1873
        %v1895 = vpop.f32.mrf.mxu0
        %v1896 = vadd.f32 0.0, %v1895
        %1897 = vmatmul.f32.gmra.mxu0 %v1876
        %v1898 = vpop.f32.mrf.mxu0
        %v1899 = vadd.f32 0.0, %v1898
        %1900 = vdwg.mxu0
        %1901 = vmatpush.msra.mxu0 0.0
        %1902 = vmatpush.msra.mxu0 0.0
        %1903 = vmatpush.msra.mxu0 0.0
        %1904 = vmatpush.msra.mxu0 0.0
        %1905 = vmatpush.msra.mxu0 0.0
        %1906 = vmatpush.msra.mxu0 0.0
        %1907 = vmatpush.msra.mxu0 0.0
        %1908 = vmatpush.msra.mxu0 0.0
        %1909 = vmatpush.msra.mxu0 0.0
        %1910 = vmatpush.msra.mxu0 0.0
        %1911 = vmatpush.msra.mxu0 0.0
        %1912 = vmatpush.msra.mxu0 0.0
        %1913 = vmatpush.msra.mxu0 0.0
        %1914 = vmatpush.msra.mxu0 0.0
        %1915 = vmatpush.msra.mxu0 %v1766
        %1916 = vmatpush.msra.mxu0 %v1762
        %1917 = vmatmul.f32.gmra.mxu0 %v1873
        %v1918 = vpop.f32.mrf.mxu0
        %v1919 = vadd.f32 0.0, %v1918
        %1920 = vmatmul.f32.gmra.mxu0 %v1876
        %v1921 = vpop.f32.mrf.mxu0
        %v1922 = vadd.f32 0.0, %v1921
        %1923 = vdwg.mxu0
        %1924 = vmatpush.msra.mxu0 0.0
        %1925 = vmatpush.msra.mxu0 0.0
        %1926 = vmatpush.msra.mxu0 0.0
        %1927 = vmatpush.msra.mxu0 0.0
        %1928 = vmatpush.msra.mxu0 0.0
        %1929 = vmatpush.msra.mxu0 0.0
        %1930 = vmatpush.msra.mxu0 0.0
        %1931 = vmatpush.msra.mxu0 0.0
        %1932 = vmatpush.msra.mxu0 0.0
        %1933 = vmatpush.msra.mxu0 0.0
        %1934 = vmatpush.msra.mxu0 0.0
        %1935 = vmatpush.msra.mxu0 0.0
        %1936 = vmatpush.msra.mxu0 0.0
        %1937 = vmatpush.msra.mxu0 0.0
        %1938 = vmatpush.msra.mxu0 %v1767
        %1939 = vmatpush.msra.mxu0 %v1763
        %1940 = vmatmul.f32.gmra.mxu0 %v1873
        %v1941 = vpop.f32.mrf.mxu0
        %v1942 = vadd.f32 0.0, %v1941
        %1943 = vmatmul.f32.gmra.mxu0 %v1876
        %v1944 = vpop.f32.mrf.mxu0
        %v1945 = vadd.f32 0.0, %v1944
        %1946 = vdwg.mxu0
        %1947 = vmatpush.msra.mxu0 0.0
        %1948 = vmatpush.msra.mxu0 0.0
        %1949 = vmatpush.msra.mxu0 0.0
        %1950 = vmatpush.msra.mxu0 0.0
        %1951 = vmatpush.msra.mxu0 0.0
        %1952 = vmatpush.msra.mxu0 0.0
        %1953 = vmatpush.msra.mxu0 0.0
        %1954 = vmatpush.msra.mxu0 0.0
        %1955 = vmatpush.msra.mxu0 0.0
        %1956 = vmatpush.msra.mxu0 0.0
        %1957 = vmatpush.msra.mxu0 0.0
        %1958 = vmatpush.msra.mxu0 0.0
        %1959 = vmatpush.msra.mxu0 0.0
        %1960 = vmatpush.msra.mxu0 0.0
        %1961 = vmatpush.msra.mxu0 %v1768
        %1962 = vmatpush.msra.mxu0 %v1764
        %1963 = vmatmul.f32.gmra.mxu0 %v1873
        %v1964 = vpop.f32.mrf.mxu0
        %v1965 = vadd.f32 0.0, %v1964
        %1966 = vmatmul.f32.gmra.mxu0 %v1876
        %v1967 = vpop.f32.mrf.mxu0
        %v1968 = vadd.f32 0.0, %v1967
        %1969 = vdwg.mxu0
        %v1970 = vmax.f32 %v1796, %v1896
        %v1971 = vmax.f32 %v1819, %v1919
        %v1972 = vmax.f32 %v1842, %v1942
        %v1973 = vmax.f32 %v1865, %v1965
        %v1974 = vmax.f32 %v1799, %v1899
        %v1975 = vmax.f32 %v1822, %v1922
        %v1976 = vmax.f32 %v1845, %v1945
        %v1977 = vmax.f32 %v1868, %v1968
        %v1978 = vld [vmem:[%s7] sm:$0xff]
        %v1979 = vld [vmem:[%s7 + $0x8] sm:$0xff]
        %v1980 = vld [vmem:[%s7 + $0x10] sm:$0xff]
        %v1981 = vld [vmem:[%s7 + $0x18] sm:$0xff]
        %v1982 = vld [vmem:[%s7 + $0x20] sm:$0xff]
        %v1983 = vld [vmem:[%s7 + $0x28] sm:$0xff]
        %v1984 = vld [vmem:[%s7 + $0x30] sm:$0xff]
        %v1985 = vld [vmem:[%s7 + $0x38] sm:$0xff]
        %v1986 = vld [vmem:[%s7 + $0x40] sm:$0xff]
        %v1987 = vld [vmem:[%s7 + $0x48] sm:$0xff]
        %v1988 = vld [vmem:[%s7 + $0x50] sm:$0xff]
        %v1989 = vld [vmem:[%s7 + $0x58] sm:$0xff]
        %v1990 = vld [vmem:[%s7 + $0x60] sm:$0xff]
        %v1991 = vld [vmem:[%s7 + $0x68] sm:$0xff]
        %v1992 = vld [vmem:[%s7 + $0x70] sm:$0xff]
        %v1993 = vld [vmem:[%s7 + $0x78] sm:$0xff]
        %v1994 = vld [vmem:[%s7 + $0x80] sm:$0xff]
        %v1995 = vld [vmem:[%s7 + $0x88] sm:$0xff]
        %v1996 = vld [vmem:[%s7 + $0x90] sm:$0xff]
        %v1997 = vld [vmem:[%s7 + $0x98] sm:$0xff]
        %v1998 = vld [vmem:[%s7 + $0xa0] sm:$0xff]
        %v1999 = vld [vmem:[%s7 + $0xa8] sm:$0xff]
        %v2000 = vld [vmem:[%s7 + $0xb0] sm:$0xff]
        %v2001 = vld [vmem:[%s7 + $0xb8] sm:$0xff]
        %v2002 = vld [vmem:[%s7 + $0xc0] sm:$0xff]
        %v2003 = vld [vmem:[%s7 + $0xc8] sm:$0xff]
        %v2004 = vld [vmem:[%s7 + $0xd0] sm:$0xff]
        %v2005 = vld [vmem:[%s7 + $0xd8] sm:$0xff]
        %v2006 = vld [vmem:[%s7 + $0xe0] sm:$0xff]
        %v2007 = vld [vmem:[%s7 + $0xe8] sm:$0xff]
        %v2008 = vld [vmem:[%s7 + $0xf0] sm:$0xff]
        %v2009 = vld [vmem:[%s7 + $0xf8] sm:$0xff]
        %v2010 = vld [vmem:[%s7 + $0x100] sm:$0xff]
        %v2011 = vld [vmem:[%s7 + $0x108] sm:$0xff]
        %v2012 = vld [vmem:[%s7 + $0x110] sm:$0xff]
        %v2013 = vld [vmem:[%s7 + $0x118] sm:$0xff]
        %v2014 = vld [vmem:[%s7 + $0x120] sm:$0xff]
        %v2015 = vld [vmem:[%s7 + $0x128] sm:$0xff]
        %v2016 = vld [vmem:[%s7 + $0x130] sm:$0xff]
        %v2017 = vld [vmem:[%s7 + $0x138] sm:$0xff]
        %v2018 = vld [vmem:[%s7 + $0x140] sm:$0xff]
        %v2019 = vld [vmem:[%s7 + $0x148] sm:$0xff]
        %v2020 = vld [vmem:[%s7 + $0x150] sm:$0xff]
        %v2021 = vld [vmem:[%s7 + $0x158] sm:$0xff]
        %v2022 = vld [vmem:[%s7 + $0x160] sm:$0xff]
        %v2023 = vld [vmem:[%s7 + $0x168] sm:$0xff]
        %v2024 = vld [vmem:[%s7 + $0x170] sm:$0xff]
        %v2025 = vld [vmem:[%s7 + $0x178] sm:$0xff]
        %v2026 = vld [vmem:[%s7 + $0x180] sm:$0xff]
        %v2027 = vld [vmem:[%s7 + $0x188] sm:$0xff]
        %v2028 = vld [vmem:[%s7 + $0x190] sm:$0xff]
        %v2029 = vld [vmem:[%s7 + $0x198] sm:$0xff]
        %v2030 = vld [vmem:[%s7 + $0x1a0] sm:$0xff]
        %v2031 = vld [vmem:[%s7 + $0x1a8] sm:$0xff]
        %v2032 = vld [vmem:[%s7 + $0x1b0] sm:$0xff]
        %v2033 = vld [vmem:[%s7 + $0x1b8] sm:$0xff]
        %v2034 = vld [vmem:[%s7 + $0x1c0] sm:$0xff]
        %v2035 = vld [vmem:[%s7 + $0x1c8] sm:$0xff]
        %v2036 = vld [vmem:[%s7 + $0x1d0] sm:$0xff]
        %v2037 = vld [vmem:[%s7 + $0x1d8] sm:$0xff]
        %v2038 = vld [vmem:[%s7 + $0x1e0] sm:$0xff]
        %v2039 = vld [vmem:[%s7 + $0x1e8] sm:$0xff]
        %v2040 = vld [vmem:[%s7 + $0x1f0] sm:$0xff]
        %v2041 = vld [vmem:[%s7 + $0x1f8] sm:$0xff]
        %v2042 = vld [vmem:[%s7 + $0x200] sm:$0xff]
        %v2043 = vld [vmem:[%s7 + $0x208] sm:$0xff]
        %v2044 = vld [vmem:[%s7 + $0x210] sm:$0xff]
        %v2045 = vld [vmem:[%s7 + $0x218] sm:$0xff]
        %v2046 = vld [vmem:[%s7 + $0x220] sm:$0xff]
        %v2047 = vld [vmem:[%s7 + $0x228] sm:$0xff]
        %v2048 = vld [vmem:[%s7 + $0x230] sm:$0xff]
        %v2049 = vld [vmem:[%s7 + $0x238] sm:$0xff]
        %v2050 = vld [vmem:[%s7 + $0x240] sm:$0xff]
        %v2051 = vld [vmem:[%s7 + $0x248] sm:$0xff]
        %v2052 = vld [vmem:[%s7 + $0x250] sm:$0xff]
        %v2053 = vld [vmem:[%s7 + $0x258] sm:$0xff]
        %v2054 = vld [vmem:[%s7 + $0x260] sm:$0xff]
        %v2055 = vld [vmem:[%s7 + $0x268] sm:$0xff]
        %v2056 = vld [vmem:[%s7 + $0x270] sm:$0xff]
        %v2057 = vld [vmem:[%s7 + $0x278] sm:$0xff]
        %v2058 = vld [vmem:[%s7 + $0x280] sm:$0xff]
        %v2059 = vld [vmem:[%s7 + $0x288] sm:$0xff]
        %v2060 = vld [vmem:[%s7 + $0x290] sm:$0xff]
        %v2061 = vld [vmem:[%s7 + $0x298] sm:$0xff]
        %v2062 = vld [vmem:[%s7 + $0x2a0] sm:$0xff]
        %v2063 = vld [vmem:[%s7 + $0x2a8] sm:$0xff]
        %v2064 = vld [vmem:[%s7 + $0x2b0] sm:$0xff]
        %v2065 = vld [vmem:[%s7 + $0x2b8] sm:$0xff]
        %v2066 = vld [vmem:[%s7 + $0x2c0] sm:$0xff]
        %v2067 = vld [vmem:[%s7 + $0x2c8] sm:$0xff]
        %v2068 = vld [vmem:[%s7 + $0x2d0] sm:$0xff]
        %v2069 = vld [vmem:[%s7 + $0x2d8] sm:$0xff]
        %v2070 = vld [vmem:[%s7 + $0x2e0] sm:$0xff]
        %v2071 = vld [vmem:[%s7 + $0x2e8] sm:$0xff]
        %v2072 = vld [vmem:[%s7 + $0x2f0] sm:$0xff]
        %v2073 = vld [vmem:[%s7 + $0x2f8] sm:$0xff]
        %v2074 = vld [vmem:[%s7 + $0x300] sm:$0xff]
        %v2075 = vld [vmem:[%s7 + $0x308] sm:$0xff]
        %v2076 = vld [vmem:[%s7 + $0x310] sm:$0xff]
        %v2077 = vld [vmem:[%s7 + $0x318] sm:$0xff]
        %v2078 = vld [vmem:[%s7 + $0x320] sm:$0xff]
        %v2079 = vld [vmem:[%s7 + $0x328] sm:$0xff]
        %v2080 = vld [vmem:[%s7 + $0x330] sm:$0xff]
        %v2081 = vld [vmem:[%s7 + $0x338] sm:$0xff]
        %v2082 = vld [vmem:[%s7 + $0x340] sm:$0xff]
        %v2083 = vld [vmem:[%s7 + $0x348] sm:$0xff]
        %v2084 = vld [vmem:[%s7 + $0x350] sm:$0xff]
        %v2085 = vld [vmem:[%s7 + $0x358] sm:$0xff]
        %v2086 = vld [vmem:[%s7 + $0x360] sm:$0xff]
        %v2087 = vld [vmem:[%s7 + $0x368] sm:$0xff]
        %v2088 = vld [vmem:[%s7 + $0x370] sm:$0xff]
        %v2089 = vld [vmem:[%s7 + $0x378] sm:$0xff]
        %v2090 = vld [vmem:[%s7 + $0x380] sm:$0xff]
        %v2091 = vld [vmem:[%s7 + $0x388] sm:$0xff]
        %v2092 = vld [vmem:[%s7 + $0x390] sm:$0xff]
        %v2093 = vld [vmem:[%s7 + $0x398] sm:$0xff]
        %v2094 = vld [vmem:[%s7 + $0x3a0] sm:$0xff]
        %v2095 = vld [vmem:[%s7 + $0x3a8] sm:$0xff]
        %v2096 = vld [vmem:[%s7 + $0x3b0] sm:$0xff]
        %v2097 = vld [vmem:[%s7 + $0x3b8] sm:$0xff]
        %v2098 = vld [vmem:[%s7 + $0x3c0] sm:$0xff]
        %v2099 = vld [vmem:[%s7 + $0x3c8] sm:$0xff]
        %v2100 = vld [vmem:[%s7 + $0x3d0] sm:$0xff]
        %v2101 = vld [vmem:[%s7 + $0x3d8] sm:$0xff]
        %v2102 = vld [vmem:[%s7 + $0x3e0] sm:$0xff]
        %v2103 = vld [vmem:[%s7 + $0x3e8] sm:$0xff]
        %v2104 = vld [vmem:[%s7 + $0x3f0] sm:$0xff]
        %v2105 = vld [vmem:[%s7 + $0x3f8] sm:$0xff]
        %v2106 = vld [vmem:[%s7 + $0x400] sm:$0xff]
        %v2107 = vld [vmem:[%s7 + $0x408] sm:$0xff]
        %v2108 = vld [vmem:[%s7 + $0x410] sm:$0xff]
        %v2109 = vld [vmem:[%s7 + $0x418] sm:$0xff]
        %v2110 = vld [vmem:[%s7 + $0x420] sm:$0xff]
        %v2111 = vld [vmem:[%s7 + $0x428] sm:$0xff]
        %v2112 = vld [vmem:[%s7 + $0x430] sm:$0xff]
        %v2113 = vld [vmem:[%s7 + $0x438] sm:$0xff]
        %v2114 = vld [vmem:[%s7 + $0x440] sm:$0xff]
        %v2115 = vld [vmem:[%s7 + $0x448] sm:$0xff]
        %v2116 = vld [vmem:[%s7 + $0x450] sm:$0xff]
        %v2117 = vld [vmem:[%s7 + $0x458] sm:$0xff]
        %v2118 = vld [vmem:[%s7 + $0x460] sm:$0xff]
        %v2119 = vld [vmem:[%s7 + $0x468] sm:$0xff]
        %v2120 = vld [vmem:[%s7 + $0x470] sm:$0xff]
        %v2121 = vld [vmem:[%s7 + $0x478] sm:$0xff]
        %v2122 = vld [vmem:[%s7 + $0x480] sm:$0xff]
        %v2123 = vld [vmem:[%s7 + $0x488] sm:$0xff]
        %v2124 = vld [vmem:[%s7 + $0x490] sm:$0xff]
        %v2125 = vld [vmem:[%s7 + $0x498] sm:$0xff]
        %v2126 = vld [vmem:[%s7 + $0x4a0] sm:$0xff]
        %v2127 = vld [vmem:[%s7 + $0x4a8] sm:$0xff]
        %v2128 = vld [vmem:[%s7 + $0x4b0] sm:$0xff]
        %v2129 = vld [vmem:[%s7 + $0x4b8] sm:$0xff]
        %v2130 = vld [vmem:[%s7 + $0x4c0] sm:$0xff]
        %v2131 = vld [vmem:[%s7 + $0x4c8] sm:$0xff]
        %v2132 = vld [vmem:[%s7 + $0x4d0] sm:$0xff]
        %v2133 = vld [vmem:[%s7 + $0x4d8] sm:$0xff]
        %v2134 = vld [vmem:[%s7 + $0x4e0] sm:$0xff]
        %v2135 = vld [vmem:[%s7 + $0x4e8] sm:$0xff]
        %v2136 = vld [vmem:[%s7 + $0x4f0] sm:$0xff]
        %v2137 = vld [vmem:[%s7 + $0x4f8] sm:$0xff]
        %v2138 = vld [vmem:[%s7 + $0x500] sm:$0xff]
        %v2139 = vld [vmem:[%s7 + $0x508] sm:$0xff]
        %v2140 = vld [vmem:[%s7 + $0x510] sm:$0xff]
        %v2141 = vld [vmem:[%s7 + $0x518] sm:$0xff]
        %v2142 = vld [vmem:[%s7 + $0x520] sm:$0xff]
        %v2143 = vld [vmem:[%s7 + $0x528] sm:$0xff]
        %v2144 = vld [vmem:[%s7 + $0x530] sm:$0xff]
        %v2145 = vld [vmem:[%s7 + $0x538] sm:$0xff]
        %v2146 = vld [vmem:[%s7 + $0x540] sm:$0xff]
        %v2147 = vld [vmem:[%s7 + $0x548] sm:$0xff]
        %v2148 = vld [vmem:[%s7 + $0x550] sm:$0xff]
        %v2149 = vld [vmem:[%s7 + $0x558] sm:$0xff]
        %v2150 = vld [vmem:[%s7 + $0x560] sm:$0xff]
        %v2151 = vld [vmem:[%s7 + $0x568] sm:$0xff]
        %v2152 = vld [vmem:[%s7 + $0x570] sm:$0xff]
        %v2153 = vld [vmem:[%s7 + $0x578] sm:$0xff]
        %v2154 = vld [vmem:[%s7 + $0x580] sm:$0xff]
        %v2155 = vld [vmem:[%s7 + $0x588] sm:$0xff]
        %v2156 = vld [vmem:[%s7 + $0x590] sm:$0xff]
        %v2157 = vld [vmem:[%s7 + $0x598] sm:$0xff]
        %v2158 = vld [vmem:[%s7 + $0x5a0] sm:$0xff]
        %v2159 = vld [vmem:[%s7 + $0x5a8] sm:$0xff]
        %v2160 = vld [vmem:[%s7 + $0x5b0] sm:$0xff]
        %v2161 = vld [vmem:[%s7 + $0x5b8] sm:$0xff]
        %v2162 = vld [vmem:[%s7 + $0x5c0] sm:$0xff]
        %v2163 = vld [vmem:[%s7 + $0x5c8] sm:$0xff]
        %v2164 = vld [vmem:[%s7 + $0x5d0] sm:$0xff]
        %v2165 = vld [vmem:[%s7 + $0x5d8] sm:$0xff]
        %v2166 = vld [vmem:[%s7 + $0x5e0] sm:$0xff]
        %v2167 = vld [vmem:[%s7 + $0x5e8] sm:$0xff]
        %v2168 = vld [vmem:[%s7 + $0x5f0] sm:$0xff]
        %v2169 = vld [vmem:[%s7 + $0x5f8] sm:$0xff]
        %2170 = vmatpush.msra.mxu0 %v2023
        %2171 = vmatpush.msra.mxu0 %v2020
        %2172 = vmatpush.msra.mxu0 %v2017
        %2173 = vmatpush.msra.mxu0 %v2014
        %2174 = vmatpush.msra.mxu0 %v2011
        %2175 = vmatpush.msra.mxu0 %v2008
        %2176 = vmatpush.msra.mxu0 %v2005
        %2177 = vmatpush.msra.mxu0 %v2002
        %2178 = vmatpush.msra.mxu0 %v1999
        %2179 = vmatpush.msra.mxu0 %v1996
        %2180 = vmatpush.msra.mxu0 %v1993
        %2181 = vmatpush.msra.mxu0 %v1990
        %2182 = vmatpush.msra.mxu0 %v1987
        %2183 = vmatpush.msra.mxu0 %v1984
        %2184 = vmatpush.msra.mxu0 %v1981
        %2185 = vmatpush.msra.mxu0 %v1978
        %2186 = vmatmul.f32.gmra.mxu0 %v1970
        %v2187 = vpop.f32.mrf.mxu0
        %v2188 = vadd.f32 0.0, %v2187
        %2189 = vmatmul.f32.gmra.mxu0 %v1974
        %v2190 = vpop.f32.mrf.mxu0
        %v2191 = vadd.f32 0.0, %v2190
        %2192 = vdwg.mxu0
        %2193 = vmatpush.msra.mxu0 %v2071
        %2194 = vmatpush.msra.mxu0 %v2068
        %2195 = vmatpush.msra.mxu0 %v2065
        %2196 = vmatpush.msra.mxu0 %v2062
        %2197 = vmatpush.msra.mxu0 %v2059
        %2198 = vmatpush.msra.mxu0 %v2056
        %2199 = vmatpush.msra.mxu0 %v2053
        %2200 = vmatpush.msra.mxu0 %v2050
        %2201 = vmatpush.msra.mxu0 %v2047
        %2202 = vmatpush.msra.mxu0 %v2044
        %2203 = vmatpush.msra.mxu0 %v2041
        %2204 = vmatpush.msra.mxu0 %v2038
        %2205 = vmatpush.msra.mxu0 %v2035
        %2206 = vmatpush.msra.mxu0 %v2032
        %2207 = vmatpush.msra.mxu0 %v2029
        %2208 = vmatpush.msra.mxu0 %v2026
        %2209 = vmatmul.f32.gmra.mxu0 %v1971
        %v2210 = vpop.f32.mrf.mxu0
        %v2211 = vadd.f32 %v2188, %v2210
        %2212 = vmatmul.f32.gmra.mxu0 %v1975
        %v2213 = vpop.f32.mrf.mxu0
        %v2214 = vadd.f32 %v2191, %v2213
        %2215 = vdwg.mxu0
        %2216 = vmatpush.msra.mxu0 %v2119
        %2217 = vmatpush.msra.mxu0 %v2116
        %2218 = vmatpush.msra.mxu0 %v2113
        %2219 = vmatpush.msra.mxu0 %v2110
        %2220 = vmatpush.msra.mxu0 %v2107
        %2221 = vmatpush.msra.mxu0 %v2104
        %2222 = vmatpush.msra.mxu0 %v2101
        %2223 = vmatpush.msra.mxu0 %v2098
        %2224 = vmatpush.msra.mxu0 %v2095
        %2225 = vmatpush.msra.mxu0 %v2092
        %2226 = vmatpush.msra.mxu0 %v2089
        %2227 = vmatpush.msra.mxu0 %v2086
        %2228 = vmatpush.msra.mxu0 %v2083
        %2229 = vmatpush.msra.mxu0 %v2080
        %2230 = vmatpush.msra.mxu0 %v2077
        %2231 = vmatpush.msra.mxu0 %v2074
        %2232 = vmatmul.f32.gmra.mxu0 %v1972
        %v2233 = vpop.f32.mrf.mxu0
        %v2234 = vadd.f32 %v2211, %v2233
        %2235 = vmatmul.f32.gmra.mxu0 %v1976
        %v2236 = vpop.f32.mrf.mxu0
        %v2237 = vadd.f32 %v2214, %v2236
        %2238 = vdwg.mxu0
        %2239 = vmatpush.msra.mxu0 %v2167
        %2240 = vmatpush.msra.mxu0 %v2164
        %2241 = vmatpush.msra.mxu0 %v2161
        %2242 = vmatpush.msra.mxu0 %v2158
        %2243 = vmatpush.msra.mxu0 %v2155
        %2244 = vmatpush.msra.mxu0 %v2152
        %2245 = vmatpush.msra.mxu0 %v2149
        %2246 = vmatpush.msra.mxu0 %v2146
        %2247 = vmatpush.msra.mxu0 %v2143
        %2248 = vmatpush.msra.mxu0 %v2140
        %2249 = vmatpush.msra.mxu0 %v2137
        %2250 = vmatpush.msra.mxu0 %v2134
        %2251 = vmatpush.msra.mxu0 %v2131
        %2252 = vmatpush.msra.mxu0 %v2128
        %2253 = vmatpush.msra.mxu0 %v2125
        %2254 = vmatpush.msra.mxu0 %v2122
        %2255 = vmatmul.f32.gmra.mxu0 %v1973
        %v2256 = vpop.f32.mrf.mxu0
        %v2257 = vadd.f32 %v2234, %v2256
        %2258 = vmatmul.f32.gmra.mxu0 %v1977
        %v2259 = vpop.f32.mrf.mxu0
        %v2260 = vadd.f32 %v2237, %v2259
        %2261 = vdwg.mxu0
        %2262 = vmatpush.msra.mxu0 %v2024
        %2263 = vmatpush.msra.mxu0 %v2021
        %2264 = vmatpush.msra.mxu0 %v2018
        %2265 = vmatpush.msra.mxu0 %v2015
        %2266 = vmatpush.msra.mxu0 %v2012
        %2267 = vmatpush.msra.mxu0 %v2009
        %2268 = vmatpush.msra.mxu0 %v2006
        %2269 = vmatpush.msra.mxu0 %v2003
        %2270 = vmatpush.msra.mxu0 %v2000
        %2271 = vmatpush.msra.mxu0 %v1997
        %2272 = vmatpush.msra.mxu0 %v1994
        %2273 = vmatpush.msra.mxu0 %v1991
        %2274 = vmatpush.msra.mxu0 %v1988
        %2275 = vmatpush.msra.mxu0 %v1985
        %2276 = vmatpush.msra.mxu0 %v1982
        %2277 = vmatpush.msra.mxu0 %v1979
        %2278 = vmatmul.f32.gmra.mxu0 %v1970
        %v2279 = vpop.f32.mrf.mxu0
        %v2280 = vadd.f32 0.0, %v2279
        %2281 = vmatmul.f32.gmra.mxu0 %v1974
        %v2282 = vpop.f32.mrf.mxu0
        %v2283 = vadd.f32 0.0, %v2282
        %2284 = vdwg.mxu0
        %2285 = vmatpush.msra.mxu0 %v2072
        %2286 = vmatpush.msra.mxu0 %v2069
        %2287 = vmatpush.msra.mxu0 %v2066
        %2288 = vmatpush.msra.mxu0 %v2063
        %2289 = vmatpush.msra.mxu0 %v2060
        %2290 = vmatpush.msra.mxu0 %v2057
        %2291 = vmatpush.msra.mxu0 %v2054
        %2292 = vmatpush.msra.mxu0 %v2051
        %2293 = vmatpush.msra.mxu0 %v2048
        %2294 = vmatpush.msra.mxu0 %v2045
        %2295 = vmatpush.msra.mxu0 %v2042
        %2296 = vmatpush.msra.mxu0 %v2039
        %2297 = vmatpush.msra.mxu0 %v2036
        %2298 = vmatpush.msra.mxu0 %v2033
        %2299 = vmatpush.msra.mxu0 %v2030
        %2300 = vmatpush.msra.mxu0 %v2027
        %2301 = vmatmul.f32.gmra.mxu0 %v1971
        %v2302 = vpop.f32.mrf.mxu0
        %v2303 = vadd.f32 %v2280, %v2302
        %2304 = vmatmul.f32.gmra.mxu0 %v1975
        %v2305 = vpop.f32.mrf.mxu0
        %v2306 = vadd.f32 %v2283, %v2305
        %2307 = vdwg.mxu0
        %2308 = vmatpush.msra.mxu0 %v2120
        %2309 = vmatpush.msra.mxu0 %v2117
        %2310 = vmatpush.msra.mxu0 %v2114
        %2311 = vmatpush.msra.mxu0 %v2111
        %2312 = vmatpush.msra.mxu0 %v2108
        %2313 = vmatpush.msra.mxu0 %v2105
        %2314 = vmatpush.msra.mxu0 %v2102
        %2315 = vmatpush.msra.mxu0 %v2099
        %2316 = vmatpush.msra.mxu0 %v2096
        %2317 = vmatpush.msra.mxu0 %v2093
        %2318 = vmatpush.msra.mxu0 %v2090
        %2319 = vmatpush.msra.mxu0 %v2087
        %2320 = vmatpush.msra.mxu0 %v2084
        %2321 = vmatpush.msra.mxu0 %v2081
        %2322 = vmatpush.msra.mxu0 %v2078
        %2323 = vmatpush.msra.mxu0 %v2075
        %2324 = vmatmul.f32.gmra.mxu0 %v1972
        %v2325 = vpop.f32.mrf.mxu0
        %v2326 = vadd.f32 %v2303, %v2325
        %2327 = vmatmul.f32.gmra.mxu0 %v1976
        %v2328 = vpop.f32.mrf.mxu0
        %v2329 = vadd.f32 %v2306, %v2328
        %2330 = vdwg.mxu0
        %2331 = vmatpush.msra.mxu0 %v2168
        %2332 = vmatpush.msra.mxu0 %v2165
        %2333 = vmatpush.msra.mxu0 %v2162
        %2334 = vmatpush.msra.mxu0 %v2159
        %2335 = vmatpush.msra.mxu0 %v2156
        %2336 = vmatpush.msra.mxu0 %v2153
        %2337 = vmatpush.msra.mxu0 %v2150
        %2338 = vmatpush.msra.mxu0 %v2147
        %2339 = vmatpush.msra.mxu0 %v2144
        %2340 = vmatpush.msra.mxu0 %v2141
        %2341 = vmatpush.msra.mxu0 %v2138
        %2342 = vmatpush.msra.mxu0 %v2135
        %2343 = vmatpush.msra.mxu0 %v2132
        %2344 = vmatpush.msra.mxu0 %v2129
        %2345 = vmatpush.msra.mxu0 %v2126
        %2346 = vmatpush.msra.mxu0 %v2123
        %2347 = vmatmul.f32.gmra.mxu0 %v1973
        %v2348 = vpop.f32.mrf.mxu0
        %v2349 = vadd.f32 %v2326, %v2348
        %2350 = vmatmul.f32.gmra.mxu0 %v1977
        %v2351 = vpop.f32.mrf.mxu0
        %v2352 = vadd.f32 %v2329, %v2351
        %2353 = vdwg.mxu0
        %2354 = vmatpush.msra.mxu0 %v2025
        %2355 = vmatpush.msra.mxu0 %v2022
        %2356 = vmatpush.msra.mxu0 %v2019
        %2357 = vmatpush.msra.mxu0 %v2016
        %2358 = vmatpush.msra.mxu0 %v2013
        %2359 = vmatpush.msra.mxu0 %v2010
        %2360 = vmatpush.msra.mxu0 %v2007
        %2361 = vmatpush.msra.mxu0 %v2004
        %2362 = vmatpush.msra.mxu0 %v2001
        %2363 = vmatpush.msra.mxu0 %v1998
        %2364 = vmatpush.msra.mxu0 %v1995
        %2365 = vmatpush.msra.mxu0 %v1992
        %2366 = vmatpush.msra.mxu0 %v1989
        %2367 = vmatpush.msra.mxu0 %v1986
        %2368 = vmatpush.msra.mxu0 %v1983
        %2369 = vmatpush.msra.mxu0 %v1980
        %2370 = vmatmul.f32.gmra.mxu0 %v1970
        %v2371 = vpop.f32.mrf.mxu0
        %v2372 = vadd.f32 0.0, %v2371
        %2373 = vmatmul.f32.gmra.mxu0 %v1974
        %v2374 = vpop.f32.mrf.mxu0
        %v2375 = vadd.f32 0.0, %v2374
        %2376 = vdwg.mxu0
        %2377 = vmatpush.msra.mxu0 %v2073
        %2378 = vmatpush.msra.mxu0 %v2070
        %2379 = vmatpush.msra.mxu0 %v2067
        %2380 = vmatpush.msra.mxu0 %v2064
        %2381 = vmatpush.msra.mxu0 %v2061
        %2382 = vmatpush.msra.mxu0 %v2058
        %2383 = vmatpush.msra.mxu0 %v2055
        %2384 = vmatpush.msra.mxu0 %v2052
        %2385 = vmatpush.msra.mxu0 %v2049
        %2386 = vmatpush.msra.mxu0 %v2046
        %2387 = vmatpush.msra.mxu0 %v2043
        %2388 = vmatpush.msra.mxu0 %v2040
        %2389 = vmatpush.msra.mxu0 %v2037
        %2390 = vmatpush.msra.mxu0 %v2034
        %2391 = vmatpush.msra.mxu0 %v2031
        %2392 = vmatpush.msra.mxu0 %v2028
        %2393 = vmatmul.f32.gmra.mxu0 %v1971
        %v2394 = vpop.f32.mrf.mxu0
        %v2395 = vadd.f32 %v2372, %v2394
        %2396 = vmatmul.f32.gmra.mxu0 %v1975
        %v2397 = vpop.f32.mrf.mxu0
        %v2398 = vadd.f32 %v2375, %v2397
        %2399 = vdwg.mxu0
        %2400 = vmatpush.msra.mxu0 %v2121
        %2401 = vmatpush.msra.mxu0 %v2118
        %2402 = vmatpush.msra.mxu0 %v2115
        %2403 = vmatpush.msra.mxu0 %v2112
        %2404 = vmatpush.msra.mxu0 %v2109
        %2405 = vmatpush.msra.mxu0 %v2106
        %2406 = vmatpush.msra.mxu0 %v2103
        %2407 = vmatpush.msra.mxu0 %v2100
        %2408 = vmatpush.msra.mxu0 %v2097
        %2409 = vmatpush.msra.mxu0 %v2094
        %2410 = vmatpush.msra.mxu0 %v2091
        %2411 = vmatpush.msra.mxu0 %v2088
        %2412 = vmatpush.msra.mxu0 %v2085
        %2413 = vmatpush.msra.mxu0 %v2082
        %2414 = vmatpush.msra.mxu0 %v2079
        %2415 = vmatpush.msra.mxu0 %v2076
        %2416 = vmatmul.f32.gmra.mxu0 %v1972
        %v2417 = vpop.f32.mrf.mxu0
        %v2418 = vadd.f32 %v2395, %v2417
        %2419 = vmatmul.f32.gmra.mxu0 %v1976
        %v2420 = vpop.f32.mrf.mxu0
        %v2421 = vadd.f32 %v2398, %v2420
        %2422 = vdwg.mxu0
        %2423 = vmatpush.msra.mxu0 %v2169
        %2424 = vmatpush.msra.mxu0 %v2166
        %2425 = vmatpush.msra.mxu0 %v2163
        %2426 = vmatpush.msra.mxu0 %v2160
        %2427 = vmatpush.msra.mxu0 %v2157
        %2428 = vmatpush.msra.mxu0 %v2154
        %2429 = vmatpush.msra.mxu0 %v2151
        %2430 = vmatpush.msra.mxu0 %v2148
        %2431 = vmatpush.msra.mxu0 %v2145
        %2432 = vmatpush.msra.mxu0 %v2142
        %2433 = vmatpush.msra.mxu0 %v2139
        %2434 = vmatpush.msra.mxu0 %v2136
        %2435 = vmatpush.msra.mxu0 %v2133
        %2436 = vmatpush.msra.mxu0 %v2130
        %2437 = vmatpush.msra.mxu0 %v2127
        %2438 = vmatpush.msra.mxu0 %v2124
        %2439 = vmatmul.f32.gmra.mxu0 %v1973
        %v2440 = vpop.f32.mrf.mxu0
        %v2441 = vadd.f32 %v2418, %v2440
        %2442 = vmatmul.f32.gmra.mxu0 %v1977
        %v2443 = vpop.f32.mrf.mxu0
        %v2444 = vadd.f32 %v2421, %v2443
        %2445 = vdwg.mxu0
        %v2446 = vld [vmem:[%s8] sm:$0xff]
        %v2447 = vld [vmem:[%s8 + $0x8] sm:$0xff]
        %v2448 = vld [vmem:[%s8 + $0x10] sm:$0xff]
        %v2449 = vld [vmem:[%s8 + $0x18] sm:$0xff]
        %v2450 = vld [vmem:[%s8 + $0x20] sm:$0xff]
        %v2451 = vld [vmem:[%s8 + $0x28] sm:$0xff]
        %v2452 = vld [vmem:[%s8 + $0x30] sm:$0xff]
        %v2453 = vld [vmem:[%s8 + $0x38] sm:$0xff]
        %v2454 = vld [vmem:[%s8 + $0x40] sm:$0xff]
        %v2455 = vld [vmem:[%s8 + $0x48] sm:$0xff]
        %v2456 = vld [vmem:[%s8 + $0x50] sm:$0xff]
        %v2457 = vld [vmem:[%s8 + $0x58] sm:$0xff]
        %v2458 = vld [vmem:[%s8 + $0x60] sm:$0xff]
        %v2459 = vld [vmem:[%s8 + $0x68] sm:$0xff]
        %v2460 = vld [vmem:[%s8 + $0x70] sm:$0xff]
        %v2461 = vld [vmem:[%s8 + $0x78] sm:$0xff]
        %v2462 = vld [vmem:[%s8 + $0x80] sm:$0xff]
        %v2463 = vld [vmem:[%s8 + $0x88] sm:$0xff]
        %v2464 = vld [vmem:[%s8 + $0x90] sm:$0xff]
        %v2465 = vld [vmem:[%s8 + $0x98] sm:$0xff]
        %v2466 = vld [vmem:[%s8 + $0xa0] sm:$0xff]
        %v2467 = vld [vmem:[%s8 + $0xa8] sm:$0xff]
        %v2468 = vld [vmem:[%s8 + $0xb0] sm:$0xff]
        %v2469 = vld [vmem:[%s8 + $0xb8] sm:$0xff]
        %v2470 = vld [vmem:[%s8 + $0xc0] sm:$0xff]
        %v2471 = vld [vmem:[%s8 + $0xc8] sm:$0xff]
        %v2472 = vld [vmem:[%s8 + $0xd0] sm:$0xff]
        %v2473 = vld [vmem:[%s8 + $0xd8] sm:$0xff]
        %v2474 = vld [vmem:[%s8 + $0xe0] sm:$0xff]
        %v2475 = vld [vmem:[%s8 + $0xe8] sm:$0xff]
        %v2476 = vld [vmem:[%s8 + $0xf0] sm:$0xff]
        %v2477 = vld [vmem:[%s8 + $0xf8] sm:$0xff]
        %v2478 = vld [vmem:[%s8 + $0x100] sm:$0xff]
        %v2479 = vld [vmem:[%s8 + $0x108] sm:$0xff]
        %v2480 = vld [vmem:[%s8 + $0x110] sm:$0xff]
        %v2481 = vld [vmem:[%s8 + $0x118] sm:$0xff]
        %v2482 = vld [vmem:[%s8 + $0x120] sm:$0xff]
        %v2483 = vld [vmem:[%s8 + $0x128] sm:$0xff]
        %v2484 = vld [vmem:[%s8 + $0x130] sm:$0xff]
        %v2485 = vld [vmem:[%s8 + $0x138] sm:$0xff]
        %v2486 = vld [vmem:[%s8 + $0x140] sm:$0xff]
        %v2487 = vld [vmem:[%s8 + $0x148] sm:$0xff]
        %v2488 = vld [vmem:[%s8 + $0x150] sm:$0xff]
        %v2489 = vld [vmem:[%s8 + $0x158] sm:$0xff]
        %v2490 = vld [vmem:[%s8 + $0x160] sm:$0xff]
        %v2491 = vld [vmem:[%s8 + $0x168] sm:$0xff]
        %v2492 = vld [vmem:[%s8 + $0x170] sm:$0xff]
        %v2493 = vld [vmem:[%s8 + $0x178] sm:$0xff]
        %v2494 = vld [vmem:[%s8 + $0x180] sm:$0xff]
        %v2495 = vld [vmem:[%s8 + $0x188] sm:$0xff]
        %v2496 = vld [vmem:[%s8 + $0x190] sm:$0xff]
        %v2497 = vld [vmem:[%s8 + $0x198] sm:$0xff]
        %v2498 = vld [vmem:[%s8 + $0x1a0] sm:$0xff]
        %v2499 = vld [vmem:[%s8 + $0x1a8] sm:$0xff]
        %v2500 = vld [vmem:[%s8 + $0x1b0] sm:$0xff]
        %v2501 = vld [vmem:[%s8 + $0x1b8] sm:$0xff]
        %v2502 = vld [vmem:[%s8 + $0x1c0] sm:$0xff]
        %v2503 = vld [vmem:[%s8 + $0x1c8] sm:$0xff]
        %v2504 = vld [vmem:[%s8 + $0x1d0] sm:$0xff]
        %v2505 = vld [vmem:[%s8 + $0x1d8] sm:$0xff]
        %v2506 = vld [vmem:[%s8 + $0x1e0] sm:$0xff]
        %v2507 = vld [vmem:[%s8 + $0x1e8] sm:$0xff]
        %v2508 = vld [vmem:[%s8 + $0x1f0] sm:$0xff]
        %v2509 = vld [vmem:[%s8 + $0x1f8] sm:$0xff]
        %v2510 = vld [vmem:[%s8 + $0x200] sm:$0xff]
        %v2511 = vld [vmem:[%s8 + $0x208] sm:$0xff]
        %v2512 = vld [vmem:[%s8 + $0x210] sm:$0xff]
        %v2513 = vld [vmem:[%s8 + $0x218] sm:$0xff]
        %v2514 = vld [vmem:[%s8 + $0x220] sm:$0xff]
        %v2515 = vld [vmem:[%s8 + $0x228] sm:$0xff]
        %v2516 = vld [vmem:[%s8 + $0x230] sm:$0xff]
        %v2517 = vld [vmem:[%s8 + $0x238] sm:$0xff]
        %v2518 = vld [vmem:[%s8 + $0x240] sm:$0xff]
        %v2519 = vld [vmem:[%s8 + $0x248] sm:$0xff]
        %v2520 = vld [vmem:[%s8 + $0x250] sm:$0xff]
        %v2521 = vld [vmem:[%s8 + $0x258] sm:$0xff]
        %v2522 = vld [vmem:[%s8 + $0x260] sm:$0xff]
        %v2523 = vld [vmem:[%s8 + $0x268] sm:$0xff]
        %v2524 = vld [vmem:[%s8 + $0x270] sm:$0xff]
        %v2525 = vld [vmem:[%s8 + $0x278] sm:$0xff]
        %v2526 = vld [vmem:[%s8 + $0x280] sm:$0xff]
        %v2527 = vld [vmem:[%s8 + $0x288] sm:$0xff]
        %v2528 = vld [vmem:[%s8 + $0x290] sm:$0xff]
        %v2529 = vld [vmem:[%s8 + $0x298] sm:$0xff]
        %v2530 = vld [vmem:[%s8 + $0x2a0] sm:$0xff]
        %v2531 = vld [vmem:[%s8 + $0x2a8] sm:$0xff]
        %v2532 = vld [vmem:[%s8 + $0x2b0] sm:$0xff]
        %v2533 = vld [vmem:[%s8 + $0x2b8] sm:$0xff]
        %v2534 = vld [vmem:[%s8 + $0x2c0] sm:$0xff]
        %v2535 = vld [vmem:[%s8 + $0x2c8] sm:$0xff]
        %v2536 = vld [vmem:[%s8 + $0x2d0] sm:$0xff]
        %v2537 = vld [vmem:[%s8 + $0x2d8] sm:$0xff]
        %v2538 = vld [vmem:[%s8 + $0x2e0] sm:$0xff]
        %v2539 = vld [vmem:[%s8 + $0x2e8] sm:$0xff]
        %v2540 = vld [vmem:[%s8 + $0x2f0] sm:$0xff]
        %v2541 = vld [vmem:[%s8 + $0x2f8] sm:$0xff]
        %v2542 = vld [vmem:[%s8 + $0x300] sm:$0xff]
        %v2543 = vld [vmem:[%s8 + $0x308] sm:$0xff]
        %v2544 = vld [vmem:[%s8 + $0x310] sm:$0xff]
        %v2545 = vld [vmem:[%s8 + $0x318] sm:$0xff]
        %v2546 = vld [vmem:[%s8 + $0x320] sm:$0xff]
        %v2547 = vld [vmem:[%s8 + $0x328] sm:$0xff]
        %v2548 = vld [vmem:[%s8 + $0x330] sm:$0xff]
        %v2549 = vld [vmem:[%s8 + $0x338] sm:$0xff]
        %v2550 = vld [vmem:[%s8 + $0x340] sm:$0xff]
        %v2551 = vld [vmem:[%s8 + $0x348] sm:$0xff]
        %v2552 = vld [vmem:[%s8 + $0x350] sm:$0xff]
        %v2553 = vld [vmem:[%s8 + $0x358] sm:$0xff]
        %v2554 = vld [vmem:[%s8 + $0x360] sm:$0xff]
        %v2555 = vld [vmem:[%s8 + $0x368] sm:$0xff]
        %v2556 = vld [vmem:[%s8 + $0x370] sm:$0xff]
        %v2557 = vld [vmem:[%s8 + $0x378] sm:$0xff]
        %v2558 = vld [vmem:[%s8 + $0x380] sm:$0xff]
        %v2559 = vld [vmem:[%s8 + $0x388] sm:$0xff]
        %v2560 = vld [vmem:[%s8 + $0x390] sm:$0xff]
        %v2561 = vld [vmem:[%s8 + $0x398] sm:$0xff]
        %v2562 = vld [vmem:[%s8 + $0x3a0] sm:$0xff]
        %v2563 = vld [vmem:[%s8 + $0x3a8] sm:$0xff]
        %v2564 = vld [vmem:[%s8 + $0x3b0] sm:$0xff]
        %v2565 = vld [vmem:[%s8 + $0x3b8] sm:$0xff]
        %v2566 = vld [vmem:[%s8 + $0x3c0] sm:$0xff]
        %v2567 = vld [vmem:[%s8 + $0x3c8] sm:$0xff]
        %v2568 = vld [vmem:[%s8 + $0x3d0] sm:$0xff]
        %v2569 = vld [vmem:[%s8 + $0x3d8] sm:$0xff]
        %v2570 = vld [vmem:[%s8 + $0x3e0] sm:$0xff]
        %v2571 = vld [vmem:[%s8 + $0x3e8] sm:$0xff]
        %v2572 = vld [vmem:[%s8 + $0x3f0] sm:$0xff]
        %v2573 = vld [vmem:[%s8 + $0x3f8] sm:$0xff]
        %v2574 = vld [vmem:[%s8 + $0x400] sm:$0xff]
        %v2575 = vld [vmem:[%s8 + $0x408] sm:$0xff]
        %v2576 = vld [vmem:[%s8 + $0x410] sm:$0xff]
        %v2577 = vld [vmem:[%s8 + $0x418] sm:$0xff]
        %v2578 = vld [vmem:[%s8 + $0x420] sm:$0xff]
        %v2579 = vld [vmem:[%s8 + $0x428] sm:$0xff]
        %v2580 = vld [vmem:[%s8 + $0x430] sm:$0xff]
        %v2581 = vld [vmem:[%s8 + $0x438] sm:$0xff]
        %v2582 = vld [vmem:[%s8 + $0x440] sm:$0xff]
        %v2583 = vld [vmem:[%s8 + $0x448] sm:$0xff]
        %v2584 = vld [vmem:[%s8 + $0x450] sm:$0xff]
        %v2585 = vld [vmem:[%s8 + $0x458] sm:$0xff]
        %v2586 = vld [vmem:[%s8 + $0x460] sm:$0xff]
        %v2587 = vld [vmem:[%s8 + $0x468] sm:$0xff]
        %v2588 = vld [vmem:[%s8 + $0x470] sm:$0xff]
        %v2589 = vld [vmem:[%s8 + $0x478] sm:$0xff]
        %v2590 = vld [vmem:[%s8 + $0x480] sm:$0xff]
        %v2591 = vld [vmem:[%s8 + $0x488] sm:$0xff]
        %v2592 = vld [vmem:[%s8 + $0x490] sm:$0xff]
        %v2593 = vld [vmem:[%s8 + $0x498] sm:$0xff]
        %v2594 = vld [vmem:[%s8 + $0x4a0] sm:$0xff]
        %v2595 = vld [vmem:[%s8 + $0x4a8] sm:$0xff]
        %v2596 = vld [vmem:[%s8 + $0x4b0] sm:$0xff]
        %v2597 = vld [vmem:[%s8 + $0x4b8] sm:$0xff]
        %v2598 = vld [vmem:[%s8 + $0x4c0] sm:$0xff]
        %v2599 = vld [vmem:[%s8 + $0x4c8] sm:$0xff]
        %v2600 = vld [vmem:[%s8 + $0x4d0] sm:$0xff]
        %v2601 = vld [vmem:[%s8 + $0x4d8] sm:$0xff]
        %v2602 = vld [vmem:[%s8 + $0x4e0] sm:$0xff]
        %v2603 = vld [vmem:[%s8 + $0x4e8] sm:$0xff]
        %v2604 = vld [vmem:[%s8 + $0x4f0] sm:$0xff]
        %v2605 = vld [vmem:[%s8 + $0x4f8] sm:$0xff]
        %v2606 = vld [vmem:[%s8 + $0x500] sm:$0xff]
        %v2607 = vld [vmem:[%s8 + $0x508] sm:$0xff]
        %v2608 = vld [vmem:[%s8 + $0x510] sm:$0xff]
        %v2609 = vld [vmem:[%s8 + $0x518] sm:$0xff]
        %v2610 = vld [vmem:[%s8 + $0x520] sm:$0xff]
        %v2611 = vld [vmem:[%s8 + $0x528] sm:$0xff]
        %v2612 = vld [vmem:[%s8 + $0x530] sm:$0xff]
        %v2613 = vld [vmem:[%s8 + $0x538] sm:$0xff]
        %v2614 = vld [vmem:[%s8 + $0x540] sm:$0xff]
        %v2615 = vld [vmem:[%s8 + $0x548] sm:$0xff]
        %v2616 = vld [vmem:[%s8 + $0x550] sm:$0xff]
        %v2617 = vld [vmem:[%s8 + $0x558] sm:$0xff]
        %v2618 = vld [vmem:[%s8 + $0x560] sm:$0xff]
        %v2619 = vld [vmem:[%s8 + $0x568] sm:$0xff]
        %v2620 = vld [vmem:[%s8 + $0x570] sm:$0xff]
        %v2621 = vld [vmem:[%s8 + $0x578] sm:$0xff]
        %v2622 = vld [vmem:[%s8 + $0x580] sm:$0xff]
        %v2623 = vld [vmem:[%s8 + $0x588] sm:$0xff]
        %v2624 = vld [vmem:[%s8 + $0x590] sm:$0xff]
        %v2625 = vld [vmem:[%s8 + $0x598] sm:$0xff]
        %v2626 = vld [vmem:[%s8 + $0x5a0] sm:$0xff]
        %v2627 = vld [vmem:[%s8 + $0x5a8] sm:$0xff]
        %v2628 = vld [vmem:[%s8 + $0x5b0] sm:$0xff]
        %v2629 = vld [vmem:[%s8 + $0x5b8] sm:$0xff]
        %v2630 = vld [vmem:[%s8 + $0x5c0] sm:$0xff]
        %v2631 = vld [vmem:[%s8 + $0x5c8] sm:$0xff]
        %v2632 = vld [vmem:[%s8 + $0x5d0] sm:$0xff]
        %v2633 = vld [vmem:[%s8 + $0x5d8] sm:$0xff]
        %v2634 = vld [vmem:[%s8 + $0x5e0] sm:$0xff]
        %v2635 = vld [vmem:[%s8 + $0x5e8] sm:$0xff]
        %v2636 = vld [vmem:[%s8 + $0x5f0] sm:$0xff]
        %v2637 = vld [vmem:[%s8 + $0x5f8] sm:$0xff]
        %2638 = vmatpush.msra.mxu0 %v2491
        %2639 = vmatpush.msra.mxu0 %v2488
        %2640 = vmatpush.msra.mxu0 %v2485
        %2641 = vmatpush.msra.mxu0 %v2482
        %2642 = vmatpush.msra.mxu0 %v2479
        %2643 = vmatpush.msra.mxu0 %v2476
        %2644 = vmatpush.msra.mxu0 %v2473
        %2645 = vmatpush.msra.mxu0 %v2470
        %2646 = vmatpush.msra.mxu0 %v2467
        %2647 = vmatpush.msra.mxu0 %v2464
        %2648 = vmatpush.msra.mxu0 %v2461
        %2649 = vmatpush.msra.mxu0 %v2458
        %2650 = vmatpush.msra.mxu0 %v2455
        %2651 = vmatpush.msra.mxu0 %v2452
        %2652 = vmatpush.msra.mxu0 %v2449
        %2653 = vmatpush.msra.mxu0 %v2446
        %2654 = vmatmul.f32.gmra.mxu0 %v1970
        %v2655 = vpop.f32.mrf.mxu0
        %v2656 = vadd.f32 0.0, %v2655
        %2657 = vmatmul.f32.gmra.mxu0 %v1974
        %v2658 = vpop.f32.mrf.mxu0
        %v2659 = vadd.f32 0.0, %v2658
        %2660 = vdwg.mxu0
        %2661 = vmatpush.msra.mxu0 %v2539
        %2662 = vmatpush.msra.mxu0 %v2536
        %2663 = vmatpush.msra.mxu0 %v2533
        %2664 = vmatpush.msra.mxu0 %v2530
        %2665 = vmatpush.msra.mxu0 %v2527
        %2666 = vmatpush.msra.mxu0 %v2524
        %2667 = vmatpush.msra.mxu0 %v2521
        %2668 = vmatpush.msra.mxu0 %v2518
        %2669 = vmatpush.msra.mxu0 %v2515
        %2670 = vmatpush.msra.mxu0 %v2512
        %2671 = vmatpush.msra.mxu0 %v2509
        %2672 = vmatpush.msra.mxu0 %v2506
        %2673 = vmatpush.msra.mxu0 %v2503
        %2674 = vmatpush.msra.mxu0 %v2500
        %2675 = vmatpush.msra.mxu0 %v2497
        %2676 = vmatpush.msra.mxu0 %v2494
        %2677 = vmatmul.f32.gmra.mxu0 %v1971
        %v2678 = vpop.f32.mrf.mxu0
        %v2679 = vadd.f32 %v2656, %v2678
        %2680 = vmatmul.f32.gmra.mxu0 %v1975
        %v2681 = vpop.f32.mrf.mxu0
        %v2682 = vadd.f32 %v2659, %v2681
        %2683 = vdwg.mxu0
        %2684 = vmatpush.msra.mxu0 %v2587
        %2685 = vmatpush.msra.mxu0 %v2584
        %2686 = vmatpush.msra.mxu0 %v2581
        %2687 = vmatpush.msra.mxu0 %v2578
        %2688 = vmatpush.msra.mxu0 %v2575
        %2689 = vmatpush.msra.mxu0 %v2572
        %2690 = vmatpush.msra.mxu0 %v2569
        %2691 = vmatpush.msra.mxu0 %v2566
        %2692 = vmatpush.msra.mxu0 %v2563
        %2693 = vmatpush.msra.mxu0 %v2560
        %2694 = vmatpush.msra.mxu0 %v2557
        %2695 = vmatpush.msra.mxu0 %v2554
        %2696 = vmatpush.msra.mxu0 %v2551
        %2697 = vmatpush.msra.mxu0 %v2548
        %2698 = vmatpush.msra.mxu0 %v2545
        %2699 = vmatpush.msra.mxu0 %v2542
        %2700 = vmatmul.f32.gmra.mxu0 %v1972
        %v2701 = vpop.f32.mrf.mxu0
        %v2702 = vadd.f32 %v2679, %v2701
        %2703 = vmatmul.f32.gmra.mxu0 %v1976
        %v2704 = vpop.f32.mrf.mxu0
        %v2705 = vadd.f32 %v2682, %v2704
        %2706 = vdwg.mxu0
        %2707 = vmatpush.msra.mxu0 %v2635
        %2708 = vmatpush.msra.mxu0 %v2632
        %2709 = vmatpush.msra.mxu0 %v2629
        %2710 = vmatpush.msra.mxu0 %v2626
        %2711 = vmatpush.msra.mxu0 %v2623
        %2712 = vmatpush.msra.mxu0 %v2620
        %2713 = vmatpush.msra.mxu0 %v2617
        %2714 = vmatpush.msra.mxu0 %v2614
        %2715 = vmatpush.msra.mxu0 %v2611
        %2716 = vmatpush.msra.mxu0 %v2608
        %2717 = vmatpush.msra.mxu0 %v2605
        %2718 = vmatpush.msra.mxu0 %v2602
        %2719 = vmatpush.msra.mxu0 %v2599
        %2720 = vmatpush.msra.mxu0 %v2596
        %2721 = vmatpush.msra.mxu0 %v2593
        %2722 = vmatpush.msra.mxu0 %v2590
        %2723 = vmatmul.f32.gmra.mxu0 %v1973
        %v2724 = vpop.f32.mrf.mxu0
        %v2725 = vadd.f32 %v2702, %v2724
        %2726 = vmatmul.f32.gmra.mxu0 %v1977
        %v2727 = vpop.f32.mrf.mxu0
        %v2728 = vadd.f32 %v2705, %v2727
        %2729 = vdwg.mxu0
        %2730 = vmatpush.msra.mxu0 %v2492
        %2731 = vmatpush.msra.mxu0 %v2489
        %2732 = vmatpush.msra.mxu0 %v2486
        %2733 = vmatpush.msra.mxu0 %v2483
        %2734 = vmatpush.msra.mxu0 %v2480
        %2735 = vmatpush.msra.mxu0 %v2477
        %2736 = vmatpush.msra.mxu0 %v2474
        %2737 = vmatpush.msra.mxu0 %v2471
        %2738 = vmatpush.msra.mxu0 %v2468
        %2739 = vmatpush.msra.mxu0 %v2465
        %2740 = vmatpush.msra.mxu0 %v2462
        %2741 = vmatpush.msra.mxu0 %v2459
        %2742 = vmatpush.msra.mxu0 %v2456
        %2743 = vmatpush.msra.mxu0 %v2453
        %2744 = vmatpush.msra.mxu0 %v2450
        %2745 = vmatpush.msra.mxu0 %v2447
        %2746 = vmatmul.f32.gmra.mxu0 %v1970
        %v2747 = vpop.f32.mrf.mxu0
        %v2748 = vadd.f32 0.0, %v2747
        %2749 = vmatmul.f32.gmra.mxu0 %v1974
        %v2750 = vpop.f32.mrf.mxu0
        %v2751 = vadd.f32 0.0, %v2750
        %2752 = vdwg.mxu0
        %2753 = vmatpush.msra.mxu0 %v2540
        %2754 = vmatpush.msra.mxu0 %v2537
        %2755 = vmatpush.msra.mxu0 %v2534
        %2756 = vmatpush.msra.mxu0 %v2531
        %2757 = vmatpush.msra.mxu0 %v2528
        %2758 = vmatpush.msra.mxu0 %v2525
        %2759 = vmatpush.msra.mxu0 %v2522
        %2760 = vmatpush.msra.mxu0 %v2519
        %2761 = vmatpush.msra.mxu0 %v2516
        %2762 = vmatpush.msra.mxu0 %v2513
        %2763 = vmatpush.msra.mxu0 %v2510
        %2764 = vmatpush.msra.mxu0 %v2507
        %2765 = vmatpush.msra.mxu0 %v2504
        %2766 = vmatpush.msra.mxu0 %v2501
        %2767 = vmatpush.msra.mxu0 %v2498
        %2768 = vmatpush.msra.mxu0 %v2495
        %2769 = vmatmul.f32.gmra.mxu0 %v1971
        %v2770 = vpop.f32.mrf.mxu0
        %v2771 = vadd.f32 %v2748, %v2770
        %2772 = vmatmul.f32.gmra.mxu0 %v1975
        %v2773 = vpop.f32.mrf.mxu0
        %v2774 = vadd.f32 %v2751, %v2773
        %2775 = vdwg.mxu0
        %2776 = vmatpush.msra.mxu0 %v2588
        %2777 = vmatpush.msra.mxu0 %v2585
        %2778 = vmatpush.msra.mxu0 %v2582
        %2779 = vmatpush.msra.mxu0 %v2579
        %2780 = vmatpush.msra.mxu0 %v2576
        %2781 = vmatpush.msra.mxu0 %v2573
        %2782 = vmatpush.msra.mxu0 %v2570
        %2783 = vmatpush.msra.mxu0 %v2567
        %2784 = vmatpush.msra.mxu0 %v2564
        %2785 = vmatpush.msra.mxu0 %v2561
        %2786 = vmatpush.msra.mxu0 %v2558
        %2787 = vmatpush.msra.mxu0 %v2555
        %2788 = vmatpush.msra.mxu0 %v2552
        %2789 = vmatpush.msra.mxu0 %v2549
        %2790 = vmatpush.msra.mxu0 %v2546
        %2791 = vmatpush.msra.mxu0 %v2543
        %2792 = vmatmul.f32.gmra.mxu0 %v1972
        %v2793 = vpop.f32.mrf.mxu0
        %v2794 = vadd.f32 %v2771, %v2793
        %2795 = vmatmul.f32.gmra.mxu0 %v1976
        %v2796 = vpop.f32.mrf.mxu0
        %v2797 = vadd.f32 %v2774, %v2796
        %2798 = vdwg.mxu0
        %2799 = vmatpush.msra.mxu0 %v2636
        %2800 = vmatpush.msra.mxu0 %v2633
        %2801 = vmatpush.msra.mxu0 %v2630
        %2802 = vmatpush.msra.mxu0 %v2627
        %2803 = vmatpush.msra.mxu0 %v2624
        %2804 = vmatpush.msra.mxu0 %v2621
        %2805 = vmatpush.msra.mxu0 %v2618
        %2806 = vmatpush.msra.mxu0 %v2615
        %2807 = vmatpush.msra.mxu0 %v2612
        %2808 = vmatpush.msra.mxu0 %v2609
        %2809 = vmatpush.msra.mxu0 %v2606
        %2810 = vmatpush.msra.mxu0 %v2603
        %2811 = vmatpush.msra.mxu0 %v2600
        %2812 = vmatpush.msra.mxu0 %v2597
        %2813 = vmatpush.msra.mxu0 %v2594
        %2814 = vmatpush.msra.mxu0 %v2591
        %2815 = vmatmul.f32.gmra.mxu0 %v1973
        %v2816 = vpop.f32.mrf.mxu0
        %v2817 = vadd.f32 %v2794, %v2816
        %2818 = vmatmul.f32.gmra.mxu0 %v1977
        %v2819 = vpop.f32.mrf.mxu0
        %v2820 = vadd.f32 %v2797, %v2819
        %2821 = vdwg.mxu0
        %2822 = vmatpush.msra.mxu0 %v2493
        %2823 = vmatpush.msra.mxu0 %v2490
        %2824 = vmatpush.msra.mxu0 %v2487
        %2825 = vmatpush.msra.mxu0 %v2484
        %2826 = vmatpush.msra.mxu0 %v2481
        %2827 = vmatpush.msra.mxu0 %v2478
        %2828 = vmatpush.msra.mxu0 %v2475
        %2829 = vmatpush.msra.mxu0 %v2472
        %2830 = vmatpush.msra.mxu0 %v2469
        %2831 = vmatpush.msra.mxu0 %v2466
        %2832 = vmatpush.msra.mxu0 %v2463
        %2833 = vmatpush.msra.mxu0 %v2460
        %2834 = vmatpush.msra.mxu0 %v2457
        %2835 = vmatpush.msra.mxu0 %v2454
        %2836 = vmatpush.msra.mxu0 %v2451
        %2837 = vmatpush.msra.mxu0 %v2448
        %2838 = vmatmul.f32.gmra.mxu0 %v1970
        %v2839 = vpop.f32.mrf.mxu0
        %v2840 = vadd.f32 0.0, %v2839
        %2841 = vmatmul.f32.gmra.mxu0 %v1974
        %v2842 = vpop.f32.mrf.mxu0
        %v2843 = vadd.f32 0.0, %v2842
        %2844 = vdwg.mxu0
        %2845 = vmatpush.msra.mxu0 %v2541
        %2846 = vmatpush.msra.mxu0 %v2538
        %2847 = vmatpush.msra.mxu0 %v2535
        %2848 = vmatpush.msra.mxu0 %v2532
        %2849 = vmatpush.msra.mxu0 %v2529
        %2850 = vmatpush.msra.mxu0 %v2526
        %2851 = vmatpush.msra.mxu0 %v2523
        %2852 = vmatpush.msra.mxu0 %v2520
        %2853 = vmatpush.msra.mxu0 %v2517
        %2854 = vmatpush.msra.mxu0 %v2514
        %2855 = vmatpush.msra.mxu0 %v2511
        %2856 = vmatpush.msra.mxu0 %v2508
        %2857 = vmatpush.msra.mxu0 %v2505
        %2858 = vmatpush.msra.mxu0 %v2502
        %2859 = vmatpush.msra.mxu0 %v2499
        %2860 = vmatpush.msra.mxu0 %v2496
        %2861 = vmatmul.f32.gmra.mxu0 %v1971
        %v2862 = vpop.f32.mrf.mxu0
        %v2863 = vadd.f32 %v2840, %v2862
        %2864 = vmatmul.f32.gmra.mxu0 %v1975
        %v2865 = vpop.f32.mrf.mxu0
        %v2866 = vadd.f32 %v2843, %v2865
        %2867 = vdwg.mxu0
        %2868 = vmatpush.msra.mxu0 %v2589
        %2869 = vmatpush.msra.mxu0 %v2586
        %2870 = vmatpush.msra.mxu0 %v2583
        %2871 = vmatpush.msra.mxu0 %v2580
        %2872 = vmatpush.msra.mxu0 %v2577
        %2873 = vmatpush.msra.mxu0 %v2574
        %2874 = vmatpush.msra.mxu0 %v2571
        %2875 = vmatpush.msra.mxu0 %v2568
        %2876 = vmatpush.msra.mxu0 %v2565
        %2877 = vmatpush.msra.mxu0 %v2562
        %2878 = vmatpush.msra.mxu0 %v2559
        %2879 = vmatpush.msra.mxu0 %v2556
        %2880 = vmatpush.msra.mxu0 %v2553
        %2881 = vmatpush.msra.mxu0 %v2550
        %2882 = vmatpush.msra.mxu0 %v2547
        %2883 = vmatpush.msra.mxu0 %v2544
        %2884 = vmatmul.f32.gmra.mxu0 %v1972
        %v2885 = vpop.f32.mrf.mxu0
        %v2886 = vadd.f32 %v2863, %v2885
        %2887 = vmatmul.f32.gmra.mxu0 %v1976
        %v2888 = vpop.f32.mrf.mxu0
        %v2889 = vadd.f32 %v2866, %v2888
        %2890 = vdwg.mxu0
        %2891 = vmatpush.msra.mxu0 %v2637
        %2892 = vmatpush.msra.mxu0 %v2634
        %2893 = vmatpush.msra.mxu0 %v2631
        %2894 = vmatpush.msra.mxu0 %v2628
        %2895 = vmatpush.msra.mxu0 %v2625
        %2896 = vmatpush.msra.mxu0 %v2622
        %2897 = vmatpush.msra.mxu0 %v2619
        %2898 = vmatpush.msra.mxu0 %v2616
        %2899 = vmatpush.msra.mxu0 %v2613
        %2900 = vmatpush.msra.mxu0 %v2610
        %2901 = vmatpush.msra.mxu0 %v2607
        %2902 = vmatpush.msra.mxu0 %v2604
        %2903 = vmatpush.msra.mxu0 %v2601
        %2904 = vmatpush.msra.mxu0 %v2598
        %2905 = vmatpush.msra.mxu0 %v2595
        %2906 = vmatpush.msra.mxu0 %v2592
        %2907 = vmatmul.f32.gmra.mxu0 %v1973
        %v2908 = vpop.f32.mrf.mxu0
        %v2909 = vadd.f32 %v2886, %v2908
        %2910 = vmatmul.f32.gmra.mxu0 %v1977
        %v2911 = vpop.f32.mrf.mxu0
        %v2912 = vadd.f32 %v2889, %v2911
        %2913 = vdwg.mxu0
        %v2914 = vmax.f32 %v2257, %v2725
        %v2915 = vmax.f32 %v2349, %v2817
        %v2916 = vmax.f32 %v2441, %v2909
        %v2917 = vmax.f32 %v2260, %v2728
        %v2918 = vmax.f32 %v2352, %v2820
        %v2919 = vmax.f32 %v2444, %v2912
        %2920 = vst [vmem:[%s349] sm:$0xff] %v2914
        %2921 = vst [vmem:[%s349 + $0x8] sm:$0xff] %v2915
        %vm2922 = vcmask 523264
        %2923 = vst.msk [vmem:[%s349 + $0x10] sm:$0xff] %vm2922, %v2916
        %2924 = vst [vmem:[%s349 + $0x18] sm:$0x3] %v2917
        %2925 = vst [vmem:[%s349 + $0x20] sm:$0x3] %v2918
        %vm2926 = vcmask 517120
        %2927 = vst.msk [vmem:[%s349 + $0x28] sm:$0x3] %vm2926, %v2919
        %p2928 = scmp.lt.s32.totalorder %s21, 1
        %s2929 = scalar_select %p2928, %s21, 1
        %s2930 = smul.addr %s2929, 6
        %s2931 = smul.addr %s2930, 8
        %s2932 = scalar_lea.vmem %s9, %s2931
        // Predicated region
        $region61: #{cnn_forward.5} parent=55 // pred_check
          %p2933 = pneg %p233
        $region62: #{cnn_forward.5} parent=55 // pred_check_branch
          %2935 = sbr.rel (%p2933) target = $region64
        $region63: #{cnn_forward.5} parent=55 // pred_region
          _
        $region64: #{cnn_forward.5} parent=55 // pred_fallthru
          _
      $region56: #{cnn_forward.5} parent=5 // pred_fallthru
        _
      %p2936 = scmp.le.s32.totalorder 2, %s16
      // Predicated region
      $region65: #{cnn_forward.5} parent=5 // pred_check
        %p2937 = pneg %p2936
      $region66: #{cnn_forward.5} parent=5 // pred_check_branch
        %2939 = sbr.rel (%p2937) target = $region68
      $region67: #{cnn_forward.5} parent=5 // pred_region
        %s2940 = ssub.s32 %s16, 2
        // Predicated region
        $region69: #{cnn_forward.5} parent=67 // pred_check
          %p2941 = pneg %p239
        $region70: #{cnn_forward.5} parent=67 // pred_check_branch
          %2943 = sbr.rel (%p2941) target = $region72
        $region71: #{cnn_forward.5} parent=67 // pred_region
          %p2944 = scmp.lt.s32.totalorder %s22, 1
          %s2945 = scalar_select %p2944, %s22, 1
          %s2946 = smul.addr %s2945, 6
          %s2947 = smul.addr %s2946, 8
          %s2948 = scalar_lea.vmem %s9, %s2947
        $region72: #{cnn_forward.5} parent=67 // pred_fallthru
          _
      $region68: #{cnn_forward.5} parent=5 // pred_fallthru
        _
    $region6: #{cnn_forward.5} parent=1 // loop_footer
      %s20 = sadd.s32 1, %s16
    $region7: #{cnn_forward.5} parent=1 // loop_footer_branch
      %15 = sbr.rel target = $region3
    $region8: #{cnn_forward.5} parent=1 // loop_exit
      _
    %2949 = vsyncpa [#allocation3], 1
    %s2950 = scalar_lea.sflag [#allocation3], 1
    %2951 = vsyncpa %s2950, 1

// kernel: cnn_forward.6
$region0: #{cnn_forward.6}
  #allocation0 [shape = 'u32[]', space=smem, size = 0x4, offset = 0x4, fixed_abs, tag = 'smem constant byte address 0x4 - core index']
  #allocation1 [shape = 'u32[72,128]{1,0:T(1,128)}', space=vmem, size = 0x9000, scoped, tag = 'internal scratch']
  %s0 = inlined_call_operand.vmem [shape: f32[2,10,320], index: 0, kind: input, shape index: {}]
  %s1 = inlined_call_operand.vmem [shape: f32[3,320,512], index: 1, kind: input, shape index: {}]
  %s2 = inlined_call_operand.vmem [shape: f32[1,512], index: 2, kind: input, shape index: {}]
  %s3 = inlined_call_operand.vmem [shape: f32[1,512], index: 3, kind: input, shape index: {}]
  %s4 = inlined_call_operand.vmem [shape: f32[1,512], index: 4, kind: input, shape index: {}]
  %s5 = inlined_call_operand.vmem [shape: f32[4,8], index: 5, kind: input, shape index: {}]
  %s6 = inlined_call_operand.vmem [shape: f32[4,8], index: 6, kind: input, shape index: {}]
  %s7 = inlined_call_operand.hbm [shape: f32[512,256], index: 7, kind: input, shape index: {}]
  %s8 = inlined_call_operand.hbm [shape: f32[512,256], index: 8, kind: input, shape index: {}]
  %s9 = inlined_call_operand.vmem [shape: f32[2,4,256], index: 9, kind: output, shape index: {}]
  %s10 = sld [smem:[#allocation0]]
  $region77: #{cnn_forward.6} parent=0
    _
  %s12 = ssub.s32 1, %s10
  %s13 = scalar_select 0, %s12, %s10
  $region1: #{cnn_forward.6} parent=0
    #allocation2 [shape = 'u8[524288]{0}', space=vmem, size = 0x80000, scoped, tag = 'input window, operand 7, single buffered']
    #allocation3 [shape = 's32[2]{0}', space=sflag, size = 0x8, scoped, tag = 'scoped memory for cnn_forward.6']
    #allocation4 [shape = 'u8[524288]{0}', space=vmem, size = 0x80000, scoped, tag = 'input window, operand 8, single buffered']
    #allocation5 [shape = 's32[1]{0}', space=sflag, size = 0x4, scoped, tag = 'scoped memory for cnn_forward.6']
    %14 = vsyncpa [#allocation3], 0
    %15 = vsyncpa [#allocation5], 0
    loop: start=0, step=1, limit=4
    $region2: #{cnn_forward.6} parent=1 // loop_pre_header
      _
    $region3: #{cnn_forward.6} parent=1 // loop_header
      %s17 = sphi 0, %s21
      %p18 = scmp.ge.s32.totalorder %s17, 4
      %s27 = sphi 0, %s29
      %s30 = sphi 0, %s27
      %s31 = sphi 0, %s30
      %s47 = sphi 0, %s31
      %s51 = sphi 0, %s51
      %s53 = sphi 0, %s51
      %s54 = sphi 0, %s53
      %s68 = sphi 0, %s54
      %s72 = sphi 0, %s72
      %s74 = sphi 0, %s72
      %s75 = sphi 0, %s74
      %s89 = sphi 0, %s75
      %s93 = sphi 0, %s93
      %s95 = sphi 0, %s93
      %s96 = sphi 0, %s95
      %s110 = sphi 0, %s96
      %s114 = sphi 0, %s114
      %s116 = sphi 0, %s114
      %s117 = sphi 0, %s116
      %s131 = sphi 0, %s117
      %s135 = sphi 0, %s135
      %s137 = sphi 0, %s135
      %s138 = sphi 0, %s137
      %s152 = sphi 0, %s138
      %s156 = sphi 0, %s156
      %s158 = sphi 0, %s156
      %s159 = sphi 0, %s158
      %s173 = sphi 0, %s159
      %s177 = sphi 0, %s177
      %s179 = sphi 0, %s177
      %s180 = sphi 0, %s179
      %s194 = sphi 0, %s180
      %s198 = sphi 0, %s198
      %s200 = sphi 0, %s198
      %s201 = sphi 0, %s200
      %s215 = sphi 0, %s201
      %s221 = sphi 0, %s223
      %s224 = sphi 0, %s221
      %s225 = sphi 0, %s224
      %s241 = sphi 0, %s225
    $region4: #{cnn_forward.6} parent=1 // loop_header_branch
      %20 = sbr.rel (%p18) target = $region8
    $region5: #{cnn_forward.6} parent=1 // loop_body
      %s22 = ssub.s32 %s17, 1
      %s23 = ssub.s32 %s17, 2
      %s24 = sadd.s32 %s17, 1
      %s25 = ssub.s32 %s17, %s24
      %p26 = scmp.eq.s32.totalorder %s25, 0
      %s28 = sadd.s32 %s27, 1
      %s29 = scalar_select %p26, %s27, %s28
      %p32 = pneg %p26
      %p33 = scmp.eq.s32.totalorder %s17, 1
      %p34 = por %p32, %p33
      %p35 = scmp.ne.s32.totalorder %s27, %s30
      %p36 = scmp.eq.s32.totalorder %s17, 0
      %p37 = por %p35, %p36
      %p38 = scmp.ne.s32.totalorder %s27, %s30
      %p39 = scmp.eq.s32.totalorder %s22, 1
      %p40 = por %p38, %p39
      %p41 = scmp.ne.s32.totalorder %s30, %s31
      %p42 = scmp.eq.s32.totalorder %s22, 0
      %p43 = por %p41, %p42
      %p44 = scmp.ne.s32.totalorder %s30, %s31
      %p45 = scmp.eq.s32.totalorder %s23, 1
      %p46 = por %p44, %p45
      %p48 = scmp.ne.s32.totalorder %s31, %s47
      %p49 = scmp.eq.s32.totalorder %s23, 0
      %p50 = por %p48, %p49
      %s52 = sadd.s32 %s51, 1
      %p55 = scmp.eq.s32.totalorder %s17, 1
      %p56 = scmp.ne.s32.totalorder %s51, %s53
      %p57 = scmp.eq.s32.totalorder %s17, 0
      %p58 = por %p56, %p57
      %p59 = scmp.ne.s32.totalorder %s51, %s53
      %p60 = scmp.eq.s32.totalorder %s22, 1
      %p61 = por %p59, %p60
      %p62 = scmp.ne.s32.totalorder %s53, %s54
      %p63 = scmp.eq.s32.totalorder %s22, 0
      %p64 = por %p62, %p63
      %p65 = scmp.ne.s32.totalorder %s53, %s54
      %p66 = scmp.eq.s32.totalorder %s23, 1
      %p67 = por %p65, %p66
      %p69 = scmp.ne.s32.totalorder %s54, %s68
      %p70 = scmp.eq.s32.totalorder %s23, 0
      %p71 = por %p69, %p70
      %s73 = sadd.s32 %s72, 1
      %p76 = scmp.eq.s32.totalorder %s17, 1
      %p77 = scmp.ne.s32.totalorder %s72, %s74
      %p78 = scmp.eq.s32.totalorder %s17, 0
      %p79 = por %p77, %p78
      %p80 = scmp.ne.s32.totalorder %s72, %s74
      %p81 = scmp.eq.s32.totalorder %s22, 1
      %p82 = por %p80, %p81
      %p83 = scmp.ne.s32.totalorder %s74, %s75
      %p84 = scmp.eq.s32.totalorder %s22, 0
      %p85 = por %p83, %p84
      %p86 = scmp.ne.s32.totalorder %s74, %s75
      %p87 = scmp.eq.s32.totalorder %s23, 1
      %p88 = por %p86, %p87
      %p90 = scmp.ne.s32.totalorder %s75, %s89
      %p91 = scmp.eq.s32.totalorder %s23, 0
      %p92 = por %p90, %p91
      %s94 = sadd.s32 %s93, 1
      %p97 = scmp.eq.s32.totalorder %s17, 1
      %p98 = scmp.ne.s32.totalorder %s93, %s95
      %p99 = scmp.eq.s32.totalorder %s17, 0
      %p100 = por %p98, %p99
      %p101 = scmp.ne.s32.totalorder %s93, %s95
      %p102 = scmp.eq.s32.totalorder %s22, 1
      %p103 = por %p101, %p102
      %p104 = scmp.ne.s32.totalorder %s95, %s96
      %p105 = scmp.eq.s32.totalorder %s22, 0
      %p106 = por %p104, %p105
      %p107 = scmp.ne.s32.totalorder %s95, %s96
      %p108 = scmp.eq.s32.totalorder %s23, 1
      %p109 = por %p107, %p108
      %p111 = scmp.ne.s32.totalorder %s96, %s110
      %p112 = scmp.eq.s32.totalorder %s23, 0
      %p113 = por %p111, %p112
      %s115 = sadd.s32 %s114, 1
      %p118 = scmp.eq.s32.totalorder %s17, 1
      %p119 = scmp.ne.s32.totalorder %s114, %s116
      %p120 = scmp.eq.s32.totalorder %s17, 0
      %p121 = por %p119, %p120
      %p122 = scmp.ne.s32.totalorder %s114, %s116
      %p123 = scmp.eq.s32.totalorder %s22, 1
      %p124 = por %p122, %p123
      %p125 = scmp.ne.s32.totalorder %s116, %s117
      %p126 = scmp.eq.s32.totalorder %s22, 0
      %p127 = por %p125, %p126
      %p128 = scmp.ne.s32.totalorder %s116, %s117
      %p129 = scmp.eq.s32.totalorder %s23, 1
      %p130 = por %p128, %p129
      %p132 = scmp.ne.s32.totalorder %s117, %s131
      %p133 = scmp.eq.s32.totalorder %s23, 0
      %p134 = por %p132, %p133
      %s136 = sadd.s32 %s135, 1
      %p139 = scmp.eq.s32.totalorder %s17, 1
      %p140 = scmp.ne.s32.totalorder %s135, %s137
      %p141 = scmp.eq.s32.totalorder %s17, 0
      %p142 = por %p140, %p141
      %p143 = scmp.ne.s32.totalorder %s135, %s137
      %p144 = scmp.eq.s32.totalorder %s22, 1
      %p145 = por %p143, %p144
      %p146 = scmp.ne.s32.totalorder %s137, %s138
      %p147 = scmp.eq.s32.totalorder %s22, 0
      %p148 = por %p146, %p147
      %p149 = scmp.ne.s32.totalorder %s137, %s138
      %p150 = scmp.eq.s32.totalorder %s23, 1
      %p151 = por %p149, %p150
      %p153 = scmp.ne.s32.totalorder %s138, %s152
      %p154 = scmp.eq.s32.totalorder %s23, 0
      %p155 = por %p153, %p154
      %s157 = sadd.s32 %s156, 1
      %p160 = scmp.eq.s32.totalorder %s17, 1
      %p161 = scmp.ne.s32.totalorder %s156, %s158
      %p162 = scmp.eq.s32.totalorder %s17, 0
      %p163 = por %p161, %p162
      %p164 = scmp.ne.s32.totalorder %s156, %s158
      %p165 = scmp.eq.s32.totalorder %s22, 1
      %p166 = por %p164, %p165
      %p167 = scmp.ne.s32.totalorder %s158, %s159
      %p168 = scmp.eq.s32.totalorder %s22, 0
      %p169 = por %p167, %p168
      %p170 = scmp.ne.s32.totalorder %s158, %s159
      %p171 = scmp.eq.s32.totalorder %s23, 1
      %p172 = por %p170, %p171
      %p174 = scmp.ne.s32.totalorder %s159, %s173
      %p175 = scmp.eq.s32.totalorder %s23, 0
      %p176 = por %p174, %p175
      %s178 = sadd.s32 %s177, 1
      %p181 = scmp.eq.s32.totalorder %s17, 1
      %p182 = scmp.ne.s32.totalorder %s177, %s179
      %p183 = scmp.eq.s32.totalorder %s17, 0
      %p184 = por %p182, %p183
      %p185 = scmp.ne.s32.totalorder %s177, %s179
      %p186 = scmp.eq.s32.totalorder %s22, 1
      %p187 = por %p185, %p186
      %p188 = scmp.ne.s32.totalorder %s179, %s180
      %p189 = scmp.eq.s32.totalorder %s22, 0
      %p190 = por %p188, %p189
      %p191 = scmp.ne.s32.totalorder %s179, %s180
      %p192 = scmp.eq.s32.totalorder %s23, 1
      %p193 = por %p191, %p192
      %p195 = scmp.ne.s32.totalorder %s180, %s194
      %p196 = scmp.eq.s32.totalorder %s23, 0
      %p197 = por %p195, %p196
      %s199 = sadd.s32 %s198, 1
      %p202 = scmp.eq.s32.totalorder %s17, 1
      %p203 = scmp.ne.s32.totalorder %s198, %s200
      %p204 = scmp.eq.s32.totalorder %s17, 0
      %p205 = por %p203, %p204
      %p206 = scmp.ne.s32.totalorder %s198, %s200
      %p207 = scmp.eq.s32.totalorder %s22, 1
      %p208 = por %p206, %p207
      %p209 = scmp.ne.s32.totalorder %s200, %s201
      %p210 = scmp.eq.s32.totalorder %s22, 0
      %p211 = por %p209, %p210
      %p212 = scmp.ne.s32.totalorder %s200, %s201
      %p213 = scmp.eq.s32.totalorder %s23, 1
      %p214 = por %p212, %p213
      %p216 = scmp.ne.s32.totalorder %s201, %s215
      %p217 = scmp.eq.s32.totalorder %s23, 0
      %p218 = por %p216, %p217
      %s219 = ssub.s32 %s17, %s24
      %p220 = scmp.eq.s32.totalorder %s219, 0
      %s222 = sadd.s32 %s221, 1
      %s223 = scalar_select %p220, %s221, %s222
      %p226 = pneg %p220
      %p227 = scmp.eq.s32.totalorder %s17, 1
      %p228 = por %p226, %p227
      %p229 = scmp.ne.s32.totalorder %s221, %s224
      %p230 = scmp.eq.s32.totalorder %s17, 0
      %p231 = por %p229, %p230
      %p232 = scmp.ne.s32.totalorder %s221, %s224
      %p233 = scmp.eq.s32.totalorder %s22, 1
      %p234 = por %p232, %p233
      %p235 = scmp.ne.s32.totalorder %s224, %s225
      %p236 = scmp.eq.s32.totalorder %s22, 0
      %p237 = por %p235, %p236
      %p238 = scmp.ne.s32.totalorder %s224, %s225
      %p239 = scmp.eq.s32.totalorder %s23, 1
      %p240 = por %p238, %p239
      %p242 = scmp.ne.s32.totalorder %s225, %s241
      %p243 = scmp.eq.s32.totalorder %s23, 0
      %p244 = por %p242, %p243
      %p245 = scmp.le.s32.totalorder 1, %s17
      %p246 = scmp.lt.s32.totalorder %s17, 3
      %p247 = pnand %p245, %p246
      %p248 = pneg %p247
      // Predicated region
      $region9: #{cnn_forward.6} parent=5 // pred_check
        _
      $region10: #{cnn_forward.6} parent=5 // pred_check_branch
        %250 = sbr.rel (%p247) target = $region12
      $region11: #{cnn_forward.6} parent=5 // pred_region
        %s251 = ssub.s32 %s17, 1
        // Predicated region
        $region13: #{cnn_forward.6} parent=11 // pred_check
          %p252 = pneg %p64
        $region14: #{cnn_forward.6} parent=11 // pred_check_branch
          %254 = sbr.rel (%p252) target = $region16
        $region15: #{cnn_forward.6} parent=11 // pred_region
          _
        $region16: #{cnn_forward.6} parent=11 // pred_fallthru
          _
        // Predicated region
        $region17: #{cnn_forward.6} parent=11 // pred_check
          %p255 = pneg %p85
        $region18: #{cnn_forward.6} parent=11 // pred_check_branch
          %257 = sbr.rel (%p255) target = $region20
        $region19: #{cnn_forward.6} parent=11 // pred_region
          _
        $region20: #{cnn_forward.6} parent=11 // pred_fallthru
          _
        // Predicated region
        $region21: #{cnn_forward.6} parent=11 // pred_check
          %p258 = pneg %p106
        $region22: #{cnn_forward.6} parent=11 // pred_check_branch
          %260 = sbr.rel (%p258) target = $region24
        $region23: #{cnn_forward.6} parent=11 // pred_region
          _
        $region24: #{cnn_forward.6} parent=11 // pred_fallthru
          _
        // Predicated region
        $region25: #{cnn_forward.6} parent=11 // pred_check
          %p261 = pneg %p127
        $region26: #{cnn_forward.6} parent=11 // pred_check_branch
          %263 = sbr.rel (%p261) target = $region28
        $region27: #{cnn_forward.6} parent=11 // pred_region
          _
        $region28: #{cnn_forward.6} parent=11 // pred_fallthru
          _
        // Predicated region
        $region29: #{cnn_forward.6} parent=11 // pred_check
          %p264 = pneg %p148
        $region30: #{cnn_forward.6} parent=11 // pred_check_branch
          %266 = sbr.rel (%p264) target = $region32
        $region31: #{cnn_forward.6} parent=11 // pred_region
          _
        $region32: #{cnn_forward.6} parent=11 // pred_fallthru
          _
        // Predicated region
        $region33: #{cnn_forward.6} parent=11 // pred_check
          %p267 = pneg %p169
        $region34: #{cnn_forward.6} parent=11 // pred_check_branch
          %269 = sbr.rel (%p267) target = $region36
        $region35: #{cnn_forward.6} parent=11 // pred_region
          _
        $region36: #{cnn_forward.6} parent=11 // pred_fallthru
          _
        // Predicated region
        $region37: #{cnn_forward.6} parent=11 // pred_check
          %p270 = pneg %p190
        $region38: #{cnn_forward.6} parent=11 // pred_check_branch
          %272 = sbr.rel (%p270) target = $region40
        $region39: #{cnn_forward.6} parent=11 // pred_region
          %274 = vsyncadd [#allocation3], 0
          %s275 = sshll.u32 %s7, 4
          %s276 = int_to_ptr.hbm [resolvable:$true] %s275
          %s277 = sshll.u32 [#allocation2], 4
          %s278 = int_to_ptr.vmem [resolvable:$true] %s277
          %283 = dma.hbm_to_vmem [thread:$0]  %s276, 16384, %s278, [#allocation3], 256, 256, 16
        $region40: #{cnn_forward.6} parent=11 // pred_fallthru
          _
        // Predicated region
        $region41: #{cnn_forward.6} parent=11 // pred_check
          %p284 = pneg %p211
        $region42: #{cnn_forward.6} parent=11 // pred_check_branch
          %286 = sbr.rel (%p284) target = $region44
        $region43: #{cnn_forward.6} parent=11 // pred_region
          %288 = vsyncadd [#allocation5], 0
          %s289 = sshll.u32 %s8, 4
          %s290 = int_to_ptr.hbm [resolvable:$true] %s289
          %s291 = sshll.u32 [#allocation4], 4
          %s292 = int_to_ptr.vmem [resolvable:$true] %s291
          %297 = dma.hbm_to_vmem [thread:$0]  %s290, 16384, %s292, [#allocation5], 256, 256, 16
        $region44: #{cnn_forward.6} parent=11 // pred_fallthru
          _
      $region12: #{cnn_forward.6} parent=5 // pred_fallthru
        _
      %p298 = scmp.lt.s32.totalorder %s17, 2
      // Predicated region
      $region45: #{cnn_forward.6} parent=5 // pred_check
        %p299 = pneg %p298
      $region46: #{cnn_forward.6} parent=5 // pred_check_branch
        %301 = sbr.rel (%p299) target = $region48
      $region47: #{cnn_forward.6} parent=5 // pred_region
        // Predicated region
        $region49: #{cnn_forward.6} parent=47 // pred_check
          %p302 = pneg %p37
        $region50: #{cnn_forward.6} parent=47 // pred_check_branch
          %304 = sbr.rel (%p302) target = $region52
        $region51: #{cnn_forward.6} parent=47 // pred_region
          %p305 = scmp.lt.s32.totalorder %s17, 1
          %s306 = scalar_select %p305, %s17, 1
          %s307 = smul.addr %s306, 6
          %s308 = smul.addr %s307, 8
          %s309 = scalar_lea.vmem %s0, %s308
        $region52: #{cnn_forward.6} parent=47 // pred_fallthru
          _
      $region48: #{cnn_forward.6} parent=5 // pred_fallthru
        _
      %p310 = scmp.le.s32.totalorder 1, %s17
      %p311 = scmp.lt.s32.totalorder %s17, 3
      %p312 = pnand %p310, %p311
      %p313 = pneg %p312
      // Predicated region
      $region53: #{cnn_forward.6} parent=5 // pred_check
        _
      $region54: #{cnn_forward.6} parent=5 // pred_check_branch
        %315 = sbr.rel (%p312) target = $region56
      $region55: #{cnn_forward.6} parent=5 // pred_region
        %s316 = ssub.s32 %s17, 1
        // Predicated region
        $region57: #{cnn_forward.6} parent=55 // pred_check
          %p317 = pneg %p190
        $region58: #{cnn_forward.6} parent=55 // pred_check_branch
          %319 = sbr.rel (%p317) target = $region60
        $region59: #{cnn_forward.6} parent=55 // pred_region
          %321 = dma.done [#allocation3], 16384
        $region60: #{cnn_forward.6} parent=55 // pred_fallthru
          _
        // Predicated region
        $region61: #{cnn_forward.6} parent=55 // pred_check
          %p322 = pneg %p211
        $region62: #{cnn_forward.6} parent=55 // pred_check_branch
          %324 = sbr.rel (%p322) target = $region64
        $region63: #{cnn_forward.6} parent=55 // pred_region
          %326 = dma.done [#allocation5], 16384
        $region64: #{cnn_forward.6} parent=55 // pred_fallthru
          _
        %p327 = scmp.lt.s32.totalorder %s22, 1
        %s328 = scalar_select %p327, %s22, 1
        %s329 = smul.addr %s328, 6
        %s330 = smul.addr %s329, 8
        %s331 = scalar_lea.vmem %s0, %s330
        %p332 = pneg %p43
        %p333 = pneg %p40
        %p334 = pneg %p64
        %p335 = pneg %p61
        %p336 = pneg %p85
        %p337 = pneg %p82
        %p338 = pneg %p106
        %p339 = pneg %p103
        %p340 = pneg %p127
        %p341 = pneg %p124
        %p342 = pneg %p148
        %p343 = pneg %p145
        %p344 = pneg %p169
        %p345 = pneg %p166
        %p346 = pneg %p190
        %p347 = pneg %p187
        %p348 = pneg %p211
        %p349 = pneg %p208
        %p350 = pneg %p237
        %p351 = pneg %p234
        %p352 = scmp.lt.s32.totalorder %s22, 1
        %s353 = scalar_select %p352, %s22, 1
        %s354 = smul.addr %s353, 2
        %s355 = smul.addr %s354, 4
        %s356 = scalar_lea.vmem %s9, %s355
        %p357 = scmp.lt.s32.totalorder %s22, 1
        %s358 = scalar_select %p357, %s22, 1
        %s359 = smul.addr %s358, 6
        %s360 = smul.addr %s359, 8
        %s361 = scalar_lea.vmem %s0, %s360
        %p362 = scmp.lt.s32.totalorder %s22, 1
        %s363 = scalar_select %p362, %s22, 1
        %s364 = smul.addr %s363, 2
        %s365 = smul.addr %s364, 4
        %s366 = scalar_lea.vmem %s9, %s365
        %v367 = vld [vmem:[%s361] sm:$0xff]
        %v368 = vld [vmem:[%s361 + $0x8] sm:$0xff]
        %v369 = vld [vmem:[%s361 + $0x10] sm:$0xff]
        %v370 = vld [vmem:[%s1] sm:$0xff]
        %v371 = vld [vmem:[%s1 + $0x8] sm:$0xff]
        %v372 = vld [vmem:[%s1 + $0x10] sm:$0xff]
        %v373 = vld [vmem:[%s1 + $0x18] sm:$0xff]
        %v374 = vld [vmem:[%s1 + $0x20] sm:$0xff]
        %v375 = vld [vmem:[%s1 + $0x28] sm:$0xff]
        %v376 = vld [vmem:[%s1 + $0x30] sm:$0xff]
        %v377 = vld [vmem:[%s1 + $0x38] sm:$0xff]
        %v378 = vld [vmem:[%s1 + $0x40] sm:$0xff]
        %v379 = vld [vmem:[%s1 + $0x48] sm:$0xff]
        %v380 = vld [vmem:[%s1 + $0x50] sm:$0xff]
        %v381 = vld [vmem:[%s1 + $0x58] sm:$0xff]
        %v382 = vld [vmem:[%s1 + $0x60] sm:$0xff]
        %v383 = vld [vmem:[%s1 + $0x68] sm:$0xff]
        %v384 = vld [vmem:[%s1 + $0x70] sm:$0xff]
        %v385 = vld [vmem:[%s1 + $0x78] sm:$0xff]
        %v386 = vld [vmem:[%s1 + $0x80] sm:$0xff]
        %v387 = vld [vmem:[%s1 + $0x88] sm:$0xff]
        %v388 = vld [vmem:[%s1 + $0x90] sm:$0xff]
        %v389 = vld [vmem:[%s1 + $0x98] sm:$0xff]
        %v390 = vld [vmem:[%s1 + $0xa0] sm:$0xff]
        %v391 = vld [vmem:[%s1 + $0xa8] sm:$0xff]
        %v392 = vld [vmem:[%s1 + $0xb0] sm:$0xff]
        %v393 = vld [vmem:[%s1 + $0xb8] sm:$0xff]
        %v394 = vld [vmem:[%s1 + $0xc0] sm:$0xff]
        %v395 = vld [vmem:[%s1 + $0xc8] sm:$0xff]
        %v396 = vld [vmem:[%s1 + $0xd0] sm:$0xff]
        %v397 = vld [vmem:[%s1 + $0xd8] sm:$0xff]
        %v398 = vld [vmem:[%s1 + $0xe0] sm:$0xff]
        %v399 = vld [vmem:[%s1 + $0xe8] sm:$0xff]
        %v400 = vld [vmem:[%s1 + $0xf0] sm:$0xff]
        %v401 = vld [vmem:[%s1 + $0xf8] sm:$0xff]
        %v402 = vld [vmem:[%s1 + $0x100] sm:$0xff]
        %v403 = vld [vmem:[%s1 + $0x108] sm:$0xff]
        %v404 = vld [vmem:[%s1 + $0x110] sm:$0xff]
        %v405 = vld [vmem:[%s1 + $0x118] sm:$0xff]
        %v406 = vld [vmem:[%s1 + $0x120] sm:$0xff]
        %v407 = vld [vmem:[%s1 + $0x128] sm:$0xff]
        %v408 = vld [vmem:[%s1 + $0x130] sm:$0xff]
        %v409 = vld [vmem:[%s1 + $0x138] sm:$0xff]
        %v410 = vld [vmem:[%s1 + $0x140] sm:$0xff]
        %v411 = vld [vmem:[%s1 + $0x148] sm:$0xff]
        %v412 = vld [vmem:[%s1 + $0x150] sm:$0xff]
        %v413 = vld [vmem:[%s1 + $0x158] sm:$0xff]
        %v414 = vld [vmem:[%s1 + $0x160] sm:$0xff]
        %v415 = vld [vmem:[%s1 + $0x168] sm:$0xff]
        %v416 = vld [vmem:[%s1 + $0x170] sm:$0xff]
        %v417 = vld [vmem:[%s1 + $0x178] sm:$0xff]
        %v418 = vld [vmem:[%s1 + $0x180] sm:$0xff]
        %v419 = vld [vmem:[%s1 + $0x188] sm:$0xff]
        %v420 = vld [vmem:[%s1 + $0x190] sm:$0xff]
        %v421 = vld [vmem:[%s1 + $0x198] sm:$0xff]
        %v422 = vld [vmem:[%s1 + $0x1a0] sm:$0xff]
        %v423 = vld [vmem:[%s1 + $0x1a8] sm:$0xff]
        %v424 = vld [vmem:[%s1 + $0x1b0] sm:$0xff]
        %v425 = vld [vmem:[%s1 + $0x1b8] sm:$0xff]
        %v426 = vld [vmem:[%s1 + $0x1c0] sm:$0xff]
        %v427 = vld [vmem:[%s1 + $0x1c8] sm:$0xff]
        %v428 = vld [vmem:[%s1 + $0x1d0] sm:$0xff]
        %v429 = vld [vmem:[%s1 + $0x1d8] sm:$0xff]
        %v430 = vld [vmem:[%s1 + $0x1e0] sm:$0xff]
        %v431 = vld [vmem:[%s1 + $0x1e8] sm:$0xff]
        %v432 = vld [vmem:[%s1 + $0x1f0] sm:$0xff]
        %v433 = vld [vmem:[%s1 + $0x1f8] sm:$0xff]
        %v434 = vld [vmem:[%s1 + $0x200] sm:$0xff]
        %v435 = vld [vmem:[%s1 + $0x208] sm:$0xff]
        %v436 = vld [vmem:[%s1 + $0x210] sm:$0xff]
        %v437 = vld [vmem:[%s1 + $0x218] sm:$0xff]
        %v438 = vld [vmem:[%s1 + $0x220] sm:$0xff]
        %v439 = vld [vmem:[%s1 + $0x228] sm:$0xff]
        %v440 = vld [vmem:[%s1 + $0x230] sm:$0xff]
        %v441 = vld [vmem:[%s1 + $0x238] sm:$0xff]
        %v442 = vld [vmem:[%s1 + $0x240] sm:$0xff]
        %v443 = vld [vmem:[%s1 + $0x248] sm:$0xff]
        %v444 = vld [vmem:[%s1 + $0x250] sm:$0xff]
        %v445 = vld [vmem:[%s1 + $0x258] sm:$0xff]
        %v446 = vld [vmem:[%s1 + $0x260] sm:$0xff]
        %v447 = vld [vmem:[%s1 + $0x268] sm:$0xff]
        %v448 = vld [vmem:[%s1 + $0x270] sm:$0xff]
        %v449 = vld [vmem:[%s1 + $0x278] sm:$0xff]
        %v450 = vld [vmem:[%s1 + $0x280] sm:$0xff]
        %v451 = vld [vmem:[%s1 + $0x288] sm:$0xff]
        %v452 = vld [vmem:[%s1 + $0x290] sm:$0xff]
        %v453 = vld [vmem:[%s1 + $0x298] sm:$0xff]
        %v454 = vld [vmem:[%s1 + $0x2a0] sm:$0xff]
        %v455 = vld [vmem:[%s1 + $0x2a8] sm:$0xff]
        %v456 = vld [vmem:[%s1 + $0x2b0] sm:$0xff]
        %v457 = vld [vmem:[%s1 + $0x2b8] sm:$0xff]
        %v458 = vld [vmem:[%s1 + $0x2c0] sm:$0xff]
        %v459 = vld [vmem:[%s1 + $0x2c8] sm:$0xff]
        %v460 = vld [vmem:[%s1 + $0x2d0] sm:$0xff]
        %v461 = vld [vmem:[%s1 + $0x2d8] sm:$0xff]
        %v462 = vld [vmem:[%s1 + $0x2e0] sm:$0xff]
        %v463 = vld [vmem:[%s1 + $0x2e8] sm:$0xff]
        %v464 = vld [vmem:[%s1 + $0x2f0] sm:$0xff]
        %v465 = vld [vmem:[%s1 + $0x2f8] sm:$0xff]
        %v466 = vld [vmem:[%s1 + $0x300] sm:$0xff]
        %v467 = vld [vmem:[%s1 + $0x308] sm:$0xff]
        %v468 = vld [vmem:[%s1 + $0x310] sm:$0xff]
        %v469 = vld [vmem:[%s1 + $0x318] sm:$0xff]
        %v470 = vld [vmem:[%s1 + $0x320] sm:$0xff]
        %v471 = vld [vmem:[%s1 + $0x328] sm:$0xff]
        %v472 = vld [vmem:[%s1 + $0x330] sm:$0xff]
        %v473 = vld [vmem:[%s1 + $0x338] sm:$0xff]
        %v474 = vld [vmem:[%s1 + $0x340] sm:$0xff]
        %v475 = vld [vmem:[%s1 + $0x348] sm:$0xff]
        %v476 = vld [vmem:[%s1 + $0x350] sm:$0xff]
        %v477 = vld [vmem:[%s1 + $0x358] sm:$0xff]
        %v478 = vld [vmem:[%s1 + $0x360] sm:$0xff]
        %v479 = vld [vmem:[%s1 + $0x368] sm:$0xff]
        %v480 = vld [vmem:[%s1 + $0x370] sm:$0xff]
        %v481 = vld [vmem:[%s1 + $0x378] sm:$0xff]
        %v482 = vld [vmem:[%s1 + $0x380] sm:$0xff]
        %v483 = vld [vmem:[%s1 + $0x388] sm:$0xff]
        %v484 = vld [vmem:[%s1 + $0x390] sm:$0xff]
        %v485 = vld [vmem:[%s1 + $0x398] sm:$0xff]
        %v486 = vld [vmem:[%s1 + $0x3a0] sm:$0xff]
        %v487 = vld [vmem:[%s1 + $0x3a8] sm:$0xff]
        %v488 = vld [vmem:[%s1 + $0x3b0] sm:$0xff]
        %v489 = vld [vmem:[%s1 + $0x3b8] sm:$0xff]
        %v490 = vld [vmem:[%s1 + $0x3c0] sm:$0xff]
        %v491 = vld [vmem:[%s1 + $0x3c8] sm:$0xff]
        %v492 = vld [vmem:[%s1 + $0x3d0] sm:$0xff]
        %v493 = vld [vmem:[%s1 + $0x3d8] sm:$0xff]
        %v494 = vld [vmem:[%s1 + $0x3e0] sm:$0xff]
        %v495 = vld [vmem:[%s1 + $0x3e8] sm:$0xff]
        %v496 = vld [vmem:[%s1 + $0x3f0] sm:$0xff]
        %v497 = vld [vmem:[%s1 + $0x3f8] sm:$0xff]
        %v498 = vld [vmem:[%s1 + $0x400] sm:$0xff]
        %v499 = vld [vmem:[%s1 + $0x408] sm:$0xff]
        %v500 = vld [vmem:[%s1 + $0x410] sm:$0xff]
        %v501 = vld [vmem:[%s1 + $0x418] sm:$0xff]
        %v502 = vld [vmem:[%s1 + $0x420] sm:$0xff]
        %v503 = vld [vmem:[%s1 + $0x428] sm:$0xff]
        %v504 = vld [vmem:[%s1 + $0x430] sm:$0xff]
        %v505 = vld [vmem:[%s1 + $0x438] sm:$0xff]
        %v506 = vld [vmem:[%s1 + $0x440] sm:$0xff]
        %v507 = vld [vmem:[%s1 + $0x448] sm:$0xff]
        %v508 = vld [vmem:[%s1 + $0x450] sm:$0xff]
        %v509 = vld [vmem:[%s1 + $0x458] sm:$0xff]
        %v510 = vld [vmem:[%s1 + $0x460] sm:$0xff]
        %v511 = vld [vmem:[%s1 + $0x468] sm:$0xff]
        %v512 = vld [vmem:[%s1 + $0x470] sm:$0xff]
        %v513 = vld [vmem:[%s1 + $0x478] sm:$0xff]
        %v514 = vld [vmem:[%s1 + $0x480] sm:$0xff]
        %v515 = vld [vmem:[%s1 + $0x488] sm:$0xff]
        %v516 = vld [vmem:[%s1 + $0x490] sm:$0xff]
        %v517 = vld [vmem:[%s1 + $0x498] sm:$0xff]
        %v518 = vld [vmem:[%s1 + $0x4a0] sm:$0xff]
        %v519 = vld [vmem:[%s1 + $0x4a8] sm:$0xff]
        %v520 = vld [vmem:[%s1 + $0x4b0] sm:$0xff]
        %v521 = vld [vmem:[%s1 + $0x4b8] sm:$0xff]
        %v522 = vld [vmem:[%s1 + $0x4c0] sm:$0xff]
        %v523 = vld [vmem:[%s1 + $0x4c8] sm:$0xff]
        %v524 = vld [vmem:[%s1 + $0x4d0] sm:$0xff]
        %v525 = vld [vmem:[%s1 + $0x4d8] sm:$0xff]
        %v526 = vld [vmem:[%s1 + $0x4e0] sm:$0xff]
        %v527 = vld [vmem:[%s1 + $0x4e8] sm:$0xff]
        %v528 = vld [vmem:[%s1 + $0x4f0] sm:$0xff]
        %v529 = vld [vmem:[%s1 + $0x4f8] sm:$0xff]
        %v530 = vld [vmem:[%s361] sm:$0xfe]
        %v531 = vld [vmem:[%s361 + $0x8] sm:$0xfe]
        %v532 = vld [vmem:[%s361 + $0x10] sm:$0xfe]
        %v533 = vld [vmem:[%s361 + $0x18] sm:$0x1]
        %v534 = vld [vmem:[%s361 + $0x20] sm:$0x1]
        %v535 = vld [vmem:[%s361 + $0x28] sm:$0x1]
        %s536 = scalar_lea.vmem %s1, 1280
        %v537 = vld [vmem:[%s536] sm:$0xff]
        %v538 = vld [vmem:[%s536 + $0x8] sm:$0xff]
        %v539 = vld [vmem:[%s536 + $0x10] sm:$0xff]
        %v540 = vld [vmem:[%s536 + $0x18] sm:$0xff]
        %v541 = vld [vmem:[%s536 + $0x20] sm:$0xff]
        %v542 = vld [vmem:[%s536 + $0x28] sm:$0xff]
        %v543 = vld [vmem:[%s536 + $0x30] sm:$0xff]
        %v544 = vld [vmem:[%s536 + $0x38] sm:$0xff]
        %v545 = vld [vmem:[%s536 + $0x40] sm:$0xff]
        %v546 = vld [vmem:[%s536 + $0x48] sm:$0xff]
        %v547 = vld [vmem:[%s536 + $0x50] sm:$0xff]
        %v548 = vld [vmem:[%s536 + $0x58] sm:$0xff]
        %v549 = vld [vmem:[%s536 + $0x60] sm:$0xff]
        %v550 = vld [vmem:[%s536 + $0x68] sm:$0xff]
        %v551 = vld [vmem:[%s536 + $0x70] sm:$0xff]
        %v552 = vld [vmem:[%s536 + $0x78] sm:$0xff]
        %v553 = vld [vmem:[%s536 + $0x80] sm:$0xff]
        %v554 = vld [vmem:[%s536 + $0x88] sm:$0xff]
        %v555 = vld [vmem:[%s536 + $0x90] sm:$0xff]
        %v556 = vld [vmem:[%s536 + $0x98] sm:$0xff]
        %v557 = vld [vmem:[%s536 + $0xa0] sm:$0xff]
        %v558 = vld [vmem:[%s536 + $0xa8] sm:$0xff]
        %v559 = vld [vmem:[%s536 + $0xb0] sm:$0xff]
        %v560 = vld [vmem:[%s536 + $0xb8] sm:$0xff]
        %v561 = vld [vmem:[%s536 + $0xc0] sm:$0xff]
        %v562 = vld [vmem:[%s536 + $0xc8] sm:$0xff]
        %v563 = vld [vmem:[%s536 + $0xd0] sm:$0xff]
        %v564 = vld [vmem:[%s536 + $0xd8] sm:$0xff]
        %v565 = vld [vmem:[%s536 + $0xe0] sm:$0xff]
        %v566 = vld [vmem:[%s536 + $0xe8] sm:$0xff]
        %v567 = vld [vmem:[%s536 + $0xf0] sm:$0xff]
        %v568 = vld [vmem:[%s536 + $0xf8] sm:$0xff]
        %v569 = vld [vmem:[%s536 + $0x100] sm:$0xff]
        %v570 = vld [vmem:[%s536 + $0x108] sm:$0xff]
        %v571 = vld [vmem:[%s536 + $0x110] sm:$0xff]
        %v572 = vld [vmem:[%s536 + $0x118] sm:$0xff]
        %v573 = vld [vmem:[%s536 + $0x120] sm:$0xff]
        %v574 = vld [vmem:[%s536 + $0x128] sm:$0xff]
        %v575 = vld [vmem:[%s536 + $0x130] sm:$0xff]
        %v576 = vld [vmem:[%s536 + $0x138] sm:$0xff]
        %v577 = vld [vmem:[%s536 + $0x140] sm:$0xff]
        %v578 = vld [vmem:[%s536 + $0x148] sm:$0xff]
        %v579 = vld [vmem:[%s536 + $0x150] sm:$0xff]
        %v580 = vld [vmem:[%s536 + $0x158] sm:$0xff]
        %v581 = vld [vmem:[%s536 + $0x160] sm:$0xff]
        %v582 = vld [vmem:[%s536 + $0x168] sm:$0xff]
        %v583 = vld [vmem:[%s536 + $0x170] sm:$0xff]
        %v584 = vld [vmem:[%s536 + $0x178] sm:$0xff]
        %v585 = vld [vmem:[%s536 + $0x180] sm:$0xff]
        %v586 = vld [vmem:[%s536 + $0x188] sm:$0xff]
        %v587 = vld [vmem:[%s536 + $0x190] sm:$0xff]
        %v588 = vld [vmem:[%s536 + $0x198] sm:$0xff]
        %v589 = vld [vmem:[%s536 + $0x1a0] sm:$0xff]
        %v590 = vld [vmem:[%s536 + $0x1a8] sm:$0xff]
        %v591 = vld [vmem:[%s536 + $0x1b0] sm:$0xff]
        %v592 = vld [vmem:[%s536 + $0x1b8] sm:$0xff]
        %v593 = vld [vmem:[%s536 + $0x1c0] sm:$0xff]
        %v594 = vld [vmem:[%s536 + $0x1c8] sm:$0xff]
        %v595 = vld [vmem:[%s536 + $0x1d0] sm:$0xff]
        %v596 = vld [vmem:[%s536 + $0x1d8] sm:$0xff]
        %v597 = vld [vmem:[%s536 + $0x1e0] sm:$0xff]
        %v598 = vld [vmem:[%s536 + $0x1e8] sm:$0xff]
        %v599 = vld [vmem:[%s536 + $0x1f0] sm:$0xff]
        %v600 = vld [vmem:[%s536 + $0x1f8] sm:$0xff]
        %v601 = vld [vmem:[%s536 + $0x200] sm:$0xff]
        %v602 = vld [vmem:[%s536 + $0x208] sm:$0xff]
        %v603 = vld [vmem:[%s536 + $0x210] sm:$0xff]
        %v604 = vld [vmem:[%s536 + $0x218] sm:$0xff]
        %v605 = vld [vmem:[%s536 + $0x220] sm:$0xff]
        %v606 = vld [vmem:[%s536 + $0x228] sm:$0xff]
        %v607 = vld [vmem:[%s536 + $0x230] sm:$0xff]
        %v608 = vld [vmem:[%s536 + $0x238] sm:$0xff]
        %v609 = vld [vmem:[%s536 + $0x240] sm:$0xff]
        %v610 = vld [vmem:[%s536 + $0x248] sm:$0xff]
        %v611 = vld [vmem:[%s536 + $0x250] sm:$0xff]
        %v612 = vld [vmem:[%s536 + $0x258] sm:$0xff]
        %v613 = vld [vmem:[%s536 + $0x260] sm:$0xff]
        %v614 = vld [vmem:[%s536 + $0x268] sm:$0xff]
        %v615 = vld [vmem:[%s536 + $0x270] sm:$0xff]
        %v616 = vld [vmem:[%s536 + $0x278] sm:$0xff]
        %v617 = vld [vmem:[%s536 + $0x280] sm:$0xff]
        %v618 = vld [vmem:[%s536 + $0x288] sm:$0xff]
        %v619 = vld [vmem:[%s536 + $0x290] sm:$0xff]
        %v620 = vld [vmem:[%s536 + $0x298] sm:$0xff]
        %v621 = vld [vmem:[%s536 + $0x2a0] sm:$0xff]
        %v622 = vld [vmem:[%s536 + $0x2a8] sm:$0xff]
        %v623 = vld [vmem:[%s536 + $0x2b0] sm:$0xff]
        %v624 = vld [vmem:[%s536 + $0x2b8] sm:$0xff]
        %v625 = vld [vmem:[%s536 + $0x2c0] sm:$0xff]
        %v626 = vld [vmem:[%s536 + $0x2c8] sm:$0xff]
        %v627 = vld [vmem:[%s536 + $0x2d0] sm:$0xff]
        %v628 = vld [vmem:[%s536 + $0x2d8] sm:$0xff]
        %v629 = vld [vmem:[%s536 + $0x2e0] sm:$0xff]
        %v630 = vld [vmem:[%s536 + $0x2e8] sm:$0xff]
        %v631 = vld [vmem:[%s536 + $0x2f0] sm:$0xff]
        %v632 = vld [vmem:[%s536 + $0x2f8] sm:$0xff]
        %v633 = vld [vmem:[%s536 + $0x300] sm:$0xff]
        %v634 = vld [vmem:[%s536 + $0x308] sm:$0xff]
        %v635 = vld [vmem:[%s536 + $0x310] sm:$0xff]
        %v636 = vld [vmem:[%s536 + $0x318] sm:$0xff]
        %v637 = vld [vmem:[%s536 + $0x320] sm:$0xff]
        %v638 = vld [vmem:[%s536 + $0x328] sm:$0xff]
        %v639 = vld [vmem:[%s536 + $0x330] sm:$0xff]
        %v640 = vld [vmem:[%s536 + $0x338] sm:$0xff]
        %v641 = vld [vmem:[%s536 + $0x340] sm:$0xff]
        %v642 = vld [vmem:[%s536 + $0x348] sm:$0xff]
        %v643 = vld [vmem:[%s536 + $0x350] sm:$0xff]
        %v644 = vld [vmem:[%s536 + $0x358] sm:$0xff]
        %v645 = vld [vmem:[%s536 + $0x360] sm:$0xff]
        %v646 = vld [vmem:[%s536 + $0x368] sm:$0xff]
        %v647 = vld [vmem:[%s536 + $0x370] sm:$0xff]
        %v648 = vld [vmem:[%s536 + $0x378] sm:$0xff]
        %v649 = vld [vmem:[%s536 + $0x380] sm:$0xff]
        %v650 = vld [vmem:[%s536 + $0x388] sm:$0xff]
        %v651 = vld [vmem:[%s536 + $0x390] sm:$0xff]
        %v652 = vld [vmem:[%s536 + $0x398] sm:$0xff]
        %v653 = vld [vmem:[%s536 + $0x3a0] sm:$0xff]
        %v654 = vld [vmem:[%s536 + $0x3a8] sm:$0xff]
        %v655 = vld [vmem:[%s536 + $0x3b0] sm:$0xff]
        %v656 = vld [vmem:[%s536 + $0x3b8] sm:$0xff]
        %v657 = vld [vmem:[%s536 + $0x3c0] sm:$0xff]
        %v658 = vld [vmem:[%s536 + $0x3c8] sm:$0xff]
        %v659 = vld [vmem:[%s536 + $0x3d0] sm:$0xff]
        %v660 = vld [vmem:[%s536 + $0x3d8] sm:$0xff]
        %v661 = vld [vmem:[%s536 + $0x3e0] sm:$0xff]
        %v662 = vld [vmem:[%s536 + $0x3e8] sm:$0xff]
        %v663 = vld [vmem:[%s536 + $0x3f0] sm:$0xff]
        %v664 = vld [vmem:[%s536 + $0x3f8] sm:$0xff]
        %v665 = vld [vmem:[%s536 + $0x400] sm:$0xff]
        %v666 = vld [vmem:[%s536 + $0x408] sm:$0xff]
        %v667 = vld [vmem:[%s536 + $0x410] sm:$0xff]
        %v668 = vld [vmem:[%s536 + $0x418] sm:$0xff]
        %v669 = vld [vmem:[%s536 + $0x420] sm:$0xff]
        %v670 = vld [vmem:[%s536 + $0x428] sm:$0xff]
        %v671 = vld [vmem:[%s536 + $0x430] sm:$0xff]
        %v672 = vld [vmem:[%s536 + $0x438] sm:$0xff]
        %v673 = vld [vmem:[%s536 + $0x440] sm:$0xff]
        %v674 = vld [vmem:[%s536 + $0x448] sm:$0xff]
        %v675 = vld [vmem:[%s536 + $0x450] sm:$0xff]
        %v676 = vld [vmem:[%s536 + $0x458] sm:$0xff]
        %v677 = vld [vmem:[%s536 + $0x460] sm:$0xff]
        %v678 = vld [vmem:[%s536 + $0x468] sm:$0xff]
        %v679 = vld [vmem:[%s536 + $0x470] sm:$0xff]
        %v680 = vld [vmem:[%s536 + $0x478] sm:$0xff]
        %v681 = vld [vmem:[%s536 + $0x480] sm:$0xff]
        %v682 = vld [vmem:[%s536 + $0x488] sm:$0xff]
        %v683 = vld [vmem:[%s536 + $0x490] sm:$0xff]
        %v684 = vld [vmem:[%s536 + $0x498] sm:$0xff]
        %v685 = vld [vmem:[%s536 + $0x4a0] sm:$0xff]
        %v686 = vld [vmem:[%s536 + $0x4a8] sm:$0xff]
        %v687 = vld [vmem:[%s536 + $0x4b0] sm:$0xff]
        %v688 = vld [vmem:[%s536 + $0x4b8] sm:$0xff]
        %v689 = vld [vmem:[%s536 + $0x4c0] sm:$0xff]
        %v690 = vld [vmem:[%s536 + $0x4c8] sm:$0xff]
        %v691 = vld [vmem:[%s536 + $0x4d0] sm:$0xff]
        %v692 = vld [vmem:[%s536 + $0x4d8] sm:$0xff]
        %v693 = vld [vmem:[%s536 + $0x4e0] sm:$0xff]
        %v694 = vld [vmem:[%s536 + $0x4e8] sm:$0xff]
        %v695 = vld [vmem:[%s536 + $0x4f0] sm:$0xff]
        %v696 = vld [vmem:[%s536 + $0x4f8] sm:$0xff]
        %vm703 = vcmask 1046528
        %v704 = vrot.slane %v530, 1
        %v705 = vrot.slane %v533, 1
        %v706 = vsel %vm703, %v704, %v705
        %v707 = vrot.slane %v531, 1
        %v708 = vrot.slane %v534, 1
        %v709 = vsel %vm703, %v707, %v708
        %v710 = vrot.slane %v532, 1
        %v711 = vrot.slane %v535, 1
        %v712 = vsel %vm703, %v710, %v711
        %vm715 = vcmask 523264
        %v716 = vsel %vm715, %v712, 0
        %718 = vmatpush.msra.mxu0 %v597
        %719 = vmatpush.msra.mxu0 %v593
        %720 = vmatpush.msra.mxu0 %v589
        %721 = vmatpush.msra.mxu0 %v585
        %722 = vmatpush.msra.mxu0 %v581
        %723 = vmatpush.msra.mxu0 %v577
        %724 = vmatpush.msra.mxu0 %v573
        %725 = vmatpush.msra.mxu0 %v569
        %726 = vmatpush.msra.mxu0 %v565
        %727 = vmatpush.msra.mxu0 %v561
        %728 = vmatpush.msra.mxu0 %v557
        %729 = vmatpush.msra.mxu0 %v553
        %730 = vmatpush.msra.mxu0 %v549
        %731 = vmatpush.msra.mxu0 %v545
        %732 = vmatpush.msra.mxu0 %v541
        %733 = vmatpush.msra.mxu0 %v537
        %734 = vmatmul.f32.gmra.mxu0 %v706
        %v735 = vpop.f32.mrf.mxu0
        %v736 = vadd.f32 0.0, %v735
        %737 = vdwg.mxu0
        %738 = vmatpush.msra.mxu0 %v661
        %739 = vmatpush.msra.mxu0 %v657
        %740 = vmatpush.msra.mxu0 %v653
        %741 = vmatpush.msra.mxu0 %v649
        %742 = vmatpush.msra.mxu0 %v645
        %743 = vmatpush.msra.mxu0 %v641
        %744 = vmatpush.msra.mxu0 %v637
        %745 = vmatpush.msra.mxu0 %v633
        %746 = vmatpush.msra.mxu0 %v629
        %747 = vmatpush.msra.mxu0 %v625
        %748 = vmatpush.msra.mxu0 %v621
        %749 = vmatpush.msra.mxu0 %v617
        %750 = vmatpush.msra.mxu0 %v613
        %751 = vmatpush.msra.mxu0 %v609
        %752 = vmatpush.msra.mxu0 %v605
        %753 = vmatpush.msra.mxu0 %v601
        %754 = vmatmul.f32.gmra.mxu0 %v709
        %v755 = vpop.f32.mrf.mxu0
        %v756 = vadd.f32 %v736, %v755
        %757 = vdwg.mxu0
        %758 = vmatpush.msra.mxu0 0.0
        %759 = vmatpush.msra.mxu0 0.0
        %760 = vmatpush.msra.mxu0 0.0
        %761 = vmatpush.msra.mxu0 0.0
        %762 = vmatpush.msra.mxu0 0.0
        %763 = vmatpush.msra.mxu0 0.0
        %764 = vmatpush.msra.mxu0 0.0
        %765 = vmatpush.msra.mxu0 0.0
        %766 = vmatpush.msra.mxu0 %v693
        %767 = vmatpush.msra.mxu0 %v689
        %768 = vmatpush.msra.mxu0 %v685
        %769 = vmatpush.msra.mxu0 %v681
        %770 = vmatpush.msra.mxu0 %v677
        %771 = vmatpush.msra.mxu0 %v673
        %772 = vmatpush.msra.mxu0 %v669
        %773 = vmatpush.msra.mxu0 %v665
        %774 = vmatmul.f32.gmra.mxu0 %v716
        %v775 = vpop.f32.mrf.mxu0
        %v776 = vadd.f32 %v756, %v775
        %777 = vdwg.mxu0
        %778 = vmatpush.msra.mxu0 %v598
        %779 = vmatpush.msra.mxu0 %v594
        %780 = vmatpush.msra.mxu0 %v590
        %781 = vmatpush.msra.mxu0 %v586
        %782 = vmatpush.msra.mxu0 %v582
        %783 = vmatpush.msra.mxu0 %v578
        %784 = vmatpush.msra.mxu0 %v574
        %785 = vmatpush.msra.mxu0 %v570
        %786 = vmatpush.msra.mxu0 %v566
        %787 = vmatpush.msra.mxu0 %v562
        %788 = vmatpush.msra.mxu0 %v558
        %789 = vmatpush.msra.mxu0 %v554
        %790 = vmatpush.msra.mxu0 %v550
        %791 = vmatpush.msra.mxu0 %v546
        %792 = vmatpush.msra.mxu0 %v542
        %793 = vmatpush.msra.mxu0 %v538
        %794 = vmatmul.f32.gmra.mxu0 %v706
        %v795 = vpop.f32.mrf.mxu0
        %v796 = vadd.f32 0.0, %v795
        %797 = vdwg.mxu0
        %798 = vmatpush.msra.mxu0 %v662
        %799 = vmatpush.msra.mxu0 %v658
        %800 = vmatpush.msra.mxu0 %v654
        %801 = vmatpush.msra.mxu0 %v650
        %802 = vmatpush.msra.mxu0 %v646
        %803 = vmatpush.msra.mxu0 %v642
        %804 = vmatpush.msra.mxu0 %v638
        %805 = vmatpush.msra.mxu0 %v634
        %806 = vmatpush.msra.mxu0 %v630
        %807 = vmatpush.msra.mxu0 %v626
        %808 = vmatpush.msra.mxu0 %v622
        %809 = vmatpush.msra.mxu0 %v618
        %810 = vmatpush.msra.mxu0 %v614
        %811 = vmatpush.msra.mxu0 %v610
        %812 = vmatpush.msra.mxu0 %v606
        %813 = vmatpush.msra.mxu0 %v602
        %814 = vmatmul.f32.gmra.mxu0 %v709
        %v815 = vpop.f32.mrf.mxu0
        %v816 = vadd.f32 %v796, %v815
        %817 = vdwg.mxu0
        %818 = vmatpush.msra.mxu0 0.0
        %819 = vmatpush.msra.mxu0 0.0
        %820 = vmatpush.msra.mxu0 0.0
        %821 = vmatpush.msra.mxu0 0.0
        %822 = vmatpush.msra.mxu0 0.0
        %823 = vmatpush.msra.mxu0 0.0
        %824 = vmatpush.msra.mxu0 0.0
        %825 = vmatpush.msra.mxu0 0.0
        %826 = vmatpush.msra.mxu0 %v694
        %827 = vmatpush.msra.mxu0 %v690
        %828 = vmatpush.msra.mxu0 %v686
        %829 = vmatpush.msra.mxu0 %v682
        %830 = vmatpush.msra.mxu0 %v678
        %831 = vmatpush.msra.mxu0 %v674
        %832 = vmatpush.msra.mxu0 %v670
        %833 = vmatpush.msra.mxu0 %v666
        %834 = vmatmul.f32.gmra.mxu0 %v716
        %v835 = vpop.f32.mrf.mxu0
        %v836 = vadd.f32 %v816, %v835
        %837 = vdwg.mxu0
        %838 = vmatpush.msra.mxu0 %v599
        %839 = vmatpush.msra.mxu0 %v595
        %840 = vmatpush.msra.mxu0 %v591
        %841 = vmatpush.msra.mxu0 %v587
        %842 = vmatpush.msra.mxu0 %v583
        %843 = vmatpush.msra.mxu0 %v579
        %844 = vmatpush.msra.mxu0 %v575
        %845 = vmatpush.msra.mxu0 %v571
        %846 = vmatpush.msra.mxu0 %v567
        %847 = vmatpush.msra.mxu0 %v563
        %848 = vmatpush.msra.mxu0 %v559
        %849 = vmatpush.msra.mxu0 %v555
        %850 = vmatpush.msra.mxu0 %v551
        %851 = vmatpush.msra.mxu0 %v547
        %852 = vmatpush.msra.mxu0 %v543
        %853 = vmatpush.msra.mxu0 %v539
        %854 = vmatmul.f32.gmra.mxu0 %v706
        %v855 = vpop.f32.mrf.mxu0
        %v856 = vadd.f32 0.0, %v855
        %857 = vdwg.mxu0
        %858 = vmatpush.msra.mxu0 %v663
        %859 = vmatpush.msra.mxu0 %v659
        %860 = vmatpush.msra.mxu0 %v655
        %861 = vmatpush.msra.mxu0 %v651
        %862 = vmatpush.msra.mxu0 %v647
        %863 = vmatpush.msra.mxu0 %v643
        %864 = vmatpush.msra.mxu0 %v639
        %865 = vmatpush.msra.mxu0 %v635
        %866 = vmatpush.msra.mxu0 %v631
        %867 = vmatpush.msra.mxu0 %v627
        %868 = vmatpush.msra.mxu0 %v623
        %869 = vmatpush.msra.mxu0 %v619
        %870 = vmatpush.msra.mxu0 %v615
        %871 = vmatpush.msra.mxu0 %v611
        %872 = vmatpush.msra.mxu0 %v607
        %873 = vmatpush.msra.mxu0 %v603
        %874 = vmatmul.f32.gmra.mxu0 %v709
        %v875 = vpop.f32.mrf.mxu0
        %v876 = vadd.f32 %v856, %v875
        %877 = vdwg.mxu0
        %878 = vmatpush.msra.mxu0 0.0
        %879 = vmatpush.msra.mxu0 0.0
        %880 = vmatpush.msra.mxu0 0.0
        %881 = vmatpush.msra.mxu0 0.0
        %882 = vmatpush.msra.mxu0 0.0
        %883 = vmatpush.msra.mxu0 0.0
        %884 = vmatpush.msra.mxu0 0.0
        %885 = vmatpush.msra.mxu0 0.0
        %886 = vmatpush.msra.mxu0 %v695
        %887 = vmatpush.msra.mxu0 %v691
        %888 = vmatpush.msra.mxu0 %v687
        %889 = vmatpush.msra.mxu0 %v683
        %890 = vmatpush.msra.mxu0 %v679
        %891 = vmatpush.msra.mxu0 %v675
        %892 = vmatpush.msra.mxu0 %v671
        %893 = vmatpush.msra.mxu0 %v667
        %894 = vmatmul.f32.gmra.mxu0 %v716
        %v895 = vpop.f32.mrf.mxu0
        %v896 = vadd.f32 %v876, %v895
        %897 = vdwg.mxu0
        %898 = vmatpush.msra.mxu0 %v600
        %899 = vmatpush.msra.mxu0 %v596
        %900 = vmatpush.msra.mxu0 %v592
        %901 = vmatpush.msra.mxu0 %v588
        %902 = vmatpush.msra.mxu0 %v584
        %903 = vmatpush.msra.mxu0 %v580
        %904 = vmatpush.msra.mxu0 %v576
        %905 = vmatpush.msra.mxu0 %v572
        %906 = vmatpush.msra.mxu0 %v568
        %907 = vmatpush.msra.mxu0 %v564
        %908 = vmatpush.msra.mxu0 %v560
        %909 = vmatpush.msra.mxu0 %v556
        %910 = vmatpush.msra.mxu0 %v552
        %911 = vmatpush.msra.mxu0 %v548
        %912 = vmatpush.msra.mxu0 %v544
        %913 = vmatpush.msra.mxu0 %v540
        %914 = vmatmul.f32.gmra.mxu0 %v706
        %v915 = vpop.f32.mrf.mxu0
        %v916 = vadd.f32 0.0, %v915
        %917 = vdwg.mxu0
        %918 = vmatpush.msra.mxu0 %v664
        %919 = vmatpush.msra.mxu0 %v660
        %920 = vmatpush.msra.mxu0 %v656
        %921 = vmatpush.msra.mxu0 %v652
        %922 = vmatpush.msra.mxu0 %v648
        %923 = vmatpush.msra.mxu0 %v644
        %924 = vmatpush.msra.mxu0 %v640
        %925 = vmatpush.msra.mxu0 %v636
        %926 = vmatpush.msra.mxu0 %v632
        %927 = vmatpush.msra.mxu0 %v628
        %928 = vmatpush.msra.mxu0 %v624
        %929 = vmatpush.msra.mxu0 %v620
        %930 = vmatpush.msra.mxu0 %v616
        %931 = vmatpush.msra.mxu0 %v612
        %932 = vmatpush.msra.mxu0 %v608
        %933 = vmatpush.msra.mxu0 %v604
        %934 = vmatmul.f32.gmra.mxu0 %v709
        %v935 = vpop.f32.mrf.mxu0
        %v936 = vadd.f32 %v916, %v935
        %937 = vdwg.mxu0
        %938 = vmatpush.msra.mxu0 0.0
        %939 = vmatpush.msra.mxu0 0.0
        %940 = vmatpush.msra.mxu0 0.0
        %941 = vmatpush.msra.mxu0 0.0
        %942 = vmatpush.msra.mxu0 0.0
        %943 = vmatpush.msra.mxu0 0.0
        %944 = vmatpush.msra.mxu0 0.0
        %945 = vmatpush.msra.mxu0 0.0
        %946 = vmatpush.msra.mxu0 %v696
        %947 = vmatpush.msra.mxu0 %v692
        %948 = vmatpush.msra.mxu0 %v688
        %949 = vmatpush.msra.mxu0 %v684
        %950 = vmatpush.msra.mxu0 %v680
        %951 = vmatpush.msra.mxu0 %v676
        %952 = vmatpush.msra.mxu0 %v672
        %953 = vmatpush.msra.mxu0 %v668
        %954 = vmatmul.f32.gmra.mxu0 %v716
        %v955 = vpop.f32.mrf.mxu0
        %v956 = vadd.f32 %v936, %v955
        %957 = vdwg.mxu0
        %v959 = vsel %vm715, %v369, 0
        %961 = vmatpush.msra.mxu0 %v430
        %962 = vmatpush.msra.mxu0 %v426
        %963 = vmatpush.msra.mxu0 %v422
        %964 = vmatpush.msra.mxu0 %v418
        %965 = vmatpush.msra.mxu0 %v414
        %966 = vmatpush.msra.mxu0 %v410
        %967 = vmatpush.msra.mxu0 %v406
        %968 = vmatpush.msra.mxu0 %v402
        %969 = vmatpush.msra.mxu0 %v398
        %970 = vmatpush.msra.mxu0 %v394
        %971 = vmatpush.msra.mxu0 %v390
        %972 = vmatpush.msra.mxu0 %v386
        %973 = vmatpush.msra.mxu0 %v382
        %974 = vmatpush.msra.mxu0 %v378
        %975 = vmatpush.msra.mxu0 %v374
        %976 = vmatpush.msra.mxu0 %v370
        %977 = vmatmul.f32.gmra.mxu0 %v367
        %v978 = vpop.f32.mrf.mxu0
        %v979 = vadd.f32 %v776, %v978
        %980 = vdwg.mxu0
        %981 = vmatpush.msra.mxu0 %v494
        %982 = vmatpush.msra.mxu0 %v490
        %983 = vmatpush.msra.mxu0 %v486
        %984 = vmatpush.msra.mxu0 %v482
        %985 = vmatpush.msra.mxu0 %v478
        %986 = vmatpush.msra.mxu0 %v474
        %987 = vmatpush.msra.mxu0 %v470
        %988 = vmatpush.msra.mxu0 %v466
        %989 = vmatpush.msra.mxu0 %v462
        %990 = vmatpush.msra.mxu0 %v458
        %991 = vmatpush.msra.mxu0 %v454
        %992 = vmatpush.msra.mxu0 %v450
        %993 = vmatpush.msra.mxu0 %v446
        %994 = vmatpush.msra.mxu0 %v442
        %995 = vmatpush.msra.mxu0 %v438
        %996 = vmatpush.msra.mxu0 %v434
        %997 = vmatmul.f32.gmra.mxu0 %v368
        %v998 = vpop.f32.mrf.mxu0
        %v999 = vadd.f32 %v979, %v998
        %1000 = vdwg.mxu0
        %1001 = vmatpush.msra.mxu0 0.0
        %1002 = vmatpush.msra.mxu0 0.0
        %1003 = vmatpush.msra.mxu0 0.0
        %1004 = vmatpush.msra.mxu0 0.0
        %1005 = vmatpush.msra.mxu0 0.0
        %1006 = vmatpush.msra.mxu0 0.0
        %1007 = vmatpush.msra.mxu0 0.0
        %1008 = vmatpush.msra.mxu0 0.0
        %1009 = vmatpush.msra.mxu0 %v526
        %1010 = vmatpush.msra.mxu0 %v522
        %1011 = vmatpush.msra.mxu0 %v518
        %1012 = vmatpush.msra.mxu0 %v514
        %1013 = vmatpush.msra.mxu0 %v510
        %1014 = vmatpush.msra.mxu0 %v506
        %1015 = vmatpush.msra.mxu0 %v502
        %1016 = vmatpush.msra.mxu0 %v498
        %1017 = vmatmul.f32.gmra.mxu0 %v959
        %v1018 = vpop.f32.mrf.mxu0
        %v1019 = vadd.f32 %v999, %v1018
        %1020 = vdwg.mxu0
        %1021 = vmatpush.msra.mxu0 %v431
        %1022 = vmatpush.msra.mxu0 %v427
        %1023 = vmatpush.msra.mxu0 %v423
        %1024 = vmatpush.msra.mxu0 %v419
        %1025 = vmatpush.msra.mxu0 %v415
        %1026 = vmatpush.msra.mxu0 %v411
        %1027 = vmatpush.msra.mxu0 %v407
        %1028 = vmatpush.msra.mxu0 %v403
        %1029 = vmatpush.msra.mxu0 %v399
        %1030 = vmatpush.msra.mxu0 %v395
        %1031 = vmatpush.msra.mxu0 %v391
        %1032 = vmatpush.msra.mxu0 %v387
        %1033 = vmatpush.msra.mxu0 %v383
        %1034 = vmatpush.msra.mxu0 %v379
        %1035 = vmatpush.msra.mxu0 %v375
        %1036 = vmatpush.msra.mxu0 %v371
        %1037 = vmatmul.f32.gmra.mxu0 %v367
        %v1038 = vpop.f32.mrf.mxu0
        %v1039 = vadd.f32 %v836, %v1038
        %1040 = vdwg.mxu0
        %1041 = vmatpush.msra.mxu0 %v495
        %1042 = vmatpush.msra.mxu0 %v491
        %1043 = vmatpush.msra.mxu0 %v487
        %1044 = vmatpush.msra.mxu0 %v483
        %1045 = vmatpush.msra.mxu0 %v479
        %1046 = vmatpush.msra.mxu0 %v475
        %1047 = vmatpush.msra.mxu0 %v471
        %1048 = vmatpush.msra.mxu0 %v467
        %1049 = vmatpush.msra.mxu0 %v463
        %1050 = vmatpush.msra.mxu0 %v459
        %1051 = vmatpush.msra.mxu0 %v455
        %1052 = vmatpush.msra.mxu0 %v451
        %1053 = vmatpush.msra.mxu0 %v447
        %1054 = vmatpush.msra.mxu0 %v443
        %1055 = vmatpush.msra.mxu0 %v439
        %1056 = vmatpush.msra.mxu0 %v435
        %1057 = vmatmul.f32.gmra.mxu0 %v368
        %v1058 = vpop.f32.mrf.mxu0
        %v1059 = vadd.f32 %v1039, %v1058
        %1060 = vdwg.mxu0
        %1061 = vmatpush.msra.mxu0 0.0
        %1062 = vmatpush.msra.mxu0 0.0
        %1063 = vmatpush.msra.mxu0 0.0
        %1064 = vmatpush.msra.mxu0 0.0
        %1065 = vmatpush.msra.mxu0 0.0
        %1066 = vmatpush.msra.mxu0 0.0
        %1067 = vmatpush.msra.mxu0 0.0
        %1068 = vmatpush.msra.mxu0 0.0
        %1069 = vmatpush.msra.mxu0 %v527
        %1070 = vmatpush.msra.mxu0 %v523
        %1071 = vmatpush.msra.mxu0 %v519
        %1072 = vmatpush.msra.mxu0 %v515
        %1073 = vmatpush.msra.mxu0 %v511
        %1074 = vmatpush.msra.mxu0 %v507
        %1075 = vmatpush.msra.mxu0 %v503
        %1076 = vmatpush.msra.mxu0 %v499
        %1077 = vmatmul.f32.gmra.mxu0 %v959
        %v1078 = vpop.f32.mrf.mxu0
        %v1079 = vadd.f32 %v1059, %v1078
        %1080 = vdwg.mxu0
        %1081 = vmatpush.msra.mxu0 %v432
        %1082 = vmatpush.msra.mxu0 %v428
        %1083 = vmatpush.msra.mxu0 %v424
        %1084 = vmatpush.msra.mxu0 %v420
        %1085 = vmatpush.msra.mxu0 %v416
        %1086 = vmatpush.msra.mxu0 %v412
        %1087 = vmatpush.msra.mxu0 %v408
        %1088 = vmatpush.msra.mxu0 %v404
        %1089 = vmatpush.msra.mxu0 %v400
        %1090 = vmatpush.msra.mxu0 %v396
        %1091 = vmatpush.msra.mxu0 %v392
        %1092 = vmatpush.msra.mxu0 %v388
        %1093 = vmatpush.msra.mxu0 %v384
        %1094 = vmatpush.msra.mxu0 %v380
        %1095 = vmatpush.msra.mxu0 %v376
        %1096 = vmatpush.msra.mxu0 %v372
        %1097 = vmatmul.f32.gmra.mxu0 %v367
        %v1098 = vpop.f32.mrf.mxu0
        %v1099 = vadd.f32 %v896, %v1098
        %1100 = vdwg.mxu0
        %1101 = vmatpush.msra.mxu0 %v496
        %1102 = vmatpush.msra.mxu0 %v492
        %1103 = vmatpush.msra.mxu0 %v488
        %1104 = vmatpush.msra.mxu0 %v484
        %1105 = vmatpush.msra.mxu0 %v480
        %1106 = vmatpush.msra.mxu0 %v476
        %1107 = vmatpush.msra.mxu0 %v472
        %1108 = vmatpush.msra.mxu0 %v468
        %1109 = vmatpush.msra.mxu0 %v464
        %1110 = vmatpush.msra.mxu0 %v460
        %1111 = vmatpush.msra.mxu0 %v456
        %1112 = vmatpush.msra.mxu0 %v452
        %1113 = vmatpush.msra.mxu0 %v448
        %1114 = vmatpush.msra.mxu0 %v444
        %1115 = vmatpush.msra.mxu0 %v440
        %1116 = vmatpush.msra.mxu0 %v436
        %1117 = vmatmul.f32.gmra.mxu0 %v368
        %v1118 = vpop.f32.mrf.mxu0
        %v1119 = vadd.f32 %v1099, %v1118
        %1120 = vdwg.mxu0
        %1121 = vmatpush.msra.mxu0 0.0
        %1122 = vmatpush.msra.mxu0 0.0
        %1123 = vmatpush.msra.mxu0 0.0
        %1124 = vmatpush.msra.mxu0 0.0
        %1125 = vmatpush.msra.mxu0 0.0
        %1126 = vmatpush.msra.mxu0 0.0
        %1127 = vmatpush.msra.mxu0 0.0
        %1128 = vmatpush.msra.mxu0 0.0
        %1129 = vmatpush.msra.mxu0 %v528
        %1130 = vmatpush.msra.mxu0 %v524
        %1131 = vmatpush.msra.mxu0 %v520
        %1132 = vmatpush.msra.mxu0 %v516
        %1133 = vmatpush.msra.mxu0 %v512
        %1134 = vmatpush.msra.mxu0 %v508
        %1135 = vmatpush.msra.mxu0 %v504
        %1136 = vmatpush.msra.mxu0 %v500
        %1137 = vmatmul.f32.gmra.mxu0 %v959
        %v1138 = vpop.f32.mrf.mxu0
        %v1139 = vadd.f32 %v1119, %v1138
        %1140 = vdwg.mxu0
        %1141 = vmatpush.msra.mxu0 %v433
        %1142 = vmatpush.msra.mxu0 %v429
        %1143 = vmatpush.msra.mxu0 %v425
        %1144 = vmatpush.msra.mxu0 %v421
        %1145 = vmatpush.msra.mxu0 %v417
        %1146 = vmatpush.msra.mxu0 %v413
        %1147 = vmatpush.msra.mxu0 %v409
        %1148 = vmatpush.msra.mxu0 %v405
        %1149 = vmatpush.msra.mxu0 %v401
        %1150 = vmatpush.msra.mxu0 %v397
        %1151 = vmatpush.msra.mxu0 %v393
        %1152 = vmatpush.msra.mxu0 %v389
        %1153 = vmatpush.msra.mxu0 %v385
        %1154 = vmatpush.msra.mxu0 %v381
        %1155 = vmatpush.msra.mxu0 %v377
        %1156 = vmatpush.msra.mxu0 %v373
        %1157 = vmatmul.f32.gmra.mxu0 %v367
        %v1158 = vpop.f32.mrf.mxu0
        %v1159 = vadd.f32 %v956, %v1158
        %1160 = vdwg.mxu0
        %1161 = vmatpush.msra.mxu0 %v497
        %1162 = vmatpush.msra.mxu0 %v493
        %1163 = vmatpush.msra.mxu0 %v489
        %1164 = vmatpush.msra.mxu0 %v485
        %1165 = vmatpush.msra.mxu0 %v481
        %1166 = vmatpush.msra.mxu0 %v477
        %1167 = vmatpush.msra.mxu0 %v473
        %1168 = vmatpush.msra.mxu0 %v469
        %1169 = vmatpush.msra.mxu0 %v465
        %1170 = vmatpush.msra.mxu0 %v461
        %1171 = vmatpush.msra.mxu0 %v457
        %1172 = vmatpush.msra.mxu0 %v453
        %1173 = vmatpush.msra.mxu0 %v449
        %1174 = vmatpush.msra.mxu0 %v445
        %1175 = vmatpush.msra.mxu0 %v441
        %1176 = vmatpush.msra.mxu0 %v437
        %1177 = vmatmul.f32.gmra.mxu0 %v368
        %v1178 = vpop.f32.mrf.mxu0
        %v1179 = vadd.f32 %v1159, %v1178
        %1180 = vdwg.mxu0
        %1181 = vmatpush.msra.mxu0 0.0
        %1182 = vmatpush.msra.mxu0 0.0
        %1183 = vmatpush.msra.mxu0 0.0
        %1184 = vmatpush.msra.mxu0 0.0
        %1185 = vmatpush.msra.mxu0 0.0
        %1186 = vmatpush.msra.mxu0 0.0
        %1187 = vmatpush.msra.mxu0 0.0
        %1188 = vmatpush.msra.mxu0 0.0
        %1189 = vmatpush.msra.mxu0 %v529
        %1190 = vmatpush.msra.mxu0 %v525
        %1191 = vmatpush.msra.mxu0 %v521
        %1192 = vmatpush.msra.mxu0 %v517
        %1193 = vmatpush.msra.mxu0 %v513
        %1194 = vmatpush.msra.mxu0 %v509
        %1195 = vmatpush.msra.mxu0 %v505
        %1196 = vmatpush.msra.mxu0 %v501
        %1197 = vmatmul.f32.gmra.mxu0 %v959
        %v1198 = vpop.f32.mrf.mxu0
        %v1199 = vadd.f32 %v1179, %v1198
        %1200 = vdwg.mxu0
        %v1201 = vld [vmem:[%s361] sm:$0xfc]
        %v1202 = vld [vmem:[%s361 + $0x8] sm:$0xfc]
        %v1203 = vld [vmem:[%s361 + $0x10] sm:$0xfc]
        %v1204 = vld [vmem:[%s361 + $0x18] sm:$0x3]
        %v1205 = vld [vmem:[%s361 + $0x20] sm:$0x3]
        %v1206 = vld [vmem:[%s361 + $0x28] sm:$0x3]
        %s1207 = scalar_lea.vmem %s1, 2560
        %v1208 = vld [vmem:[%s1207] sm:$0xff]
        %v1209 = vld [vmem:[%s1207 + $0x8] sm:$0xff]
        %v1210 = vld [vmem:[%s1207 + $0x10] sm:$0xff]
        %v1211 = vld [vmem:[%s1207 + $0x18] sm:$0xff]
        %v1212 = vld [vmem:[%s1207 + $0x20] sm:$0xff]
        %v1213 = vld [vmem:[%s1207 + $0x28] sm:$0xff]
        %v1214 = vld [vmem:[%s1207 + $0x30] sm:$0xff]
        %v1215 = vld [vmem:[%s1207 + $0x38] sm:$0xff]
        %v1216 = vld [vmem:[%s1207 + $0x40] sm:$0xff]
        %v1217 = vld [vmem:[%s1207 + $0x48] sm:$0xff]
        %v1218 = vld [vmem:[%s1207 + $0x50] sm:$0xff]
        %v1219 = vld [vmem:[%s1207 + $0x58] sm:$0xff]
        %v1220 = vld [vmem:[%s1207 + $0x60] sm:$0xff]
        %v1221 = vld [vmem:[%s1207 + $0x68] sm:$0xff]
        %v1222 = vld [vmem:[%s1207 + $0x70] sm:$0xff]
        %v1223 = vld [vmem:[%s1207 + $0x78] sm:$0xff]
        %v1224 = vld [vmem:[%s1207 + $0x80] sm:$0xff]
        %v1225 = vld [vmem:[%s1207 + $0x88] sm:$0xff]
        %v1226 = vld [vmem:[%s1207 + $0x90] sm:$0xff]
        %v1227 = vld [vmem:[%s1207 + $0x98] sm:$0xff]
        %v1228 = vld [vmem:[%s1207 + $0xa0] sm:$0xff]
        %v1229 = vld [vmem:[%s1207 + $0xa8] sm:$0xff]
        %v1230 = vld [vmem:[%s1207 + $0xb0] sm:$0xff]
        %v1231 = vld [vmem:[%s1207 + $0xb8] sm:$0xff]
        %v1232 = vld [vmem:[%s1207 + $0xc0] sm:$0xff]
        %v1233 = vld [vmem:[%s1207 + $0xc8] sm:$0xff]
        %v1234 = vld [vmem:[%s1207 + $0xd0] sm:$0xff]
        %v1235 = vld [vmem:[%s1207 + $0xd8] sm:$0xff]
        %v1236 = vld [vmem:[%s1207 + $0xe0] sm:$0xff]
        %v1237 = vld [vmem:[%s1207 + $0xe8] sm:$0xff]
        %v1238 = vld [vmem:[%s1207 + $0xf0] sm:$0xff]
        %v1239 = vld [vmem:[%s1207 + $0xf8] sm:$0xff]
        %v1240 = vld [vmem:[%s1207 + $0x100] sm:$0xff]
        %v1241 = vld [vmem:[%s1207 + $0x108] sm:$0xff]
        %v1242 = vld [vmem:[%s1207 + $0x110] sm:$0xff]
        %v1243 = vld [vmem:[%s1207 + $0x118] sm:$0xff]
        %v1244 = vld [vmem:[%s1207 + $0x120] sm:$0xff]
        %v1245 = vld [vmem:[%s1207 + $0x128] sm:$0xff]
        %v1246 = vld [vmem:[%s1207 + $0x130] sm:$0xff]
        %v1247 = vld [vmem:[%s1207 + $0x138] sm:$0xff]
        %v1248 = vld [vmem:[%s1207 + $0x140] sm:$0xff]
        %v1249 = vld [vmem:[%s1207 + $0x148] sm:$0xff]
        %v1250 = vld [vmem:[%s1207 + $0x150] sm:$0xff]
        %v1251 = vld [vmem:[%s1207 + $0x158] sm:$0xff]
        %v1252 = vld [vmem:[%s1207 + $0x160] sm:$0xff]
        %v1253 = vld [vmem:[%s1207 + $0x168] sm:$0xff]
        %v1254 = vld [vmem:[%s1207 + $0x170] sm:$0xff]
        %v1255 = vld [vmem:[%s1207 + $0x178] sm:$0xff]
        %v1256 = vld [vmem:[%s1207 + $0x180] sm:$0xff]
        %v1257 = vld [vmem:[%s1207 + $0x188] sm:$0xff]
        %v1258 = vld [vmem:[%s1207 + $0x190] sm:$0xff]
        %v1259 = vld [vmem:[%s1207 + $0x198] sm:$0xff]
        %v1260 = vld [vmem:[%s1207 + $0x1a0] sm:$0xff]
        %v1261 = vld [vmem:[%s1207 + $0x1a8] sm:$0xff]
        %v1262 = vld [vmem:[%s1207 + $0x1b0] sm:$0xff]
        %v1263 = vld [vmem:[%s1207 + $0x1b8] sm:$0xff]
        %v1264 = vld [vmem:[%s1207 + $0x1c0] sm:$0xff]
        %v1265 = vld [vmem:[%s1207 + $0x1c8] sm:$0xff]
        %v1266 = vld [vmem:[%s1207 + $0x1d0] sm:$0xff]
        %v1267 = vld [vmem:[%s1207 + $0x1d8] sm:$0xff]
        %v1268 = vld [vmem:[%s1207 + $0x1e0] sm:$0xff]
        %v1269 = vld [vmem:[%s1207 + $0x1e8] sm:$0xff]
        %v1270 = vld [vmem:[%s1207 + $0x1f0] sm:$0xff]
        %v1271 = vld [vmem:[%s1207 + $0x1f8] sm:$0xff]
        %v1272 = vld [vmem:[%s1207 + $0x200] sm:$0xff]
        %v1273 = vld [vmem:[%s1207 + $0x208] sm:$0xff]
        %v1274 = vld [vmem:[%s1207 + $0x210] sm:$0xff]
        %v1275 = vld [vmem:[%s1207 + $0x218] sm:$0xff]
        %v1276 = vld [vmem:[%s1207 + $0x220] sm:$0xff]
        %v1277 = vld [vmem:[%s1207 + $0x228] sm:$0xff]
        %v1278 = vld [vmem:[%s1207 + $0x230] sm:$0xff]
        %v1279 = vld [vmem:[%s1207 + $0x238] sm:$0xff]
        %v1280 = vld [vmem:[%s1207 + $0x240] sm:$0xff]
        %v1281 = vld [vmem:[%s1207 + $0x248] sm:$0xff]
        %v1282 = vld [vmem:[%s1207 + $0x250] sm:$0xff]
        %v1283 = vld [vmem:[%s1207 + $0x258] sm:$0xff]
        %v1284 = vld [vmem:[%s1207 + $0x260] sm:$0xff]
        %v1285 = vld [vmem:[%s1207 + $0x268] sm:$0xff]
        %v1286 = vld [vmem:[%s1207 + $0x270] sm:$0xff]
        %v1287 = vld [vmem:[%s1207 + $0x278] sm:$0xff]
        %v1288 = vld [vmem:[%s1207 + $0x280] sm:$0xff]
        %v1289 = vld [vmem:[%s1207 + $0x288] sm:$0xff]
        %v1290 = vld [vmem:[%s1207 + $0x290] sm:$0xff]
        %v1291 = vld [vmem:[%s1207 + $0x298] sm:$0xff]
        %v1292 = vld [vmem:[%s1207 + $0x2a0] sm:$0xff]
        %v1293 = vld [vmem:[%s1207 + $0x2a8] sm:$0xff]
        %v1294 = vld [vmem:[%s1207 + $0x2b0] sm:$0xff]
        %v1295 = vld [vmem:[%s1207 + $0x2b8] sm:$0xff]
        %v1296 = vld [vmem:[%s1207 + $0x2c0] sm:$0xff]
        %v1297 = vld [vmem:[%s1207 + $0x2c8] sm:$0xff]
        %v1298 = vld [vmem:[%s1207 + $0x2d0] sm:$0xff]
        %v1299 = vld [vmem:[%s1207 + $0x2d8] sm:$0xff]
        %v1300 = vld [vmem:[%s1207 + $0x2e0] sm:$0xff]
        %v1301 = vld [vmem:[%s1207 + $0x2e8] sm:$0xff]
        %v1302 = vld [vmem:[%s1207 + $0x2f0] sm:$0xff]
        %v1303 = vld [vmem:[%s1207 + $0x2f8] sm:$0xff]
        %v1304 = vld [vmem:[%s1207 + $0x300] sm:$0xff]
        %v1305 = vld [vmem:[%s1207 + $0x308] sm:$0xff]
        %v1306 = vld [vmem:[%s1207 + $0x310] sm:$0xff]
        %v1307 = vld [vmem:[%s1207 + $0x318] sm:$0xff]
        %v1308 = vld [vmem:[%s1207 + $0x320] sm:$0xff]
        %v1309 = vld [vmem:[%s1207 + $0x328] sm:$0xff]
        %v1310 = vld [vmem:[%s1207 + $0x330] sm:$0xff]
        %v1311 = vld [vmem:[%s1207 + $0x338] sm:$0xff]
        %v1312 = vld [vmem:[%s1207 + $0x340] sm:$0xff]
        %v1313 = vld [vmem:[%s1207 + $0x348] sm:$0xff]
        %v1314 = vld [vmem:[%s1207 + $0x350] sm:$0xff]
        %v1315 = vld [vmem:[%s1207 + $0x358] sm:$0xff]
        %v1316 = vld [vmem:[%s1207 + $0x360] sm:$0xff]
        %v1317 = vld [vmem:[%s1207 + $0x368] sm:$0xff]
        %v1318 = vld [vmem:[%s1207 + $0x370] sm:$0xff]
        %v1319 = vld [vmem:[%s1207 + $0x378] sm:$0xff]
        %v1320 = vld [vmem:[%s1207 + $0x380] sm:$0xff]
        %v1321 = vld [vmem:[%s1207 + $0x388] sm:$0xff]
        %v1322 = vld [vmem:[%s1207 + $0x390] sm:$0xff]
        %v1323 = vld [vmem:[%s1207 + $0x398] sm:$0xff]
        %v1324 = vld [vmem:[%s1207 + $0x3a0] sm:$0xff]
        %v1325 = vld [vmem:[%s1207 + $0x3a8] sm:$0xff]
        %v1326 = vld [vmem:[%s1207 + $0x3b0] sm:$0xff]
        %v1327 = vld [vmem:[%s1207 + $0x3b8] sm:$0xff]
        %v1328 = vld [vmem:[%s1207 + $0x3c0] sm:$0xff]
        %v1329 = vld [vmem:[%s1207 + $0x3c8] sm:$0xff]
        %v1330 = vld [vmem:[%s1207 + $0x3d0] sm:$0xff]
        %v1331 = vld [vmem:[%s1207 + $0x3d8] sm:$0xff]
        %v1332 = vld [vmem:[%s1207 + $0x3e0] sm:$0xff]
        %v1333 = vld [vmem:[%s1207 + $0x3e8] sm:$0xff]
        %v1334 = vld [vmem:[%s1207 + $0x3f0] sm:$0xff]
        %v1335 = vld [vmem:[%s1207 + $0x3f8] sm:$0xff]
        %v1336 = vld [vmem:[%s1207 + $0x400] sm:$0xff]
        %v1337 = vld [vmem:[%s1207 + $0x408] sm:$0xff]
        %v1338 = vld [vmem:[%s1207 + $0x410] sm:$0xff]
        %v1339 = vld [vmem:[%s1207 + $0x418] sm:$0xff]
        %v1340 = vld [vmem:[%s1207 + $0x420] sm:$0xff]
        %v1341 = vld [vmem:[%s1207 + $0x428] sm:$0xff]
        %v1342 = vld [vmem:[%s1207 + $0x430] sm:$0xff]
        %v1343 = vld [vmem:[%s1207 + $0x438] sm:$0xff]
        %v1344 = vld [vmem:[%s1207 + $0x440] sm:$0xff]
        %v1345 = vld [vmem:[%s1207 + $0x448] sm:$0xff]
        %v1346 = vld [vmem:[%s1207 + $0x450] sm:$0xff]
        %v1347 = vld [vmem:[%s1207 + $0x458] sm:$0xff]
        %v1348 = vld [vmem:[%s1207 + $0x460] sm:$0xff]
        %v1349 = vld [vmem:[%s1207 + $0x468] sm:$0xff]
        %v1350 = vld [vmem:[%s1207 + $0x470] sm:$0xff]
        %v1351 = vld [vmem:[%s1207 + $0x478] sm:$0xff]
        %v1352 = vld [vmem:[%s1207 + $0x480] sm:$0xff]
        %v1353 = vld [vmem:[%s1207 + $0x488] sm:$0xff]
        %v1354 = vld [vmem:[%s1207 + $0x490] sm:$0xff]
        %v1355 = vld [vmem:[%s1207 + $0x498] sm:$0xff]
        %v1356 = vld [vmem:[%s1207 + $0x4a0] sm:$0xff]
        %v1357 = vld [vmem:[%s1207 + $0x4a8] sm:$0xff]
        %v1358 = vld [vmem:[%s1207 + $0x4b0] sm:$0xff]
        %v1359 = vld [vmem:[%s1207 + $0x4b8] sm:$0xff]
        %v1360 = vld [vmem:[%s1207 + $0x4c0] sm:$0xff]
        %v1361 = vld [vmem:[%s1207 + $0x4c8] sm:$0xff]
        %v1362 = vld [vmem:[%s1207 + $0x4d0] sm:$0xff]
        %v1363 = vld [vmem:[%s1207 + $0x4d8] sm:$0xff]
        %v1364 = vld [vmem:[%s1207 + $0x4e0] sm:$0xff]
        %v1365 = vld [vmem:[%s1207 + $0x4e8] sm:$0xff]
        %v1366 = vld [vmem:[%s1207 + $0x4f0] sm:$0xff]
        %v1367 = vld [vmem:[%s1207 + $0x4f8] sm:$0xff]
        %vm1374 = vcmask 1045504
        %v1375 = vrot.slane %v1201, 2
        %v1376 = vrot.slane %v1204, 2
        %v1377 = vsel %vm1374, %v1375, %v1376
        %v1378 = vrot.slane %v1202, 2
        %v1379 = vrot.slane %v1205, 2
        %v1380 = vsel %vm1374, %v1378, %v1379
        %v1381 = vrot.slane %v1203, 2
        %v1382 = vrot.slane %v1206, 2
        %v1383 = vsel %vm1374, %v1381, %v1382
        %v1386 = vsel %vm715, %v1383, 0
        %1388 = vmatpush.msra.mxu0 %v1268
        %1389 = vmatpush.msra.mxu0 %v1264
        %1390 = vmatpush.msra.mxu0 %v1260
        %1391 = vmatpush.msra.mxu0 %v1256
        %1392 = vmatpush.msra.mxu0 %v1252
        %1393 = vmatpush.msra.mxu0 %v1248
        %1394 = vmatpush.msra.mxu0 %v1244
        %1395 = vmatpush.msra.mxu0 %v1240
        %1396 = vmatpush.msra.mxu0 %v1236
        %1397 = vmatpush.msra.mxu0 %v1232
        %1398 = vmatpush.msra.mxu0 %v1228
        %1399 = vmatpush.msra.mxu0 %v1224
        %1400 = vmatpush.msra.mxu0 %v1220
        %1401 = vmatpush.msra.mxu0 %v1216
        %1402 = vmatpush.msra.mxu0 %v1212
        %1403 = vmatpush.msra.mxu0 %v1208
        %1404 = vmatmul.f32.gmra.mxu0 %v1377
        %v1405 = vpop.f32.mrf.mxu0
        %v1406 = vadd.f32 0.0, %v1405
        %1407 = vdwg.mxu0
        %1408 = vmatpush.msra.mxu0 %v1332
        %1409 = vmatpush.msra.mxu0 %v1328
        %1410 = vmatpush.msra.mxu0 %v1324
        %1411 = vmatpush.msra.mxu0 %v1320
        %1412 = vmatpush.msra.mxu0 %v1316
        %1413 = vmatpush.msra.mxu0 %v1312
        %1414 = vmatpush.msra.mxu0 %v1308
        %1415 = vmatpush.msra.mxu0 %v1304
        %1416 = vmatpush.msra.mxu0 %v1300
        %1417 = vmatpush.msra.mxu0 %v1296
        %1418 = vmatpush.msra.mxu0 %v1292
        %1419 = vmatpush.msra.mxu0 %v1288
        %1420 = vmatpush.msra.mxu0 %v1284
        %1421 = vmatpush.msra.mxu0 %v1280
        %1422 = vmatpush.msra.mxu0 %v1276
        %1423 = vmatpush.msra.mxu0 %v1272
        %1424 = vmatmul.f32.gmra.mxu0 %v1380
        %v1425 = vpop.f32.mrf.mxu0
        %v1426 = vadd.f32 %v1406, %v1425
        %1427 = vdwg.mxu0
        %1428 = vmatpush.msra.mxu0 0.0
        %1429 = vmatpush.msra.mxu0 0.0
        %1430 = vmatpush.msra.mxu0 0.0
        %1431 = vmatpush.msra.mxu0 0.0
        %1432 = vmatpush.msra.mxu0 0.0
        %1433 = vmatpush.msra.mxu0 0.0
        %1434 = vmatpush.msra.mxu0 0.0
        %1435 = vmatpush.msra.mxu0 0.0
        %1436 = vmatpush.msra.mxu0 %v1364
        %1437 = vmatpush.msra.mxu0 %v1360
        %1438 = vmatpush.msra.mxu0 %v1356
        %1439 = vmatpush.msra.mxu0 %v1352
        %1440 = vmatpush.msra.mxu0 %v1348
        %1441 = vmatpush.msra.mxu0 %v1344
        %1442 = vmatpush.msra.mxu0 %v1340
        %1443 = vmatpush.msra.mxu0 %v1336
        %1444 = vmatmul.f32.gmra.mxu0 %v1386
        %v1445 = vpop.f32.mrf.mxu0
        %v1446 = vadd.f32 %v1426, %v1445
        %1447 = vdwg.mxu0
        %1448 = vmatpush.msra.mxu0 %v1269
        %1449 = vmatpush.msra.mxu0 %v1265
        %1450 = vmatpush.msra.mxu0 %v1261
        %1451 = vmatpush.msra.mxu0 %v1257
        %1452 = vmatpush.msra.mxu0 %v1253
        %1453 = vmatpush.msra.mxu0 %v1249
        %1454 = vmatpush.msra.mxu0 %v1245
        %1455 = vmatpush.msra.mxu0 %v1241
        %1456 = vmatpush.msra.mxu0 %v1237
        %1457 = vmatpush.msra.mxu0 %v1233
        %1458 = vmatpush.msra.mxu0 %v1229
        %1459 = vmatpush.msra.mxu0 %v1225
        %1460 = vmatpush.msra.mxu0 %v1221
        %1461 = vmatpush.msra.mxu0 %v1217
        %1462 = vmatpush.msra.mxu0 %v1213
        %1463 = vmatpush.msra.mxu0 %v1209
        %1464 = vmatmul.f32.gmra.mxu0 %v1377
        %v1465 = vpop.f32.mrf.mxu0
        %v1466 = vadd.f32 0.0, %v1465
        %1467 = vdwg.mxu0
        %1468 = vmatpush.msra.mxu0 %v1333
        %1469 = vmatpush.msra.mxu0 %v1329
        %1470 = vmatpush.msra.mxu0 %v1325
        %1471 = vmatpush.msra.mxu0 %v1321
        %1472 = vmatpush.msra.mxu0 %v1317
        %1473 = vmatpush.msra.mxu0 %v1313
        %1474 = vmatpush.msra.mxu0 %v1309
        %1475 = vmatpush.msra.mxu0 %v1305
        %1476 = vmatpush.msra.mxu0 %v1301
        %1477 = vmatpush.msra.mxu0 %v1297
        %1478 = vmatpush.msra.mxu0 %v1293
        %1479 = vmatpush.msra.mxu0 %v1289
        %1480 = vmatpush.msra.mxu0 %v1285
        %1481 = vmatpush.msra.mxu0 %v1281
        %1482 = vmatpush.msra.mxu0 %v1277
        %1483 = vmatpush.msra.mxu0 %v1273
        %1484 = vmatmul.f32.gmra.mxu0 %v1380
        %v1485 = vpop.f32.mrf.mxu0
        %v1486 = vadd.f32 %v1466, %v1485
        %1487 = vdwg.mxu0
        %1488 = vmatpush.msra.mxu0 0.0
        %1489 = vmatpush.msra.mxu0 0.0
        %1490 = vmatpush.msra.mxu0 0.0
        %1491 = vmatpush.msra.mxu0 0.0
        %1492 = vmatpush.msra.mxu0 0.0
        %1493 = vmatpush.msra.mxu0 0.0
        %1494 = vmatpush.msra.mxu0 0.0
        %1495 = vmatpush.msra.mxu0 0.0
        %1496 = vmatpush.msra.mxu0 %v1365
        %1497 = vmatpush.msra.mxu0 %v1361
        %1498 = vmatpush.msra.mxu0 %v1357
        %1499 = vmatpush.msra.mxu0 %v1353
        %1500 = vmatpush.msra.mxu0 %v1349
        %1501 = vmatpush.msra.mxu0 %v1345
        %1502 = vmatpush.msra.mxu0 %v1341
        %1503 = vmatpush.msra.mxu0 %v1337
        %1504 = vmatmul.f32.gmra.mxu0 %v1386
        %v1505 = vpop.f32.mrf.mxu0
        %v1506 = vadd.f32 %v1486, %v1505
        %1507 = vdwg.mxu0
        %1508 = vmatpush.msra.mxu0 %v1270
        %1509 = vmatpush.msra.mxu0 %v1266
        %1510 = vmatpush.msra.mxu0 %v1262
        %1511 = vmatpush.msra.mxu0 %v1258
        %1512 = vmatpush.msra.mxu0 %v1254
        %1513 = vmatpush.msra.mxu0 %v1250
        %1514 = vmatpush.msra.mxu0 %v1246
        %1515 = vmatpush.msra.mxu0 %v1242
        %1516 = vmatpush.msra.mxu0 %v1238
        %1517 = vmatpush.msra.mxu0 %v1234
        %1518 = vmatpush.msra.mxu0 %v1230
        %1519 = vmatpush.msra.mxu0 %v1226
        %1520 = vmatpush.msra.mxu0 %v1222
        %1521 = vmatpush.msra.mxu0 %v1218
        %1522 = vmatpush.msra.mxu0 %v1214
        %1523 = vmatpush.msra.mxu0 %v1210
        %1524 = vmatmul.f32.gmra.mxu0 %v1377
        %v1525 = vpop.f32.mrf.mxu0
        %v1526 = vadd.f32 0.0, %v1525
        %1527 = vdwg.mxu0
        %1528 = vmatpush.msra.mxu0 %v1334
        %1529 = vmatpush.msra.mxu0 %v1330
        %1530 = vmatpush.msra.mxu0 %v1326
        %1531 = vmatpush.msra.mxu0 %v1322
        %1532 = vmatpush.msra.mxu0 %v1318
        %1533 = vmatpush.msra.mxu0 %v1314
        %1534 = vmatpush.msra.mxu0 %v1310
        %1535 = vmatpush.msra.mxu0 %v1306
        %1536 = vmatpush.msra.mxu0 %v1302
        %1537 = vmatpush.msra.mxu0 %v1298
        %1538 = vmatpush.msra.mxu0 %v1294
        %1539 = vmatpush.msra.mxu0 %v1290
        %1540 = vmatpush.msra.mxu0 %v1286
        %1541 = vmatpush.msra.mxu0 %v1282
        %1542 = vmatpush.msra.mxu0 %v1278
        %1543 = vmatpush.msra.mxu0 %v1274
        %1544 = vmatmul.f32.gmra.mxu0 %v1380
        %v1545 = vpop.f32.mrf.mxu0
        %v1546 = vadd.f32 %v1526, %v1545
        %1547 = vdwg.mxu0
        %1548 = vmatpush.msra.mxu0 0.0
        %1549 = vmatpush.msra.mxu0 0.0
        %1550 = vmatpush.msra.mxu0 0.0
        %1551 = vmatpush.msra.mxu0 0.0
        %1552 = vmatpush.msra.mxu0 0.0
        %1553 = vmatpush.msra.mxu0 0.0
        %1554 = vmatpush.msra.mxu0 0.0
        %1555 = vmatpush.msra.mxu0 0.0
        %1556 = vmatpush.msra.mxu0 %v1366
        %1557 = vmatpush.msra.mxu0 %v1362
        %1558 = vmatpush.msra.mxu0 %v1358
        %1559 = vmatpush.msra.mxu0 %v1354
        %1560 = vmatpush.msra.mxu0 %v1350
        %1561 = vmatpush.msra.mxu0 %v1346
        %1562 = vmatpush.msra.mxu0 %v1342
        %1563 = vmatpush.msra.mxu0 %v1338
        %1564 = vmatmul.f32.gmra.mxu0 %v1386
        %v1565 = vpop.f32.mrf.mxu0
        %v1566 = vadd.f32 %v1546, %v1565
        %1567 = vdwg.mxu0
        %1568 = vmatpush.msra.mxu0 %v1271
        %1569 = vmatpush.msra.mxu0 %v1267
        %1570 = vmatpush.msra.mxu0 %v1263
        %1571 = vmatpush.msra.mxu0 %v1259
        %1572 = vmatpush.msra.mxu0 %v1255
        %1573 = vmatpush.msra.mxu0 %v1251
        %1574 = vmatpush.msra.mxu0 %v1247
        %1575 = vmatpush.msra.mxu0 %v1243
        %1576 = vmatpush.msra.mxu0 %v1239
        %1577 = vmatpush.msra.mxu0 %v1235
        %1578 = vmatpush.msra.mxu0 %v1231
        %1579 = vmatpush.msra.mxu0 %v1227
        %1580 = vmatpush.msra.mxu0 %v1223
        %1581 = vmatpush.msra.mxu0 %v1219
        %1582 = vmatpush.msra.mxu0 %v1215
        %1583 = vmatpush.msra.mxu0 %v1211
        %1584 = vmatmul.f32.gmra.mxu0 %v1377
        %v1585 = vpop.f32.mrf.mxu0
        %v1586 = vadd.f32 0.0, %v1585
        %1587 = vdwg.mxu0
        %1588 = vmatpush.msra.mxu0 %v1335
        %1589 = vmatpush.msra.mxu0 %v1331
        %1590 = vmatpush.msra.mxu0 %v1327
        %1591 = vmatpush.msra.mxu0 %v1323
        %1592 = vmatpush.msra.mxu0 %v1319
        %1593 = vmatpush.msra.mxu0 %v1315
        %1594 = vmatpush.msra.mxu0 %v1311
        %1595 = vmatpush.msra.mxu0 %v1307
        %1596 = vmatpush.msra.mxu0 %v1303
        %1597 = vmatpush.msra.mxu0 %v1299
        %1598 = vmatpush.msra.mxu0 %v1295
        %1599 = vmatpush.msra.mxu0 %v1291
        %1600 = vmatpush.msra.mxu0 %v1287
        %1601 = vmatpush.msra.mxu0 %v1283
        %1602 = vmatpush.msra.mxu0 %v1279
        %1603 = vmatpush.msra.mxu0 %v1275
        %1604 = vmatmul.f32.gmra.mxu0 %v1380
        %v1605 = vpop.f32.mrf.mxu0
        %v1606 = vadd.f32 %v1586, %v1605
        %1607 = vdwg.mxu0
        %1608 = vmatpush.msra.mxu0 0.0
        %1609 = vmatpush.msra.mxu0 0.0
        %1610 = vmatpush.msra.mxu0 0.0
        %1611 = vmatpush.msra.mxu0 0.0
        %1612 = vmatpush.msra.mxu0 0.0
        %1613 = vmatpush.msra.mxu0 0.0
        %1614 = vmatpush.msra.mxu0 0.0
        %1615 = vmatpush.msra.mxu0 0.0
        %1616 = vmatpush.msra.mxu0 %v1367
        %1617 = vmatpush.msra.mxu0 %v1363
        %1618 = vmatpush.msra.mxu0 %v1359
        %1619 = vmatpush.msra.mxu0 %v1355
        %1620 = vmatpush.msra.mxu0 %v1351
        %1621 = vmatpush.msra.mxu0 %v1347
        %1622 = vmatpush.msra.mxu0 %v1343
        %1623 = vmatpush.msra.mxu0 %v1339
        %1624 = vmatmul.f32.gmra.mxu0 %v1386
        %v1625 = vpop.f32.mrf.mxu0
        %v1626 = vadd.f32 %v1606, %v1625
        %1627 = vdwg.mxu0
        %v1628 = vadd.f32 %v1019, %v1446
        %v1629 = vadd.f32 %v1079, %v1506
        %v1630 = vadd.f32 %v1139, %v1566
        %v1631 = vadd.f32 %v1199, %v1626
        %v1632 = vld [vmem:[%s2] sm:$0xf]
        %v1634 = vperm.slane %v1632, 0
        %v1635 = vperm.slane %v1632, 1
        %v1636 = vperm.slane %v1632, 2
        %v1637 = vperm.slane %v1632, 3
        %v1642 = vadd.f32 %v1628, %v1634
        %v1643 = vadd.f32 %v1629, %v1635
        %v1644 = vadd.f32 %v1630, %v1636
        %v1645 = vadd.f32 %v1631, %v1637
        %v1646 = vmax.f32 %v1642, 0.0
        %v1647 = vmax.f32 %v1643, 0.0
        %v1648 = vmax.f32 %v1644, 0.0
        %v1649 = vmax.f32 %v1645, 0.0
        %v1650 = vld [vmem:[%s3] sm:$0xf]
        %v1652 = vperm.slane %v1650, 0
        %v1653 = vperm.slane %v1650, 1
        %v1654 = vperm.slane %v1650, 2
        %v1655 = vperm.slane %v1650, 3
        %v1660 = vmul.f32 %v1646, %v1652
        %v1661 = vmul.f32 %v1647, %v1653
        %v1662 = vmul.f32 %v1648, %v1654
        %v1663 = vmul.f32 %v1649, %v1655
        %v1664 = vld [vmem:[%s4] sm:$0xf]
        %v1666 = vperm.slane %v1664, 0
        %v1667 = vperm.slane %v1664, 1
        %v1668 = vperm.slane %v1664, 2
        %v1669 = vperm.slane %v1664, 3
        %v1674 = vadd.f32 %v1660, %v1666
        %v1675 = vadd.f32 %v1661, %v1667
        %v1676 = vadd.f32 %v1662, %v1668
        %v1677 = vadd.f32 %v1663, %v1669
        %v1678 = vld [vmem:[%s5] sm:$0xf]
        %vm1679 = vcmask 64512
        %v1681 = vsel %vm1679, %v1678, 0
        %1683 = vmatpush.msra.mxu0 0.0
        %1684 = vmatpush.msra.mxu0 0.0
        %1685 = vmatpush.msra.mxu0 0.0
        %1686 = vmatpush.msra.mxu0 0.0
        %1687 = vmatpush.msra.mxu0 0.0
        %1688 = vmatpush.msra.mxu0 0.0
        %1689 = vmatpush.msra.mxu0 0.0
        %1690 = vmatpush.msra.mxu0 0.0
        %1691 = vmatpush.msra.mxu0 0.0
        %1692 = vmatpush.msra.mxu0 0.0
        %1693 = vmatpush.msra.mxu0 0.0
        %1694 = vmatpush.msra.mxu0 0.0
        %1695 = vmatpush.msra.mxu0 0.0
        %1696 = vmatpush.msra.mxu0 0.0
        %1697 = vmatpush.msra.mxu0 0.0
        %1698 = vmatpush.msra.mxu0 %v1674
        %1699 = vmatmul.f32.gmra.mxu0 %v1681
        %v1700 = vpop.f32.mrf.mxu0
        %v1701 = vadd.f32 0.0, %v1700
        %1702 = vdwg.mxu0
        %1703 = vmatpush.msra.mxu0 0.0
        %1704 = vmatpush.msra.mxu0 0.0
        %1705 = vmatpush.msra.mxu0 0.0
        %1706 = vmatpush.msra.mxu0 0.0
        %1707 = vmatpush.msra.mxu0 0.0
        %1708 = vmatpush.msra.mxu0 0.0
        %1709 = vmatpush.msra.mxu0 0.0
        %1710 = vmatpush.msra.mxu0 0.0
        %1711 = vmatpush.msra.mxu0 0.0
        %1712 = vmatpush.msra.mxu0 0.0
        %1713 = vmatpush.msra.mxu0 0.0
        %1714 = vmatpush.msra.mxu0 0.0
        %1715 = vmatpush.msra.mxu0 0.0
        %1716 = vmatpush.msra.mxu0 0.0
        %1717 = vmatpush.msra.mxu0 0.0
        %1718 = vmatpush.msra.mxu0 %v1675
        %1719 = vmatmul.f32.gmra.mxu0 %v1681
        %v1720 = vpop.f32.mrf.mxu0
        %v1721 = vadd.f32 0.0, %v1720
        %1722 = vdwg.mxu0
        %1723 = vmatpush.msra.mxu0 0.0
        %1724 = vmatpush.msra.mxu0 0.0
        %1725 = vmatpush.msra.mxu0 0.0
        %1726 = vmatpush.msra.mxu0 0.0
        %1727 = vmatpush.msra.mxu0 0.0
        %1728 = vmatpush.msra.mxu0 0.0
        %1729 = vmatpush.msra.mxu0 0.0
        %1730 = vmatpush.msra.mxu0 0.0
        %1731 = vmatpush.msra.mxu0 0.0
        %1732 = vmatpush.msra.mxu0 0.0
        %1733 = vmatpush.msra.mxu0 0.0
        %1734 = vmatpush.msra.mxu0 0.0
        %1735 = vmatpush.msra.mxu0 0.0
        %1736 = vmatpush.msra.mxu0 0.0
        %1737 = vmatpush.msra.mxu0 0.0
        %1738 = vmatpush.msra.mxu0 %v1676
        %1739 = vmatmul.f32.gmra.mxu0 %v1681
        %v1740 = vpop.f32.mrf.mxu0
        %v1741 = vadd.f32 0.0, %v1740
        %1742 = vdwg.mxu0
        %1743 = vmatpush.msra.mxu0 0.0
        %1744 = vmatpush.msra.mxu0 0.0
        %1745 = vmatpush.msra.mxu0 0.0
        %1746 = vmatpush.msra.mxu0 0.0
        %1747 = vmatpush.msra.mxu0 0.0
        %1748 = vmatpush.msra.mxu0 0.0
        %1749 = vmatpush.msra.mxu0 0.0
        %1750 = vmatpush.msra.mxu0 0.0
        %1751 = vmatpush.msra.mxu0 0.0
        %1752 = vmatpush.msra.mxu0 0.0
        %1753 = vmatpush.msra.mxu0 0.0
        %1754 = vmatpush.msra.mxu0 0.0
        %1755 = vmatpush.msra.mxu0 0.0
        %1756 = vmatpush.msra.mxu0 0.0
        %1757 = vmatpush.msra.mxu0 0.0
        %1758 = vmatpush.msra.mxu0 %v1677
        %1759 = vmatmul.f32.gmra.mxu0 %v1681
        %v1760 = vpop.f32.mrf.mxu0
        %v1761 = vadd.f32 0.0, %v1760
        %1762 = vdwg.mxu0
        %v1763 = vld [vmem:[%s6] sm:$0xf]
        %v1765 = vsel %vm1679, %v1763, 0
        %1767 = vmatpush.msra.mxu0 0.0
        %1768 = vmatpush.msra.mxu0 0.0
        %1769 = vmatpush.msra.mxu0 0.0
        %1770 = vmatpush.msra.mxu0 0.0
        %1771 = vmatpush.msra.mxu0 0.0
        %1772 = vmatpush.msra.mxu0 0.0
        %1773 = vmatpush.msra.mxu0 0.0
        %1774 = vmatpush.msra.mxu0 0.0
        %1775 = vmatpush.msra.mxu0 0.0
        %1776 = vmatpush.msra.mxu0 0.0
        %1777 = vmatpush.msra.mxu0 0.0
        %1778 = vmatpush.msra.mxu0 0.0
        %1779 = vmatpush.msra.mxu0 0.0
        %1780 = vmatpush.msra.mxu0 0.0
        %1781 = vmatpush.msra.mxu0 0.0
        %1782 = vmatpush.msra.mxu0 %v1674
        %1783 = vmatmul.f32.gmra.mxu0 %v1765
        %v1784 = vpop.f32.mrf.mxu0
        %v1785 = vadd.f32 0.0, %v1784
        %1786 = vdwg.mxu0
        %1787 = vmatpush.msra.mxu0 0.0
        %1788 = vmatpush.msra.mxu0 0.0
        %1789 = vmatpush.msra.mxu0 0.0
        %1790 = vmatpush.msra.mxu0 0.0
        %1791 = vmatpush.msra.mxu0 0.0
        %1792 = vmatpush.msra.mxu0 0.0
        %1793 = vmatpush.msra.mxu0 0.0
        %1794 = vmatpush.msra.mxu0 0.0
        %1795 = vmatpush.msra.mxu0 0.0
        %1796 = vmatpush.msra.mxu0 0.0
        %1797 = vmatpush.msra.mxu0 0.0
        %1798 = vmatpush.msra.mxu0 0.0
        %1799 = vmatpush.msra.mxu0 0.0
        %1800 = vmatpush.msra.mxu0 0.0
        %1801 = vmatpush.msra.mxu0 0.0
        %1802 = vmatpush.msra.mxu0 %v1675
        %1803 = vmatmul.f32.gmra.mxu0 %v1765
        %v1804 = vpop.f32.mrf.mxu0
        %v1805 = vadd.f32 0.0, %v1804
        %1806 = vdwg.mxu0
        %1807 = vmatpush.msra.mxu0 0.0
        %1808 = vmatpush.msra.mxu0 0.0
        %1809 = vmatpush.msra.mxu0 0.0
        %1810 = vmatpush.msra.mxu0 0.0
        %1811 = vmatpush.msra.mxu0 0.0
        %1812 = vmatpush.msra.mxu0 0.0
        %1813 = vmatpush.msra.mxu0 0.0
        %1814 = vmatpush.msra.mxu0 0.0
        %1815 = vmatpush.msra.mxu0 0.0
        %1816 = vmatpush.msra.mxu0 0.0
        %1817 = vmatpush.msra.mxu0 0.0
        %1818 = vmatpush.msra.mxu0 0.0
        %1819 = vmatpush.msra.mxu0 0.0
        %1820 = vmatpush.msra.mxu0 0.0
        %1821 = vmatpush.msra.mxu0 0.0
        %1822 = vmatpush.msra.mxu0 %v1676
        %1823 = vmatmul.f32.gmra.mxu0 %v1765
        %v1824 = vpop.f32.mrf.mxu0
        %v1825 = vadd.f32 0.0, %v1824
        %1826 = vdwg.mxu0
        %1827 = vmatpush.msra.mxu0 0.0
        %1828 = vmatpush.msra.mxu0 0.0
        %1829 = vmatpush.msra.mxu0 0.0
        %1830 = vmatpush.msra.mxu0 0.0
        %1831 = vmatpush.msra.mxu0 0.0
        %1832 = vmatpush.msra.mxu0 0.0
        %1833 = vmatpush.msra.mxu0 0.0
        %1834 = vmatpush.msra.mxu0 0.0
        %1835 = vmatpush.msra.mxu0 0.0
        %1836 = vmatpush.msra.mxu0 0.0
        %1837 = vmatpush.msra.mxu0 0.0
        %1838 = vmatpush.msra.mxu0 0.0
        %1839 = vmatpush.msra.mxu0 0.0
        %1840 = vmatpush.msra.mxu0 0.0
        %1841 = vmatpush.msra.mxu0 0.0
        %1842 = vmatpush.msra.mxu0 %v1677
        %1843 = vmatmul.f32.gmra.mxu0 %v1765
        %v1844 = vpop.f32.mrf.mxu0
        %v1845 = vadd.f32 0.0, %v1844
        %1846 = vdwg.mxu0
        %v1847 = vmax.f32 %v1701, %v1785
        %v1848 = vmax.f32 %v1721, %v1805
        %v1849 = vmax.f32 %v1741, %v1825
        %v1850 = vmax.f32 %v1761, %v1845
        %v1851 = vld [vmem:[#allocation2] sm:$0xff]
        %v1852 = vld [vmem:[#allocation2 + $0x8] sm:$0xff]
        %v1853 = vld [vmem:[#allocation2 + $0x10] sm:$0xff]
        %v1854 = vld [vmem:[#allocation2 + $0x18] sm:$0xff]
        %v1855 = vld [vmem:[#allocation2 + $0x20] sm:$0xff]
        %v1856 = vld [vmem:[#allocation2 + $0x28] sm:$0xff]
        %v1857 = vld [vmem:[#allocation2 + $0x30] sm:$0xff]
        %v1858 = vld [vmem:[#allocation2 + $0x38] sm:$0xff]
        %v1859 = vld [vmem:[#allocation2 + $0x40] sm:$0xff]
        %v1860 = vld [vmem:[#allocation2 + $0x48] sm:$0xff]
        %v1861 = vld [vmem:[#allocation2 + $0x50] sm:$0xff]
        %v1862 = vld [vmem:[#allocation2 + $0x58] sm:$0xff]
        %v1863 = vld [vmem:[#allocation2 + $0x60] sm:$0xff]
        %v1864 = vld [vmem:[#allocation2 + $0x68] sm:$0xff]
        %v1865 = vld [vmem:[#allocation2 + $0x70] sm:$0xff]
        %v1866 = vld [vmem:[#allocation2 + $0x78] sm:$0xff]
        %v1867 = vld [vmem:[#allocation2 + $0x80] sm:$0xff]
        %v1868 = vld [vmem:[#allocation2 + $0x88] sm:$0xff]
        %v1869 = vld [vmem:[#allocation2 + $0x90] sm:$0xff]
        %v1870 = vld [vmem:[#allocation2 + $0x98] sm:$0xff]
        %v1871 = vld [vmem:[#allocation2 + $0xa0] sm:$0xff]
        %v1872 = vld [vmem:[#allocation2 + $0xa8] sm:$0xff]
        %v1873 = vld [vmem:[#allocation2 + $0xb0] sm:$0xff]
        %v1874 = vld [vmem:[#allocation2 + $0xb8] sm:$0xff]
        %v1875 = vld [vmem:[#allocation2 + $0xc0] sm:$0xff]
        %v1876 = vld [vmem:[#allocation2 + $0xc8] sm:$0xff]
        %v1877 = vld [vmem:[#allocation2 + $0xd0] sm:$0xff]
        %v1878 = vld [vmem:[#allocation2 + $0xd8] sm:$0xff]
        %v1879 = vld [vmem:[#allocation2 + $0xe0] sm:$0xff]
        %v1880 = vld [vmem:[#allocation2 + $0xe8] sm:$0xff]
        %v1881 = vld [vmem:[#allocation2 + $0xf0] sm:$0xff]
        %v1882 = vld [vmem:[#allocation2 + $0xf8] sm:$0xff]
        %v1883 = vld [vmem:[#allocation2 + $0x100] sm:$0xff]
        %v1884 = vld [vmem:[#allocation2 + $0x108] sm:$0xff]
        %v1885 = vld [vmem:[#allocation2 + $0x110] sm:$0xff]
        %v1886 = vld [vmem:[#allocation2 + $0x118] sm:$0xff]
        %v1887 = vld [vmem:[#allocation2 + $0x120] sm:$0xff]
        %v1888 = vld [vmem:[#allocation2 + $0x128] sm:$0xff]
        %v1889 = vld [vmem:[#allocation2 + $0x130] sm:$0xff]
        %v1890 = vld [vmem:[#allocation2 + $0x138] sm:$0xff]
        %v1891 = vld [vmem:[#allocation2 + $0x140] sm:$0xff]
        %v1892 = vld [vmem:[#allocation2 + $0x148] sm:$0xff]
        %v1893 = vld [vmem:[#allocation2 + $0x150] sm:$0xff]
        %v1894 = vld [vmem:[#allocation2 + $0x158] sm:$0xff]
        %v1895 = vld [vmem:[#allocation2 + $0x160] sm:$0xff]
        %v1896 = vld [vmem:[#allocation2 + $0x168] sm:$0xff]
        %v1897 = vld [vmem:[#allocation2 + $0x170] sm:$0xff]
        %v1898 = vld [vmem:[#allocation2 + $0x178] sm:$0xff]
        %v1899 = vld [vmem:[#allocation2 + $0x180] sm:$0xff]
        %v1900 = vld [vmem:[#allocation2 + $0x188] sm:$0xff]
        %v1901 = vld [vmem:[#allocation2 + $0x190] sm:$0xff]
        %v1902 = vld [vmem:[#allocation2 + $0x198] sm:$0xff]
        %v1903 = vld [vmem:[#allocation2 + $0x1a0] sm:$0xff]
        %v1904 = vld [vmem:[#allocation2 + $0x1a8] sm:$0xff]
        %v1905 = vld [vmem:[#allocation2 + $0x1b0] sm:$0xff]
        %v1906 = vld [vmem:[#allocation2 + $0x1b8] sm:$0xff]
        %v1907 = vld [vmem:[#allocation2 + $0x1c0] sm:$0xff]
        %v1908 = vld [vmem:[#allocation2 + $0x1c8] sm:$0xff]
        %v1909 = vld [vmem:[#allocation2 + $0x1d0] sm:$0xff]
        %v1910 = vld [vmem:[#allocation2 + $0x1d8] sm:$0xff]
        %v1911 = vld [vmem:[#allocation2 + $0x1e0] sm:$0xff]
        %v1912 = vld [vmem:[#allocation2 + $0x1e8] sm:$0xff]
        %v1913 = vld [vmem:[#allocation2 + $0x1f0] sm:$0xff]
        %v1914 = vld [vmem:[#allocation2 + $0x1f8] sm:$0xff]
        %v1915 = vld [vmem:[#allocation2 + $0x200] sm:$0xff]
        %v1916 = vld [vmem:[#allocation2 + $0x208] sm:$0xff]
        %v1917 = vld [vmem:[#allocation2 + $0x210] sm:$0xff]
        %v1918 = vld [vmem:[#allocation2 + $0x218] sm:$0xff]
        %v1919 = vld [vmem:[#allocation2 + $0x220] sm:$0xff]
        %v1920 = vld [vmem:[#allocation2 + $0x228] sm:$0xff]
        %v1921 = vld [vmem:[#allocation2 + $0x230] sm:$0xff]
        %v1922 = vld [vmem:[#allocation2 + $0x238] sm:$0xff]
        %v1923 = vld [vmem:[#allocation2 + $0x240] sm:$0xff]
        %v1924 = vld [vmem:[#allocation2 + $0x248] sm:$0xff]
        %v1925 = vld [vmem:[#allocation2 + $0x250] sm:$0xff]
        %v1926 = vld [vmem:[#allocation2 + $0x258] sm:$0xff]
        %v1927 = vld [vmem:[#allocation2 + $0x260] sm:$0xff]
        %v1928 = vld [vmem:[#allocation2 + $0x268] sm:$0xff]
        %v1929 = vld [vmem:[#allocation2 + $0x270] sm:$0xff]
        %v1930 = vld [vmem:[#allocation2 + $0x278] sm:$0xff]
        %v1931 = vld [vmem:[#allocation2 + $0x280] sm:$0xff]
        %v1932 = vld [vmem:[#allocation2 + $0x288] sm:$0xff]
        %v1933 = vld [vmem:[#allocation2 + $0x290] sm:$0xff]
        %v1934 = vld [vmem:[#allocation2 + $0x298] sm:$0xff]
        %v1935 = vld [vmem:[#allocation2 + $0x2a0] sm:$0xff]
        %v1936 = vld [vmem:[#allocation2 + $0x2a8] sm:$0xff]
        %v1937 = vld [vmem:[#allocation2 + $0x2b0] sm:$0xff]
        %v1938 = vld [vmem:[#allocation2 + $0x2b8] sm:$0xff]
        %v1939 = vld [vmem:[#allocation2 + $0x2c0] sm:$0xff]
        %v1940 = vld [vmem:[#allocation2 + $0x2c8] sm:$0xff]
        %v1941 = vld [vmem:[#allocation2 + $0x2d0] sm:$0xff]
        %v1942 = vld [vmem:[#allocation2 + $0x2d8] sm:$0xff]
        %v1943 = vld [vmem:[#allocation2 + $0x2e0] sm:$0xff]
        %v1944 = vld [vmem:[#allocation2 + $0x2e8] sm:$0xff]
        %v1945 = vld [vmem:[#allocation2 + $0x2f0] sm:$0xff]
        %v1946 = vld [vmem:[#allocation2 + $0x2f8] sm:$0xff]
        %v1947 = vld [vmem:[#allocation2 + $0x300] sm:$0xff]
        %v1948 = vld [vmem:[#allocation2 + $0x308] sm:$0xff]
        %v1949 = vld [vmem:[#allocation2 + $0x310] sm:$0xff]
        %v1950 = vld [vmem:[#allocation2 + $0x318] sm:$0xff]
        %v1951 = vld [vmem:[#allocation2 + $0x320] sm:$0xff]
        %v1952 = vld [vmem:[#allocation2 + $0x328] sm:$0xff]
        %v1953 = vld [vmem:[#allocation2 + $0x330] sm:$0xff]
        %v1954 = vld [vmem:[#allocation2 + $0x338] sm:$0xff]
        %v1955 = vld [vmem:[#allocation2 + $0x340] sm:$0xff]
        %v1956 = vld [vmem:[#allocation2 + $0x348] sm:$0xff]
        %v1957 = vld [vmem:[#allocation2 + $0x350] sm:$0xff]
        %v1958 = vld [vmem:[#allocation2 + $0x358] sm:$0xff]
        %v1959 = vld [vmem:[#allocation2 + $0x360] sm:$0xff]
        %v1960 = vld [vmem:[#allocation2 + $0x368] sm:$0xff]
        %v1961 = vld [vmem:[#allocation2 + $0x370] sm:$0xff]
        %v1962 = vld [vmem:[#allocation2 + $0x378] sm:$0xff]
        %v1963 = vld [vmem:[#allocation2 + $0x380] sm:$0xff]
        %v1964 = vld [vmem:[#allocation2 + $0x388] sm:$0xff]
        %v1965 = vld [vmem:[#allocation2 + $0x390] sm:$0xff]
        %v1966 = vld [vmem:[#allocation2 + $0x398] sm:$0xff]
        %v1967 = vld [vmem:[#allocation2 + $0x3a0] sm:$0xff]
        %v1968 = vld [vmem:[#allocation2 + $0x3a8] sm:$0xff]
        %v1969 = vld [vmem:[#allocation2 + $0x3b0] sm:$0xff]
        %v1970 = vld [vmem:[#allocation2 + $0x3b8] sm:$0xff]
        %v1971 = vld [vmem:[#allocation2 + $0x3c0] sm:$0xff]
        %v1972 = vld [vmem:[#allocation2 + $0x3c8] sm:$0xff]
        %v1973 = vld [vmem:[#allocation2 + $0x3d0] sm:$0xff]
        %v1974 = vld [vmem:[#allocation2 + $0x3d8] sm:$0xff]
        %v1975 = vld [vmem:[#allocation2 + $0x3e0] sm:$0xff]
        %v1976 = vld [vmem:[#allocation2 + $0x3e8] sm:$0xff]
        %v1977 = vld [vmem:[#allocation2 + $0x3f0] sm:$0xff]
        %v1978 = vld [vmem:[#allocation2 + $0x3f8] sm:$0xff]
        %1979 = vmatpush.msra.mxu0 %v1881
        %1980 = vmatpush.msra.mxu0 %v1879
        %1981 = vmatpush.msra.mxu0 %v1877
        %1982 = vmatpush.msra.mxu0 %v1875
        %1983 = vmatpush.msra.mxu0 %v1873
        %1984 = vmatpush.msra.mxu0 %v1871
        %1985 = vmatpush.msra.mxu0 %v1869
        %1986 = vmatpush.msra.mxu0 %v1867
        %1987 = vmatpush.msra.mxu0 %v1865
        %1988 = vmatpush.msra.mxu0 %v1863
        %1989 = vmatpush.msra.mxu0 %v1861
        %1990 = vmatpush.msra.mxu0 %v1859
        %1991 = vmatpush.msra.mxu0 %v1857
        %1992 = vmatpush.msra.mxu0 %v1855
        %1993 = vmatpush.msra.mxu0 %v1853
        %1994 = vmatpush.msra.mxu0 %v1851
        %1995 = vmatmul.f32.gmra.mxu0 %v1847
        %v1996 = vpop.f32.mrf.mxu0
        %v1997 = vadd.f32 0.0, %v1996
        %1998 = vdwg.mxu0
        %1999 = vmatpush.msra.mxu0 %v1913
        %2000 = vmatpush.msra.mxu0 %v1911
        %2001 = vmatpush.msra.mxu0 %v1909
        %2002 = vmatpush.msra.mxu0 %v1907
        %2003 = vmatpush.msra.mxu0 %v1905
        %2004 = vmatpush.msra.mxu0 %v1903
        %2005 = vmatpush.msra.mxu0 %v1901
        %2006 = vmatpush.msra.mxu0 %v1899
        %2007 = vmatpush.msra.mxu0 %v1897
        %2008 = vmatpush.msra.mxu0 %v1895
        %2009 = vmatpush.msra.mxu0 %v1893
        %2010 = vmatpush.msra.mxu0 %v1891
        %2011 = vmatpush.msra.mxu0 %v1889
        %2012 = vmatpush.msra.mxu0 %v1887
        %2013 = vmatpush.msra.mxu0 %v1885
        %2014 = vmatpush.msra.mxu0 %v1883
        %2015 = vmatmul.f32.gmra.mxu0 %v1848
        %v2016 = vpop.f32.mrf.mxu0
        %v2017 = vadd.f32 %v1997, %v2016
        %2018 = vdwg.mxu0
        %2019 = vmatpush.msra.mxu0 %v1945
        %2020 = vmatpush.msra.mxu0 %v1943
        %2021 = vmatpush.msra.mxu0 %v1941
        %2022 = vmatpush.msra.mxu0 %v1939
        %2023 = vmatpush.msra.mxu0 %v1937
        %2024 = vmatpush.msra.mxu0 %v1935
        %2025 = vmatpush.msra.mxu0 %v1933
        %2026 = vmatpush.msra.mxu0 %v1931
        %2027 = vmatpush.msra.mxu0 %v1929
        %2028 = vmatpush.msra.mxu0 %v1927
        %2029 = vmatpush.msra.mxu0 %v1925
        %2030 = vmatpush.msra.mxu0 %v1923
        %2031 = vmatpush.msra.mxu0 %v1921
        %2032 = vmatpush.msra.mxu0 %v1919
        %2033 = vmatpush.msra.mxu0 %v1917
        %2034 = vmatpush.msra.mxu0 %v1915
        %2035 = vmatmul.f32.gmra.mxu0 %v1849
        %v2036 = vpop.f32.mrf.mxu0
        %v2037 = vadd.f32 %v2017, %v2036
        %2038 = vdwg.mxu0
        %2039 = vmatpush.msra.mxu0 %v1977
        %2040 = vmatpush.msra.mxu0 %v1975
        %2041 = vmatpush.msra.mxu0 %v1973
        %2042 = vmatpush.msra.mxu0 %v1971
        %2043 = vmatpush.msra.mxu0 %v1969
        %2044 = vmatpush.msra.mxu0 %v1967
        %2045 = vmatpush.msra.mxu0 %v1965
        %2046 = vmatpush.msra.mxu0 %v1963
        %2047 = vmatpush.msra.mxu0 %v1961
        %2048 = vmatpush.msra.mxu0 %v1959
        %2049 = vmatpush.msra.mxu0 %v1957
        %2050 = vmatpush.msra.mxu0 %v1955
        %2051 = vmatpush.msra.mxu0 %v1953
        %2052 = vmatpush.msra.mxu0 %v1951
        %2053 = vmatpush.msra.mxu0 %v1949
        %2054 = vmatpush.msra.mxu0 %v1947
        %2055 = vmatmul.f32.gmra.mxu0 %v1850
        %v2056 = vpop.f32.mrf.mxu0
        %v2057 = vadd.f32 %v2037, %v2056
        %2058 = vdwg.mxu0
        %2059 = vmatpush.msra.mxu0 %v1882
        %2060 = vmatpush.msra.mxu0 %v1880
        %2061 = vmatpush.msra.mxu0 %v1878
        %2062 = vmatpush.msra.mxu0 %v1876
        %2063 = vmatpush.msra.mxu0 %v1874
        %2064 = vmatpush.msra.mxu0 %v1872
        %2065 = vmatpush.msra.mxu0 %v1870
        %2066 = vmatpush.msra.mxu0 %v1868
        %2067 = vmatpush.msra.mxu0 %v1866
        %2068 = vmatpush.msra.mxu0 %v1864
        %2069 = vmatpush.msra.mxu0 %v1862
        %2070 = vmatpush.msra.mxu0 %v1860
        %2071 = vmatpush.msra.mxu0 %v1858
        %2072 = vmatpush.msra.mxu0 %v1856
        %2073 = vmatpush.msra.mxu0 %v1854
        %2074 = vmatpush.msra.mxu0 %v1852
        %2075 = vmatmul.f32.gmra.mxu0 %v1847
        %v2076 = vpop.f32.mrf.mxu0
        %v2077 = vadd.f32 0.0, %v2076
        %2078 = vdwg.mxu0
        %2079 = vmatpush.msra.mxu0 %v1914
        %2080 = vmatpush.msra.mxu0 %v1912
        %2081 = vmatpush.msra.mxu0 %v1910
        %2082 = vmatpush.msra.mxu0 %v1908
        %2083 = vmatpush.msra.mxu0 %v1906
        %2084 = vmatpush.msra.mxu0 %v1904
        %2085 = vmatpush.msra.mxu0 %v1902
        %2086 = vmatpush.msra.mxu0 %v1900
        %2087 = vmatpush.msra.mxu0 %v1898
        %2088 = vmatpush.msra.mxu0 %v1896
        %2089 = vmatpush.msra.mxu0 %v1894
        %2090 = vmatpush.msra.mxu0 %v1892
        %2091 = vmatpush.msra.mxu0 %v1890
        %2092 = vmatpush.msra.mxu0 %v1888
        %2093 = vmatpush.msra.mxu0 %v1886
        %2094 = vmatpush.msra.mxu0 %v1884
        %2095 = vmatmul.f32.gmra.mxu0 %v1848
        %v2096 = vpop.f32.mrf.mxu0
        %v2097 = vadd.f32 %v2077, %v2096
        %2098 = vdwg.mxu0
        %2099 = vmatpush.msra.mxu0 %v1946
        %2100 = vmatpush.msra.mxu0 %v1944
        %2101 = vmatpush.msra.mxu0 %v1942
        %2102 = vmatpush.msra.mxu0 %v1940
        %2103 = vmatpush.msra.mxu0 %v1938
        %2104 = vmatpush.msra.mxu0 %v1936
        %2105 = vmatpush.msra.mxu0 %v1934
        %2106 = vmatpush.msra.mxu0 %v1932
        %2107 = vmatpush.msra.mxu0 %v1930
        %2108 = vmatpush.msra.mxu0 %v1928
        %2109 = vmatpush.msra.mxu0 %v1926
        %2110 = vmatpush.msra.mxu0 %v1924
        %2111 = vmatpush.msra.mxu0 %v1922
        %2112 = vmatpush.msra.mxu0 %v1920
        %2113 = vmatpush.msra.mxu0 %v1918
        %2114 = vmatpush.msra.mxu0 %v1916
        %2115 = vmatmul.f32.gmra.mxu0 %v1849
        %v2116 = vpop.f32.mrf.mxu0
        %v2117 = vadd.f32 %v2097, %v2116
        %2118 = vdwg.mxu0
        %2119 = vmatpush.msra.mxu0 %v1978
        %2120 = vmatpush.msra.mxu0 %v1976
        %2121 = vmatpush.msra.mxu0 %v1974
        %2122 = vmatpush.msra.mxu0 %v1972
        %2123 = vmatpush.msra.mxu0 %v1970
        %2124 = vmatpush.msra.mxu0 %v1968
        %2125 = vmatpush.msra.mxu0 %v1966
        %2126 = vmatpush.msra.mxu0 %v1964
        %2127 = vmatpush.msra.mxu0 %v1962
        %2128 = vmatpush.msra.mxu0 %v1960
        %2129 = vmatpush.msra.mxu0 %v1958
        %2130 = vmatpush.msra.mxu0 %v1956
        %2131 = vmatpush.msra.mxu0 %v1954
        %2132 = vmatpush.msra.mxu0 %v1952
        %2133 = vmatpush.msra.mxu0 %v1950
        %2134 = vmatpush.msra.mxu0 %v1948
        %2135 = vmatmul.f32.gmra.mxu0 %v1850
        %v2136 = vpop.f32.mrf.mxu0
        %v2137 = vadd.f32 %v2117, %v2136
        %2138 = vdwg.mxu0
        %v2139 = vld [vmem:[#allocation4] sm:$0xff]
        %v2140 = vld [vmem:[#allocation4 + $0x8] sm:$0xff]
        %v2141 = vld [vmem:[#allocation4 + $0x10] sm:$0xff]
        %v2142 = vld [vmem:[#allocation4 + $0x18] sm:$0xff]
        %v2143 = vld [vmem:[#allocation4 + $0x20] sm:$0xff]
        %v2144 = vld [vmem:[#allocation4 + $0x28] sm:$0xff]
        %v2145 = vld [vmem:[#allocation4 + $0x30] sm:$0xff]
        %v2146 = vld [vmem:[#allocation4 + $0x38] sm:$0xff]
        %v2147 = vld [vmem:[#allocation4 + $0x40] sm:$0xff]
        %v2148 = vld [vmem:[#allocation4 + $0x48] sm:$0xff]
        %v2149 = vld [vmem:[#allocation4 + $0x50] sm:$0xff]
        %v2150 = vld [vmem:[#allocation4 + $0x58] sm:$0xff]
        %v2151 = vld [vmem:[#allocation4 + $0x60] sm:$0xff]
        %v2152 = vld [vmem:[#allocation4 + $0x68] sm:$0xff]
        %v2153 = vld [vmem:[#allocation4 + $0x70] sm:$0xff]
        %v2154 = vld [vmem:[#allocation4 + $0x78] sm:$0xff]
        %v2155 = vld [vmem:[#allocation4 + $0x80] sm:$0xff]
        %v2156 = vld [vmem:[#allocation4 + $0x88] sm:$0xff]
        %v2157 = vld [vmem:[#allocation4 + $0x90] sm:$0xff]
        %v2158 = vld [vmem:[#allocation4 + $0x98] sm:$0xff]
        %v2159 = vld [vmem:[#allocation4 + $0xa0] sm:$0xff]
        %v2160 = vld [vmem:[#allocation4 + $0xa8] sm:$0xff]
        %v2161 = vld [vmem:[#allocation4 + $0xb0] sm:$0xff]
        %v2162 = vld [vmem:[#allocation4 + $0xb8] sm:$0xff]
        %v2163 = vld [vmem:[#allocation4 + $0xc0] sm:$0xff]
        %v2164 = vld [vmem:[#allocation4 + $0xc8] sm:$0xff]
        %v2165 = vld [vmem:[#allocation4 + $0xd0] sm:$0xff]
        %v2166 = vld [vmem:[#allocation4 + $0xd8] sm:$0xff]
        %v2167 = vld [vmem:[#allocation4 + $0xe0] sm:$0xff]
        %v2168 = vld [vmem:[#allocation4 + $0xe8] sm:$0xff]
        %v2169 = vld [vmem:[#allocation4 + $0xf0] sm:$0xff]
        %v2170 = vld [vmem:[#allocation4 + $0xf8] sm:$0xff]
        %v2171 = vld [vmem:[#allocation4 + $0x100] sm:$0xff]
        %v2172 = vld [vmem:[#allocation4 + $0x108] sm:$0xff]
        %v2173 = vld [vmem:[#allocation4 + $0x110] sm:$0xff]
        %v2174 = vld [vmem:[#allocation4 + $0x118] sm:$0xff]
        %v2175 = vld [vmem:[#allocation4 + $0x120] sm:$0xff]
        %v2176 = vld [vmem:[#allocation4 + $0x128] sm:$0xff]
        %v2177 = vld [vmem:[#allocation4 + $0x130] sm:$0xff]
        %v2178 = vld [vmem:[#allocation4 + $0x138] sm:$0xff]
        %v2179 = vld [vmem:[#allocation4 + $0x140] sm:$0xff]
        %v2180 = vld [vmem:[#allocation4 + $0x148] sm:$0xff]
        %v2181 = vld [vmem:[#allocation4 + $0x150] sm:$0xff]
        %v2182 = vld [vmem:[#allocation4 + $0x158] sm:$0xff]
        %v2183 = vld [vmem:[#allocation4 + $0x160] sm:$0xff]
        %v2184 = vld [vmem:[#allocation4 + $0x168] sm:$0xff]
        %v2185 = vld [vmem:[#allocation4 + $0x170] sm:$0xff]
        %v2186 = vld [vmem:[#allocation4 + $0x178] sm:$0xff]
        %v2187 = vld [vmem:[#allocation4 + $0x180] sm:$0xff]
        %v2188 = vld [vmem:[#allocation4 + $0x188] sm:$0xff]
        %v2189 = vld [vmem:[#allocation4 + $0x190] sm:$0xff]
        %v2190 = vld [vmem:[#allocation4 + $0x198] sm:$0xff]
        %v2191 = vld [vmem:[#allocation4 + $0x1a0] sm:$0xff]
        %v2192 = vld [vmem:[#allocation4 + $0x1a8] sm:$0xff]
        %v2193 = vld [vmem:[#allocation4 + $0x1b0] sm:$0xff]
        %v2194 = vld [vmem:[#allocation4 + $0x1b8] sm:$0xff]
        %v2195 = vld [vmem:[#allocation4 + $0x1c0] sm:$0xff]
        %v2196 = vld [vmem:[#allocation4 + $0x1c8] sm:$0xff]
        %v2197 = vld [vmem:[#allocation4 + $0x1d0] sm:$0xff]
        %v2198 = vld [vmem:[#allocation4 + $0x1d8] sm:$0xff]
        %v2199 = vld [vmem:[#allocation4 + $0x1e0] sm:$0xff]
        %v2200 = vld [vmem:[#allocation4 + $0x1e8] sm:$0xff]
        %v2201 = vld [vmem:[#allocation4 + $0x1f0] sm:$0xff]
        %v2202 = vld [vmem:[#allocation4 + $0x1f8] sm:$0xff]
        %v2203 = vld [vmem:[#allocation4 + $0x200] sm:$0xff]
        %v2204 = vld [vmem:[#allocation4 + $0x208] sm:$0xff]
        %v2205 = vld [vmem:[#allocation4 + $0x210] sm:$0xff]
        %v2206 = vld [vmem:[#allocation4 + $0x218] sm:$0xff]
        %v2207 = vld [vmem:[#allocation4 + $0x220] sm:$0xff]
        %v2208 = vld [vmem:[#allocation4 + $0x228] sm:$0xff]
        %v2209 = vld [vmem:[#allocation4 + $0x230] sm:$0xff]
        %v2210 = vld [vmem:[#allocation4 + $0x238] sm:$0xff]
        %v2211 = vld [vmem:[#allocation4 + $0x240] sm:$0xff]
        %v2212 = vld [vmem:[#allocation4 + $0x248] sm:$0xff]
        %v2213 = vld [vmem:[#allocation4 + $0x250] sm:$0xff]
        %v2214 = vld [vmem:[#allocation4 + $0x258] sm:$0xff]
        %v2215 = vld [vmem:[#allocation4 + $0x260] sm:$0xff]
        %v2216 = vld [vmem:[#allocation4 + $0x268] sm:$0xff]
        %v2217 = vld [vmem:[#allocation4 + $0x270] sm:$0xff]
        %v2218 = vld [vmem:[#allocation4 + $0x278] sm:$0xff]
        %v2219 = vld [vmem:[#allocation4 + $0x280] sm:$0xff]
        %v2220 = vld [vmem:[#allocation4 + $0x288] sm:$0xff]
        %v2221 = vld [vmem:[#allocation4 + $0x290] sm:$0xff]
        %v2222 = vld [vmem:[#allocation4 + $0x298] sm:$0xff]
        %v2223 = vld [vmem:[#allocation4 + $0x2a0] sm:$0xff]
        %v2224 = vld [vmem:[#allocation4 + $0x2a8] sm:$0xff]
        %v2225 = vld [vmem:[#allocation4 + $0x2b0] sm:$0xff]
        %v2226 = vld [vmem:[#allocation4 + $0x2b8] sm:$0xff]
        %v2227 = vld [vmem:[#allocation4 + $0x2c0] sm:$0xff]
        %v2228 = vld [vmem:[#allocation4 + $0x2c8] sm:$0xff]
        %v2229 = vld [vmem:[#allocation4 + $0x2d0] sm:$0xff]
        %v2230 = vld [vmem:[#allocation4 + $0x2d8] sm:$0xff]
        %v2231 = vld [vmem:[#allocation4 + $0x2e0] sm:$0xff]
        %v2232 = vld [vmem:[#allocation4 + $0x2e8] sm:$0xff]
        %v2233 = vld [vmem:[#allocation4 + $0x2f0] sm:$0xff]
        %v2234 = vld [vmem:[#allocation4 + $0x2f8] sm:$0xff]
        %v2235 = vld [vmem:[#allocation4 + $0x300] sm:$0xff]
        %v2236 = vld [vmem:[#allocation4 + $0x308] sm:$0xff]
        %v2237 = vld [vmem:[#allocation4 + $0x310] sm:$0xff]
        %v2238 = vld [vmem:[#allocation4 + $0x318] sm:$0xff]
        %v2239 = vld [vmem:[#allocation4 + $0x320] sm:$0xff]
        %v2240 = vld [vmem:[#allocation4 + $0x328] sm:$0xff]
        %v2241 = vld [vmem:[#allocation4 + $0x330] sm:$0xff]
        %v2242 = vld [vmem:[#allocation4 + $0x338] sm:$0xff]
        %v2243 = vld [vmem:[#allocation4 + $0x340] sm:$0xff]
        %v2244 = vld [vmem:[#allocation4 + $0x348] sm:$0xff]
        %v2245 = vld [vmem:[#allocation4 + $0x350] sm:$0xff]
        %v2246 = vld [vmem:[#allocation4 + $0x358] sm:$0xff]
        %v2247 = vld [vmem:[#allocation4 + $0x360] sm:$0xff]
        %v2248 = vld [vmem:[#allocation4 + $0x368] sm:$0xff]
        %v2249 = vld [vmem:[#allocation4 + $0x370] sm:$0xff]
        %v2250 = vld [vmem:[#allocation4 + $0x378] sm:$0xff]
        %v2251 = vld [vmem:[#allocation4 + $0x380] sm:$0xff]
        %v2252 = vld [vmem:[#allocation4 + $0x388] sm:$0xff]
        %v2253 = vld [vmem:[#allocation4 + $0x390] sm:$0xff]
        %v2254 = vld [vmem:[#allocation4 + $0x398] sm:$0xff]
        %v2255 = vld [vmem:[#allocation4 + $0x3a0] sm:$0xff]
        %v2256 = vld [vmem:[#allocation4 + $0x3a8] sm:$0xff]
        %v2257 = vld [vmem:[#allocation4 + $0x3b0] sm:$0xff]
        %v2258 = vld [vmem:[#allocation4 + $0x3b8] sm:$0xff]
        %v2259 = vld [vmem:[#allocation4 + $0x3c0] sm:$0xff]
        %v2260 = vld [vmem:[#allocation4 + $0x3c8] sm:$0xff]
        %v2261 = vld [vmem:[#allocation4 + $0x3d0] sm:$0xff]
        %v2262 = vld [vmem:[#allocation4 + $0x3d8] sm:$0xff]
        %v2263 = vld [vmem:[#allocation4 + $0x3e0] sm:$0xff]
        %v2264 = vld [vmem:[#allocation4 + $0x3e8] sm:$0xff]
        %v2265 = vld [vmem:[#allocation4 + $0x3f0] sm:$0xff]
        %v2266 = vld [vmem:[#allocation4 + $0x3f8] sm:$0xff]
        %2267 = vmatpush.msra.mxu0 %v2169
        %2268 = vmatpush.msra.mxu0 %v2167
        %2269 = vmatpush.msra.mxu0 %v2165
        %2270 = vmatpush.msra.mxu0 %v2163
        %2271 = vmatpush.msra.mxu0 %v2161
        %2272 = vmatpush.msra.mxu0 %v2159
        %2273 = vmatpush.msra.mxu0 %v2157
        %2274 = vmatpush.msra.mxu0 %v2155
        %2275 = vmatpush.msra.mxu0 %v2153
        %2276 = vmatpush.msra.mxu0 %v2151
        %2277 = vmatpush.msra.mxu0 %v2149
        %2278 = vmatpush.msra.mxu0 %v2147
        %2279 = vmatpush.msra.mxu0 %v2145
        %2280 = vmatpush.msra.mxu0 %v2143
        %2281 = vmatpush.msra.mxu0 %v2141
        %2282 = vmatpush.msra.mxu0 %v2139
        %2283 = vmatmul.f32.gmra.mxu0 %v1847
        %v2284 = vpop.f32.mrf.mxu0
        %v2285 = vadd.f32 0.0, %v2284
        %2286 = vdwg.mxu0
        %2287 = vmatpush.msra.mxu0 %v2201
        %2288 = vmatpush.msra.mxu0 %v2199
        %2289 = vmatpush.msra.mxu0 %v2197
        %2290 = vmatpush.msra.mxu0 %v2195
        %2291 = vmatpush.msra.mxu0 %v2193
        %2292 = vmatpush.msra.mxu0 %v2191
        %2293 = vmatpush.msra.mxu0 %v2189
        %2294 = vmatpush.msra.mxu0 %v2187
        %2295 = vmatpush.msra.mxu0 %v2185
        %2296 = vmatpush.msra.mxu0 %v2183
        %2297 = vmatpush.msra.mxu0 %v2181
        %2298 = vmatpush.msra.mxu0 %v2179
        %2299 = vmatpush.msra.mxu0 %v2177
        %2300 = vmatpush.msra.mxu0 %v2175
        %2301 = vmatpush.msra.mxu0 %v2173
        %2302 = vmatpush.msra.mxu0 %v2171
        %2303 = vmatmul.f32.gmra.mxu0 %v1848
        %v2304 = vpop.f32.mrf.mxu0
        %v2305 = vadd.f32 %v2285, %v2304
        %2306 = vdwg.mxu0
        %2307 = vmatpush.msra.mxu0 %v2233
        %2308 = vmatpush.msra.mxu0 %v2231
        %2309 = vmatpush.msra.mxu0 %v2229
        %2310 = vmatpush.msra.mxu0 %v2227
        %2311 = vmatpush.msra.mxu0 %v2225
        %2312 = vmatpush.msra.mxu0 %v2223
        %2313 = vmatpush.msra.mxu0 %v2221
        %2314 = vmatpush.msra.mxu0 %v2219
        %2315 = vmatpush.msra.mxu0 %v2217
        %2316 = vmatpush.msra.mxu0 %v2215
        %2317 = vmatpush.msra.mxu0 %v2213
        %2318 = vmatpush.msra.mxu0 %v2211
        %2319 = vmatpush.msra.mxu0 %v2209
        %2320 = vmatpush.msra.mxu0 %v2207
        %2321 = vmatpush.msra.mxu0 %v2205
        %2322 = vmatpush.msra.mxu0 %v2203
        %2323 = vmatmul.f32.gmra.mxu0 %v1849
        %v2324 = vpop.f32.mrf.mxu0
        %v2325 = vadd.f32 %v2305, %v2324
        %2326 = vdwg.mxu0
        %2327 = vmatpush.msra.mxu0 %v2265
        %2328 = vmatpush.msra.mxu0 %v2263
        %2329 = vmatpush.msra.mxu0 %v2261
        %2330 = vmatpush.msra.mxu0 %v2259
        %2331 = vmatpush.msra.mxu0 %v2257
        %2332 = vmatpush.msra.mxu0 %v2255
        %2333 = vmatpush.msra.mxu0 %v2253
        %2334 = vmatpush.msra.mxu0 %v2251
        %2335 = vmatpush.msra.mxu0 %v2249
        %2336 = vmatpush.msra.mxu0 %v2247
        %2337 = vmatpush.msra.mxu0 %v2245
        %2338 = vmatpush.msra.mxu0 %v2243
        %2339 = vmatpush.msra.mxu0 %v2241
        %2340 = vmatpush.msra.mxu0 %v2239
        %2341 = vmatpush.msra.mxu0 %v2237
        %2342 = vmatpush.msra.mxu0 %v2235
        %2343 = vmatmul.f32.gmra.mxu0 %v1850
        %v2344 = vpop.f32.mrf.mxu0
        %v2345 = vadd.f32 %v2325, %v2344
        %2346 = vdwg.mxu0
        %2347 = vmatpush.msra.mxu0 %v2170
        %2348 = vmatpush.msra.mxu0 %v2168
        %2349 = vmatpush.msra.mxu0 %v2166
        %2350 = vmatpush.msra.mxu0 %v2164
        %2351 = vmatpush.msra.mxu0 %v2162
        %2352 = vmatpush.msra.mxu0 %v2160
        %2353 = vmatpush.msra.mxu0 %v2158
        %2354 = vmatpush.msra.mxu0 %v2156
        %2355 = vmatpush.msra.mxu0 %v2154
        %2356 = vmatpush.msra.mxu0 %v2152
        %2357 = vmatpush.msra.mxu0 %v2150
        %2358 = vmatpush.msra.mxu0 %v2148
        %2359 = vmatpush.msra.mxu0 %v2146
        %2360 = vmatpush.msra.mxu0 %v2144
        %2361 = vmatpush.msra.mxu0 %v2142
        %2362 = vmatpush.msra.mxu0 %v2140
        %2363 = vmatmul.f32.gmra.mxu0 %v1847
        %v2364 = vpop.f32.mrf.mxu0
        %v2365 = vadd.f32 0.0, %v2364
        %2366 = vdwg.mxu0
        %2367 = vmatpush.msra.mxu0 %v2202
        %2368 = vmatpush.msra.mxu0 %v2200
        %2369 = vmatpush.msra.mxu0 %v2198
        %2370 = vmatpush.msra.mxu0 %v2196
        %2371 = vmatpush.msra.mxu0 %v2194
        %2372 = vmatpush.msra.mxu0 %v2192
        %2373 = vmatpush.msra.mxu0 %v2190
        %2374 = vmatpush.msra.mxu0 %v2188
        %2375 = vmatpush.msra.mxu0 %v2186
        %2376 = vmatpush.msra.mxu0 %v2184
        %2377 = vmatpush.msra.mxu0 %v2182
        %2378 = vmatpush.msra.mxu0 %v2180
        %2379 = vmatpush.msra.mxu0 %v2178
        %2380 = vmatpush.msra.mxu0 %v2176
        %2381 = vmatpush.msra.mxu0 %v2174
        %2382 = vmatpush.msra.mxu0 %v2172
        %2383 = vmatmul.f32.gmra.mxu0 %v1848
        %v2384 = vpop.f32.mrf.mxu0
        %v2385 = vadd.f32 %v2365, %v2384
        %2386 = vdwg.mxu0
        %2387 = vmatpush.msra.mxu0 %v2234
        %2388 = vmatpush.msra.mxu0 %v2232
        %2389 = vmatpush.msra.mxu0 %v2230
        %2390 = vmatpush.msra.mxu0 %v2228
        %2391 = vmatpush.msra.mxu0 %v2226
        %2392 = vmatpush.msra.mxu0 %v2224
        %2393 = vmatpush.msra.mxu0 %v2222
        %2394 = vmatpush.msra.mxu0 %v2220
        %2395 = vmatpush.msra.mxu0 %v2218
        %2396 = vmatpush.msra.mxu0 %v2216
        %2397 = vmatpush.msra.mxu0 %v2214
        %2398 = vmatpush.msra.mxu0 %v2212
        %2399 = vmatpush.msra.mxu0 %v2210
        %2400 = vmatpush.msra.mxu0 %v2208
        %2401 = vmatpush.msra.mxu0 %v2206
        %2402 = vmatpush.msra.mxu0 %v2204
        %2403 = vmatmul.f32.gmra.mxu0 %v1849
        %v2404 = vpop.f32.mrf.mxu0
        %v2405 = vadd.f32 %v2385, %v2404
        %2406 = vdwg.mxu0
        %2407 = vmatpush.msra.mxu0 %v2266
        %2408 = vmatpush.msra.mxu0 %v2264
        %2409 = vmatpush.msra.mxu0 %v2262
        %2410 = vmatpush.msra.mxu0 %v2260
        %2411 = vmatpush.msra.mxu0 %v2258
        %2412 = vmatpush.msra.mxu0 %v2256
        %2413 = vmatpush.msra.mxu0 %v2254
        %2414 = vmatpush.msra.mxu0 %v2252
        %2415 = vmatpush.msra.mxu0 %v2250
        %2416 = vmatpush.msra.mxu0 %v2248
        %2417 = vmatpush.msra.mxu0 %v2246
        %2418 = vmatpush.msra.mxu0 %v2244
        %2419 = vmatpush.msra.mxu0 %v2242
        %2420 = vmatpush.msra.mxu0 %v2240
        %2421 = vmatpush.msra.mxu0 %v2238
        %2422 = vmatpush.msra.mxu0 %v2236
        %2423 = vmatmul.f32.gmra.mxu0 %v1850
        %v2424 = vpop.f32.mrf.mxu0
        %v2425 = vadd.f32 %v2405, %v2424
        %2426 = vdwg.mxu0
        %v2427 = vmax.f32 %v2057, %v2345
        %v2428 = vmax.f32 %v2137, %v2425
        %v2431 = vrot.slane %v2428, 4
        %vm2432 = vcmask 1043456
        %v2433 = vsel %vm2432, %v2427, %v2431
        %2435 = vst [vmem:[%s366] sm:$0xff] %v2433
        %p2436 = scmp.lt.s32.totalorder %s22, 1
        %s2437 = scalar_select %p2436, %s22, 1
        %s2438 = smul.addr %s2437, 2
        %s2439 = smul.addr %s2438, 4
        %s2440 = scalar_lea.vmem %s9, %s2439
        // Predicated region
        $region65: #{cnn_forward.6} parent=55 // pred_check
          %p2441 = pneg %p234
        $region66: #{cnn_forward.6} parent=55 // pred_check_branch
          %2443 = sbr.rel (%p2441) target = $region68
        $region67: #{cnn_forward.6} parent=55 // pred_region
          _
        $region68: #{cnn_forward.6} parent=55 // pred_fallthru
          _
      $region56: #{cnn_forward.6} parent=5 // pred_fallthru
        _
      %p2444 = scmp.le.s32.totalorder 2, %s17
      // Predicated region
      $region69: #{cnn_forward.6} parent=5 // pred_check
        %p2445 = pneg %p2444
      $region70: #{cnn_forward.6} parent=5 // pred_check_branch
        %2447 = sbr.rel (%p2445) target = $region72
      $region71: #{cnn_forward.6} parent=5 // pred_region
        %s2448 = ssub.s32 %s17, 2
        // Predicated region
        $region73: #{cnn_forward.6} parent=71 // pred_check
          %p2449 = pneg %p240
        $region74: #{cnn_forward.6} parent=71 // pred_check_branch
          %2451 = sbr.rel (%p2449) target = $region76
        $region75: #{cnn_forward.6} parent=71 // pred_region
          %p2452 = scmp.lt.s32.totalorder %s23, 1
          %s2453 = scalar_select %p2452, %s23, 1
          %s2454 = smul.addr %s2453, 2
          %s2455 = smul.addr %s2454, 4
          %s2456 = scalar_lea.vmem %s9, %s2455
        $region76: #{cnn_forward.6} parent=71 // pred_fallthru
          _
      $region72: #{cnn_forward.6} parent=5 // pred_fallthru
        _
    $region6: #{cnn_forward.6} parent=1 // loop_footer
      %s21 = sadd.s32 1, %s17
    $region7: #{cnn_forward.6} parent=1 // loop_footer_branch
      %16 = sbr.rel target = $region3
    $region8: #{cnn_forward.6} parent=1 // loop_exit
      _
    %2457 = vsyncpa [#allocation3], 1
    %s2458 = scalar_lea.sflag [#allocation3], 1
    %2459 = vsyncpa %s2458, 1
    %2460 = vsyncpa [#allocation5], 1

</llo_original>
